<compile_context>
chip_gen: v6e
topology: v6e:2x2x1
jax: 0.10.0
libtpu: 0.0.40
codegen_flags: <defaults>
</compile_context>

<pallas_src>
import numpy as np
import jax
import jax.numpy as jnp
from jax.experimental import pallas as pl
from jax.experimental.pallas import tpu as pltpu


def _round_up(x, m):
    return (x + m - 1) // m * m


def edgeconv_kernel(off_ref, cnt_ref, dst_ref, diff_ref, wt_ref, out_ref):
    """Per-destination segment-max of Theta_lin(x_dst - x_src).

    Grid: (node_tile ["parallel"], edge_tile ["arbitrary"]).  out_ref is the (tn, Dout)
    running-max accumulator, resident across the edge-tile axis.
    """
    nt = pl.program_id(0)
    et = pl.program_id(1)
    tn = out_ref.shape[0]

    # First edge tile of this node tile: reset the running max.
    @pl.when(et == 0)
    def _():
        out_ref[...] = jnp.full(out_ref.shape, -jnp.inf, dtype=out_ref.dtype)

    # Skip edge tiles beyond this node tile's bucket (prefetched per-tile counts).
    @pl.when(et < cnt_ref[nt])
    def _():
        # Theta_lin for this edge tile: bf16 operands, f32 accumulation on the MXU.
        # (The Theta bias commutes with max and is added once per node outside.)
        theta = jnp.dot(diff_ref[...], wt_ref[...],
                        preferred_element_type=jnp.float32)            # (te, Dout_p) f32

        # Edge-major membership: dst streamed as a (te, 1) column; padding rows are -1
        # and never match a local row id in [0, tn).
        dst_local = dst_ref[...] - nt * tn                              # (te, 1) int32

        # Running segment-max, one node row at a time (2D slabs stay in vregs; no
        # (tn, te, Dout) intermediate).  f32 select/max on purpose (v5e has no bf16 VPU).
        rows = []
        for r in range(tn):                                             # static unroll
            m = dst_local == r                                          # (te, 1)
            rows.append(jnp.max(jnp.where(m, theta, -jnp.inf),
                                axis=0, keepdims=True))                 # (1, Dout_p)
        upd = jnp.concatenate(rows, axis=0)                             # (tn, Dout_p)
        out_ref[...] = jnp.maximum(out_ref[...], upd)


def edge_conv(h, src, dst, w_theta, b_theta, w_phi, b_phi, *, tn=16, te=512):
    """EdgeConv forward (batch_norm=False).

    h: (N, Din) f32 node features; src/dst: (E,) int32 edge endpoints (dst receives);
    weights pre-transposed (Din, Dout); biases (Dout,).

    With the sorted layout each edge is touched exactly once, so `tn` only sets the
    masking work per edge (tn*Dout) and the bucket padding granularity; the old N/tn
    re-streaming penalty no longer exists, hence a small tn.
    """
    N, Din = h.shape
    E = int(src.shape[0])
    Dout = w_theta.shape[1]

    din_p = _round_up(Din, 128)
    dout_p = _round_up(Dout, 128)
    num_nt = _round_up(N, tn) // tn

    # ---------------- host-side graph layout (static per graph) -------------------
    # Sort edges by destination, bucket per node tile, pad each bucket to a multiple of
    # te; build the scalar-prefetch tables and the gather/valid map for the diff stream.
    src_np = np.asarray(src).astype(np.int64)
    dst_np = np.asarray(dst).astype(np.int64)
    order = np.argsort(dst_np, kind="stable")
    dst_sorted = dst_np[order]
    bounds = np.searchsorted(dst_sorted, np.arange(num_nt + 1) * tn)
    counts = np.diff(bounds)                                 # edges per node tile
    tiles = -(-counts // te)                                 # edge tiles per node tile
    tile_off = np.concatenate([[0], np.cumsum(tiles)[:-1]]).astype(np.int32)
    total_tiles = int(max(1, int(tiles.sum())))
    max_tiles = int(max(1, int(tiles.max())))
    rows_total = total_tiles * te

    gather = np.zeros((rows_total,), np.int32)
    valid = np.zeros((rows_total,), np.bool_)
    for t in range(num_nt):
        c = int(counts[t])
        p = int(tile_off[t]) * te
        gather[p:p + c] = order[int(bounds[t]):int(bounds[t]) + c]
        valid[p:p + c] = True

    # ---------------- device-side glue (O(E*Din), plain XLA) ----------------------
    # Subtract in f32 BEFORE the bf16 cast (precision), then stream only the diff.
    diff = h[dst] - h[src]                                    # (E, Din) f32, exact
    g_idx = jnp.asarray(gather)
    v_msk = jnp.asarray(valid)
    diff_sorted = jnp.where(v_msk[:, None], diff[g_idx], 0.0)
    diff_p = (jnp.zeros((rows_total, din_p), jnp.float32)
              .at[:, :Din].set(diff_sorted).astype(jnp.bfloat16))
    dst_col = jnp.where(v_msk, dst[g_idx].astype(jnp.int32),
                        jnp.int32(-1)).reshape(rows_total, 1)

    wt = (jnp.zeros((din_p, dout_p), jnp.float32)
          .at[:Din, :Dout].set(w_theta).astype(jnp.bfloat16))

    off_arr = jnp.asarray(tile_off, dtype=jnp.int32)          # scalar-prefetch: tile offsets
    cnt_arr = jnp.asarray(tiles, dtype=jnp.int32)             # scalar-prefetch: tile counts

    def edge_map(nt_, et_, off, cnt):
        # Clamp keeps the DMA in-bounds when et_ >= cnt[nt_]; compute is skipped there.
        return (jnp.minimum(off[nt_] + et_, total_tiles - 1), 0)

    seg_max = pl.pallas_call(
        edgeconv_kernel,
        out_shape=jax.ShapeDtypeStruct((num_nt * tn, dout_p), jnp.float32),
        grid_spec=pltpu.PrefetchScalarGridSpec(
            num_scalar_prefetch=2,
            grid=(num_nt, max_tiles),
            in_specs=[
                pl.BlockSpec((te, 1), edge_map),              # dst column (edge-major)
                pl.BlockSpec((te, din_p), edge_map),          # diff rows, bf16
                pl.BlockSpec((din_p, dout_p), lambda nt_, et_, off, cnt: (0, 0)),
            ],
            out_specs=pl.BlockSpec((tn, dout_p),
                                   lambda nt_, et_, off, cnt: (nt_, 0)),
        ),
        compiler_params=pltpu.CompilerParams(
            dimension_semantics=("parallel", "arbitrary"),
            vmem_limit_bytes=32 * 1024 * 1024),
    )(off_arr, cnt_arr, dst_col, diff_p, wt)

    # Phi(x) + fused biases once per node as a single full-size XLA matmul (near-peak
    # MXU); the Theta bias commutes with the max, so it is folded in here as well.
    # TODO(synk): nodes with zero in-degree come out as -inf; DGL raises for them by
    #             default (allow_zero_in_degree=False), so in-degree >= 1 is assumed
    #             (e.g. self-loops), matching the modeled module configuration.
    phi = h @ w_phi + (b_theta + b_phi)
    return seg_max[:N, :Dout] + phi


def edge_conv_ref(h, src, dst, w_theta, b_theta, w_phi, b_phi):
    """Pure-JAX f32 reference matching the DGL EdgeConv forward."""
    theta = (h[dst] - h[src]) @ w_theta + b_theta
    phi = h @ w_phi + b_phi
    msg = theta + phi[dst]
    out = jnp.full((h.shape[0], w_theta.shape[1]), -jnp.inf, dtype=h.dtype)
    return out.at[dst].max(msg)


if __name__ == "__main__":
    N = 8
    in_feat, out_feat = 16, 32

    key = jax.random.PRNGKey(0)
    k_h, k_wt, k_bt, k_wp, k_bp = jax.random.split(key, 5)

    # node features
    h = jax.random.normal(k_h, (N, in_feat), dtype=jnp.float32)

    # small ring graph + self loops (so every node has in-degree >= 1) -> E = 16
    ring_src = jnp.arange(N, dtype=jnp.int32)
    ring_dst = (ring_src + 1) % N
    self_idx = jnp.arange(N, dtype=jnp.int32)
    src = jnp.concatenate([ring_src, self_idx])
    dst = jnp.concatenate([ring_dst, self_idx])

    # deterministic nn.Linear-style init (uniform(-1/sqrt(in), 1/sqrt(in))),
    # stored pre-transposed as (in_feat, out_feat)
    bound = 1.0 / jnp.sqrt(jnp.float32(in_feat))
    w_theta = jax.random.uniform(k_wt, (in_feat, out_feat), jnp.float32, -bound, bound)
    b_theta = jax.random.uniform(k_bt, (out_feat,), jnp.float32, -bound, bound)
    w_phi = jax.random.uniform(k_wp, (in_feat, out_feat), jnp.float32, -bound, bound)
    b_phi = jax.random.uniform(k_bp, (out_feat,), jnp.float32, -bound, bound)

    out = edge_conv(h, src, dst, w_theta, b_theta, w_phi, b_phi)
    out = jax.block_until_ready(out)

    ref = edge_conv_ref(h, src, dst, w_theta, b_theta, w_phi, b_phi)
    assert out.shape == (N, out_feat)
    # bf16 MXU operands (f32 accumulation, f32 subtract, f32 phi) vs pure-f32 reference.
    assert jnp.allclose(out, ref, atol=5e-2, rtol=5e-2), "mismatch vs JAX reference"

    print("KERNEL_OK")
</pallas_src>

<mosaic_0001>
module attributes {stable_mosaic.version = 11 : i64} {
  func.func @edgeconv_kernel(%arg0: i32, %arg1: i32, %arg2: memref<1xi32, #tpu.memory_space<smem>>, %arg3: memref<1xi32, #tpu.memory_space<smem>>, %arg4: memref<512x1xi32, #tpu.memory_space<vmem>>, %arg5: memref<512x128xbf16, #tpu.memory_space<vmem>>, %arg6: memref<128x128xbf16, #tpu.memory_space<vmem>>, %arg7: memref<16x128xf32, #tpu.memory_space<vmem>>) attributes {dimension_semantics = [#tpu.dimension_semantics<parallel>, #tpu.dimension_semantics<arbitrary>], iteration_bounds = array<i64: 1, 1>, scalar_prefetch = 2 : i64, scratch_operands = 0 : i64, tpu.core_type = #tpu.core_type<tc>, window_params = [{transform_indices = @transform_0, window_bounds = array<i64: 512, 1>}, {transform_indices = @transform_1, window_bounds = array<i64: 512, 128>}, {pipeline_mode = #tpu.pipeline_mode<synchronous>, transform_indices = @transform_2, window_bounds = array<i64: 128, 128>}, {transform_indices = @transform_3, window_bounds = array<i64: 16, 128>}]} {
    %c0_i32 = arith.constant 0 : i32
    %0 = arith.cmpi eq, %arg1, %c0_i32 : i32
    %1 = arith.extui %0 : i1 to i32
    %c0_i32_0 = arith.constant 0 : i32
    %2 = arith.cmpi ne, %1, %c0_i32_0 : i32
    scf.if %2 {
      %cst = arith.constant 0xFF800000 : f32
      %8 = vector.broadcast %cst : f32 to vector<16x128xf32>
      %c0 = arith.constant 0 : index
      %c0_2 = arith.constant 0 : index
      %9 = vector.load %arg7[%c0, %c0_2] : memref<16x128xf32, #tpu.memory_space<vmem>>, vector<16x128xf32>
      tpu.vector_store %arg7[%c0, %c0_2], %8 {strides = array<i32>} : memref<16x128xf32, #tpu.memory_space<vmem>>, vector<16x128xf32>,
    } else {
    }
    %3 = arith.index_cast %arg0 : i32 to index
    %4 = memref.load %arg3[%3] : memref<1xi32, #tpu.memory_space<smem>>
    %5 = arith.cmpi slt, %arg1, %4 : i32
    %6 = arith.extui %5 : i1 to i32
    %c0_i32_1 = arith.constant 0 : i32
    %7 = arith.cmpi ne, %6, %c0_i32_1 : i32
    scf.if %7 {
      %c0 = arith.constant 0 : index
      %c0_2 = arith.constant 0 : index
      %8 = vector.load %arg5[%c0, %c0_2] : memref<512x128xbf16, #tpu.memory_space<vmem>>, vector<512x128xbf16>
      %c0_3 = arith.constant 0 : index
      %c0_4 = arith.constant 0 : index
      %9 = vector.load %arg6[%c0_3, %c0_4] : memref<128x128xbf16, #tpu.memory_space<vmem>>, vector<128x128xbf16>
      %cst = arith.constant dense<0.000000e+00> : vector<512x128xf32>
      %10 = tpu.matmul %8, %9, %cst {dimension_numbers = #tpu.dot_dimension_numbers<[1], [0], [0], [1], [0, 0, 1, 1], [], []>} : vector<512x128xbf16>, vector<128x128xbf16>, vector<512x128xf32> -> vector<512x128xf32>
      %c0_5 = arith.constant 0 : index
      %c0_6 = arith.constant 0 : index
      %11 = vector.load %arg4[%c0_5, %c0_6] : memref<512x1xi32, #tpu.memory_space<vmem>>, vector<512x1xi32>
      %c16_i32 = arith.constant 16 : i32
      %12 = arith.muli %arg0, %c16_i32 : i32
      %13 = vector.broadcast %12 : i32 to vector<512x1xi32>
      %14 = arith.subi %11, %13 : vector<512x1xi32>
      %c0_i32_7 = arith.constant 0 : i32
      %15 = vector.broadcast %c0_i32_7 : i32 to vector<512x1xi32>
      %16 = arith.cmpi eq, %14, %15 : vector<512x1xi32>
      %cst_8 = arith.constant 0xFF800000 : f32
      %17 = vector.shape_cast %16 : vector<512x1xi1> to vector<512x1xi1>
      %18 = vector.broadcast %17 : vector<512x1xi1> to vector<512x128xi1>
      %19 = vector.broadcast %cst_8 : f32 to vector<512x128xf32>
      %20 = arith.select %18, %10, %19 : vector<512x128xi1>, vector<512x128xf32>
      %cst_9 = arith.constant dense<0xFF800000> : vector<128xf32>
      %21 = vector.multi_reduction <maximumf>, %20, %cst_9 [0] : vector<512x128xf32> to vector<128xf32>
      %22 = vector.shape_cast %21 : vector<128xf32> to vector<1x128xf32>
      %c1_i32 = arith.constant 1 : i32
      %23 = vector.broadcast %c1_i32 : i32 to vector<512x1xi32>
      %24 = arith.cmpi eq, %14, %23 : vector<512x1xi32>
      %cst_10 = arith.constant 0xFF800000 : f32
      %25 = vector.shape_cast %24 : vector<512x1xi1> to vector<512x1xi1>
      %26 = vector.broadcast %25 : vector<512x1xi1> to vector<512x128xi1>
      %27 = vector.broadcast %cst_10 : f32 to vector<512x128xf32>
      %28 = arith.select %26, %10, %27 : vector<512x128xi1>, vector<512x128xf32>
      %cst_11 = arith.constant dense<0xFF800000> : vector<128xf32>
      %29 = vector.multi_reduction <maximumf>, %28, %cst_11 [0] : vector<512x128xf32> to vector<128xf32>
      %30 = vector.shape_cast %29 : vector<128xf32> to vector<1x128xf32>
      %c2_i32 = arith.constant 2 : i32
      %31 = vector.broadcast %c2_i32 : i32 to vector<512x1xi32>
      %32 = arith.cmpi eq, %14, %31 : vector<512x1xi32>
      %cst_12 = arith.constant 0xFF800000 : f32
      %33 = vector.shape_cast %32 : vector<512x1xi1> to vector<512x1xi1>
      %34 = vector.broadcast %33 : vector<512x1xi1> to vector<512x128xi1>
      %35 = vector.broadcast %cst_12 : f32 to vector<512x128xf32>
      %36 = arith.select %34, %10, %35 : vector<512x128xi1>, vector<512x128xf32>
      %cst_13 = arith.constant dense<0xFF800000> : vector<128xf32>
      %37 = vector.multi_reduction <maximumf>, %36, %cst_13 [0] : vector<512x128xf32> to vector<128xf32>
      %38 = vector.shape_cast %37 : vector<128xf32> to vector<1x128xf32>
      %c3_i32 = arith.constant 3 : i32
      %39 = vector.broadcast %c3_i32 : i32 to vector<512x1xi32>
      %40 = arith.cmpi eq, %14, %39 : vector<512x1xi32>
      %cst_14 = arith.constant 0xFF800000 : f32
      %41 = vector.shape_cast %40 : vector<512x1xi1> to vector<512x1xi1>
      %42 = vector.broadcast %41 : vector<512x1xi1> to vector<512x128xi1>
      %43 = vector.broadcast %cst_14 : f32 to vector<512x128xf32>
      %44 = arith.select %42, %10, %43 : vector<512x128xi1>, vector<512x128xf32>
      %cst_15 = arith.constant dense<0xFF800000> : vector<128xf32>
      %45 = vector.multi_reduction <maximumf>, %44, %cst_15 [0] : vector<512x128xf32> to vector<128xf32>
      %46 = vector.shape_cast %45 : vector<128xf32> to vector<1x128xf32>
      %c4_i32 = arith.constant 4 : i32
      %47 = vector.broadcast %c4_i32 : i32 to vector<512x1xi32>
      %48 = arith.cmpi eq, %14, %47 : vector<512x1xi32>
      %cst_16 = arith.constant 0xFF800000 : f32
      %49 = vector.shape_cast %48 : vector<512x1xi1> to vector<512x1xi1>
      %50 = vector.broadcast %49 : vector<512x1xi1> to vector<512x128xi1>
      %51 = vector.broadcast %cst_16 : f32 to vector<512x128xf32>
      %52 = arith.select %50, %10, %51 : vector<512x128xi1>, vector<512x128xf32>
      %cst_17 = arith.constant dense<0xFF800000> : vector<128xf32>
      %53 = vector.multi_reduction <maximumf>, %52, %cst_17 [0] : vector<512x128xf32> to vector<128xf32>
      %54 = vector.shape_cast %53 : vector<128xf32> to vector<1x128xf32>
      %c5_i32 = arith.constant 5 : i32
      %55 = vector.broadcast %c5_i32 : i32 to vector<512x1xi32>
      %56 = arith.cmpi eq, %14, %55 : vector<512x1xi32>
      %cst_18 = arith.constant 0xFF800000 : f32
      %57 = vector.shape_cast %56 : vector<512x1xi1> to vector<512x1xi1>
      %58 = vector.broadcast %57 : vector<512x1xi1> to vector<512x128xi1>
      %59 = vector.broadcast %cst_18 : f32 to vector<512x128xf32>
      %60 = arith.select %58, %10, %59 : vector<512x128xi1>, vector<512x128xf32>
      %cst_19 = arith.constant dense<0xFF800000> : vector<128xf32>
      %61 = vector.multi_reduction <maximumf>, %60, %cst_19 [0] : vector<512x128xf32> to vector<128xf32>
      %62 = vector.shape_cast %61 : vector<128xf32> to vector<1x128xf32>
      %c6_i32 = arith.constant 6 : i32
      %63 = vector.broadcast %c6_i32 : i32 to vector<512x1xi32>
      %64 = arith.cmpi eq, %14, %63 : vector<512x1xi32>
      %cst_20 = arith.constant 0xFF800000 : f32
      %65 = vector.shape_cast %64 : vector<512x1xi1> to vector<512x1xi1>
      %66 = vector.broadcast %65 : vector<512x1xi1> to vector<512x128xi1>
      %67 = vector.broadcast %cst_20 : f32 to vector<512x128xf32>
      %68 = arith.select %66, %10, %67 : vector<512x128xi1>, vector<512x128xf32>
      %cst_21 = arith.constant dense<0xFF800000> : vector<128xf32>
      %69 = vector.multi_reduction <maximumf>, %68, %cst_21 [0] : vector<512x128xf32> to vector<128xf32>
      %70 = vector.shape_cast %69 : vector<128xf32> to vector<1x128xf32>
      %c7_i32 = arith.constant 7 : i32
      %71 = vector.broadcast %c7_i32 : i32 to vector<512x1xi32>
      %72 = arith.cmpi eq, %14, %71 : vector<512x1xi32>
      %cst_22 = arith.constant 0xFF800000 : f32
      %73 = vector.shape_cast %72 : vector<512x1xi1> to vector<512x1xi1>
      %74 = vector.broadcast %73 : vector<512x1xi1> to vector<512x128xi1>
      %75 = vector.broadcast %cst_22 : f32 to vector<512x128xf32>
      %76 = arith.select %74, %10, %75 : vector<512x128xi1>, vector<512x128xf32>
      %cst_23 = arith.constant dense<0xFF800000> : vector<128xf32>
      %77 = vector.multi_reduction <maximumf>, %76, %cst_23 [0] : vector<512x128xf32> to vector<128xf32>
      %78 = vector.shape_cast %77 : vector<128xf32> to vector<1x128xf32>
      %c8_i32 = arith.constant 8 : i32
      %79 = vector.broadcast %c8_i32 : i32 to vector<512x1xi32>
      %80 = arith.cmpi eq, %14, %79 : vector<512x1xi32>
      %cst_24 = arith.constant 0xFF800000 : f32
      %81 = vector.shape_cast %80 : vector<512x1xi1> to vector<512x1xi1>
      %82 = vector.broadcast %81 : vector<512x1xi1> to vector<512x128xi1>
      %83 = vector.broadcast %cst_24 : f32 to vector<512x128xf32>
      %84 = arith.select %82, %10, %83 : vector<512x128xi1>, vector<512x128xf32>
      %cst_25 = arith.constant dense<0xFF800000> : vector<128xf32>
      %85 = vector.multi_reduction <maximumf>, %84, %cst_25 [0] : vector<512x128xf32> to vector<128xf32>
      %86 = vector.shape_cast %85 : vector<128xf32> to vector<1x128xf32>
      %c9_i32 = arith.constant 9 : i32
      %87 = vector.broadcast %c9_i32 : i32 to vector<512x1xi32>
      %88 = arith.cmpi eq, %14, %87 : vector<512x1xi32>
      %cst_26 = arith.constant 0xFF800000 : f32
      %89 = vector.shape_cast %88 : vector<512x1xi1> to vector<512x1xi1>
      %90 = vector.broadcast %89 : vector<512x1xi1> to vector<512x128xi1>
      %91 = vector.broadcast %cst_26 : f32 to vector<512x128xf32>
      %92 = arith.select %90, %10, %91 : vector<512x128xi1>, vector<512x128xf32>
      %cst_27 = arith.constant dense<0xFF800000> : vector<128xf32>
      %93 = vector.multi_reduction <maximumf>, %92, %cst_27 [0] : vector<512x128xf32> to vector<128xf32>
      %94 = vector.shape_cast %93 : vector<128xf32> to vector<1x128xf32>
      %c10_i32 = arith.constant 10 : i32
      %95 = vector.broadcast %c10_i32 : i32 to vector<512x1xi32>
      %96 = arith.cmpi eq, %14, %95 : vector<512x1xi32>
      %cst_28 = arith.constant 0xFF800000 : f32
      %97 = vector.shape_cast %96 : vector<512x1xi1> to vector<512x1xi1>
      %98 = vector.broadcast %97 : vector<512x1xi1> to vector<512x128xi1>
      %99 = vector.broadcast %cst_28 : f32 to vector<512x128xf32>
      %100 = arith.select %98, %10, %99 : vector<512x128xi1>, vector<512x128xf32>
      %cst_29 = arith.constant dense<0xFF800000> : vector<128xf32>
      %101 = vector.multi_reduction <maximumf>, %100, %cst_29 [0] : vector<512x128xf32> to vector<128xf32>
      %102 = vector.shape_cast %101 : vector<128xf32> to vector<1x128xf32>
      %c11_i32 = arith.constant 11 : i32
      %103 = vector.broadcast %c11_i32 : i32 to vector<512x1xi32>
      %104 = arith.cmpi eq, %14, %103 : vector<512x1xi32>
      %cst_30 = arith.constant 0xFF800000 : f32
      %105 = vector.shape_cast %104 : vector<512x1xi1> to vector<512x1xi1>
      %106 = vector.broadcast %105 : vector<512x1xi1> to vector<512x128xi1>
      %107 = vector.broadcast %cst_30 : f32 to vector<512x128xf32>
      %108 = arith.select %106, %10, %107 : vector<512x128xi1>, vector<512x128xf32>
      %cst_31 = arith.constant dense<0xFF800000> : vector<128xf32>
      %109 = vector.multi_reduction <maximumf>, %108, %cst_31 [0] : vector<512x128xf32> to vector<128xf32>
      %110 = vector.shape_cast %109 : vector<128xf32> to vector<1x128xf32>
      %c12_i32 = arith.constant 12 : i32
      %111 = vector.broadcast %c12_i32 : i32 to vector<512x1xi32>
      %112 = arith.cmpi eq, %14, %111 : vector<512x1xi32>
      %cst_32 = arith.constant 0xFF800000 : f32
      %113 = vector.shape_cast %112 : vector<512x1xi1> to vector<512x1xi1>
      %114 = vector.broadcast %113 : vector<512x1xi1> to vector<512x128xi1>
      %115 = vector.broadcast %cst_32 : f32 to vector<512x128xf32>
      %116 = arith.select %114, %10, %115 : vector<512x128xi1>, vector<512x128xf32>
      %cst_33 = arith.constant dense<0xFF800000> : vector<128xf32>
      %117 = vector.multi_reduction <maximumf>, %116, %cst_33 [0] : vector<512x128xf32> to vector<128xf32>
      %118 = vector.shape_cast %117 : vector<128xf32> to vector<1x128xf32>
      %c13_i32 = arith.constant 13 : i32
      %119 = vector.broadcast %c13_i32 : i32 to vector<512x1xi32>
      %120 = arith.cmpi eq, %14, %119 : vector<512x1xi32>
      %cst_34 = arith.constant 0xFF800000 : f32
      %121 = vector.shape_cast %120 : vector<512x1xi1> to vector<512x1xi1>
      %122 = vector.broadcast %121 : vector<512x1xi1> to vector<512x128xi1>
      %123 = vector.broadcast %cst_34 : f32 to vector<512x128xf32>
      %124 = arith.select %122, %10, %123 : vector<512x128xi1>, vector<512x128xf32>
      %cst_35 = arith.constant dense<0xFF800000> : vector<128xf32>
      %125 = vector.multi_reduction <maximumf>, %124, %cst_35 [0] : vector<512x128xf32> to vector<128xf32>
      %126 = vector.shape_cast %125 : vector<128xf32> to vector<1x128xf32>
      %c14_i32 = arith.constant 14 : i32
      %127 = vector.broadcast %c14_i32 : i32 to vector<512x1xi32>
      %128 = arith.cmpi eq, %14, %127 : vector<512x1xi32>
      %cst_36 = arith.constant 0xFF800000 : f32
      %129 = vector.shape_cast %128 : vector<512x1xi1> to vector<512x1xi1>
      %130 = vector.broadcast %129 : vector<512x1xi1> to vector<512x128xi1>
      %131 = vector.broadcast %cst_36 : f32 to vector<512x128xf32>
      %132 = arith.select %130, %10, %131 : vector<512x128xi1>, vector<512x128xf32>
      %cst_37 = arith.constant dense<0xFF800000> : vector<128xf32>
      %133 = vector.multi_reduction <maximumf>, %132, %cst_37 [0] : vector<512x128xf32> to vector<128xf32>
      %134 = vector.shape_cast %133 : vector<128xf32> to vector<1x128xf32>
      %c15_i32 = arith.constant 15 : i32
      %135 = vector.broadcast %c15_i32 : i32 to vector<512x1xi32>
      %136 = arith.cmpi eq, %14, %135 : vector<512x1xi32>
      %cst_38 = arith.constant 0xFF800000 : f32
      %137 = vector.shape_cast %136 : vector<512x1xi1> to vector<512x1xi1>
      %138 = vector.broadcast %137 : vector<512x1xi1> to vector<512x128xi1>
      %139 = vector.broadcast %cst_38 : f32 to vector<512x128xf32>
      %140 = arith.select %138, %10, %139 : vector<512x128xi1>, vector<512x128xf32>
      %cst_39 = arith.constant dense<0xFF800000> : vector<128xf32>
      %141 = vector.multi_reduction <maximumf>, %140, %cst_39 [0] : vector<512x128xf32> to vector<128xf32>
      %142 = vector.shape_cast %141 : vector<128xf32> to vector<1x128xf32>
      %143 = tpu.concatenate %22, %30, %38, %46, %54, %62, %70, %78, %86, %94, %102, %110, %118, %126, %134, %142 in 0 : vector<1x128xf32>, vector<1x128xf32>, vector<1x128xf32>, vector<1x128xf32>, vector<1x128xf32>, vector<1x128xf32>, vector<1x128xf32>, vector<1x128xf32>, vector<1x128xf32>, vector<1x128xf32>, vector<1x128xf32>, vector<1x128xf32>, vector<1x128xf32>, vector<1x128xf32>, vector<1x128xf32>, vector<1x128xf32> -> vector<16x128xf32>
      %c0_40 = arith.constant 0 : index
      %c0_41 = arith.constant 0 : index
      %144 = vector.load %arg7[%c0_40, %c0_41] : memref<16x128xf32, #tpu.memory_space<vmem>>, vector<16x128xf32>
      %145 = arith.maximumf %144, %143 : vector<16x128xf32>
      %c0_42 = arith.constant 0 : index
      %c0_43 = arith.constant 0 : index
      %146 = vector.load %arg7[%c0_42, %c0_43] : memref<16x128xf32, #tpu.memory_space<vmem>>, vector<16x128xf32>
      tpu.vector_store %arg7[%c0_42, %c0_43], %145 {strides = array<i32>} : memref<16x128xf32, #tpu.memory_space<vmem>>, vector<16x128xf32>,
    } else {
    }
    return
  }
  func.func @transform_0(%arg0: i32, %arg1: i32, %arg2: memref<1xi32, #tpu.memory_space<smem>>, %arg3: memref<1xi32, #tpu.memory_space<smem>>) -> (i32, i32) {
    %0 = arith.index_cast %arg0 : i32 to index
    %1 = memref.load %arg2[%0] : memref<1xi32, #tpu.memory_space<smem>>
    %2 = arith.addi %1, %arg1 : i32
    %c0_i32 = arith.constant 0 : i32
    %3 = arith.minsi %2, %c0_i32 : i32
    %c0_i32_0 = arith.constant 0 : i32
    %c0_i32_1 = arith.constant 0 : i32
    return %3, %c0_i32_0 : i32, i32
  }
  func.func @transform_1(%arg0: i32, %arg1: i32, %arg2: memref<1xi32, #tpu.memory_space<smem>>, %arg3: memref<1xi32, #tpu.memory_space<smem>>) -> (i32, i32) {
    %0 = arith.index_cast %arg0 : i32 to index
    %1 = memref.load %arg2[%0] : memref<1xi32, #tpu.memory_space<smem>>
    %2 = arith.addi %1, %arg1 : i32
    %c0_i32 = arith.constant 0 : i32
    %3 = arith.minsi %2, %c0_i32 : i32
    %c0_i32_0 = arith.constant 0 : i32
    %c0_i32_1 = arith.constant 0 : i32
    return %3, %c0_i32_0 : i32, i32
  }
  func.func @transform_2(%arg0: i32, %arg1: i32, %arg2: memref<1xi32, #tpu.memory_space<smem>>, %arg3: memref<1xi32, #tpu.memory_space<smem>>) -> (i32, i32) {
    %c0_i32 = arith.constant 0 : i32
    %c0_i32_0 = arith.constant 0 : i32
    %c0_i32_1 = arith.constant 0 : i32
    return %c0_i32, %c0_i32_0 : i32, i32
  }
  func.func @transform_3(%arg0: i32, %arg1: i32, %arg2: memref<1xi32, #tpu.memory_space<smem>>, %arg3: memref<1xi32, #tpu.memory_space<smem>>) -> (i32, i32) {
    %c0_i32 = arith.constant 0 : i32
    %c0_i32_0 = arith.constant 0 : i32
    return %arg0, %c0_i32 : i32, i32
  }
}

</mosaic_0001>

<llo_original>
// kernel: tpu_custom_call.1
$region0: #{tpu_custom_call.1}
  #allocation0 [shape = 'u32[]', space=smem, size = 0x4, offset = 0x4, fixed_abs, tag = 'smem constant byte address 0x4 - core index']
  #allocation1 [shape = 'u32[144,128]{1,0:T(1,128)}', space=vmem, size = 0x12000, scoped, tag = 'internal scratch']
  #allocation2 [shape = 's32[1]{0}', space=sflag, size = 0x4, scoped, tag = 'scoped memory for tpu_custom_call.1']
  #allocation3 [shape = 's32[1]{0:T(128)S(6)}', space=smem, size = 0x200, scoped, tag = 'prefetched SMEM operand 0']
  #allocation4 [shape = 's32[1]{0:T(128)S(6)}', space=smem, size = 0x200, scoped, tag = 'prefetched SMEM operand 1']
  %s0 = inlined_call_operand.<no memory space> [shape: s32[1], index: 0, kind: input, shape index: {}]
  %s1 = inlined_call_operand.<no memory space> [shape: s32[1], index: 1, kind: input, shape index: {}]
  %s2 = inlined_call_operand.vmem [shape: s32[512,1], index: 2, kind: input, shape index: {}]
  %s3 = inlined_call_operand.vmem [shape: bf16[512,128], index: 3, kind: input, shape index: {}]
  %s4 = inlined_call_operand.vmem [shape: bf16[128,128], index: 4, kind: input, shape index: {}]
  %s5 = inlined_call_operand.hbm [shape: f32[16,128], index: 5, kind: output, shape index: {}]
  %s6 = sld [smem:[#allocation0]]
  $region30: #{tpu_custom_call.1} parent=0
    _
  %s8 = ssub.s32 1, %s6
  %s9 = scalar_select 0, %s8, %s6
  %10 = sst [smem:[#allocation3]] %s0
  %11 = sst [smem:[#allocation4]] %s1
  $region1: #{tpu_custom_call.1} parent=0
    #allocation5 [shape = 'u8[8192]{0}', space=vmem, size = 0x2000, scoped, tag = 'output window, operand 0, single buffered']
    #allocation6 [shape = 's32[1]{0}', space=sflag, size = 0x4, scoped, tag = 'scoped memory for tpu_custom_call.1']
    %12 = vsyncpa [#allocation6], 0
    // Predicated region
    $region2: #{tpu_custom_call.1} parent=1 // pred_check
      _
    $region3: #{tpu_custom_call.1} parent=1 // pred_check_branch
      %14 = sbr.rel (0) target = $region5
    $region4: #{tpu_custom_call.1} parent=1 // pred_region
      %s15 = sld [smem:[#allocation3]]
      %s16 = sadd.s32 %s15, 0
      %p17 = scmp.lt.s32.totalorder %s16, 0
      %s18 = scalar_select %p17, %s16, 0
      %s19 = smul.u32 64, %s18
      %p20 = scmp.lt.s32.totalorder %s19, 63
      %s21 = scalar_select %p20, %s19, 63
      %s22 = smul.addr %s21, 8
      %s23 = scalar_lea.vmem %s2, %s22
      %s24 = sld [smem:[#allocation3]]
      %s25 = sadd.s32 %s24, 0
      %p26 = scmp.lt.s32.totalorder %s25, 0
      %s27 = scalar_select %p26, %s25, 0
      %s28 = smul.u32 64, %s27
    $region5: #{tpu_custom_call.1} parent=1 // pred_fallthru
      _
    // Predicated region
    $region6: #{tpu_custom_call.1} parent=1 // pred_check
      _
    $region7: #{tpu_custom_call.1} parent=1 // pred_check_branch
      %30 = sbr.rel (0) target = $region9
    $region8: #{tpu_custom_call.1} parent=1 // pred_region
      %s31 = sld [smem:[#allocation3]]
      %s32 = sadd.s32 %s31, 0
      %p33 = scmp.lt.s32.totalorder %s32, 0
      %s34 = scalar_select %p33, %s32, 0
      %s35 = smul.u32 64, %s34
      %p36 = scmp.lt.s32.totalorder %s35, 63
      %s37 = scalar_select %p36, %s35, 63
      %s38 = smul.addr %s37, 4
      %s39 = scalar_lea.vmem %s3, %s38
      %s40 = sld [smem:[#allocation3]]
      %s41 = sadd.s32 %s40, 0
      %p42 = scmp.lt.s32.totalorder %s41, 0
      %s43 = scalar_select %p42, %s41, 0
      %s44 = smul.u32 64, %s43
    $region9: #{tpu_custom_call.1} parent=1 // pred_fallthru
      _
    // Predicated region
    $region10: #{tpu_custom_call.1} parent=1 // pred_check
      _
    $region11: #{tpu_custom_call.1} parent=1 // pred_check_branch
      %46 = sbr.rel (0) target = $region13
    $region12: #{tpu_custom_call.1} parent=1 // pred_region
      _
    $region13: #{tpu_custom_call.1} parent=1 // pred_fallthru
      _
    %s47 = sld [smem:[#allocation3]]
    %s48 = sadd.s32 %s47, 0
    %p49 = scmp.lt.s32.totalorder %s48, 0
    %s50 = scalar_select %p49, %s48, 0
    %s51 = smul.u32 64, %s50
    %p52 = scmp.lt.s32.totalorder %s51, 63
    %s53 = scalar_select %p52, %s51, 63
    %s54 = smul.addr %s53, 8
    %s55 = scalar_lea.vmem %s2, %s54
    %s56 = sld [smem:[#allocation3]]
    %s57 = sadd.s32 %s56, 0
    %p58 = scmp.lt.s32.totalorder %s57, 0
    %s59 = scalar_select %p58, %s57, 0
    %s60 = smul.u32 64, %s59
    %p61 = scmp.lt.s32.totalorder %s60, 63
    %s62 = scalar_select %p61, %s60, 63
    %s63 = smul.addr %s62, 4
    %s64 = scalar_lea.vmem %s3, %s63
    %s65 = sld [smem:[#allocation3]]
    %s66 = sadd.s32 %s65, 0
    %p67 = scmp.lt.s32.totalorder %s66, 0
    %s68 = scalar_select %p67, %s66, 0
    %s69 = smul.u32 64, %s68
    %p70 = scmp.lt.s32.totalorder %s69, 63
    %s71 = scalar_select %p70, %s69, 63
    %s72 = smul.addr %s71, 8
    %s73 = scalar_lea.vmem %s2, %s72
    %s74 = sld [smem:[#allocation3]]
    %s75 = sadd.s32 %s74, 0
    %p76 = scmp.lt.s32.totalorder %s75, 0
    %s77 = scalar_select %p76, %s75, 0
    %s78 = smul.u32 64, %s77
    %s79 = sld [smem:[#allocation3]]
    %s80 = sadd.s32 %s79, 0
    %p81 = scmp.lt.s32.totalorder %s80, 0
    %s82 = scalar_select %p81, %s80, 0
    %s83 = smul.u32 64, %s82
    %p84 = scmp.lt.s32.totalorder %s83, 63
    %s85 = scalar_select %p84, %s83, 63
    %s86 = smul.addr %s85, 4
    %s87 = scalar_lea.vmem %s3, %s86
    %s88 = sld [smem:[#allocation3]]
    %s89 = sadd.s32 %s88, 0
    %p90 = scmp.lt.s32.totalorder %s89, 0
    %s91 = scalar_select %p90, %s89, 0
    %s92 = smul.u32 64, %s91
    %p94 = scmp.eq.s32.totalorder 0, 0
    // Predicated region
    $region14: #{tpu_custom_call.1} parent=1 // pred_check
      %p95 = pneg %p94
    $region15: #{tpu_custom_call.1} parent=1 // pred_check_branch
      %97 = sbr.rel (%p95) target = $region17
    $region16: #{tpu_custom_call.1} parent=1 // pred_region
      %98 = vst [vmem:[#allocation5] sm:$0xff] -inf
      %99 = vst [vmem:[#allocation5 + $0x8] sm:$0xff] -inf
    $region17: #{tpu_custom_call.1} parent=1 // pred_fallthru
      _
    %s100 = sld [smem:[#allocation4]]
    %p101 = scmp.lt.s32.totalorder 0, %s100
    // Predicated region
    $region18: #{tpu_custom_call.1} parent=1 // pred_check
      %p102 = pneg %p101
    $region19: #{tpu_custom_call.1} parent=1 // pred_check_branch
      %104 = sbr.rel (%p102) target = $region21
    $region20: #{tpu_custom_call.1} parent=1 // pred_region
      %v105 = vld [vmem:[%s87] sm:$0xf]
      %v106 = vld [vmem:[%s87 + $0x4] sm:$0xf]
      %v107 = vld [vmem:[%s87 + $0x8] sm:$0xf]
      %v108 = vld [vmem:[%s87 + $0xc] sm:$0xf]
      %v109 = vld [vmem:[%s87 + $0x10] sm:$0xf]
      %v110 = vld [vmem:[%s87 + $0x14] sm:$0xf]
      %v111 = vld [vmem:[%s87 + $0x18] sm:$0xf]
      %v112 = vld [vmem:[%s87 + $0x1c] sm:$0xf]
      %v113 = vld [vmem:[%s87 + $0x20] sm:$0xf]
      %v114 = vld [vmem:[%s87 + $0x24] sm:$0xf]
      %v115 = vld [vmem:[%s87 + $0x28] sm:$0xf]
      %v116 = vld [vmem:[%s87 + $0x2c] sm:$0xf]
      %v117 = vld [vmem:[%s87 + $0x30] sm:$0xf]
      %v118 = vld [vmem:[%s87 + $0x34] sm:$0xf]
      %v119 = vld [vmem:[%s87 + $0x38] sm:$0xf]
      %v120 = vld [vmem:[%s87 + $0x3c] sm:$0xf]
      %v121 = vld [vmem:[%s87 + $0x40] sm:$0xf]
      %v122 = vld [vmem:[%s87 + $0x44] sm:$0xf]
      %v123 = vld [vmem:[%s87 + $0x48] sm:$0xf]
      %v124 = vld [vmem:[%s87 + $0x4c] sm:$0xf]
      %v125 = vld [vmem:[%s87 + $0x50] sm:$0xf]
      %v126 = vld [vmem:[%s87 + $0x54] sm:$0xf]
      %v127 = vld [vmem:[%s87 + $0x58] sm:$0xf]
      %v128 = vld [vmem:[%s87 + $0x5c] sm:$0xf]
      %v129 = vld [vmem:[%s87 + $0x60] sm:$0xf]
      %v130 = vld [vmem:[%s87 + $0x64] sm:$0xf]
      %v131 = vld [vmem:[%s87 + $0x68] sm:$0xf]
      %v132 = vld [vmem:[%s87 + $0x6c] sm:$0xf]
      %v133 = vld [vmem:[%s87 + $0x70] sm:$0xf]
      %v134 = vld [vmem:[%s87 + $0x74] sm:$0xf]
      %v135 = vld [vmem:[%s87 + $0x78] sm:$0xf]
      %v136 = vld [vmem:[%s87 + $0x7c] sm:$0xf]
      %v137 = vld [vmem:[%s87 + $0x80] sm:$0xf]
      %v138 = vld [vmem:[%s87 + $0x84] sm:$0xf]
      %v139 = vld [vmem:[%s87 + $0x88] sm:$0xf]
      %v140 = vld [vmem:[%s87 + $0x8c] sm:$0xf]
      %v141 = vld [vmem:[%s87 + $0x90] sm:$0xf]
      %v142 = vld [vmem:[%s87 + $0x94] sm:$0xf]
      %v143 = vld [vmem:[%s87 + $0x98] sm:$0xf]
      %v144 = vld [vmem:[%s87 + $0x9c] sm:$0xf]
      %v145 = vld [vmem:[%s87 + $0xa0] sm:$0xf]
      %v146 = vld [vmem:[%s87 + $0xa4] sm:$0xf]
      %v147 = vld [vmem:[%s87 + $0xa8] sm:$0xf]
      %v148 = vld [vmem:[%s87 + $0xac] sm:$0xf]
      %v149 = vld [vmem:[%s87 + $0xb0] sm:$0xf]
      %v150 = vld [vmem:[%s87 + $0xb4] sm:$0xf]
      %v151 = vld [vmem:[%s87 + $0xb8] sm:$0xf]
      %v152 = vld [vmem:[%s87 + $0xbc] sm:$0xf]
      %v153 = vld [vmem:[%s87 + $0xc0] sm:$0xf]
      %v154 = vld [vmem:[%s87 + $0xc4] sm:$0xf]
      %v155 = vld [vmem:[%s87 + $0xc8] sm:$0xf]
      %v156 = vld [vmem:[%s87 + $0xcc] sm:$0xf]
      %v157 = vld [vmem:[%s87 + $0xd0] sm:$0xf]
      %v158 = vld [vmem:[%s87 + $0xd4] sm:$0xf]
      %v159 = vld [vmem:[%s87 + $0xd8] sm:$0xf]
      %v160 = vld [vmem:[%s87 + $0xdc] sm:$0xf]
      %v161 = vld [vmem:[%s87 + $0xe0] sm:$0xf]
      %v162 = vld [vmem:[%s87 + $0xe4] sm:$0xf]
      %v163 = vld [vmem:[%s87 + $0xe8] sm:$0xf]
      %v164 = vld [vmem:[%s87 + $0xec] sm:$0xf]
      %v165 = vld [vmem:[%s87 + $0xf0] sm:$0xf]
      %v166 = vld [vmem:[%s87 + $0xf4] sm:$0xf]
      %v167 = vld [vmem:[%s87 + $0xf8] sm:$0xf]
      %v168 = vld [vmem:[%s87 + $0xfc] sm:$0xf]
      %v169 = vld [vmem:[%s4] sm:$0xf]
      %v170 = vld [vmem:[%s4 + $0x4] sm:$0xf]
      %v171 = vld [vmem:[%s4 + $0x8] sm:$0xf]
      %v172 = vld [vmem:[%s4 + $0xc] sm:$0xf]
      %v173 = vld [vmem:[%s4 + $0x10] sm:$0xf]
      %v174 = vld [vmem:[%s4 + $0x14] sm:$0xf]
      %v175 = vld [vmem:[%s4 + $0x18] sm:$0xf]
      %v176 = vld [vmem:[%s4 + $0x1c] sm:$0xf]
      %v177 = vld [vmem:[%s4 + $0x20] sm:$0xf]
      %v178 = vld [vmem:[%s4 + $0x24] sm:$0xf]
      %v179 = vld [vmem:[%s4 + $0x28] sm:$0xf]
      %v180 = vld [vmem:[%s4 + $0x2c] sm:$0xf]
      %v181 = vld [vmem:[%s4 + $0x30] sm:$0xf]
      %v182 = vld [vmem:[%s4 + $0x34] sm:$0xf]
      %v183 = vld [vmem:[%s4 + $0x38] sm:$0xf]
      %v184 = vld [vmem:[%s4 + $0x3c] sm:$0xf]
      %v249 = vunpack.c.l.b16 %v105
      %v250 = vunpack.c.l.b16 %v106
      %v251 = vunpack.c.l.b16 %v107
      %v252 = vunpack.c.l.b16 %v108
      %v253 = vunpack.c.l.b16 %v109
      %v254 = vunpack.c.l.b16 %v110
      %v255 = vunpack.c.l.b16 %v111
      %v256 = vunpack.c.l.b16 %v112
      %v257 = vunpack.c.l.b16 %v113
      %v258 = vunpack.c.l.b16 %v114
      %v259 = vunpack.c.l.b16 %v115
      %v260 = vunpack.c.l.b16 %v116
      %v261 = vunpack.c.l.b16 %v117
      %v262 = vunpack.c.l.b16 %v118
      %v263 = vunpack.c.l.b16 %v119
      %v264 = vunpack.c.l.b16 %v120
      %v265 = vunpack.c.l.b16 %v121
      %v266 = vunpack.c.l.b16 %v122
      %v267 = vunpack.c.l.b16 %v123
      %v268 = vunpack.c.l.b16 %v124
      %v269 = vunpack.c.l.b16 %v125
      %v270 = vunpack.c.l.b16 %v126
      %v271 = vunpack.c.l.b16 %v127
      %v272 = vunpack.c.l.b16 %v128
      %v273 = vunpack.c.l.b16 %v129
      %v274 = vunpack.c.l.b16 %v130
      %v275 = vunpack.c.l.b16 %v131
      %v276 = vunpack.c.l.b16 %v132
      %v277 = vunpack.c.l.b16 %v133
      %v278 = vunpack.c.l.b16 %v134
      %v279 = vunpack.c.l.b16 %v135
      %v280 = vunpack.c.l.b16 %v136
      %v281 = vunpack.c.l.b16 %v137
      %v282 = vunpack.c.l.b16 %v138
      %v283 = vunpack.c.l.b16 %v139
      %v284 = vunpack.c.l.b16 %v140
      %v285 = vunpack.c.l.b16 %v141
      %v286 = vunpack.c.l.b16 %v142
      %v287 = vunpack.c.l.b16 %v143
      %v288 = vunpack.c.l.b16 %v144
      %v289 = vunpack.c.l.b16 %v145
      %v290 = vunpack.c.l.b16 %v146
      %v291 = vunpack.c.l.b16 %v147
      %v292 = vunpack.c.l.b16 %v148
      %v293 = vunpack.c.l.b16 %v149
      %v294 = vunpack.c.l.b16 %v150
      %v295 = vunpack.c.l.b16 %v151
      %v296 = vunpack.c.l.b16 %v152
      %v297 = vunpack.c.l.b16 %v153
      %v298 = vunpack.c.l.b16 %v154
      %v299 = vunpack.c.l.b16 %v155
      %v300 = vunpack.c.l.b16 %v156
      %v301 = vunpack.c.l.b16 %v157
      %v302 = vunpack.c.l.b16 %v158
      %v303 = vunpack.c.l.b16 %v159
      %v304 = vunpack.c.l.b16 %v160
      %v305 = vunpack.c.l.b16 %v161
      %v306 = vunpack.c.l.b16 %v162
      %v307 = vunpack.c.l.b16 %v163
      %v308 = vunpack.c.l.b16 %v164
      %v309 = vunpack.c.l.b16 %v165
      %v310 = vunpack.c.l.b16 %v166
      %v311 = vunpack.c.l.b16 %v167
      %v312 = vunpack.c.l.b16 %v168
      %v313 = vpack.c.b16 %v250, %v249
      %v314 = vpack.c.b16 %v252, %v251
      %v315 = vpack.c.b16 %v254, %v253
      %v316 = vpack.c.b16 %v256, %v255
      %v317 = vpack.c.b16 %v258, %v257
      %v318 = vpack.c.b16 %v260, %v259
      %v319 = vpack.c.b16 %v262, %v261
      %v320 = vpack.c.b16 %v264, %v263
      %v321 = vpack.c.b16 %v266, %v265
      %v322 = vpack.c.b16 %v268, %v267
      %v323 = vpack.c.b16 %v270, %v269
      %v324 = vpack.c.b16 %v272, %v271
      %v325 = vpack.c.b16 %v274, %v273
      %v326 = vpack.c.b16 %v276, %v275
      %v327 = vpack.c.b16 %v278, %v277
      %v328 = vpack.c.b16 %v280, %v279
      %v329 = vpack.c.b16 %v282, %v281
      %v330 = vpack.c.b16 %v284, %v283
      %v331 = vpack.c.b16 %v286, %v285
      %v332 = vpack.c.b16 %v288, %v287
      %v333 = vpack.c.b16 %v290, %v289
      %v334 = vpack.c.b16 %v292, %v291
      %v335 = vpack.c.b16 %v294, %v293
      %v336 = vpack.c.b16 %v296, %v295
      %v337 = vpack.c.b16 %v298, %v297
      %v338 = vpack.c.b16 %v300, %v299
      %v339 = vpack.c.b16 %v302, %v301
      %v340 = vpack.c.b16 %v304, %v303
      %v341 = vpack.c.b16 %v306, %v305
      %v342 = vpack.c.b16 %v308, %v307
      %v343 = vpack.c.b16 %v310, %v309
      %v344 = vpack.c.b16 %v312, %v311
      %v393 = vunpack.c.l.b16 %v169
      %v394 = vunpack.c.l.b16 %v170
      %v395 = vunpack.c.l.b16 %v171
      %v396 = vunpack.c.l.b16 %v172
      %v397 = vunpack.c.l.b16 %v173
      %v398 = vunpack.c.l.b16 %v174
      %v399 = vunpack.c.l.b16 %v175
      %v400 = vunpack.c.l.b16 %v176
      %v401 = vunpack.c.l.b16 %v177
      %v402 = vunpack.c.l.b16 %v178
      %v403 = vunpack.c.l.b16 %v179
      %v404 = vunpack.c.l.b16 %v180
      %v405 = vunpack.c.l.b16 %v181
      %v406 = vunpack.c.l.b16 %v182
      %v407 = vunpack.c.l.b16 %v183
      %v408 = vunpack.c.l.b16 %v184
      %v409 = vpack.c.b16 %v394, %v393
      %v410 = vpack.c.b16 %v396, %v395
      %v411 = vpack.c.b16 %v398, %v397
      %v412 = vpack.c.b16 %v400, %v399
      %v413 = vpack.c.b16 %v402, %v401
      %v414 = vpack.c.b16 %v404, %v403
      %v415 = vpack.c.b16 %v406, %v405
      %v416 = vpack.c.b16 %v408, %v407
      %425 = vmatprep.subr.bf16.mxu0 0
      %426 = vmatpush1.bf16.msra.mxu0 %v416
      %427 = vmatprep.subr.bf16.mxu0 0
      %428 = vmatpush1.bf16.msra.mxu0 %v415
      %429 = vmatprep.subr.bf16.mxu0 0
      %430 = vmatpush1.bf16.msra.mxu0 %v414
      %431 = vmatprep.subr.bf16.mxu0 0
      %432 = vmatpush1.bf16.msra.mxu0 %v413
      %433 = vmatprep.subr.bf16.mxu0 0
      %434 = vmatpush1.bf16.msra.mxu0 %v412
      %435 = vmatprep.subr.bf16.mxu0 0
      %436 = vmatpush1.bf16.msra.mxu0 %v411
      %437 = vmatprep.subr.bf16.mxu0 0
      %438 = vmatpush1.bf16.msra.mxu0 %v410
      %439 = vmatprep.subr.bf16.mxu0 0
      %440 = vmatpush1.bf16.msra.mxu0 %v409
      %441 = vmatprep.subr.bf16.mxu0 0
      %442 = vmatpush2.bf16.msra.mxu0 0
      %443 = vmatprep.subr.bf16.mxu0 0
      %444 = vmatpush2.bf16.msra.mxu0 0
      %445 = vmatprep.subr.bf16.mxu0 0
      %446 = vmatpush2.bf16.msra.mxu0 0
      %447 = vmatprep.subr.bf16.mxu0 0
      %448 = vmatpush2.bf16.msra.mxu0 0
      %449 = vmatprep.subr.bf16.mxu0 0
      %450 = vmatpush2.bf16.msra.mxu0 0
      %451 = vmatprep.subr.bf16.mxu0 0
      %452 = vmatpush2.bf16.msra.mxu0 0
      %453 = vmatprep.subr.bf16.mxu0 0
      %454 = vmatpush2.bf16.msra.mxu0 0
      %455 = vmatprep.subr.bf16.mxu0 0
      %456 = vmatpush2.bf16.msra.mxu0 0
      %457 = vmatprep.mubr.bf16.mxu0 0
      %458 = vmatmul.mubr.bf16.gmra.mxu0 %v313
      %v459 = vpop.f32.mrf.mxu0
      %v460 = vadd.f32 0.0, %v459
      %v461 = vpop.f32.mrf.mxu0
      %v462 = vpop.f32.mrf.mxu0
      %v463 = vadd.f32 0.0, %v462
      %v464 = vpop.f32.mrf.mxu0
      %465 = vmatprep.mubr.bf16.mxu0 0
      %466 = vmatmul.mubr.bf16.gmra.mxu0 %v314
      %v467 = vpop.f32.mrf.mxu0
      %v468 = vadd.f32 0.0, %v467
      %v469 = vpop.f32.mrf.mxu0
      %v470 = vpop.f32.mrf.mxu0
      %v471 = vadd.f32 0.0, %v470
      %v472 = vpop.f32.mrf.mxu0
      %473 = vmatprep.mubr.bf16.mxu0 0
      %474 = vmatmul.mubr.bf16.gmra.mxu0 %v315
      %v475 = vpop.f32.mrf.mxu0
      %v476 = vadd.f32 0.0, %v475
      %v477 = vpop.f32.mrf.mxu0
      %v478 = vpop.f32.mrf.mxu0
      %v479 = vadd.f32 0.0, %v478
      %v480 = vpop.f32.mrf.mxu0
      %481 = vmatprep.mubr.bf16.mxu0 0
      %482 = vmatmul.mubr.bf16.gmra.mxu0 %v316
      %v483 = vpop.f32.mrf.mxu0
      %v484 = vadd.f32 0.0, %v483
      %v485 = vpop.f32.mrf.mxu0
      %v486 = vpop.f32.mrf.mxu0
      %v487 = vadd.f32 0.0, %v486
      %v488 = vpop.f32.mrf.mxu0
      %489 = vmatprep.mubr.bf16.mxu0 0
      %490 = vmatmul.mubr.bf16.gmra.mxu0 %v317
      %v491 = vpop.f32.mrf.mxu0
      %v492 = vadd.f32 0.0, %v491
      %v493 = vpop.f32.mrf.mxu0
      %v494 = vpop.f32.mrf.mxu0
      %v495 = vadd.f32 0.0, %v494
      %v496 = vpop.f32.mrf.mxu0
      %497 = vmatprep.mubr.bf16.mxu0 0
      %498 = vmatmul.mubr.bf16.gmra.mxu0 %v318
      %v499 = vpop.f32.mrf.mxu0
      %v500 = vadd.f32 0.0, %v499
      %v501 = vpop.f32.mrf.mxu0
      %v502 = vpop.f32.mrf.mxu0
      %v503 = vadd.f32 0.0, %v502
      %v504 = vpop.f32.mrf.mxu0
      %505 = vmatprep.mubr.bf16.mxu0 0
      %506 = vmatmul.mubr.bf16.gmra.mxu0 %v319
      %v507 = vpop.f32.mrf.mxu0
      %v508 = vadd.f32 0.0, %v507
      %v509 = vpop.f32.mrf.mxu0
      %v510 = vpop.f32.mrf.mxu0
      %v511 = vadd.f32 0.0, %v510
      %v512 = vpop.f32.mrf.mxu0
      %513 = vmatprep.mubr.bf16.mxu0 0
      %514 = vmatmul.mubr.bf16.gmra.mxu0 %v320
      %v515 = vpop.f32.mrf.mxu0
      %v516 = vadd.f32 0.0, %v515
      %v517 = vpop.f32.mrf.mxu0
      %v518 = vpop.f32.mrf.mxu0
      %v519 = vadd.f32 0.0, %v518
      %v520 = vpop.f32.mrf.mxu0
      %521 = vmatprep.mubr.bf16.mxu0 0
      %522 = vmatmul.mubr.bf16.gmra.mxu0 %v321
      %v523 = vpop.f32.mrf.mxu0
      %v524 = vadd.f32 0.0, %v523
      %v525 = vpop.f32.mrf.mxu0
      %v526 = vpop.f32.mrf.mxu0
      %v527 = vadd.f32 0.0, %v526
      %v528 = vpop.f32.mrf.mxu0
      %529 = vmatprep.mubr.bf16.mxu0 0
      %530 = vmatmul.mubr.bf16.gmra.mxu0 %v322
      %v531 = vpop.f32.mrf.mxu0
      %v532 = vadd.f32 0.0, %v531
      %v533 = vpop.f32.mrf.mxu0
      %v534 = vpop.f32.mrf.mxu0
      %v535 = vadd.f32 0.0, %v534
      %v536 = vpop.f32.mrf.mxu0
      %537 = vmatprep.mubr.bf16.mxu0 0
      %538 = vmatmul.mubr.bf16.gmra.mxu0 %v323
      %v539 = vpop.f32.mrf.mxu0
      %v540 = vadd.f32 0.0, %v539
      %v541 = vpop.f32.mrf.mxu0
      %v542 = vpop.f32.mrf.mxu0
      %v543 = vadd.f32 0.0, %v542
      %v544 = vpop.f32.mrf.mxu0
      %545 = vmatprep.mubr.bf16.mxu0 0
      %546 = vmatmul.mubr.bf16.gmra.mxu0 %v324
      %v547 = vpop.f32.mrf.mxu0
      %v548 = vadd.f32 0.0, %v547
      %v549 = vpop.f32.mrf.mxu0
      %v550 = vpop.f32.mrf.mxu0
      %v551 = vadd.f32 0.0, %v550
      %v552 = vpop.f32.mrf.mxu0
      %553 = vmatprep.mubr.bf16.mxu0 0
      %554 = vmatmul.mubr.bf16.gmra.mxu0 %v325
      %v555 = vpop.f32.mrf.mxu0
      %v556 = vadd.f32 0.0, %v555
      %v557 = vpop.f32.mrf.mxu0
      %v558 = vpop.f32.mrf.mxu0
      %v559 = vadd.f32 0.0, %v558
      %v560 = vpop.f32.mrf.mxu0
      %561 = vmatprep.mubr.bf16.mxu0 0
      %562 = vmatmul.mubr.bf16.gmra.mxu0 %v326
      %v563 = vpop.f32.mrf.mxu0
      %v564 = vadd.f32 0.0, %v563
      %v565 = vpop.f32.mrf.mxu0
      %v566 = vpop.f32.mrf.mxu0
      %v567 = vadd.f32 0.0, %v566
      %v568 = vpop.f32.mrf.mxu0
      %569 = vmatprep.mubr.bf16.mxu0 0
      %570 = vmatmul.mubr.bf16.gmra.mxu0 %v327
      %v571 = vpop.f32.mrf.mxu0
      %v572 = vadd.f32 0.0, %v571
      %v573 = vpop.f32.mrf.mxu0
      %v574 = vpop.f32.mrf.mxu0
      %v575 = vadd.f32 0.0, %v574
      %v576 = vpop.f32.mrf.mxu0
      %577 = vmatprep.mubr.bf16.mxu0 0
      %578 = vmatmul.mubr.bf16.gmra.mxu0 %v328
      %v579 = vpop.f32.mrf.mxu0
      %v580 = vadd.f32 0.0, %v579
      %v581 = vpop.f32.mrf.mxu0
      %v582 = vpop.f32.mrf.mxu0
      %v583 = vadd.f32 0.0, %v582
      %v584 = vpop.f32.mrf.mxu0
      %585 = vmatprep.mubr.bf16.mxu0 0
      %586 = vmatmul.mubr.bf16.gmra.mxu0 %v329
      %v587 = vpop.f32.mrf.mxu0
      %v588 = vadd.f32 0.0, %v587
      %v589 = vpop.f32.mrf.mxu0
      %v590 = vpop.f32.mrf.mxu0
      %v591 = vadd.f32 0.0, %v590
      %v592 = vpop.f32.mrf.mxu0
      %593 = vmatprep.mubr.bf16.mxu0 0
      %594 = vmatmul.mubr.bf16.gmra.mxu0 %v330
      %v595 = vpop.f32.mrf.mxu0
      %v596 = vadd.f32 0.0, %v595
      %v597 = vpop.f32.mrf.mxu0
      %v598 = vpop.f32.mrf.mxu0
      %v599 = vadd.f32 0.0, %v598
      %v600 = vpop.f32.mrf.mxu0
      %601 = vmatprep.mubr.bf16.mxu0 0
      %602 = vmatmul.mubr.bf16.gmra.mxu0 %v331
      %v603 = vpop.f32.mrf.mxu0
      %v604 = vadd.f32 0.0, %v603
      %v605 = vpop.f32.mrf.mxu0
      %v606 = vpop.f32.mrf.mxu0
      %v607 = vadd.f32 0.0, %v606
      %v608 = vpop.f32.mrf.mxu0
      %609 = vmatprep.mubr.bf16.mxu0 0
      %610 = vmatmul.mubr.bf16.gmra.mxu0 %v332
      %v611 = vpop.f32.mrf.mxu0
      %v612 = vadd.f32 0.0, %v611
      %v613 = vpop.f32.mrf.mxu0
      %v614 = vpop.f32.mrf.mxu0
      %v615 = vadd.f32 0.0, %v614
      %v616 = vpop.f32.mrf.mxu0
      %617 = vmatprep.mubr.bf16.mxu0 0
      %618 = vmatmul.mubr.bf16.gmra.mxu0 %v333
      %v619 = vpop.f32.mrf.mxu0
      %v620 = vadd.f32 0.0, %v619
      %v621 = vpop.f32.mrf.mxu0
      %v622 = vpop.f32.mrf.mxu0
      %v623 = vadd.f32 0.0, %v622
      %v624 = vpop.f32.mrf.mxu0
      %625 = vmatprep.mubr.bf16.mxu0 0
      %626 = vmatmul.mubr.bf16.gmra.mxu0 %v334
      %v627 = vpop.f32.mrf.mxu0
      %v628 = vadd.f32 0.0, %v627
      %v629 = vpop.f32.mrf.mxu0
      %v630 = vpop.f32.mrf.mxu0
      %v631 = vadd.f32 0.0, %v630
      %v632 = vpop.f32.mrf.mxu0
      %633 = vmatprep.mubr.bf16.mxu0 0
      %634 = vmatmul.mubr.bf16.gmra.mxu0 %v335
      %v635 = vpop.f32.mrf.mxu0
      %v636 = vadd.f32 0.0, %v635
      %v637 = vpop.f32.mrf.mxu0
      %v638 = vpop.f32.mrf.mxu0
      %v639 = vadd.f32 0.0, %v638
      %v640 = vpop.f32.mrf.mxu0
      %641 = vmatprep.mubr.bf16.mxu0 0
      %642 = vmatmul.mubr.bf16.gmra.mxu0 %v336
      %v643 = vpop.f32.mrf.mxu0
      %v644 = vadd.f32 0.0, %v643
      %v645 = vpop.f32.mrf.mxu0
      %v646 = vpop.f32.mrf.mxu0
      %v647 = vadd.f32 0.0, %v646
      %v648 = vpop.f32.mrf.mxu0
      %649 = vmatprep.mubr.bf16.mxu0 0
      %650 = vmatmul.mubr.bf16.gmra.mxu0 %v337
      %v651 = vpop.f32.mrf.mxu0
      %v652 = vadd.f32 0.0, %v651
      %v653 = vpop.f32.mrf.mxu0
      %v654 = vpop.f32.mrf.mxu0
      %v655 = vadd.f32 0.0, %v654
      %v656 = vpop.f32.mrf.mxu0
      %657 = vmatprep.mubr.bf16.mxu0 0
      %658 = vmatmul.mubr.bf16.gmra.mxu0 %v338
      %v659 = vpop.f32.mrf.mxu0
      %v660 = vadd.f32 0.0, %v659
      %v661 = vpop.f32.mrf.mxu0
      %v662 = vpop.f32.mrf.mxu0
      %v663 = vadd.f32 0.0, %v662
      %v664 = vpop.f32.mrf.mxu0
      %665 = vmatprep.mubr.bf16.mxu0 0
      %666 = vmatmul.mubr.bf16.gmra.mxu0 %v339
      %v667 = vpop.f32.mrf.mxu0
      %v668 = vadd.f32 0.0, %v667
      %v669 = vpop.f32.mrf.mxu0
      %v670 = vpop.f32.mrf.mxu0
      %v671 = vadd.f32 0.0, %v670
      %v672 = vpop.f32.mrf.mxu0
      %673 = vmatprep.mubr.bf16.mxu0 0
      %674 = vmatmul.mubr.bf16.gmra.mxu0 %v340
      %v675 = vpop.f32.mrf.mxu0
      %v676 = vadd.f32 0.0, %v675
      %v677 = vpop.f32.mrf.mxu0
      %v678 = vpop.f32.mrf.mxu0
      %v679 = vadd.f32 0.0, %v678
      %v680 = vpop.f32.mrf.mxu0
      %681 = vmatprep.mubr.bf16.mxu0 0
      %682 = vmatmul.mubr.bf16.gmra.mxu0 %v341
      %v683 = vpop.f32.mrf.mxu0
      %v684 = vadd.f32 0.0, %v683
      %v685 = vpop.f32.mrf.mxu0
      %v686 = vpop.f32.mrf.mxu0
      %v687 = vadd.f32 0.0, %v686
      %v688 = vpop.f32.mrf.mxu0
      %689 = vmatprep.mubr.bf16.mxu0 0
      %690 = vmatmul.mubr.bf16.gmra.mxu0 %v342
      %v691 = vpop.f32.mrf.mxu0
      %v692 = vadd.f32 0.0, %v691
      %v693 = vpop.f32.mrf.mxu0
      %v694 = vpop.f32.mrf.mxu0
      %v695 = vadd.f32 0.0, %v694
      %v696 = vpop.f32.mrf.mxu0
      %697 = vmatprep.mubr.bf16.mxu0 0
      %698 = vmatmul.mubr.bf16.gmra.mxu0 %v343
      %v699 = vpop.f32.mrf.mxu0
      %v700 = vadd.f32 0.0, %v699
      %v701 = vpop.f32.mrf.mxu0
      %v702 = vpop.f32.mrf.mxu0
      %v703 = vadd.f32 0.0, %v702
      %v704 = vpop.f32.mrf.mxu0
      %705 = vmatprep.mubr.bf16.mxu0 0
      %706 = vmatmul.mubr.bf16.gmra.mxu0 %v344
      %v707 = vpop.f32.mrf.mxu0
      %v708 = vadd.f32 0.0, %v707
      %v709 = vpop.f32.mrf.mxu0
      %v710 = vpop.f32.mrf.mxu0
      %v711 = vadd.f32 0.0, %v710
      %v712 = vpop.f32.mrf.mxu0
      %713 = vdwg.mxu0
      %v714 = vld [vmem:[%s73] sm:$0xff]
      %v715 = vld [vmem:[%s73 + $0x8] sm:$0xff]
      %v716 = vld [vmem:[%s73 + $0x10] sm:$0xff]
      %v717 = vld [vmem:[%s73 + $0x18] sm:$0xff]
      %v718 = vld [vmem:[%s73 + $0x20] sm:$0xff]
      %v719 = vld [vmem:[%s73 + $0x28] sm:$0xff]
      %v720 = vld [vmem:[%s73 + $0x30] sm:$0xff]
      %v721 = vld [vmem:[%s73 + $0x38] sm:$0xff]
      %v722 = vld [vmem:[%s73 + $0x40] sm:$0xff]
      %v723 = vld [vmem:[%s73 + $0x48] sm:$0xff]
      %v724 = vld [vmem:[%s73 + $0x50] sm:$0xff]
      %v725 = vld [vmem:[%s73 + $0x58] sm:$0xff]
      %v726 = vld [vmem:[%s73 + $0x60] sm:$0xff]
      %v727 = vld [vmem:[%s73 + $0x68] sm:$0xff]
      %v728 = vld [vmem:[%s73 + $0x70] sm:$0xff]
      %v729 = vld [vmem:[%s73 + $0x78] sm:$0xff]
      %v730 = vld [vmem:[%s73 + $0x80] sm:$0xff]
      %v731 = vld [vmem:[%s73 + $0x88] sm:$0xff]
      %v732 = vld [vmem:[%s73 + $0x90] sm:$0xff]
      %v733 = vld [vmem:[%s73 + $0x98] sm:$0xff]
      %v734 = vld [vmem:[%s73 + $0xa0] sm:$0xff]
      %v735 = vld [vmem:[%s73 + $0xa8] sm:$0xff]
      %v736 = vld [vmem:[%s73 + $0xb0] sm:$0xff]
      %v737 = vld [vmem:[%s73 + $0xb8] sm:$0xff]
      %v738 = vld [vmem:[%s73 + $0xc0] sm:$0xff]
      %v739 = vld [vmem:[%s73 + $0xc8] sm:$0xff]
      %v740 = vld [vmem:[%s73 + $0xd0] sm:$0xff]
      %v741 = vld [vmem:[%s73 + $0xd8] sm:$0xff]
      %v742 = vld [vmem:[%s73 + $0xe0] sm:$0xff]
      %v743 = vld [vmem:[%s73 + $0xe8] sm:$0xff]
      %v744 = vld [vmem:[%s73 + $0xf0] sm:$0xff]
      %v745 = vld [vmem:[%s73 + $0xf8] sm:$0xff]
      %v746 = vld [vmem:[%s73 + $0x100] sm:$0xff]
      %v747 = vld [vmem:[%s73 + $0x108] sm:$0xff]
      %v748 = vld [vmem:[%s73 + $0x110] sm:$0xff]
      %v749 = vld [vmem:[%s73 + $0x118] sm:$0xff]
      %v750 = vld [vmem:[%s73 + $0x120] sm:$0xff]
      %v751 = vld [vmem:[%s73 + $0x128] sm:$0xff]
      %v752 = vld [vmem:[%s73 + $0x130] sm:$0xff]
      %v753 = vld [vmem:[%s73 + $0x138] sm:$0xff]
      %v754 = vld [vmem:[%s73 + $0x140] sm:$0xff]
      %v755 = vld [vmem:[%s73 + $0x148] sm:$0xff]
      %v756 = vld [vmem:[%s73 + $0x150] sm:$0xff]
      %v757 = vld [vmem:[%s73 + $0x158] sm:$0xff]
      %v758 = vld [vmem:[%s73 + $0x160] sm:$0xff]
      %v759 = vld [vmem:[%s73 + $0x168] sm:$0xff]
      %v760 = vld [vmem:[%s73 + $0x170] sm:$0xff]
      %v761 = vld [vmem:[%s73 + $0x178] sm:$0xff]
      %v762 = vld [vmem:[%s73 + $0x180] sm:$0xff]
      %v763 = vld [vmem:[%s73 + $0x188] sm:$0xff]
      %v764 = vld [vmem:[%s73 + $0x190] sm:$0xff]
      %v765 = vld [vmem:[%s73 + $0x198] sm:$0xff]
      %v766 = vld [vmem:[%s73 + $0x1a0] sm:$0xff]
      %v767 = vld [vmem:[%s73 + $0x1a8] sm:$0xff]
      %v768 = vld [vmem:[%s73 + $0x1b0] sm:$0xff]
      %v769 = vld [vmem:[%s73 + $0x1b8] sm:$0xff]
      %v770 = vld [vmem:[%s73 + $0x1c0] sm:$0xff]
      %v771 = vld [vmem:[%s73 + $0x1c8] sm:$0xff]
      %v772 = vld [vmem:[%s73 + $0x1d0] sm:$0xff]
      %v773 = vld [vmem:[%s73 + $0x1d8] sm:$0xff]
      %v774 = vld [vmem:[%s73 + $0x1e0] sm:$0xff]
      %v775 = vld [vmem:[%s73 + $0x1e8] sm:$0xff]
      %v776 = vld [vmem:[%s73 + $0x1f0] sm:$0xff]
      %v777 = vld [vmem:[%s73 + $0x1f8] sm:$0xff]
      %s778 = smul.u32 0, 16
      %v779 = vstv %s778
      %v780 = vsub.s32 %v714, %v779
      %v781 = vsub.s32 %v715, %v779
      %v782 = vsub.s32 %v716, %v779
      %v783 = vsub.s32 %v717, %v779
      %v784 = vsub.s32 %v718, %v779
      %v785 = vsub.s32 %v719, %v779
      %v786 = vsub.s32 %v720, %v779
      %v787 = vsub.s32 %v721, %v779
      %v788 = vsub.s32 %v722, %v779
      %v789 = vsub.s32 %v723, %v779
      %v790 = vsub.s32 %v724, %v779
      %v791 = vsub.s32 %v725, %v779
      %v792 = vsub.s32 %v726, %v779
      %v793 = vsub.s32 %v727, %v779
      %v794 = vsub.s32 %v728, %v779
      %v795 = vsub.s32 %v729, %v779
      %v796 = vsub.s32 %v730, %v779
      %v797 = vsub.s32 %v731, %v779
      %v798 = vsub.s32 %v732, %v779
      %v799 = vsub.s32 %v733, %v779
      %v800 = vsub.s32 %v734, %v779
      %v801 = vsub.s32 %v735, %v779
      %v802 = vsub.s32 %v736, %v779
      %v803 = vsub.s32 %v737, %v779
      %v804 = vsub.s32 %v738, %v779
      %v805 = vsub.s32 %v739, %v779
      %v806 = vsub.s32 %v740, %v779
      %v807 = vsub.s32 %v741, %v779
      %v808 = vsub.s32 %v742, %v779
      %v809 = vsub.s32 %v743, %v779
      %v810 = vsub.s32 %v744, %v779
      %v811 = vsub.s32 %v745, %v779
      %v812 = vsub.s32 %v746, %v779
      %v813 = vsub.s32 %v747, %v779
      %v814 = vsub.s32 %v748, %v779
      %v815 = vsub.s32 %v749, %v779
      %v816 = vsub.s32 %v750, %v779
      %v817 = vsub.s32 %v751, %v779
      %v818 = vsub.s32 %v752, %v779
      %v819 = vsub.s32 %v753, %v779
      %v820 = vsub.s32 %v754, %v779
      %v821 = vsub.s32 %v755, %v779
      %v822 = vsub.s32 %v756, %v779
      %v823 = vsub.s32 %v757, %v779
      %v824 = vsub.s32 %v758, %v779
      %v825 = vsub.s32 %v759, %v779
      %v826 = vsub.s32 %v760, %v779
      %v827 = vsub.s32 %v761, %v779
      %v828 = vsub.s32 %v762, %v779
      %v829 = vsub.s32 %v763, %v779
      %v830 = vsub.s32 %v764, %v779
      %v831 = vsub.s32 %v765, %v779
      %v832 = vsub.s32 %v766, %v779
      %v833 = vsub.s32 %v767, %v779
      %v834 = vsub.s32 %v768, %v779
      %v835 = vsub.s32 %v769, %v779
      %v836 = vsub.s32 %v770, %v779
      %v837 = vsub.s32 %v771, %v779
      %v838 = vsub.s32 %v772, %v779
      %v839 = vsub.s32 %v773, %v779
      %v840 = vsub.s32 %v774, %v779
      %v841 = vsub.s32 %v775, %v779
      %v842 = vsub.s32 %v776, %v779
      %v843 = vsub.s32 %v777, %v779
      %vm844 = vcmp.eq.s32.totalorder %v780, 0
      %vm845 = vcmp.eq.s32.totalorder %v781, 0
      %vm846 = vcmp.eq.s32.totalorder %v782, 0
      %vm847 = vcmp.eq.s32.totalorder %v783, 0
      %vm848 = vcmp.eq.s32.totalorder %v784, 0
      %vm849 = vcmp.eq.s32.totalorder %v785, 0
      %vm850 = vcmp.eq.s32.totalorder %v786, 0
      %vm851 = vcmp.eq.s32.totalorder %v787, 0
      %vm852 = vcmp.eq.s32.totalorder %v788, 0
      %vm853 = vcmp.eq.s32.totalorder %v789, 0
      %vm854 = vcmp.eq.s32.totalorder %v790, 0
      %vm855 = vcmp.eq.s32.totalorder %v791, 0
      %vm856 = vcmp.eq.s32.totalorder %v792, 0
      %vm857 = vcmp.eq.s32.totalorder %v793, 0
      %vm858 = vcmp.eq.s32.totalorder %v794, 0
      %vm859 = vcmp.eq.s32.totalorder %v795, 0
      %vm860 = vcmp.eq.s32.totalorder %v796, 0
      %vm861 = vcmp.eq.s32.totalorder %v797, 0
      %vm862 = vcmp.eq.s32.totalorder %v798, 0
      %vm863 = vcmp.eq.s32.totalorder %v799, 0
      %vm864 = vcmp.eq.s32.totalorder %v800, 0
      %vm865 = vcmp.eq.s32.totalorder %v801, 0
      %vm866 = vcmp.eq.s32.totalorder %v802, 0
      %vm867 = vcmp.eq.s32.totalorder %v803, 0
      %vm868 = vcmp.eq.s32.totalorder %v804, 0
      %vm869 = vcmp.eq.s32.totalorder %v805, 0
      %vm870 = vcmp.eq.s32.totalorder %v806, 0
      %vm871 = vcmp.eq.s32.totalorder %v807, 0
      %vm872 = vcmp.eq.s32.totalorder %v808, 0
      %vm873 = vcmp.eq.s32.totalorder %v809, 0
      %vm874 = vcmp.eq.s32.totalorder %v810, 0
      %vm875 = vcmp.eq.s32.totalorder %v811, 0
      %vm876 = vcmp.eq.s32.totalorder %v812, 0
      %vm877 = vcmp.eq.s32.totalorder %v813, 0
      %vm878 = vcmp.eq.s32.totalorder %v814, 0
      %vm879 = vcmp.eq.s32.totalorder %v815, 0
      %vm880 = vcmp.eq.s32.totalorder %v816, 0
      %vm881 = vcmp.eq.s32.totalorder %v817, 0
      %vm882 = vcmp.eq.s32.totalorder %v818, 0
      %vm883 = vcmp.eq.s32.totalorder %v819, 0
      %vm884 = vcmp.eq.s32.totalorder %v820, 0
      %vm885 = vcmp.eq.s32.totalorder %v821, 0
      %vm886 = vcmp.eq.s32.totalorder %v822, 0
      %vm887 = vcmp.eq.s32.totalorder %v823, 0
      %vm888 = vcmp.eq.s32.totalorder %v824, 0
      %vm889 = vcmp.eq.s32.totalorder %v825, 0
      %vm890 = vcmp.eq.s32.totalorder %v826, 0
      %vm891 = vcmp.eq.s32.totalorder %v827, 0
      %vm892 = vcmp.eq.s32.totalorder %v828, 0
      %vm893 = vcmp.eq.s32.totalorder %v829, 0
      %vm894 = vcmp.eq.s32.totalorder %v830, 0
      %vm895 = vcmp.eq.s32.totalorder %v831, 0
      %vm896 = vcmp.eq.s32.totalorder %v832, 0
      %vm897 = vcmp.eq.s32.totalorder %v833, 0
      %vm898 = vcmp.eq.s32.totalorder %v834, 0
      %vm899 = vcmp.eq.s32.totalorder %v835, 0
      %vm900 = vcmp.eq.s32.totalorder %v836, 0
      %vm901 = vcmp.eq.s32.totalorder %v837, 0
      %vm902 = vcmp.eq.s32.totalorder %v838, 0
      %vm903 = vcmp.eq.s32.totalorder %v839, 0
      %vm904 = vcmp.eq.s32.totalorder %v840, 0
      %vm905 = vcmp.eq.s32.totalorder %v841, 0
      %vm906 = vcmp.eq.s32.totalorder %v842, 0
      %vm907 = vcmp.eq.s32.totalorder %v843, 0
      %v908 = vsel %vm844, 1, 0
      %v909 = vsel %vm845, 1, 0
      %v910 = vsel %vm846, 1, 0
      %v911 = vsel %vm847, 1, 0
      %v912 = vsel %vm848, 1, 0
      %v913 = vsel %vm849, 1, 0
      %v914 = vsel %vm850, 1, 0
      %v915 = vsel %vm851, 1, 0
      %v916 = vsel %vm852, 1, 0
      %v917 = vsel %vm853, 1, 0
      %v918 = vsel %vm854, 1, 0
      %v919 = vsel %vm855, 1, 0
      %v920 = vsel %vm856, 1, 0
      %v921 = vsel %vm857, 1, 0
      %v922 = vsel %vm858, 1, 0
      %v923 = vsel %vm859, 1, 0
      %v924 = vsel %vm860, 1, 0
      %v925 = vsel %vm861, 1, 0
      %v926 = vsel %vm862, 1, 0
      %v927 = vsel %vm863, 1, 0
      %v928 = vsel %vm864, 1, 0
      %v929 = vsel %vm865, 1, 0
      %v930 = vsel %vm866, 1, 0
      %v931 = vsel %vm867, 1, 0
      %v932 = vsel %vm868, 1, 0
      %v933 = vsel %vm869, 1, 0
      %v934 = vsel %vm870, 1, 0
      %v935 = vsel %vm871, 1, 0
      %v936 = vsel %vm872, 1, 0
      %v937 = vsel %vm873, 1, 0
      %v938 = vsel %vm874, 1, 0
      %v939 = vsel %vm875, 1, 0
      %v940 = vsel %vm876, 1, 0
      %v941 = vsel %vm877, 1, 0
      %v942 = vsel %vm878, 1, 0
      %v943 = vsel %vm879, 1, 0
      %v944 = vsel %vm880, 1, 0
      %v945 = vsel %vm881, 1, 0
      %v946 = vsel %vm882, 1, 0
      %v947 = vsel %vm883, 1, 0
      %v948 = vsel %vm884, 1, 0
      %v949 = vsel %vm885, 1, 0
      %v950 = vsel %vm886, 1, 0
      %v951 = vsel %vm887, 1, 0
      %v952 = vsel %vm888, 1, 0
      %v953 = vsel %vm889, 1, 0
      %v954 = vsel %vm890, 1, 0
      %v955 = vsel %vm891, 1, 0
      %v956 = vsel %vm892, 1, 0
      %v957 = vsel %vm893, 1, 0
      %v958 = vsel %vm894, 1, 0
      %v959 = vsel %vm895, 1, 0
      %v960 = vsel %vm896, 1, 0
      %v961 = vsel %vm897, 1, 0
      %v962 = vsel %vm898, 1, 0
      %v963 = vsel %vm899, 1, 0
      %v964 = vsel %vm900, 1, 0
      %v965 = vsel %vm901, 1, 0
      %v966 = vsel %vm902, 1, 0
      %v967 = vsel %vm903, 1, 0
      %v968 = vsel %vm904, 1, 0
      %v969 = vsel %vm905, 1, 0
      %v970 = vsel %vm906, 1, 0
      %v971 = vsel %vm907, 1, 0
      %972 = vset.pattern.permute.xlu0 0
      %973 = vperm.xlu0 %972, %v908
      %v974 = vpop.permute.xlu0 %973
      %975 = vset.pattern.permute.xlu0 0
      %976 = vperm.xlu0 %975, %v909
      %v977 = vpop.permute.xlu0 %976
      %978 = vset.pattern.permute.xlu0 0
      %979 = vperm.xlu0 %978, %v910
      %v980 = vpop.permute.xlu0 %979
      %981 = vset.pattern.permute.xlu0 0
      %982 = vperm.xlu0 %981, %v911
      %v983 = vpop.permute.xlu0 %982
      %984 = vset.pattern.permute.xlu0 0
      %985 = vperm.xlu0 %984, %v912
      %v986 = vpop.permute.xlu0 %985
      %987 = vset.pattern.permute.xlu0 0
      %988 = vperm.xlu0 %987, %v913
      %v989 = vpop.permute.xlu0 %988
      %990 = vset.pattern.permute.xlu0 0
      %991 = vperm.xlu0 %990, %v914
      %v992 = vpop.permute.xlu0 %991
      %993 = vset.pattern.permute.xlu0 0
      %994 = vperm.xlu0 %993, %v915
      %v995 = vpop.permute.xlu0 %994
      %996 = vset.pattern.permute.xlu0 0
      %997 = vperm.xlu0 %996, %v916
      %v998 = vpop.permute.xlu0 %997
      %999 = vset.pattern.permute.xlu0 0
      %1000 = vperm.xlu0 %999, %v917
      %v1001 = vpop.permute.xlu0 %1000
      %1002 = vset.pattern.permute.xlu0 0
      %1003 = vperm.xlu0 %1002, %v918
      %v1004 = vpop.permute.xlu0 %1003
      %1005 = vset.pattern.permute.xlu0 0
      %1006 = vperm.xlu0 %1005, %v919
      %v1007 = vpop.permute.xlu0 %1006
      %1008 = vset.pattern.permute.xlu0 0
      %1009 = vperm.xlu0 %1008, %v920
      %v1010 = vpop.permute.xlu0 %1009
      %1011 = vset.pattern.permute.xlu0 0
      %1012 = vperm.xlu0 %1011, %v921
      %v1013 = vpop.permute.xlu0 %1012
      %1014 = vset.pattern.permute.xlu0 0
      %1015 = vperm.xlu0 %1014, %v922
      %v1016 = vpop.permute.xlu0 %1015
      %1017 = vset.pattern.permute.xlu0 0
      %1018 = vperm.xlu0 %1017, %v923
      %v1019 = vpop.permute.xlu0 %1018
      %1020 = vset.pattern.permute.xlu0 0
      %1021 = vperm.xlu0 %1020, %v924
      %v1022 = vpop.permute.xlu0 %1021
      %1023 = vset.pattern.permute.xlu0 0
      %1024 = vperm.xlu0 %1023, %v925
      %v1025 = vpop.permute.xlu0 %1024
      %1026 = vset.pattern.permute.xlu0 0
      %1027 = vperm.xlu0 %1026, %v926
      %v1028 = vpop.permute.xlu0 %1027
      %1029 = vset.pattern.permute.xlu0 0
      %1030 = vperm.xlu0 %1029, %v927
      %v1031 = vpop.permute.xlu0 %1030
      %1032 = vset.pattern.permute.xlu0 0
      %1033 = vperm.xlu0 %1032, %v928
      %v1034 = vpop.permute.xlu0 %1033
      %1035 = vset.pattern.permute.xlu0 0
      %1036 = vperm.xlu0 %1035, %v929
      %v1037 = vpop.permute.xlu0 %1036
      %1038 = vset.pattern.permute.xlu0 0
      %1039 = vperm.xlu0 %1038, %v930
      %v1040 = vpop.permute.xlu0 %1039
      %1041 = vset.pattern.permute.xlu0 0
      %1042 = vperm.xlu0 %1041, %v931
      %v1043 = vpop.permute.xlu0 %1042
      %1044 = vset.pattern.permute.xlu0 0
      %1045 = vperm.xlu0 %1044, %v932
      %v1046 = vpop.permute.xlu0 %1045
      %1047 = vset.pattern.permute.xlu0 0
      %1048 = vperm.xlu0 %1047, %v933
      %v1049 = vpop.permute.xlu0 %1048
      %1050 = vset.pattern.permute.xlu0 0
      %1051 = vperm.xlu0 %1050, %v934
      %v1052 = vpop.permute.xlu0 %1051
      %1053 = vset.pattern.permute.xlu0 0
      %1054 = vperm.xlu0 %1053, %v935
      %v1055 = vpop.permute.xlu0 %1054
      %1056 = vset.pattern.permute.xlu0 0
      %1057 = vperm.xlu0 %1056, %v936
      %v1058 = vpop.permute.xlu0 %1057
      %1059 = vset.pattern.permute.xlu0 0
      %1060 = vperm.xlu0 %1059, %v937
      %v1061 = vpop.permute.xlu0 %1060
      %1062 = vset.pattern.permute.xlu0 0
      %1063 = vperm.xlu0 %1062, %v938
      %v1064 = vpop.permute.xlu0 %1063
      %1065 = vset.pattern.permute.xlu0 0
      %1066 = vperm.xlu0 %1065, %v939
      %v1067 = vpop.permute.xlu0 %1066
      %1068 = vset.pattern.permute.xlu0 0
      %1069 = vperm.xlu0 %1068, %v940
      %v1070 = vpop.permute.xlu0 %1069
      %1071 = vset.pattern.permute.xlu0 0
      %1072 = vperm.xlu0 %1071, %v941
      %v1073 = vpop.permute.xlu0 %1072
      %1074 = vset.pattern.permute.xlu0 0
      %1075 = vperm.xlu0 %1074, %v942
      %v1076 = vpop.permute.xlu0 %1075
      %1077 = vset.pattern.permute.xlu0 0
      %1078 = vperm.xlu0 %1077, %v943
      %v1079 = vpop.permute.xlu0 %1078
      %1080 = vset.pattern.permute.xlu0 0
      %1081 = vperm.xlu0 %1080, %v944
      %v1082 = vpop.permute.xlu0 %1081
      %1083 = vset.pattern.permute.xlu0 0
      %1084 = vperm.xlu0 %1083, %v945
      %v1085 = vpop.permute.xlu0 %1084
      %1086 = vset.pattern.permute.xlu0 0
      %1087 = vperm.xlu0 %1086, %v946
      %v1088 = vpop.permute.xlu0 %1087
      %1089 = vset.pattern.permute.xlu0 0
      %1090 = vperm.xlu0 %1089, %v947
      %v1091 = vpop.permute.xlu0 %1090
      %1092 = vset.pattern.permute.xlu0 0
      %1093 = vperm.xlu0 %1092, %v948
      %v1094 = vpop.permute.xlu0 %1093
      %1095 = vset.pattern.permute.xlu0 0
      %1096 = vperm.xlu0 %1095, %v949
      %v1097 = vpop.permute.xlu0 %1096
      %1098 = vset.pattern.permute.xlu0 0
      %1099 = vperm.xlu0 %1098, %v950
      %v1100 = vpop.permute.xlu0 %1099
      %1101 = vset.pattern.permute.xlu0 0
      %1102 = vperm.xlu0 %1101, %v951
      %v1103 = vpop.permute.xlu0 %1102
      %1104 = vset.pattern.permute.xlu0 0
      %1105 = vperm.xlu0 %1104, %v952
      %v1106 = vpop.permute.xlu0 %1105
      %1107 = vset.pattern.permute.xlu0 0
      %1108 = vperm.xlu0 %1107, %v953
      %v1109 = vpop.permute.xlu0 %1108
      %1110 = vset.pattern.permute.xlu0 0
      %1111 = vperm.xlu0 %1110, %v954
      %v1112 = vpop.permute.xlu0 %1111
      %1113 = vset.pattern.permute.xlu0 0
      %1114 = vperm.xlu0 %1113, %v955
      %v1115 = vpop.permute.xlu0 %1114
      %1116 = vset.pattern.permute.xlu0 0
      %1117 = vperm.xlu0 %1116, %v956
      %v1118 = vpop.permute.xlu0 %1117
      %1119 = vset.pattern.permute.xlu0 0
      %1120 = vperm.xlu0 %1119, %v957
      %v1121 = vpop.permute.xlu0 %1120
      %1122 = vset.pattern.permute.xlu0 0
      %1123 = vperm.xlu0 %1122, %v958
      %v1124 = vpop.permute.xlu0 %1123
      %1125 = vset.pattern.permute.xlu0 0
      %1126 = vperm.xlu0 %1125, %v959
      %v1127 = vpop.permute.xlu0 %1126
      %1128 = vset.pattern.permute.xlu0 0
      %1129 = vperm.xlu0 %1128, %v960
      %v1130 = vpop.permute.xlu0 %1129
      %1131 = vset.pattern.permute.xlu0 0
      %1132 = vperm.xlu0 %1131, %v961
      %v1133 = vpop.permute.xlu0 %1132
      %1134 = vset.pattern.permute.xlu0 0
      %1135 = vperm.xlu0 %1134, %v962
      %v1136 = vpop.permute.xlu0 %1135
      %1137 = vset.pattern.permute.xlu0 0
      %1138 = vperm.xlu0 %1137, %v963
      %v1139 = vpop.permute.xlu0 %1138
      %1140 = vset.pattern.permute.xlu0 0
      %1141 = vperm.xlu0 %1140, %v964
      %v1142 = vpop.permute.xlu0 %1141
      %1143 = vset.pattern.permute.xlu0 0
      %1144 = vperm.xlu0 %1143, %v965
      %v1145 = vpop.permute.xlu0 %1144
      %1146 = vset.pattern.permute.xlu0 0
      %1147 = vperm.xlu0 %1146, %v966
      %v1148 = vpop.permute.xlu0 %1147
      %1149 = vset.pattern.permute.xlu0 0
      %1150 = vperm.xlu0 %1149, %v967
      %v1151 = vpop.permute.xlu0 %1150
      %1152 = vset.pattern.permute.xlu0 0
      %1153 = vperm.xlu0 %1152, %v968
      %v1154 = vpop.permute.xlu0 %1153
      %1155 = vset.pattern.permute.xlu0 0
      %1156 = vperm.xlu0 %1155, %v969
      %v1157 = vpop.permute.xlu0 %1156
      %1158 = vset.pattern.permute.xlu0 0
      %1159 = vperm.xlu0 %1158, %v970
      %v1160 = vpop.permute.xlu0 %1159
      %1161 = vset.pattern.permute.xlu0 0
      %1162 = vperm.xlu0 %1161, %v971
      %v1163 = vpop.permute.xlu0 %1162
      %vm1164 = vcmp.eq.s32.totalorder %v974, 1
      %vm1165 = vcmp.eq.s32.totalorder %v977, 1
      %vm1166 = vcmp.eq.s32.totalorder %v980, 1
      %vm1167 = vcmp.eq.s32.totalorder %v983, 1
      %vm1168 = vcmp.eq.s32.totalorder %v986, 1
      %vm1169 = vcmp.eq.s32.totalorder %v989, 1
      %vm1170 = vcmp.eq.s32.totalorder %v992, 1
      %vm1171 = vcmp.eq.s32.totalorder %v995, 1
      %vm1172 = vcmp.eq.s32.totalorder %v998, 1
      %vm1173 = vcmp.eq.s32.totalorder %v1001, 1
      %vm1174 = vcmp.eq.s32.totalorder %v1004, 1
      %vm1175 = vcmp.eq.s32.totalorder %v1007, 1
      %vm1176 = vcmp.eq.s32.totalorder %v1010, 1
      %vm1177 = vcmp.eq.s32.totalorder %v1013, 1
      %vm1178 = vcmp.eq.s32.totalorder %v1016, 1
      %vm1179 = vcmp.eq.s32.totalorder %v1019, 1
      %vm1180 = vcmp.eq.s32.totalorder %v1022, 1
      %vm1181 = vcmp.eq.s32.totalorder %v1025, 1
      %vm1182 = vcmp.eq.s32.totalorder %v1028, 1
      %vm1183 = vcmp.eq.s32.totalorder %v1031, 1
      %vm1184 = vcmp.eq.s32.totalorder %v1034, 1
      %vm1185 = vcmp.eq.s32.totalorder %v1037, 1
      %vm1186 = vcmp.eq.s32.totalorder %v1040, 1
      %vm1187 = vcmp.eq.s32.totalorder %v1043, 1
      %vm1188 = vcmp.eq.s32.totalorder %v1046, 1
      %vm1189 = vcmp.eq.s32.totalorder %v1049, 1
      %vm1190 = vcmp.eq.s32.totalorder %v1052, 1
      %vm1191 = vcmp.eq.s32.totalorder %v1055, 1
      %vm1192 = vcmp.eq.s32.totalorder %v1058, 1
      %vm1193 = vcmp.eq.s32.totalorder %v1061, 1
      %vm1194 = vcmp.eq.s32.totalorder %v1064, 1
      %vm1195 = vcmp.eq.s32.totalorder %v1067, 1
      %vm1196 = vcmp.eq.s32.totalorder %v1070, 1
      %vm1197 = vcmp.eq.s32.totalorder %v1073, 1
      %vm1198 = vcmp.eq.s32.totalorder %v1076, 1
      %vm1199 = vcmp.eq.s32.totalorder %v1079, 1
      %vm1200 = vcmp.eq.s32.totalorder %v1082, 1
      %vm1201 = vcmp.eq.s32.totalorder %v1085, 1
      %vm1202 = vcmp.eq.s32.totalorder %v1088, 1
      %vm1203 = vcmp.eq.s32.totalorder %v1091, 1
      %vm1204 = vcmp.eq.s32.totalorder %v1094, 1
      %vm1205 = vcmp.eq.s32.totalorder %v1097, 1
      %vm1206 = vcmp.eq.s32.totalorder %v1100, 1
      %vm1207 = vcmp.eq.s32.totalorder %v1103, 1
      %vm1208 = vcmp.eq.s32.totalorder %v1106, 1
      %vm1209 = vcmp.eq.s32.totalorder %v1109, 1
      %vm1210 = vcmp.eq.s32.totalorder %v1112, 1
      %vm1211 = vcmp.eq.s32.totalorder %v1115, 1
      %vm1212 = vcmp.eq.s32.totalorder %v1118, 1
      %vm1213 = vcmp.eq.s32.totalorder %v1121, 1
      %vm1214 = vcmp.eq.s32.totalorder %v1124, 1
      %vm1215 = vcmp.eq.s32.totalorder %v1127, 1
      %vm1216 = vcmp.eq.s32.totalorder %v1130, 1
      %vm1217 = vcmp.eq.s32.totalorder %v1133, 1
      %vm1218 = vcmp.eq.s32.totalorder %v1136, 1
      %vm1219 = vcmp.eq.s32.totalorder %v1139, 1
      %vm1220 = vcmp.eq.s32.totalorder %v1142, 1
      %vm1221 = vcmp.eq.s32.totalorder %v1145, 1
      %vm1222 = vcmp.eq.s32.totalorder %v1148, 1
      %vm1223 = vcmp.eq.s32.totalorder %v1151, 1
      %vm1224 = vcmp.eq.s32.totalorder %v1154, 1
      %vm1225 = vcmp.eq.s32.totalorder %v1157, 1
      %vm1226 = vcmp.eq.s32.totalorder %v1160, 1
      %vm1227 = vcmp.eq.s32.totalorder %v1163, 1
      %v1228 = vsel %vm1164, %v460, -inf
      %v1229 = vsel %vm1165, %v463, -inf
      %v1230 = vsel %vm1166, %v468, -inf
      %v1231 = vsel %vm1167, %v471, -inf
      %v1232 = vsel %vm1168, %v476, -inf
      %v1233 = vsel %vm1169, %v479, -inf
      %v1234 = vsel %vm1170, %v484, -inf
      %v1235 = vsel %vm1171, %v487, -inf
      %v1236 = vsel %vm1172, %v492, -inf
      %v1237 = vsel %vm1173, %v495, -inf
      %v1238 = vsel %vm1174, %v500, -inf
      %v1239 = vsel %vm1175, %v503, -inf
      %v1240 = vsel %vm1176, %v508, -inf
      %v1241 = vsel %vm1177, %v511, -inf
      %v1242 = vsel %vm1178, %v516, -inf
      %v1243 = vsel %vm1179, %v519, -inf
      %v1244 = vsel %vm1180, %v524, -inf
      %v1245 = vsel %vm1181, %v527, -inf
      %v1246 = vsel %vm1182, %v532, -inf
      %v1247 = vsel %vm1183, %v535, -inf
      %v1248 = vsel %vm1184, %v540, -inf
      %v1249 = vsel %vm1185, %v543, -inf
      %v1250 = vsel %vm1186, %v548, -inf
      %v1251 = vsel %vm1187, %v551, -inf
      %v1252 = vsel %vm1188, %v556, -inf
      %v1253 = vsel %vm1189, %v559, -inf
      %v1254 = vsel %vm1190, %v564, -inf
      %v1255 = vsel %vm1191, %v567, -inf
      %v1256 = vsel %vm1192, %v572, -inf
      %v1257 = vsel %vm1193, %v575, -inf
      %v1258 = vsel %vm1194, %v580, -inf
      %v1259 = vsel %vm1195, %v583, -inf
      %v1260 = vsel %vm1196, %v588, -inf
      %v1261 = vsel %vm1197, %v591, -inf
      %v1262 = vsel %vm1198, %v596, -inf
      %v1263 = vsel %vm1199, %v599, -inf
      %v1264 = vsel %vm1200, %v604, -inf
      %v1265 = vsel %vm1201, %v607, -inf
      %v1266 = vsel %vm1202, %v612, -inf
      %v1267 = vsel %vm1203, %v615, -inf
      %v1268 = vsel %vm1204, %v620, -inf
      %v1269 = vsel %vm1205, %v623, -inf
      %v1270 = vsel %vm1206, %v628, -inf
      %v1271 = vsel %vm1207, %v631, -inf
      %v1272 = vsel %vm1208, %v636, -inf
      %v1273 = vsel %vm1209, %v639, -inf
      %v1274 = vsel %vm1210, %v644, -inf
      %v1275 = vsel %vm1211, %v647, -inf
      %v1276 = vsel %vm1212, %v652, -inf
      %v1277 = vsel %vm1213, %v655, -inf
      %v1278 = vsel %vm1214, %v660, -inf
      %v1279 = vsel %vm1215, %v663, -inf
      %v1280 = vsel %vm1216, %v668, -inf
      %v1281 = vsel %vm1217, %v671, -inf
      %v1282 = vsel %vm1218, %v676, -inf
      %v1283 = vsel %vm1219, %v679, -inf
      %v1284 = vsel %vm1220, %v684, -inf
      %v1285 = vsel %vm1221, %v687, -inf
      %v1286 = vsel %vm1222, %v692, -inf
      %v1287 = vsel %vm1223, %v695, -inf
      %v1288 = vsel %vm1224, %v700, -inf
      %v1289 = vsel %vm1225, %v703, -inf
      %v1290 = vsel %vm1226, %v708, -inf
      %v1291 = vsel %vm1227, %v711, -inf
      %v1292 = vmax.f32 %v1228, %v1232
      %v1293 = vmax.f32 %v1229, %v1233
      %v1294 = vmax.f32 %v1230, %v1234
      %v1295 = vmax.f32 %v1231, %v1235
      %v1296 = vmax.f32 %v1292, %v1236
      %v1297 = vmax.f32 %v1293, %v1237
      %v1298 = vmax.f32 %v1294, %v1238
      %v1299 = vmax.f32 %v1295, %v1239
      %v1300 = vmax.f32 %v1296, %v1240
      %v1301 = vmax.f32 %v1297, %v1241
      %v1302 = vmax.f32 %v1298, %v1242
      %v1303 = vmax.f32 %v1299, %v1243
      %v1304 = vmax.f32 %v1300, %v1244
      %v1305 = vmax.f32 %v1301, %v1245
      %v1306 = vmax.f32 %v1302, %v1246
      %v1307 = vmax.f32 %v1303, %v1247
      %v1308 = vmax.f32 %v1304, %v1248
      %v1309 = vmax.f32 %v1305, %v1249
      %v1310 = vmax.f32 %v1306, %v1250
      %v1311 = vmax.f32 %v1307, %v1251
      %v1312 = vmax.f32 %v1308, %v1252
      %v1313 = vmax.f32 %v1309, %v1253
      %v1314 = vmax.f32 %v1310, %v1254
      %v1315 = vmax.f32 %v1311, %v1255
      %v1316 = vmax.f32 %v1312, %v1256
      %v1317 = vmax.f32 %v1313, %v1257
      %v1318 = vmax.f32 %v1314, %v1258
      %v1319 = vmax.f32 %v1315, %v1259
      %v1320 = vmax.f32 %v1316, %v1260
      %v1321 = vmax.f32 %v1317, %v1261
      %v1322 = vmax.f32 %v1318, %v1262
      %v1323 = vmax.f32 %v1319, %v1263
      %v1324 = vmax.f32 %v1320, %v1264
      %v1325 = vmax.f32 %v1321, %v1265
      %v1326 = vmax.f32 %v1322, %v1266
      %v1327 = vmax.f32 %v1323, %v1267
      %v1328 = vmax.f32 %v1324, %v1268
      %v1329 = vmax.f32 %v1325, %v1269
      %v1330 = vmax.f32 %v1326, %v1270
      %v1331 = vmax.f32 %v1327, %v1271
      %v1332 = vmax.f32 %v1328, %v1272
      %v1333 = vmax.f32 %v1329, %v1273
      %v1334 = vmax.f32 %v1330, %v1274
      %v1335 = vmax.f32 %v1331, %v1275
      %v1336 = vmax.f32 %v1332, %v1276
      %v1337 = vmax.f32 %v1333, %v1277
      %v1338 = vmax.f32 %v1334, %v1278
      %v1339 = vmax.f32 %v1335, %v1279
      %v1340 = vmax.f32 %v1336, %v1280
      %v1341 = vmax.f32 %v1337, %v1281
      %v1342 = vmax.f32 %v1338, %v1282
      %v1343 = vmax.f32 %v1339, %v1283
      %v1344 = vmax.f32 %v1340, %v1284
      %v1345 = vmax.f32 %v1341, %v1285
      %v1346 = vmax.f32 %v1342, %v1286
      %v1347 = vmax.f32 %v1343, %v1287
      %v1348 = vmax.f32 %v1344, %v1288
      %v1349 = vmax.f32 %v1345, %v1289
      %v1350 = vmax.f32 %v1346, %v1290
      %v1351 = vmax.f32 %v1347, %v1291
      %v1352 = vmax.f32 %v1348, %v1349
      %v1353 = vmax.f32 %v1350, %v1351
      %v1354 = vmax.f32 %v1352, %v1353
      %v1355 = vrot.slane %v1354, 4
      %v1356 = vmax.f32 %v1354, %v1355
      %v1357 = vrot.slane %v1356, 2
      %v1358 = vmax.f32 %v1356, %v1357
      %v1359 = vrot.slane %v1358, 1
      %v1360 = vmax.f32 %v1358, %v1359
      %vm1361 = vcmp.eq.s32.totalorder %v780, 1
      %vm1362 = vcmp.eq.s32.totalorder %v781, 1
      %vm1363 = vcmp.eq.s32.totalorder %v782, 1
      %vm1364 = vcmp.eq.s32.totalorder %v783, 1
      %vm1365 = vcmp.eq.s32.totalorder %v784, 1
      %vm1366 = vcmp.eq.s32.totalorder %v785, 1
      %vm1367 = vcmp.eq.s32.totalorder %v786, 1
      %vm1368 = vcmp.eq.s32.totalorder %v787, 1
      %vm1369 = vcmp.eq.s32.totalorder %v788, 1
      %vm1370 = vcmp.eq.s32.totalorder %v789, 1
      %vm1371 = vcmp.eq.s32.totalorder %v790, 1
      %vm1372 = vcmp.eq.s32.totalorder %v791, 1
      %vm1373 = vcmp.eq.s32.totalorder %v792, 1
      %vm1374 = vcmp.eq.s32.totalorder %v793, 1
      %vm1375 = vcmp.eq.s32.totalorder %v794, 1
      %vm1376 = vcmp.eq.s32.totalorder %v795, 1
      %vm1377 = vcmp.eq.s32.totalorder %v796, 1
      %vm1378 = vcmp.eq.s32.totalorder %v797, 1
      %vm1379 = vcmp.eq.s32.totalorder %v798, 1
      %vm1380 = vcmp.eq.s32.totalorder %v799, 1
      %vm1381 = vcmp.eq.s32.totalorder %v800, 1
      %vm1382 = vcmp.eq.s32.totalorder %v801, 1
      %vm1383 = vcmp.eq.s32.totalorder %v802, 1
      %vm1384 = vcmp.eq.s32.totalorder %v803, 1
      %vm1385 = vcmp.eq.s32.totalorder %v804, 1
      %vm1386 = vcmp.eq.s32.totalorder %v805, 1
      %vm1387 = vcmp.eq.s32.totalorder %v806, 1
      %vm1388 = vcmp.eq.s32.totalorder %v807, 1
      %vm1389 = vcmp.eq.s32.totalorder %v808, 1
      %vm1390 = vcmp.eq.s32.totalorder %v809, 1
      %vm1391 = vcmp.eq.s32.totalorder %v810, 1
      %vm1392 = vcmp.eq.s32.totalorder %v811, 1
      %vm1393 = vcmp.eq.s32.totalorder %v812, 1
      %vm1394 = vcmp.eq.s32.totalorder %v813, 1
      %vm1395 = vcmp.eq.s32.totalorder %v814, 1
      %vm1396 = vcmp.eq.s32.totalorder %v815, 1
      %vm1397 = vcmp.eq.s32.totalorder %v816, 1
      %vm1398 = vcmp.eq.s32.totalorder %v817, 1
      %vm1399 = vcmp.eq.s32.totalorder %v818, 1
      %vm1400 = vcmp.eq.s32.totalorder %v819, 1
      %vm1401 = vcmp.eq.s32.totalorder %v820, 1
      %vm1402 = vcmp.eq.s32.totalorder %v821, 1
      %vm1403 = vcmp.eq.s32.totalorder %v822, 1
      %vm1404 = vcmp.eq.s32.totalorder %v823, 1
      %vm1405 = vcmp.eq.s32.totalorder %v824, 1
      %vm1406 = vcmp.eq.s32.totalorder %v825, 1
      %vm1407 = vcmp.eq.s32.totalorder %v826, 1
      %vm1408 = vcmp.eq.s32.totalorder %v827, 1
      %vm1409 = vcmp.eq.s32.totalorder %v828, 1
      %vm1410 = vcmp.eq.s32.totalorder %v829, 1
      %vm1411 = vcmp.eq.s32.totalorder %v830, 1
      %vm1412 = vcmp.eq.s32.totalorder %v831, 1
      %vm1413 = vcmp.eq.s32.totalorder %v832, 1
      %vm1414 = vcmp.eq.s32.totalorder %v833, 1
      %vm1415 = vcmp.eq.s32.totalorder %v834, 1
      %vm1416 = vcmp.eq.s32.totalorder %v835, 1
      %vm1417 = vcmp.eq.s32.totalorder %v836, 1
      %vm1418 = vcmp.eq.s32.totalorder %v837, 1
      %vm1419 = vcmp.eq.s32.totalorder %v838, 1
      %vm1420 = vcmp.eq.s32.totalorder %v839, 1
      %vm1421 = vcmp.eq.s32.totalorder %v840, 1
      %vm1422 = vcmp.eq.s32.totalorder %v841, 1
      %vm1423 = vcmp.eq.s32.totalorder %v842, 1
      %vm1424 = vcmp.eq.s32.totalorder %v843, 1
      %v1425 = vsel %vm1361, 1, 0
      %v1426 = vsel %vm1362, 1, 0
      %v1427 = vsel %vm1363, 1, 0
      %v1428 = vsel %vm1364, 1, 0
      %v1429 = vsel %vm1365, 1, 0
      %v1430 = vsel %vm1366, 1, 0
      %v1431 = vsel %vm1367, 1, 0
      %v1432 = vsel %vm1368, 1, 0
      %v1433 = vsel %vm1369, 1, 0
      %v1434 = vsel %vm1370, 1, 0
      %v1435 = vsel %vm1371, 1, 0
      %v1436 = vsel %vm1372, 1, 0
      %v1437 = vsel %vm1373, 1, 0
      %v1438 = vsel %vm1374, 1, 0
      %v1439 = vsel %vm1375, 1, 0
      %v1440 = vsel %vm1376, 1, 0
      %v1441 = vsel %vm1377, 1, 0
      %v1442 = vsel %vm1378, 1, 0
      %v1443 = vsel %vm1379, 1, 0
      %v1444 = vsel %vm1380, 1, 0
      %v1445 = vsel %vm1381, 1, 0
      %v1446 = vsel %vm1382, 1, 0
      %v1447 = vsel %vm1383, 1, 0
      %v1448 = vsel %vm1384, 1, 0
      %v1449 = vsel %vm1385, 1, 0
      %v1450 = vsel %vm1386, 1, 0
      %v1451 = vsel %vm1387, 1, 0
      %v1452 = vsel %vm1388, 1, 0
      %v1453 = vsel %vm1389, 1, 0
      %v1454 = vsel %vm1390, 1, 0
      %v1455 = vsel %vm1391, 1, 0
      %v1456 = vsel %vm1392, 1, 0
      %v1457 = vsel %vm1393, 1, 0
      %v1458 = vsel %vm1394, 1, 0
      %v1459 = vsel %vm1395, 1, 0
      %v1460 = vsel %vm1396, 1, 0
      %v1461 = vsel %vm1397, 1, 0
      %v1462 = vsel %vm1398, 1, 0
      %v1463 = vsel %vm1399, 1, 0
      %v1464 = vsel %vm1400, 1, 0
      %v1465 = vsel %vm1401, 1, 0
      %v1466 = vsel %vm1402, 1, 0
      %v1467 = vsel %vm1403, 1, 0
      %v1468 = vsel %vm1404, 1, 0
      %v1469 = vsel %vm1405, 1, 0
      %v1470 = vsel %vm1406, 1, 0
      %v1471 = vsel %vm1407, 1, 0
      %v1472 = vsel %vm1408, 1, 0
      %v1473 = vsel %vm1409, 1, 0
      %v1474 = vsel %vm1410, 1, 0
      %v1475 = vsel %vm1411, 1, 0
      %v1476 = vsel %vm1412, 1, 0
      %v1477 = vsel %vm1413, 1, 0
      %v1478 = vsel %vm1414, 1, 0
      %v1479 = vsel %vm1415, 1, 0
      %v1480 = vsel %vm1416, 1, 0
      %v1481 = vsel %vm1417, 1, 0
      %v1482 = vsel %vm1418, 1, 0
      %v1483 = vsel %vm1419, 1, 0
      %v1484 = vsel %vm1420, 1, 0
      %v1485 = vsel %vm1421, 1, 0
      %v1486 = vsel %vm1422, 1, 0
      %v1487 = vsel %vm1423, 1, 0
      %v1488 = vsel %vm1424, 1, 0
      %1489 = vset.pattern.permute.xlu0 0
      %1490 = vperm.xlu0 %1489, %v1425
      %v1491 = vpop.permute.xlu0 %1490
      %1492 = vset.pattern.permute.xlu0 0
      %1493 = vperm.xlu0 %1492, %v1426
      %v1494 = vpop.permute.xlu0 %1493
      %1495 = vset.pattern.permute.xlu0 0
      %1496 = vperm.xlu0 %1495, %v1427
      %v1497 = vpop.permute.xlu0 %1496
      %1498 = vset.pattern.permute.xlu0 0
      %1499 = vperm.xlu0 %1498, %v1428
      %v1500 = vpop.permute.xlu0 %1499
      %1501 = vset.pattern.permute.xlu0 0
      %1502 = vperm.xlu0 %1501, %v1429
      %v1503 = vpop.permute.xlu0 %1502
      %1504 = vset.pattern.permute.xlu0 0
      %1505 = vperm.xlu0 %1504, %v1430
      %v1506 = vpop.permute.xlu0 %1505
      %1507 = vset.pattern.permute.xlu0 0
      %1508 = vperm.xlu0 %1507, %v1431
      %v1509 = vpop.permute.xlu0 %1508
      %1510 = vset.pattern.permute.xlu0 0
      %1511 = vperm.xlu0 %1510, %v1432
      %v1512 = vpop.permute.xlu0 %1511
      %1513 = vset.pattern.permute.xlu0 0
      %1514 = vperm.xlu0 %1513, %v1433
      %v1515 = vpop.permute.xlu0 %1514
      %1516 = vset.pattern.permute.xlu0 0
      %1517 = vperm.xlu0 %1516, %v1434
      %v1518 = vpop.permute.xlu0 %1517
      %1519 = vset.pattern.permute.xlu0 0
      %1520 = vperm.xlu0 %1519, %v1435
      %v1521 = vpop.permute.xlu0 %1520
      %1522 = vset.pattern.permute.xlu0 0
      %1523 = vperm.xlu0 %1522, %v1436
      %v1524 = vpop.permute.xlu0 %1523
      %1525 = vset.pattern.permute.xlu0 0
      %1526 = vperm.xlu0 %1525, %v1437
      %v1527 = vpop.permute.xlu0 %1526
      %1528 = vset.pattern.permute.xlu0 0
      %1529 = vperm.xlu0 %1528, %v1438
      %v1530 = vpop.permute.xlu0 %1529
      %1531 = vset.pattern.permute.xlu0 0
      %1532 = vperm.xlu0 %1531, %v1439
      %v1533 = vpop.permute.xlu0 %1532
      %1534 = vset.pattern.permute.xlu0 0
      %1535 = vperm.xlu0 %1534, %v1440
      %v1536 = vpop.permute.xlu0 %1535
      %1537 = vset.pattern.permute.xlu0 0
      %1538 = vperm.xlu0 %1537, %v1441
      %v1539 = vpop.permute.xlu0 %1538
      %1540 = vset.pattern.permute.xlu0 0
      %1541 = vperm.xlu0 %1540, %v1442
      %v1542 = vpop.permute.xlu0 %1541
      %1543 = vset.pattern.permute.xlu0 0
      %1544 = vperm.xlu0 %1543, %v1443
      %v1545 = vpop.permute.xlu0 %1544
      %1546 = vset.pattern.permute.xlu0 0
      %1547 = vperm.xlu0 %1546, %v1444
      %v1548 = vpop.permute.xlu0 %1547
      %1549 = vset.pattern.permute.xlu0 0
      %1550 = vperm.xlu0 %1549, %v1445
      %v1551 = vpop.permute.xlu0 %1550
      %1552 = vset.pattern.permute.xlu0 0
      %1553 = vperm.xlu0 %1552, %v1446
      %v1554 = vpop.permute.xlu0 %1553
      %1555 = vset.pattern.permute.xlu0 0
      %1556 = vperm.xlu0 %1555, %v1447
      %v1557 = vpop.permute.xlu0 %1556
      %1558 = vset.pattern.permute.xlu0 0
      %1559 = vperm.xlu0 %1558, %v1448
      %v1560 = vpop.permute.xlu0 %1559
      %1561 = vset.pattern.permute.xlu0 0
      %1562 = vperm.xlu0 %1561, %v1449
      %v1563 = vpop.permute.xlu0 %1562
      %1564 = vset.pattern.permute.xlu0 0
      %1565 = vperm.xlu0 %1564, %v1450
      %v1566 = vpop.permute.xlu0 %1565
      %1567 = vset.pattern.permute.xlu0 0
      %1568 = vperm.xlu0 %1567, %v1451
      %v1569 = vpop.permute.xlu0 %1568
      %1570 = vset.pattern.permute.xlu0 0
      %1571 = vperm.xlu0 %1570, %v1452
      %v1572 = vpop.permute.xlu0 %1571
      %1573 = vset.pattern.permute.xlu0 0
      %1574 = vperm.xlu0 %1573, %v1453
      %v1575 = vpop.permute.xlu0 %1574
      %1576 = vset.pattern.permute.xlu0 0
      %1577 = vperm.xlu0 %1576, %v1454
      %v1578 = vpop.permute.xlu0 %1577
      %1579 = vset.pattern.permute.xlu0 0
      %1580 = vperm.xlu0 %1579, %v1455
      %v1581 = vpop.permute.xlu0 %1580
      %1582 = vset.pattern.permute.xlu0 0
      %1583 = vperm.xlu0 %1582, %v1456
      %v1584 = vpop.permute.xlu0 %1583
      %1585 = vset.pattern.permute.xlu0 0
      %1586 = vperm.xlu0 %1585, %v1457
      %v1587 = vpop.permute.xlu0 %1586
      %1588 = vset.pattern.permute.xlu0 0
      %1589 = vperm.xlu0 %1588, %v1458
      %v1590 = vpop.permute.xlu0 %1589
      %1591 = vset.pattern.permute.xlu0 0
      %1592 = vperm.xlu0 %1591, %v1459
      %v1593 = vpop.permute.xlu0 %1592
      %1594 = vset.pattern.permute.xlu0 0
      %1595 = vperm.xlu0 %1594, %v1460
      %v1596 = vpop.permute.xlu0 %1595
      %1597 = vset.pattern.permute.xlu0 0
      %1598 = vperm.xlu0 %1597, %v1461
      %v1599 = vpop.permute.xlu0 %1598
      %1600 = vset.pattern.permute.xlu0 0
      %1601 = vperm.xlu0 %1600, %v1462
      %v1602 = vpop.permute.xlu0 %1601
      %1603 = vset.pattern.permute.xlu0 0
      %1604 = vperm.xlu0 %1603, %v1463
      %v1605 = vpop.permute.xlu0 %1604
      %1606 = vset.pattern.permute.xlu0 0
      %1607 = vperm.xlu0 %1606, %v1464
      %v1608 = vpop.permute.xlu0 %1607
      %1609 = vset.pattern.permute.xlu0 0
      %1610 = vperm.xlu0 %1609, %v1465
      %v1611 = vpop.permute.xlu0 %1610
      %1612 = vset.pattern.permute.xlu0 0
      %1613 = vperm.xlu0 %1612, %v1466
      %v1614 = vpop.permute.xlu0 %1613
      %1615 = vset.pattern.permute.xlu0 0
      %1616 = vperm.xlu0 %1615, %v1467
      %v1617 = vpop.permute.xlu0 %1616
      %1618 = vset.pattern.permute.xlu0 0
      %1619 = vperm.xlu0 %1618, %v1468
      %v1620 = vpop.permute.xlu0 %1619
      %1621 = vset.pattern.permute.xlu0 0
      %1622 = vperm.xlu0 %1621, %v1469
      %v1623 = vpop.permute.xlu0 %1622
      %1624 = vset.pattern.permute.xlu0 0
      %1625 = vperm.xlu0 %1624, %v1470
      %v1626 = vpop.permute.xlu0 %1625
      %1627 = vset.pattern.permute.xlu0 0
      %1628 = vperm.xlu0 %1627, %v1471
      %v1629 = vpop.permute.xlu0 %1628
      %1630 = vset.pattern.permute.xlu0 0
      %1631 = vperm.xlu0 %1630, %v1472
      %v1632 = vpop.permute.xlu0 %1631
      %1633 = vset.pattern.permute.xlu0 0
      %1634 = vperm.xlu0 %1633, %v1473
      %v1635 = vpop.permute.xlu0 %1634
      %1636 = vset.pattern.permute.xlu0 0
      %1637 = vperm.xlu0 %1636, %v1474
      %v1638 = vpop.permute.xlu0 %1637
      %1639 = vset.pattern.permute.xlu0 0
      %1640 = vperm.xlu0 %1639, %v1475
      %v1641 = vpop.permute.xlu0 %1640
      %1642 = vset.pattern.permute.xlu0 0
      %1643 = vperm.xlu0 %1642, %v1476
      %v1644 = vpop.permute.xlu0 %1643
      %1645 = vset.pattern.permute.xlu0 0
      %1646 = vperm.xlu0 %1645, %v1477
      %v1647 = vpop.permute.xlu0 %1646
      %1648 = vset.pattern.permute.xlu0 0
      %1649 = vperm.xlu0 %1648, %v1478
      %v1650 = vpop.permute.xlu0 %1649
      %1651 = vset.pattern.permute.xlu0 0
      %1652 = vperm.xlu0 %1651, %v1479
      %v1653 = vpop.permute.xlu0 %1652
      %1654 = vset.pattern.permute.xlu0 0
      %1655 = vperm.xlu0 %1654, %v1480
      %v1656 = vpop.permute.xlu0 %1655
      %1657 = vset.pattern.permute.xlu0 0
      %1658 = vperm.xlu0 %1657, %v1481
      %v1659 = vpop.permute.xlu0 %1658
      %1660 = vset.pattern.permute.xlu0 0
      %1661 = vperm.xlu0 %1660, %v1482
      %v1662 = vpop.permute.xlu0 %1661
      %1663 = vset.pattern.permute.xlu0 0
      %1664 = vperm.xlu0 %1663, %v1483
      %v1665 = vpop.permute.xlu0 %1664
      %1666 = vset.pattern.permute.xlu0 0
      %1667 = vperm.xlu0 %1666, %v1484
      %v1668 = vpop.permute.xlu0 %1667
      %1669 = vset.pattern.permute.xlu0 0
      %1670 = vperm.xlu0 %1669, %v1485
      %v1671 = vpop.permute.xlu0 %1670
      %1672 = vset.pattern.permute.xlu0 0
      %1673 = vperm.xlu0 %1672, %v1486
      %v1674 = vpop.permute.xlu0 %1673
      %1675 = vset.pattern.permute.xlu0 0
      %1676 = vperm.xlu0 %1675, %v1487
      %v1677 = vpop.permute.xlu0 %1676
      %1678 = vset.pattern.permute.xlu0 0
      %1679 = vperm.xlu0 %1678, %v1488
      %v1680 = vpop.permute.xlu0 %1679
      %vm1681 = vcmp.eq.s32.totalorder %v1491, 1
      %vm1682 = vcmp.eq.s32.totalorder %v1494, 1
      %vm1683 = vcmp.eq.s32.totalorder %v1497, 1
      %vm1684 = vcmp.eq.s32.totalorder %v1500, 1
      %vm1685 = vcmp.eq.s32.totalorder %v1503, 1
      %vm1686 = vcmp.eq.s32.totalorder %v1506, 1
      %vm1687 = vcmp.eq.s32.totalorder %v1509, 1
      %vm1688 = vcmp.eq.s32.totalorder %v1512, 1
      %vm1689 = vcmp.eq.s32.totalorder %v1515, 1
      %vm1690 = vcmp.eq.s32.totalorder %v1518, 1
      %vm1691 = vcmp.eq.s32.totalorder %v1521, 1
      %vm1692 = vcmp.eq.s32.totalorder %v1524, 1
      %vm1693 = vcmp.eq.s32.totalorder %v1527, 1
      %vm1694 = vcmp.eq.s32.totalorder %v1530, 1
      %vm1695 = vcmp.eq.s32.totalorder %v1533, 1
      %vm1696 = vcmp.eq.s32.totalorder %v1536, 1
      %vm1697 = vcmp.eq.s32.totalorder %v1539, 1
      %vm1698 = vcmp.eq.s32.totalorder %v1542, 1
      %vm1699 = vcmp.eq.s32.totalorder %v1545, 1
      %vm1700 = vcmp.eq.s32.totalorder %v1548, 1
      %vm1701 = vcmp.eq.s32.totalorder %v1551, 1
      %vm1702 = vcmp.eq.s32.totalorder %v1554, 1
      %vm1703 = vcmp.eq.s32.totalorder %v1557, 1
      %vm1704 = vcmp.eq.s32.totalorder %v1560, 1
      %vm1705 = vcmp.eq.s32.totalorder %v1563, 1
      %vm1706 = vcmp.eq.s32.totalorder %v1566, 1
      %vm1707 = vcmp.eq.s32.totalorder %v1569, 1
      %vm1708 = vcmp.eq.s32.totalorder %v1572, 1
      %vm1709 = vcmp.eq.s32.totalorder %v1575, 1
      %vm1710 = vcmp.eq.s32.totalorder %v1578, 1
      %vm1711 = vcmp.eq.s32.totalorder %v1581, 1
      %vm1712 = vcmp.eq.s32.totalorder %v1584, 1
      %vm1713 = vcmp.eq.s32.totalorder %v1587, 1
      %vm1714 = vcmp.eq.s32.totalorder %v1590, 1
      %vm1715 = vcmp.eq.s32.totalorder %v1593, 1
      %vm1716 = vcmp.eq.s32.totalorder %v1596, 1
      %vm1717 = vcmp.eq.s32.totalorder %v1599, 1
      %vm1718 = vcmp.eq.s32.totalorder %v1602, 1
      %vm1719 = vcmp.eq.s32.totalorder %v1605, 1
      %vm1720 = vcmp.eq.s32.totalorder %v1608, 1
      %vm1721 = vcmp.eq.s32.totalorder %v1611, 1
      %vm1722 = vcmp.eq.s32.totalorder %v1614, 1
      %vm1723 = vcmp.eq.s32.totalorder %v1617, 1
      %vm1724 = vcmp.eq.s32.totalorder %v1620, 1
      %vm1725 = vcmp.eq.s32.totalorder %v1623, 1
      %vm1726 = vcmp.eq.s32.totalorder %v1626, 1
      %vm1727 = vcmp.eq.s32.totalorder %v1629, 1
      %vm1728 = vcmp.eq.s32.totalorder %v1632, 1
      %vm1729 = vcmp.eq.s32.totalorder %v1635, 1
      %vm1730 = vcmp.eq.s32.totalorder %v1638, 1
      %vm1731 = vcmp.eq.s32.totalorder %v1641, 1
      %vm1732 = vcmp.eq.s32.totalorder %v1644, 1
      %vm1733 = vcmp.eq.s32.totalorder %v1647, 1
      %vm1734 = vcmp.eq.s32.totalorder %v1650, 1
      %vm1735 = vcmp.eq.s32.totalorder %v1653, 1
      %vm1736 = vcmp.eq.s32.totalorder %v1656, 1
      %vm1737 = vcmp.eq.s32.totalorder %v1659, 1
      %vm1738 = vcmp.eq.s32.totalorder %v1662, 1
      %vm1739 = vcmp.eq.s32.totalorder %v1665, 1
      %vm1740 = vcmp.eq.s32.totalorder %v1668, 1
      %vm1741 = vcmp.eq.s32.totalorder %v1671, 1
      %vm1742 = vcmp.eq.s32.totalorder %v1674, 1
      %vm1743 = vcmp.eq.s32.totalorder %v1677, 1
      %vm1744 = vcmp.eq.s32.totalorder %v1680, 1
      %v1745 = vsel %vm1681, %v460, -inf
      %v1746 = vsel %vm1682, %v463, -inf
      %v1747 = vsel %vm1683, %v468, -inf
      %v1748 = vsel %vm1684, %v471, -inf
      %v1749 = vsel %vm1685, %v476, -inf
      %v1750 = vsel %vm1686, %v479, -inf
      %v1751 = vsel %vm1687, %v484, -inf
      %v1752 = vsel %vm1688, %v487, -inf
      %v1753 = vsel %vm1689, %v492, -inf
      %v1754 = vsel %vm1690, %v495, -inf
      %v1755 = vsel %vm1691, %v500, -inf
      %v1756 = vsel %vm1692, %v503, -inf
      %v1757 = vsel %vm1693, %v508, -inf
      %v1758 = vsel %vm1694, %v511, -inf
      %v1759 = vsel %vm1695, %v516, -inf
      %v1760 = vsel %vm1696, %v519, -inf
      %v1761 = vsel %vm1697, %v524, -inf
      %v1762 = vsel %vm1698, %v527, -inf
      %v1763 = vsel %vm1699, %v532, -inf
      %v1764 = vsel %vm1700, %v535, -inf
      %v1765 = vsel %vm1701, %v540, -inf
      %v1766 = vsel %vm1702, %v543, -inf
      %v1767 = vsel %vm1703, %v548, -inf
      %v1768 = vsel %vm1704, %v551, -inf
      %v1769 = vsel %vm1705, %v556, -inf
      %v1770 = vsel %vm1706, %v559, -inf
      %v1771 = vsel %vm1707, %v564, -inf
      %v1772 = vsel %vm1708, %v567, -inf
      %v1773 = vsel %vm1709, %v572, -inf
      %v1774 = vsel %vm1710, %v575, -inf
      %v1775 = vsel %vm1711, %v580, -inf
      %v1776 = vsel %vm1712, %v583, -inf
      %v1777 = vsel %vm1713, %v588, -inf
      %v1778 = vsel %vm1714, %v591, -inf
      %v1779 = vsel %vm1715, %v596, -inf
      %v1780 = vsel %vm1716, %v599, -inf
      %v1781 = vsel %vm1717, %v604, -inf
      %v1782 = vsel %vm1718, %v607, -inf
      %v1783 = vsel %vm1719, %v612, -inf
      %v1784 = vsel %vm1720, %v615, -inf
      %v1785 = vsel %vm1721, %v620, -inf
      %v1786 = vsel %vm1722, %v623, -inf
      %v1787 = vsel %vm1723, %v628, -inf
      %v1788 = vsel %vm1724, %v631, -inf
      %v1789 = vsel %vm1725, %v636, -inf
      %v1790 = vsel %vm1726, %v639, -inf
      %v1791 = vsel %vm1727, %v644, -inf
      %v1792 = vsel %vm1728, %v647, -inf
      %v1793 = vsel %vm1729, %v652, -inf
      %v1794 = vsel %vm1730, %v655, -inf
      %v1795 = vsel %vm1731, %v660, -inf
      %v1796 = vsel %vm1732, %v663, -inf
      %v1797 = vsel %vm1733, %v668, -inf
      %v1798 = vsel %vm1734, %v671, -inf
      %v1799 = vsel %vm1735, %v676, -inf
      %v1800 = vsel %vm1736, %v679, -inf
      %v1801 = vsel %vm1737, %v684, -inf
      %v1802 = vsel %vm1738, %v687, -inf
      %v1803 = vsel %vm1739, %v692, -inf
      %v1804 = vsel %vm1740, %v695, -inf
      %v1805 = vsel %vm1741, %v700, -inf
      %v1806 = vsel %vm1742, %v703, -inf
      %v1807 = vsel %vm1743, %v708, -inf
      %v1808 = vsel %vm1744, %v711, -inf
      %v1809 = vmax.f32 %v1745, %v1749
      %v1810 = vmax.f32 %v1746, %v1750
      %v1811 = vmax.f32 %v1747, %v1751
      %v1812 = vmax.f32 %v1748, %v1752
      %v1813 = vmax.f32 %v1809, %v1753
      %v1814 = vmax.f32 %v1810, %v1754
      %v1815 = vmax.f32 %v1811, %v1755
      %v1816 = vmax.f32 %v1812, %v1756
      %v1817 = vmax.f32 %v1813, %v1757
      %v1818 = vmax.f32 %v1814, %v1758
      %v1819 = vmax.f32 %v1815, %v1759
      %v1820 = vmax.f32 %v1816, %v1760
      %v1821 = vmax.f32 %v1817, %v1761
      %v1822 = vmax.f32 %v1818, %v1762
      %v1823 = vmax.f32 %v1819, %v1763
      %v1824 = vmax.f32 %v1820, %v1764
      %v1825 = vmax.f32 %v1821, %v1765
      %v1826 = vmax.f32 %v1822, %v1766
      %v1827 = vmax.f32 %v1823, %v1767
      %v1828 = vmax.f32 %v1824, %v1768
      %v1829 = vmax.f32 %v1825, %v1769
      %v1830 = vmax.f32 %v1826, %v1770
      %v1831 = vmax.f32 %v1827, %v1771
      %v1832 = vmax.f32 %v1828, %v1772
      %v1833 = vmax.f32 %v1829, %v1773
      %v1834 = vmax.f32 %v1830, %v1774
      %v1835 = vmax.f32 %v1831, %v1775
      %v1836 = vmax.f32 %v1832, %v1776
      %v1837 = vmax.f32 %v1833, %v1777
      %v1838 = vmax.f32 %v1834, %v1778
      %v1839 = vmax.f32 %v1835, %v1779
      %v1840 = vmax.f32 %v1836, %v1780
      %v1841 = vmax.f32 %v1837, %v1781
      %v1842 = vmax.f32 %v1838, %v1782
      %v1843 = vmax.f32 %v1839, %v1783
      %v1844 = vmax.f32 %v1840, %v1784
      %v1845 = vmax.f32 %v1841, %v1785
      %v1846 = vmax.f32 %v1842, %v1786
      %v1847 = vmax.f32 %v1843, %v1787
      %v1848 = vmax.f32 %v1844, %v1788
      %v1849 = vmax.f32 %v1845, %v1789
      %v1850 = vmax.f32 %v1846, %v1790
      %v1851 = vmax.f32 %v1847, %v1791
      %v1852 = vmax.f32 %v1848, %v1792
      %v1853 = vmax.f32 %v1849, %v1793
      %v1854 = vmax.f32 %v1850, %v1794
      %v1855 = vmax.f32 %v1851, %v1795
      %v1856 = vmax.f32 %v1852, %v1796
      %v1857 = vmax.f32 %v1853, %v1797
      %v1858 = vmax.f32 %v1854, %v1798
      %v1859 = vmax.f32 %v1855, %v1799
      %v1860 = vmax.f32 %v1856, %v1800
      %v1861 = vmax.f32 %v1857, %v1801
      %v1862 = vmax.f32 %v1858, %v1802
      %v1863 = vmax.f32 %v1859, %v1803
      %v1864 = vmax.f32 %v1860, %v1804
      %v1865 = vmax.f32 %v1861, %v1805
      %v1866 = vmax.f32 %v1862, %v1806
      %v1867 = vmax.f32 %v1863, %v1807
      %v1868 = vmax.f32 %v1864, %v1808
      %v1869 = vmax.f32 %v1865, %v1866
      %v1870 = vmax.f32 %v1867, %v1868
      %v1871 = vmax.f32 %v1869, %v1870
      %v1872 = vrot.slane %v1871, 4
      %v1873 = vmax.f32 %v1871, %v1872
      %v1874 = vrot.slane %v1873, 2
      %v1875 = vmax.f32 %v1873, %v1874
      %v1876 = vrot.slane %v1875, 1
      %v1877 = vmax.f32 %v1875, %v1876
      %vm1878 = vcmp.eq.s32.totalorder %v780, 2
      %vm1879 = vcmp.eq.s32.totalorder %v781, 2
      %vm1880 = vcmp.eq.s32.totalorder %v782, 2
      %vm1881 = vcmp.eq.s32.totalorder %v783, 2
      %vm1882 = vcmp.eq.s32.totalorder %v784, 2
      %vm1883 = vcmp.eq.s32.totalorder %v785, 2
      %vm1884 = vcmp.eq.s32.totalorder %v786, 2
      %vm1885 = vcmp.eq.s32.totalorder %v787, 2
      %vm1886 = vcmp.eq.s32.totalorder %v788, 2
      %vm1887 = vcmp.eq.s32.totalorder %v789, 2
      %vm1888 = vcmp.eq.s32.totalorder %v790, 2
      %vm1889 = vcmp.eq.s32.totalorder %v791, 2
      %vm1890 = vcmp.eq.s32.totalorder %v792, 2
      %vm1891 = vcmp.eq.s32.totalorder %v793, 2
      %vm1892 = vcmp.eq.s32.totalorder %v794, 2
      %vm1893 = vcmp.eq.s32.totalorder %v795, 2
      %vm1894 = vcmp.eq.s32.totalorder %v796, 2
      %vm1895 = vcmp.eq.s32.totalorder %v797, 2
      %vm1896 = vcmp.eq.s32.totalorder %v798, 2
      %vm1897 = vcmp.eq.s32.totalorder %v799, 2
      %vm1898 = vcmp.eq.s32.totalorder %v800, 2
      %vm1899 = vcmp.eq.s32.totalorder %v801, 2
      %vm1900 = vcmp.eq.s32.totalorder %v802, 2
      %vm1901 = vcmp.eq.s32.totalorder %v803, 2
      %vm1902 = vcmp.eq.s32.totalorder %v804, 2
      %vm1903 = vcmp.eq.s32.totalorder %v805, 2
      %vm1904 = vcmp.eq.s32.totalorder %v806, 2
      %vm1905 = vcmp.eq.s32.totalorder %v807, 2
      %vm1906 = vcmp.eq.s32.totalorder %v808, 2
      %vm1907 = vcmp.eq.s32.totalorder %v809, 2
      %vm1908 = vcmp.eq.s32.totalorder %v810, 2
      %vm1909 = vcmp.eq.s32.totalorder %v811, 2
      %vm1910 = vcmp.eq.s32.totalorder %v812, 2
      %vm1911 = vcmp.eq.s32.totalorder %v813, 2
      %vm1912 = vcmp.eq.s32.totalorder %v814, 2
      %vm1913 = vcmp.eq.s32.totalorder %v815, 2
      %vm1914 = vcmp.eq.s32.totalorder %v816, 2
      %vm1915 = vcmp.eq.s32.totalorder %v817, 2
      %vm1916 = vcmp.eq.s32.totalorder %v818, 2
      %vm1917 = vcmp.eq.s32.totalorder %v819, 2
      %vm1918 = vcmp.eq.s32.totalorder %v820, 2
      %vm1919 = vcmp.eq.s32.totalorder %v821, 2
      %vm1920 = vcmp.eq.s32.totalorder %v822, 2
      %vm1921 = vcmp.eq.s32.totalorder %v823, 2
      %vm1922 = vcmp.eq.s32.totalorder %v824, 2
      %vm1923 = vcmp.eq.s32.totalorder %v825, 2
      %vm1924 = vcmp.eq.s32.totalorder %v826, 2
      %vm1925 = vcmp.eq.s32.totalorder %v827, 2
      %vm1926 = vcmp.eq.s32.totalorder %v828, 2
      %vm1927 = vcmp.eq.s32.totalorder %v829, 2
      %vm1928 = vcmp.eq.s32.totalorder %v830, 2
      %vm1929 = vcmp.eq.s32.totalorder %v831, 2
      %vm1930 = vcmp.eq.s32.totalorder %v832, 2
      %vm1931 = vcmp.eq.s32.totalorder %v833, 2
      %vm1932 = vcmp.eq.s32.totalorder %v834, 2
      %vm1933 = vcmp.eq.s32.totalorder %v835, 2
      %vm1934 = vcmp.eq.s32.totalorder %v836, 2
      %vm1935 = vcmp.eq.s32.totalorder %v837, 2
      %vm1936 = vcmp.eq.s32.totalorder %v838, 2
      %vm1937 = vcmp.eq.s32.totalorder %v839, 2
      %vm1938 = vcmp.eq.s32.totalorder %v840, 2
      %vm1939 = vcmp.eq.s32.totalorder %v841, 2
      %vm1940 = vcmp.eq.s32.totalorder %v842, 2
      %vm1941 = vcmp.eq.s32.totalorder %v843, 2
      %v1942 = vsel %vm1878, 1, 0
      %v1943 = vsel %vm1879, 1, 0
      %v1944 = vsel %vm1880, 1, 0
      %v1945 = vsel %vm1881, 1, 0
      %v1946 = vsel %vm1882, 1, 0
      %v1947 = vsel %vm1883, 1, 0
      %v1948 = vsel %vm1884, 1, 0
      %v1949 = vsel %vm1885, 1, 0
      %v1950 = vsel %vm1886, 1, 0
      %v1951 = vsel %vm1887, 1, 0
      %v1952 = vsel %vm1888, 1, 0
      %v1953 = vsel %vm1889, 1, 0
      %v1954 = vsel %vm1890, 1, 0
      %v1955 = vsel %vm1891, 1, 0
      %v1956 = vsel %vm1892, 1, 0
      %v1957 = vsel %vm1893, 1, 0
      %v1958 = vsel %vm1894, 1, 0
      %v1959 = vsel %vm1895, 1, 0
      %v1960 = vsel %vm1896, 1, 0
      %v1961 = vsel %vm1897, 1, 0
      %v1962 = vsel %vm1898, 1, 0
      %v1963 = vsel %vm1899, 1, 0
      %v1964 = vsel %vm1900, 1, 0
      %v1965 = vsel %vm1901, 1, 0
      %v1966 = vsel %vm1902, 1, 0
      %v1967 = vsel %vm1903, 1, 0
      %v1968 = vsel %vm1904, 1, 0
      %v1969 = vsel %vm1905, 1, 0
      %v1970 = vsel %vm1906, 1, 0
      %v1971 = vsel %vm1907, 1, 0
      %v1972 = vsel %vm1908, 1, 0
      %v1973 = vsel %vm1909, 1, 0
      %v1974 = vsel %vm1910, 1, 0
      %v1975 = vsel %vm1911, 1, 0
      %v1976 = vsel %vm1912, 1, 0
      %v1977 = vsel %vm1913, 1, 0
      %v1978 = vsel %vm1914, 1, 0
      %v1979 = vsel %vm1915, 1, 0
      %v1980 = vsel %vm1916, 1, 0
      %v1981 = vsel %vm1917, 1, 0
      %v1982 = vsel %vm1918, 1, 0
      %v1983 = vsel %vm1919, 1, 0
      %v1984 = vsel %vm1920, 1, 0
      %v1985 = vsel %vm1921, 1, 0
      %v1986 = vsel %vm1922, 1, 0
      %v1987 = vsel %vm1923, 1, 0
      %v1988 = vsel %vm1924, 1, 0
      %v1989 = vsel %vm1925, 1, 0
      %v1990 = vsel %vm1926, 1, 0
      %v1991 = vsel %vm1927, 1, 0
      %v1992 = vsel %vm1928, 1, 0
      %v1993 = vsel %vm1929, 1, 0
      %v1994 = vsel %vm1930, 1, 0
      %v1995 = vsel %vm1931, 1, 0
      %v1996 = vsel %vm1932, 1, 0
      %v1997 = vsel %vm1933, 1, 0
      %v1998 = vsel %vm1934, 1, 0
      %v1999 = vsel %vm1935, 1, 0
      %v2000 = vsel %vm1936, 1, 0
      %v2001 = vsel %vm1937, 1, 0
      %v2002 = vsel %vm1938, 1, 0
      %v2003 = vsel %vm1939, 1, 0
      %v2004 = vsel %vm1940, 1, 0
      %v2005 = vsel %vm1941, 1, 0
      %2006 = vset.pattern.permute.xlu0 0
      %2007 = vperm.xlu0 %2006, %v1942
      %v2008 = vpop.permute.xlu0 %2007
      %2009 = vset.pattern.permute.xlu0 0
      %2010 = vperm.xlu0 %2009, %v1943
      %v2011 = vpop.permute.xlu0 %2010
      %2012 = vset.pattern.permute.xlu0 0
      %2013 = vperm.xlu0 %2012, %v1944
      %v2014 = vpop.permute.xlu0 %2013
      %2015 = vset.pattern.permute.xlu0 0
      %2016 = vperm.xlu0 %2015, %v1945
      %v2017 = vpop.permute.xlu0 %2016
      %2018 = vset.pattern.permute.xlu0 0
      %2019 = vperm.xlu0 %2018, %v1946
      %v2020 = vpop.permute.xlu0 %2019
      %2021 = vset.pattern.permute.xlu0 0
      %2022 = vperm.xlu0 %2021, %v1947
      %v2023 = vpop.permute.xlu0 %2022
      %2024 = vset.pattern.permute.xlu0 0
      %2025 = vperm.xlu0 %2024, %v1948
      %v2026 = vpop.permute.xlu0 %2025
      %2027 = vset.pattern.permute.xlu0 0
      %2028 = vperm.xlu0 %2027, %v1949
      %v2029 = vpop.permute.xlu0 %2028
      %2030 = vset.pattern.permute.xlu0 0
      %2031 = vperm.xlu0 %2030, %v1950
      %v2032 = vpop.permute.xlu0 %2031
      %2033 = vset.pattern.permute.xlu0 0
      %2034 = vperm.xlu0 %2033, %v1951
      %v2035 = vpop.permute.xlu0 %2034
      %2036 = vset.pattern.permute.xlu0 0
      %2037 = vperm.xlu0 %2036, %v1952
      %v2038 = vpop.permute.xlu0 %2037
      %2039 = vset.pattern.permute.xlu0 0
      %2040 = vperm.xlu0 %2039, %v1953
      %v2041 = vpop.permute.xlu0 %2040
      %2042 = vset.pattern.permute.xlu0 0
      %2043 = vperm.xlu0 %2042, %v1954
      %v2044 = vpop.permute.xlu0 %2043
      %2045 = vset.pattern.permute.xlu0 0
      %2046 = vperm.xlu0 %2045, %v1955
      %v2047 = vpop.permute.xlu0 %2046
      %2048 = vset.pattern.permute.xlu0 0
      %2049 = vperm.xlu0 %2048, %v1956
      %v2050 = vpop.permute.xlu0 %2049
      %2051 = vset.pattern.permute.xlu0 0
      %2052 = vperm.xlu0 %2051, %v1957
      %v2053 = vpop.permute.xlu0 %2052
      %2054 = vset.pattern.permute.xlu0 0
      %2055 = vperm.xlu0 %2054, %v1958
      %v2056 = vpop.permute.xlu0 %2055
      %2057 = vset.pattern.permute.xlu0 0
      %2058 = vperm.xlu0 %2057, %v1959
      %v2059 = vpop.permute.xlu0 %2058
      %2060 = vset.pattern.permute.xlu0 0
      %2061 = vperm.xlu0 %2060, %v1960
      %v2062 = vpop.permute.xlu0 %2061
      %2063 = vset.pattern.permute.xlu0 0
      %2064 = vperm.xlu0 %2063, %v1961
      %v2065 = vpop.permute.xlu0 %2064
      %2066 = vset.pattern.permute.xlu0 0
      %2067 = vperm.xlu0 %2066, %v1962
      %v2068 = vpop.permute.xlu0 %2067
      %2069 = vset.pattern.permute.xlu0 0
      %2070 = vperm.xlu0 %2069, %v1963
      %v2071 = vpop.permute.xlu0 %2070
      %2072 = vset.pattern.permute.xlu0 0
      %2073 = vperm.xlu0 %2072, %v1964
      %v2074 = vpop.permute.xlu0 %2073
      %2075 = vset.pattern.permute.xlu0 0
      %2076 = vperm.xlu0 %2075, %v1965
      %v2077 = vpop.permute.xlu0 %2076
      %2078 = vset.pattern.permute.xlu0 0
      %2079 = vperm.xlu0 %2078, %v1966
      %v2080 = vpop.permute.xlu0 %2079
      %2081 = vset.pattern.permute.xlu0 0
      %2082 = vperm.xlu0 %2081, %v1967
      %v2083 = vpop.permute.xlu0 %2082
      %2084 = vset.pattern.permute.xlu0 0
      %2085 = vperm.xlu0 %2084, %v1968
      %v2086 = vpop.permute.xlu0 %2085
      %2087 = vset.pattern.permute.xlu0 0
      %2088 = vperm.xlu0 %2087, %v1969
      %v2089 = vpop.permute.xlu0 %2088
      %2090 = vset.pattern.permute.xlu0 0
      %2091 = vperm.xlu0 %2090, %v1970
      %v2092 = vpop.permute.xlu0 %2091
      %2093 = vset.pattern.permute.xlu0 0
      %2094 = vperm.xlu0 %2093, %v1971
      %v2095 = vpop.permute.xlu0 %2094
      %2096 = vset.pattern.permute.xlu0 0
      %2097 = vperm.xlu0 %2096, %v1972
      %v2098 = vpop.permute.xlu0 %2097
      %2099 = vset.pattern.permute.xlu0 0
      %2100 = vperm.xlu0 %2099, %v1973
      %v2101 = vpop.permute.xlu0 %2100
      %2102 = vset.pattern.permute.xlu0 0
      %2103 = vperm.xlu0 %2102, %v1974
      %v2104 = vpop.permute.xlu0 %2103
      %2105 = vset.pattern.permute.xlu0 0
      %2106 = vperm.xlu0 %2105, %v1975
      %v2107 = vpop.permute.xlu0 %2106
      %2108 = vset.pattern.permute.xlu0 0
      %2109 = vperm.xlu0 %2108, %v1976
      %v2110 = vpop.permute.xlu0 %2109
      %2111 = vset.pattern.permute.xlu0 0
      %2112 = vperm.xlu0 %2111, %v1977
      %v2113 = vpop.permute.xlu0 %2112
      %2114 = vset.pattern.permute.xlu0 0
      %2115 = vperm.xlu0 %2114, %v1978
      %v2116 = vpop.permute.xlu0 %2115
      %2117 = vset.pattern.permute.xlu0 0
      %2118 = vperm.xlu0 %2117, %v1979
      %v2119 = vpop.permute.xlu0 %2118
      %2120 = vset.pattern.permute.xlu0 0
      %2121 = vperm.xlu0 %2120, %v1980
      %v2122 = vpop.permute.xlu0 %2121
      %2123 = vset.pattern.permute.xlu0 0
      %2124 = vperm.xlu0 %2123, %v1981
      %v2125 = vpop.permute.xlu0 %2124
      %2126 = vset.pattern.permute.xlu0 0
      %2127 = vperm.xlu0 %2126, %v1982
      %v2128 = vpop.permute.xlu0 %2127
      %2129 = vset.pattern.permute.xlu0 0
      %2130 = vperm.xlu0 %2129, %v1983
      %v2131 = vpop.permute.xlu0 %2130
      %2132 = vset.pattern.permute.xlu0 0
      %2133 = vperm.xlu0 %2132, %v1984
      %v2134 = vpop.permute.xlu0 %2133
      %2135 = vset.pattern.permute.xlu0 0
      %2136 = vperm.xlu0 %2135, %v1985
      %v2137 = vpop.permute.xlu0 %2136
      %2138 = vset.pattern.permute.xlu0 0
      %2139 = vperm.xlu0 %2138, %v1986
      %v2140 = vpop.permute.xlu0 %2139
      %2141 = vset.pattern.permute.xlu0 0
      %2142 = vperm.xlu0 %2141, %v1987
      %v2143 = vpop.permute.xlu0 %2142
      %2144 = vset.pattern.permute.xlu0 0
      %2145 = vperm.xlu0 %2144, %v1988
      %v2146 = vpop.permute.xlu0 %2145
      %2147 = vset.pattern.permute.xlu0 0
      %2148 = vperm.xlu0 %2147, %v1989
      %v2149 = vpop.permute.xlu0 %2148
      %2150 = vset.pattern.permute.xlu0 0
      %2151 = vperm.xlu0 %2150, %v1990
      %v2152 = vpop.permute.xlu0 %2151
      %2153 = vset.pattern.permute.xlu0 0
      %2154 = vperm.xlu0 %2153, %v1991
      %v2155 = vpop.permute.xlu0 %2154
      %2156 = vset.pattern.permute.xlu0 0
      %2157 = vperm.xlu0 %2156, %v1992
      %v2158 = vpop.permute.xlu0 %2157
      %2159 = vset.pattern.permute.xlu0 0
      %2160 = vperm.xlu0 %2159, %v1993
      %v2161 = vpop.permute.xlu0 %2160
      %2162 = vset.pattern.permute.xlu0 0
      %2163 = vperm.xlu0 %2162, %v1994
      %v2164 = vpop.permute.xlu0 %2163
      %2165 = vset.pattern.permute.xlu0 0
      %2166 = vperm.xlu0 %2165, %v1995
      %v2167 = vpop.permute.xlu0 %2166
      %2168 = vset.pattern.permute.xlu0 0
      %2169 = vperm.xlu0 %2168, %v1996
      %v2170 = vpop.permute.xlu0 %2169
      %2171 = vset.pattern.permute.xlu0 0
      %2172 = vperm.xlu0 %2171, %v1997
      %v2173 = vpop.permute.xlu0 %2172
      %2174 = vset.pattern.permute.xlu0 0
      %2175 = vperm.xlu0 %2174, %v1998
      %v2176 = vpop.permute.xlu0 %2175
      %2177 = vset.pattern.permute.xlu0 0
      %2178 = vperm.xlu0 %2177, %v1999
      %v2179 = vpop.permute.xlu0 %2178
      %2180 = vset.pattern.permute.xlu0 0
      %2181 = vperm.xlu0 %2180, %v2000
      %v2182 = vpop.permute.xlu0 %2181
      %2183 = vset.pattern.permute.xlu0 0
      %2184 = vperm.xlu0 %2183, %v2001
      %v2185 = vpop.permute.xlu0 %2184
      %2186 = vset.pattern.permute.xlu0 0
      %2187 = vperm.xlu0 %2186, %v2002
      %v2188 = vpop.permute.xlu0 %2187
      %2189 = vset.pattern.permute.xlu0 0
      %2190 = vperm.xlu0 %2189, %v2003
      %v2191 = vpop.permute.xlu0 %2190
      %2192 = vset.pattern.permute.xlu0 0
      %2193 = vperm.xlu0 %2192, %v2004
      %v2194 = vpop.permute.xlu0 %2193
      %2195 = vset.pattern.permute.xlu0 0
      %2196 = vperm.xlu0 %2195, %v2005
      %v2197 = vpop.permute.xlu0 %2196
      %vm2198 = vcmp.eq.s32.totalorder %v2008, 1
      %vm2199 = vcmp.eq.s32.totalorder %v2011, 1
      %vm2200 = vcmp.eq.s32.totalorder %v2014, 1
      %vm2201 = vcmp.eq.s32.totalorder %v2017, 1
      %vm2202 = vcmp.eq.s32.totalorder %v2020, 1
      %vm2203 = vcmp.eq.s32.totalorder %v2023, 1
      %vm2204 = vcmp.eq.s32.totalorder %v2026, 1
      %vm2205 = vcmp.eq.s32.totalorder %v2029, 1
      %vm2206 = vcmp.eq.s32.totalorder %v2032, 1
      %vm2207 = vcmp.eq.s32.totalorder %v2035, 1
      %vm2208 = vcmp.eq.s32.totalorder %v2038, 1
      %vm2209 = vcmp.eq.s32.totalorder %v2041, 1
      %vm2210 = vcmp.eq.s32.totalorder %v2044, 1
      %vm2211 = vcmp.eq.s32.totalorder %v2047, 1
      %vm2212 = vcmp.eq.s32.totalorder %v2050, 1
      %vm2213 = vcmp.eq.s32.totalorder %v2053, 1
      %vm2214 = vcmp.eq.s32.totalorder %v2056, 1
      %vm2215 = vcmp.eq.s32.totalorder %v2059, 1
      %vm2216 = vcmp.eq.s32.totalorder %v2062, 1
      %vm2217 = vcmp.eq.s32.totalorder %v2065, 1
      %vm2218 = vcmp.eq.s32.totalorder %v2068, 1
      %vm2219 = vcmp.eq.s32.totalorder %v2071, 1
      %vm2220 = vcmp.eq.s32.totalorder %v2074, 1
      %vm2221 = vcmp.eq.s32.totalorder %v2077, 1
      %vm2222 = vcmp.eq.s32.totalorder %v2080, 1
      %vm2223 = vcmp.eq.s32.totalorder %v2083, 1
      %vm2224 = vcmp.eq.s32.totalorder %v2086, 1
      %vm2225 = vcmp.eq.s32.totalorder %v2089, 1
      %vm2226 = vcmp.eq.s32.totalorder %v2092, 1
      %vm2227 = vcmp.eq.s32.totalorder %v2095, 1
      %vm2228 = vcmp.eq.s32.totalorder %v2098, 1
      %vm2229 = vcmp.eq.s32.totalorder %v2101, 1
      %vm2230 = vcmp.eq.s32.totalorder %v2104, 1
      %vm2231 = vcmp.eq.s32.totalorder %v2107, 1
      %vm2232 = vcmp.eq.s32.totalorder %v2110, 1
      %vm2233 = vcmp.eq.s32.totalorder %v2113, 1
      %vm2234 = vcmp.eq.s32.totalorder %v2116, 1
      %vm2235 = vcmp.eq.s32.totalorder %v2119, 1
      %vm2236 = vcmp.eq.s32.totalorder %v2122, 1
      %vm2237 = vcmp.eq.s32.totalorder %v2125, 1
      %vm2238 = vcmp.eq.s32.totalorder %v2128, 1
      %vm2239 = vcmp.eq.s32.totalorder %v2131, 1
      %vm2240 = vcmp.eq.s32.totalorder %v2134, 1
      %vm2241 = vcmp.eq.s32.totalorder %v2137, 1
      %vm2242 = vcmp.eq.s32.totalorder %v2140, 1
      %vm2243 = vcmp.eq.s32.totalorder %v2143, 1
      %vm2244 = vcmp.eq.s32.totalorder %v2146, 1
      %vm2245 = vcmp.eq.s32.totalorder %v2149, 1
      %vm2246 = vcmp.eq.s32.totalorder %v2152, 1
      %vm2247 = vcmp.eq.s32.totalorder %v2155, 1
      %vm2248 = vcmp.eq.s32.totalorder %v2158, 1
      %vm2249 = vcmp.eq.s32.totalorder %v2161, 1
      %vm2250 = vcmp.eq.s32.totalorder %v2164, 1
      %vm2251 = vcmp.eq.s32.totalorder %v2167, 1
      %vm2252 = vcmp.eq.s32.totalorder %v2170, 1
      %vm2253 = vcmp.eq.s32.totalorder %v2173, 1
      %vm2254 = vcmp.eq.s32.totalorder %v2176, 1
      %vm2255 = vcmp.eq.s32.totalorder %v2179, 1
      %vm2256 = vcmp.eq.s32.totalorder %v2182, 1
      %vm2257 = vcmp.eq.s32.totalorder %v2185, 1
      %vm2258 = vcmp.eq.s32.totalorder %v2188, 1
      %vm2259 = vcmp.eq.s32.totalorder %v2191, 1
      %vm2260 = vcmp.eq.s32.totalorder %v2194, 1
      %vm2261 = vcmp.eq.s32.totalorder %v2197, 1
      %v2262 = vsel %vm2198, %v460, -inf
      %v2263 = vsel %vm2199, %v463, -inf
      %v2264 = vsel %vm2200, %v468, -inf
      %v2265 = vsel %vm2201, %v471, -inf
      %v2266 = vsel %vm2202, %v476, -inf
      %v2267 = vsel %vm2203, %v479, -inf
      %v2268 = vsel %vm2204, %v484, -inf
      %v2269 = vsel %vm2205, %v487, -inf
      %v2270 = vsel %vm2206, %v492, -inf
      %v2271 = vsel %vm2207, %v495, -inf
      %v2272 = vsel %vm2208, %v500, -inf
      %v2273 = vsel %vm2209, %v503, -inf
      %v2274 = vsel %vm2210, %v508, -inf
      %v2275 = vsel %vm2211, %v511, -inf
      %v2276 = vsel %vm2212, %v516, -inf
      %v2277 = vsel %vm2213, %v519, -inf
      %v2278 = vsel %vm2214, %v524, -inf
      %v2279 = vsel %vm2215, %v527, -inf
      %v2280 = vsel %vm2216, %v532, -inf
      %v2281 = vsel %vm2217, %v535, -inf
      %v2282 = vsel %vm2218, %v540, -inf
      %v2283 = vsel %vm2219, %v543, -inf
      %v2284 = vsel %vm2220, %v548, -inf
      %v2285 = vsel %vm2221, %v551, -inf
      %v2286 = vsel %vm2222, %v556, -inf
      %v2287 = vsel %vm2223, %v559, -inf
      %v2288 = vsel %vm2224, %v564, -inf
      %v2289 = vsel %vm2225, %v567, -inf
      %v2290 = vsel %vm2226, %v572, -inf
      %v2291 = vsel %vm2227, %v575, -inf
      %v2292 = vsel %vm2228, %v580, -inf
      %v2293 = vsel %vm2229, %v583, -inf
      %v2294 = vsel %vm2230, %v588, -inf
      %v2295 = vsel %vm2231, %v591, -inf
      %v2296 = vsel %vm2232, %v596, -inf
      %v2297 = vsel %vm2233, %v599, -inf
      %v2298 = vsel %vm2234, %v604, -inf
      %v2299 = vsel %vm2235, %v607, -inf
      %v2300 = vsel %vm2236, %v612, -inf
      %v2301 = vsel %vm2237, %v615, -inf
      %v2302 = vsel %vm2238, %v620, -inf
      %v2303 = vsel %vm2239, %v623, -inf
      %v2304 = vsel %vm2240, %v628, -inf
      %v2305 = vsel %vm2241, %v631, -inf
      %v2306 = vsel %vm2242, %v636, -inf
      %v2307 = vsel %vm2243, %v639, -inf
      %v2308 = vsel %vm2244, %v644, -inf
      %v2309 = vsel %vm2245, %v647, -inf
      %v2310 = vsel %vm2246, %v652, -inf
      %v2311 = vsel %vm2247, %v655, -inf
      %v2312 = vsel %vm2248, %v660, -inf
      %v2313 = vsel %vm2249, %v663, -inf
      %v2314 = vsel %vm2250, %v668, -inf
      %v2315 = vsel %vm2251, %v671, -inf
      %v2316 = vsel %vm2252, %v676, -inf
      %v2317 = vsel %vm2253, %v679, -inf
      %v2318 = vsel %vm2254, %v684, -inf
      %v2319 = vsel %vm2255, %v687, -inf
      %v2320 = vsel %vm2256, %v692, -inf
      %v2321 = vsel %vm2257, %v695, -inf
      %v2322 = vsel %vm2258, %v700, -inf
      %v2323 = vsel %vm2259, %v703, -inf
      %v2324 = vsel %vm2260, %v708, -inf
      %v2325 = vsel %vm2261, %v711, -inf
      %v2326 = vmax.f32 %v2262, %v2266
      %v2327 = vmax.f32 %v2263, %v2267
      %v2328 = vmax.f32 %v2264, %v2268
      %v2329 = vmax.f32 %v2265, %v2269
      %v2330 = vmax.f32 %v2326, %v2270
      %v2331 = vmax.f32 %v2327, %v2271
      %v2332 = vmax.f32 %v2328, %v2272
      %v2333 = vmax.f32 %v2329, %v2273
      %v2334 = vmax.f32 %v2330, %v2274
      %v2335 = vmax.f32 %v2331, %v2275
      %v2336 = vmax.f32 %v2332, %v2276
      %v2337 = vmax.f32 %v2333, %v2277
      %v2338 = vmax.f32 %v2334, %v2278
      %v2339 = vmax.f32 %v2335, %v2279
      %v2340 = vmax.f32 %v2336, %v2280
      %v2341 = vmax.f32 %v2337, %v2281
      %v2342 = vmax.f32 %v2338, %v2282
      %v2343 = vmax.f32 %v2339, %v2283
      %v2344 = vmax.f32 %v2340, %v2284
      %v2345 = vmax.f32 %v2341, %v2285
      %v2346 = vmax.f32 %v2342, %v2286
      %v2347 = vmax.f32 %v2343, %v2287
      %v2348 = vmax.f32 %v2344, %v2288
      %v2349 = vmax.f32 %v2345, %v2289
      %v2350 = vmax.f32 %v2346, %v2290
      %v2351 = vmax.f32 %v2347, %v2291
      %v2352 = vmax.f32 %v2348, %v2292
      %v2353 = vmax.f32 %v2349, %v2293
      %v2354 = vmax.f32 %v2350, %v2294
      %v2355 = vmax.f32 %v2351, %v2295
      %v2356 = vmax.f32 %v2352, %v2296
      %v2357 = vmax.f32 %v2353, %v2297
      %v2358 = vmax.f32 %v2354, %v2298
      %v2359 = vmax.f32 %v2355, %v2299
      %v2360 = vmax.f32 %v2356, %v2300
      %v2361 = vmax.f32 %v2357, %v2301
      %v2362 = vmax.f32 %v2358, %v2302
      %v2363 = vmax.f32 %v2359, %v2303
      %v2364 = vmax.f32 %v2360, %v2304
      %v2365 = vmax.f32 %v2361, %v2305
      %v2366 = vmax.f32 %v2362, %v2306
      %v2367 = vmax.f32 %v2363, %v2307
      %v2368 = vmax.f32 %v2364, %v2308
      %v2369 = vmax.f32 %v2365, %v2309
      %v2370 = vmax.f32 %v2366, %v2310
      %v2371 = vmax.f32 %v2367, %v2311
      %v2372 = vmax.f32 %v2368, %v2312
      %v2373 = vmax.f32 %v2369, %v2313
      %v2374 = vmax.f32 %v2370, %v2314
      %v2375 = vmax.f32 %v2371, %v2315
      %v2376 = vmax.f32 %v2372, %v2316
      %v2377 = vmax.f32 %v2373, %v2317
      %v2378 = vmax.f32 %v2374, %v2318
      %v2379 = vmax.f32 %v2375, %v2319
      %v2380 = vmax.f32 %v2376, %v2320
      %v2381 = vmax.f32 %v2377, %v2321
      %v2382 = vmax.f32 %v2378, %v2322
      %v2383 = vmax.f32 %v2379, %v2323
      %v2384 = vmax.f32 %v2380, %v2324
      %v2385 = vmax.f32 %v2381, %v2325
      %v2386 = vmax.f32 %v2382, %v2383
      %v2387 = vmax.f32 %v2384, %v2385
      %v2388 = vmax.f32 %v2386, %v2387
      %v2389 = vrot.slane %v2388, 4
      %v2390 = vmax.f32 %v2388, %v2389
      %v2391 = vrot.slane %v2390, 2
      %v2392 = vmax.f32 %v2390, %v2391
      %v2393 = vrot.slane %v2392, 1
      %v2394 = vmax.f32 %v2392, %v2393
      %vm2395 = vcmp.eq.s32.totalorder %v780, 3
      %vm2396 = vcmp.eq.s32.totalorder %v781, 3
      %vm2397 = vcmp.eq.s32.totalorder %v782, 3
      %vm2398 = vcmp.eq.s32.totalorder %v783, 3
      %vm2399 = vcmp.eq.s32.totalorder %v784, 3
      %vm2400 = vcmp.eq.s32.totalorder %v785, 3
      %vm2401 = vcmp.eq.s32.totalorder %v786, 3
      %vm2402 = vcmp.eq.s32.totalorder %v787, 3
      %vm2403 = vcmp.eq.s32.totalorder %v788, 3
      %vm2404 = vcmp.eq.s32.totalorder %v789, 3
      %vm2405 = vcmp.eq.s32.totalorder %v790, 3
      %vm2406 = vcmp.eq.s32.totalorder %v791, 3
      %vm2407 = vcmp.eq.s32.totalorder %v792, 3
      %vm2408 = vcmp.eq.s32.totalorder %v793, 3
      %vm2409 = vcmp.eq.s32.totalorder %v794, 3
      %vm2410 = vcmp.eq.s32.totalorder %v795, 3
      %vm2411 = vcmp.eq.s32.totalorder %v796, 3
      %vm2412 = vcmp.eq.s32.totalorder %v797, 3
      %vm2413 = vcmp.eq.s32.totalorder %v798, 3
      %vm2414 = vcmp.eq.s32.totalorder %v799, 3
      %vm2415 = vcmp.eq.s32.totalorder %v800, 3
      %vm2416 = vcmp.eq.s32.totalorder %v801, 3
      %vm2417 = vcmp.eq.s32.totalorder %v802, 3
      %vm2418 = vcmp.eq.s32.totalorder %v803, 3
      %vm2419 = vcmp.eq.s32.totalorder %v804, 3
      %vm2420 = vcmp.eq.s32.totalorder %v805, 3
      %vm2421 = vcmp.eq.s32.totalorder %v806, 3
      %vm2422 = vcmp.eq.s32.totalorder %v807, 3
      %vm2423 = vcmp.eq.s32.totalorder %v808, 3
      %vm2424 = vcmp.eq.s32.totalorder %v809, 3
      %vm2425 = vcmp.eq.s32.totalorder %v810, 3
      %vm2426 = vcmp.eq.s32.totalorder %v811, 3
      %vm2427 = vcmp.eq.s32.totalorder %v812, 3
      %vm2428 = vcmp.eq.s32.totalorder %v813, 3
      %vm2429 = vcmp.eq.s32.totalorder %v814, 3
      %vm2430 = vcmp.eq.s32.totalorder %v815, 3
      %vm2431 = vcmp.eq.s32.totalorder %v816, 3
      %vm2432 = vcmp.eq.s32.totalorder %v817, 3
      %vm2433 = vcmp.eq.s32.totalorder %v818, 3
      %vm2434 = vcmp.eq.s32.totalorder %v819, 3
      %vm2435 = vcmp.eq.s32.totalorder %v820, 3
      %vm2436 = vcmp.eq.s32.totalorder %v821, 3
      %vm2437 = vcmp.eq.s32.totalorder %v822, 3
      %vm2438 = vcmp.eq.s32.totalorder %v823, 3
      %vm2439 = vcmp.eq.s32.totalorder %v824, 3
      %vm2440 = vcmp.eq.s32.totalorder %v825, 3
      %vm2441 = vcmp.eq.s32.totalorder %v826, 3
      %vm2442 = vcmp.eq.s32.totalorder %v827, 3
      %vm2443 = vcmp.eq.s32.totalorder %v828, 3
      %vm2444 = vcmp.eq.s32.totalorder %v829, 3
      %vm2445 = vcmp.eq.s32.totalorder %v830, 3
      %vm2446 = vcmp.eq.s32.totalorder %v831, 3
      %vm2447 = vcmp.eq.s32.totalorder %v832, 3
      %vm2448 = vcmp.eq.s32.totalorder %v833, 3
      %vm2449 = vcmp.eq.s32.totalorder %v834, 3
      %vm2450 = vcmp.eq.s32.totalorder %v835, 3
      %vm2451 = vcmp.eq.s32.totalorder %v836, 3
      %vm2452 = vcmp.eq.s32.totalorder %v837, 3
      %vm2453 = vcmp.eq.s32.totalorder %v838, 3
      %vm2454 = vcmp.eq.s32.totalorder %v839, 3
      %vm2455 = vcmp.eq.s32.totalorder %v840, 3
      %vm2456 = vcmp.eq.s32.totalorder %v841, 3
      %vm2457 = vcmp.eq.s32.totalorder %v842, 3
      %vm2458 = vcmp.eq.s32.totalorder %v843, 3
      %v2459 = vsel %vm2395, 1, 0
      %v2460 = vsel %vm2396, 1, 0
      %v2461 = vsel %vm2397, 1, 0
      %v2462 = vsel %vm2398, 1, 0
      %v2463 = vsel %vm2399, 1, 0
      %v2464 = vsel %vm2400, 1, 0
      %v2465 = vsel %vm2401, 1, 0
      %v2466 = vsel %vm2402, 1, 0
      %v2467 = vsel %vm2403, 1, 0
      %v2468 = vsel %vm2404, 1, 0
      %v2469 = vsel %vm2405, 1, 0
      %v2470 = vsel %vm2406, 1, 0
      %v2471 = vsel %vm2407, 1, 0
      %v2472 = vsel %vm2408, 1, 0
      %v2473 = vsel %vm2409, 1, 0
      %v2474 = vsel %vm2410, 1, 0
      %v2475 = vsel %vm2411, 1, 0
      %v2476 = vsel %vm2412, 1, 0
      %v2477 = vsel %vm2413, 1, 0
      %v2478 = vsel %vm2414, 1, 0
      %v2479 = vsel %vm2415, 1, 0
      %v2480 = vsel %vm2416, 1, 0
      %v2481 = vsel %vm2417, 1, 0
      %v2482 = vsel %vm2418, 1, 0
      %v2483 = vsel %vm2419, 1, 0
      %v2484 = vsel %vm2420, 1, 0
      %v2485 = vsel %vm2421, 1, 0
      %v2486 = vsel %vm2422, 1, 0
      %v2487 = vsel %vm2423, 1, 0
      %v2488 = vsel %vm2424, 1, 0
      %v2489 = vsel %vm2425, 1, 0
      %v2490 = vsel %vm2426, 1, 0
      %v2491 = vsel %vm2427, 1, 0
      %v2492 = vsel %vm2428, 1, 0
      %v2493 = vsel %vm2429, 1, 0
      %v2494 = vsel %vm2430, 1, 0
      %v2495 = vsel %vm2431, 1, 0
      %v2496 = vsel %vm2432, 1, 0
      %v2497 = vsel %vm2433, 1, 0
      %v2498 = vsel %vm2434, 1, 0
      %v2499 = vsel %vm2435, 1, 0
      %v2500 = vsel %vm2436, 1, 0
      %v2501 = vsel %vm2437, 1, 0
      %v2502 = vsel %vm2438, 1, 0
      %v2503 = vsel %vm2439, 1, 0
      %v2504 = vsel %vm2440, 1, 0
      %v2505 = vsel %vm2441, 1, 0
      %v2506 = vsel %vm2442, 1, 0
      %v2507 = vsel %vm2443, 1, 0
      %v2508 = vsel %vm2444, 1, 0
      %v2509 = vsel %vm2445, 1, 0
      %v2510 = vsel %vm2446, 1, 0
      %v2511 = vsel %vm2447, 1, 0
      %v2512 = vsel %vm2448, 1, 0
      %v2513 = vsel %vm2449, 1, 0
      %v2514 = vsel %vm2450, 1, 0
      %v2515 = vsel %vm2451, 1, 0
      %v2516 = vsel %vm2452, 1, 0
      %v2517 = vsel %vm2453, 1, 0
      %v2518 = vsel %vm2454, 1, 0
      %v2519 = vsel %vm2455, 1, 0
      %v2520 = vsel %vm2456, 1, 0
      %v2521 = vsel %vm2457, 1, 0
      %v2522 = vsel %vm2458, 1, 0
      %2523 = vset.pattern.permute.xlu0 0
      %2524 = vperm.xlu0 %2523, %v2459
      %v2525 = vpop.permute.xlu0 %2524
      %2526 = vset.pattern.permute.xlu0 0
      %2527 = vperm.xlu0 %2526, %v2460
      %v2528 = vpop.permute.xlu0 %2527
      %2529 = vset.pattern.permute.xlu0 0
      %2530 = vperm.xlu0 %2529, %v2461
      %v2531 = vpop.permute.xlu0 %2530
      %2532 = vset.pattern.permute.xlu0 0
      %2533 = vperm.xlu0 %2532, %v2462
      %v2534 = vpop.permute.xlu0 %2533
      %2535 = vset.pattern.permute.xlu0 0
      %2536 = vperm.xlu0 %2535, %v2463
      %v2537 = vpop.permute.xlu0 %2536
      %2538 = vset.pattern.permute.xlu0 0
      %2539 = vperm.xlu0 %2538, %v2464
      %v2540 = vpop.permute.xlu0 %2539
      %2541 = vset.pattern.permute.xlu0 0
      %2542 = vperm.xlu0 %2541, %v2465
      %v2543 = vpop.permute.xlu0 %2542
      %2544 = vset.pattern.permute.xlu0 0
      %2545 = vperm.xlu0 %2544, %v2466
      %v2546 = vpop.permute.xlu0 %2545
      %2547 = vset.pattern.permute.xlu0 0
      %2548 = vperm.xlu0 %2547, %v2467
      %v2549 = vpop.permute.xlu0 %2548
      %2550 = vset.pattern.permute.xlu0 0
      %2551 = vperm.xlu0 %2550, %v2468
      %v2552 = vpop.permute.xlu0 %2551
      %2553 = vset.pattern.permute.xlu0 0
      %2554 = vperm.xlu0 %2553, %v2469
      %v2555 = vpop.permute.xlu0 %2554
      %2556 = vset.pattern.permute.xlu0 0
      %2557 = vperm.xlu0 %2556, %v2470
      %v2558 = vpop.permute.xlu0 %2557
      %2559 = vset.pattern.permute.xlu0 0
      %2560 = vperm.xlu0 %2559, %v2471
      %v2561 = vpop.permute.xlu0 %2560
      %2562 = vset.pattern.permute.xlu0 0
      %2563 = vperm.xlu0 %2562, %v2472
      %v2564 = vpop.permute.xlu0 %2563
      %2565 = vset.pattern.permute.xlu0 0
      %2566 = vperm.xlu0 %2565, %v2473
      %v2567 = vpop.permute.xlu0 %2566
      %2568 = vset.pattern.permute.xlu0 0
      %2569 = vperm.xlu0 %2568, %v2474
      %v2570 = vpop.permute.xlu0 %2569
      %2571 = vset.pattern.permute.xlu0 0
      %2572 = vperm.xlu0 %2571, %v2475
      %v2573 = vpop.permute.xlu0 %2572
      %2574 = vset.pattern.permute.xlu0 0
      %2575 = vperm.xlu0 %2574, %v2476
      %v2576 = vpop.permute.xlu0 %2575
      %2577 = vset.pattern.permute.xlu0 0
      %2578 = vperm.xlu0 %2577, %v2477
      %v2579 = vpop.permute.xlu0 %2578
      %2580 = vset.pattern.permute.xlu0 0
      %2581 = vperm.xlu0 %2580, %v2478
      %v2582 = vpop.permute.xlu0 %2581
      %2583 = vset.pattern.permute.xlu0 0
      %2584 = vperm.xlu0 %2583, %v2479
      %v2585 = vpop.permute.xlu0 %2584
      %2586 = vset.pattern.permute.xlu0 0
      %2587 = vperm.xlu0 %2586, %v2480
      %v2588 = vpop.permute.xlu0 %2587
      %2589 = vset.pattern.permute.xlu0 0
      %2590 = vperm.xlu0 %2589, %v2481
      %v2591 = vpop.permute.xlu0 %2590
      %2592 = vset.pattern.permute.xlu0 0
      %2593 = vperm.xlu0 %2592, %v2482
      %v2594 = vpop.permute.xlu0 %2593
      %2595 = vset.pattern.permute.xlu0 0
      %2596 = vperm.xlu0 %2595, %v2483
      %v2597 = vpop.permute.xlu0 %2596
      %2598 = vset.pattern.permute.xlu0 0
      %2599 = vperm.xlu0 %2598, %v2484
      %v2600 = vpop.permute.xlu0 %2599
      %2601 = vset.pattern.permute.xlu0 0
      %2602 = vperm.xlu0 %2601, %v2485
      %v2603 = vpop.permute.xlu0 %2602
      %2604 = vset.pattern.permute.xlu0 0
      %2605 = vperm.xlu0 %2604, %v2486
      %v2606 = vpop.permute.xlu0 %2605
      %2607 = vset.pattern.permute.xlu0 0
      %2608 = vperm.xlu0 %2607, %v2487
      %v2609 = vpop.permute.xlu0 %2608
      %2610 = vset.pattern.permute.xlu0 0
      %2611 = vperm.xlu0 %2610, %v2488
      %v2612 = vpop.permute.xlu0 %2611
      %2613 = vset.pattern.permute.xlu0 0
      %2614 = vperm.xlu0 %2613, %v2489
      %v2615 = vpop.permute.xlu0 %2614
      %2616 = vset.pattern.permute.xlu0 0
      %2617 = vperm.xlu0 %2616, %v2490
      %v2618 = vpop.permute.xlu0 %2617
      %2619 = vset.pattern.permute.xlu0 0
      %2620 = vperm.xlu0 %2619, %v2491
      %v2621 = vpop.permute.xlu0 %2620
      %2622 = vset.pattern.permute.xlu0 0
      %2623 = vperm.xlu0 %2622, %v2492
      %v2624 = vpop.permute.xlu0 %2623
      %2625 = vset.pattern.permute.xlu0 0
      %2626 = vperm.xlu0 %2625, %v2493
      %v2627 = vpop.permute.xlu0 %2626
      %2628 = vset.pattern.permute.xlu0 0
      %2629 = vperm.xlu0 %2628, %v2494
      %v2630 = vpop.permute.xlu0 %2629
      %2631 = vset.pattern.permute.xlu0 0
      %2632 = vperm.xlu0 %2631, %v2495
      %v2633 = vpop.permute.xlu0 %2632
      %2634 = vset.pattern.permute.xlu0 0
      %2635 = vperm.xlu0 %2634, %v2496
      %v2636 = vpop.permute.xlu0 %2635
      %2637 = vset.pattern.permute.xlu0 0
      %2638 = vperm.xlu0 %2637, %v2497
      %v2639 = vpop.permute.xlu0 %2638
      %2640 = vset.pattern.permute.xlu0 0
      %2641 = vperm.xlu0 %2640, %v2498
      %v2642 = vpop.permute.xlu0 %2641
      %2643 = vset.pattern.permute.xlu0 0
      %2644 = vperm.xlu0 %2643, %v2499
      %v2645 = vpop.permute.xlu0 %2644
      %2646 = vset.pattern.permute.xlu0 0
      %2647 = vperm.xlu0 %2646, %v2500
      %v2648 = vpop.permute.xlu0 %2647
      %2649 = vset.pattern.permute.xlu0 0
      %2650 = vperm.xlu0 %2649, %v2501
      %v2651 = vpop.permute.xlu0 %2650
      %2652 = vset.pattern.permute.xlu0 0
      %2653 = vperm.xlu0 %2652, %v2502
      %v2654 = vpop.permute.xlu0 %2653
      %2655 = vset.pattern.permute.xlu0 0
      %2656 = vperm.xlu0 %2655, %v2503
      %v2657 = vpop.permute.xlu0 %2656
      %2658 = vset.pattern.permute.xlu0 0
      %2659 = vperm.xlu0 %2658, %v2504
      %v2660 = vpop.permute.xlu0 %2659
      %2661 = vset.pattern.permute.xlu0 0
      %2662 = vperm.xlu0 %2661, %v2505
      %v2663 = vpop.permute.xlu0 %2662
      %2664 = vset.pattern.permute.xlu0 0
      %2665 = vperm.xlu0 %2664, %v2506
      %v2666 = vpop.permute.xlu0 %2665
      %2667 = vset.pattern.permute.xlu0 0
      %2668 = vperm.xlu0 %2667, %v2507
      %v2669 = vpop.permute.xlu0 %2668
      %2670 = vset.pattern.permute.xlu0 0
      %2671 = vperm.xlu0 %2670, %v2508
      %v2672 = vpop.permute.xlu0 %2671
      %2673 = vset.pattern.permute.xlu0 0
      %2674 = vperm.xlu0 %2673, %v2509
      %v2675 = vpop.permute.xlu0 %2674
      %2676 = vset.pattern.permute.xlu0 0
      %2677 = vperm.xlu0 %2676, %v2510
      %v2678 = vpop.permute.xlu0 %2677
      %2679 = vset.pattern.permute.xlu0 0
      %2680 = vperm.xlu0 %2679, %v2511
      %v2681 = vpop.permute.xlu0 %2680
      %2682 = vset.pattern.permute.xlu0 0
      %2683 = vperm.xlu0 %2682, %v2512
      %v2684 = vpop.permute.xlu0 %2683
      %2685 = vset.pattern.permute.xlu0 0
      %2686 = vperm.xlu0 %2685, %v2513
      %v2687 = vpop.permute.xlu0 %2686
      %2688 = vset.pattern.permute.xlu0 0
      %2689 = vperm.xlu0 %2688, %v2514
      %v2690 = vpop.permute.xlu0 %2689
      %2691 = vset.pattern.permute.xlu0 0
      %2692 = vperm.xlu0 %2691, %v2515
      %v2693 = vpop.permute.xlu0 %2692
      %2694 = vset.pattern.permute.xlu0 0
      %2695 = vperm.xlu0 %2694, %v2516
      %v2696 = vpop.permute.xlu0 %2695
      %2697 = vset.pattern.permute.xlu0 0
      %2698 = vperm.xlu0 %2697, %v2517
      %v2699 = vpop.permute.xlu0 %2698
      %2700 = vset.pattern.permute.xlu0 0
      %2701 = vperm.xlu0 %2700, %v2518
      %v2702 = vpop.permute.xlu0 %2701
      %2703 = vset.pattern.permute.xlu0 0
      %2704 = vperm.xlu0 %2703, %v2519
      %v2705 = vpop.permute.xlu0 %2704
      %2706 = vset.pattern.permute.xlu0 0
      %2707 = vperm.xlu0 %2706, %v2520
      %v2708 = vpop.permute.xlu0 %2707
      %2709 = vset.pattern.permute.xlu0 0
      %2710 = vperm.xlu0 %2709, %v2521
      %v2711 = vpop.permute.xlu0 %2710
      %2712 = vset.pattern.permute.xlu0 0
      %2713 = vperm.xlu0 %2712, %v2522
      %v2714 = vpop.permute.xlu0 %2713
      %vm2715 = vcmp.eq.s32.totalorder %v2525, 1
      %vm2716 = vcmp.eq.s32.totalorder %v2528, 1
      %vm2717 = vcmp.eq.s32.totalorder %v2531, 1
      %vm2718 = vcmp.eq.s32.totalorder %v2534, 1
      %vm2719 = vcmp.eq.s32.totalorder %v2537, 1
      %vm2720 = vcmp.eq.s32.totalorder %v2540, 1
      %vm2721 = vcmp.eq.s32.totalorder %v2543, 1
      %vm2722 = vcmp.eq.s32.totalorder %v2546, 1
      %vm2723 = vcmp.eq.s32.totalorder %v2549, 1
      %vm2724 = vcmp.eq.s32.totalorder %v2552, 1
      %vm2725 = vcmp.eq.s32.totalorder %v2555, 1
      %vm2726 = vcmp.eq.s32.totalorder %v2558, 1
      %vm2727 = vcmp.eq.s32.totalorder %v2561, 1
      %vm2728 = vcmp.eq.s32.totalorder %v2564, 1
      %vm2729 = vcmp.eq.s32.totalorder %v2567, 1
      %vm2730 = vcmp.eq.s32.totalorder %v2570, 1
      %vm2731 = vcmp.eq.s32.totalorder %v2573, 1
      %vm2732 = vcmp.eq.s32.totalorder %v2576, 1
      %vm2733 = vcmp.eq.s32.totalorder %v2579, 1
      %vm2734 = vcmp.eq.s32.totalorder %v2582, 1
      %vm2735 = vcmp.eq.s32.totalorder %v2585, 1
      %vm2736 = vcmp.eq.s32.totalorder %v2588, 1
      %vm2737 = vcmp.eq.s32.totalorder %v2591, 1
      %vm2738 = vcmp.eq.s32.totalorder %v2594, 1
      %vm2739 = vcmp.eq.s32.totalorder %v2597, 1
      %vm2740 = vcmp.eq.s32.totalorder %v2600, 1
      %vm2741 = vcmp.eq.s32.totalorder %v2603, 1
      %vm2742 = vcmp.eq.s32.totalorder %v2606, 1
      %vm2743 = vcmp.eq.s32.totalorder %v2609, 1
      %vm2744 = vcmp.eq.s32.totalorder %v2612, 1
      %vm2745 = vcmp.eq.s32.totalorder %v2615, 1
      %vm2746 = vcmp.eq.s32.totalorder %v2618, 1
      %vm2747 = vcmp.eq.s32.totalorder %v2621, 1
      %vm2748 = vcmp.eq.s32.totalorder %v2624, 1
      %vm2749 = vcmp.eq.s32.totalorder %v2627, 1
      %vm2750 = vcmp.eq.s32.totalorder %v2630, 1
      %vm2751 = vcmp.eq.s32.totalorder %v2633, 1
      %vm2752 = vcmp.eq.s32.totalorder %v2636, 1
      %vm2753 = vcmp.eq.s32.totalorder %v2639, 1
      %vm2754 = vcmp.eq.s32.totalorder %v2642, 1
      %vm2755 = vcmp.eq.s32.totalorder %v2645, 1
      %vm2756 = vcmp.eq.s32.totalorder %v2648, 1
      %vm2757 = vcmp.eq.s32.totalorder %v2651, 1
      %vm2758 = vcmp.eq.s32.totalorder %v2654, 1
      %vm2759 = vcmp.eq.s32.totalorder %v2657, 1
      %vm2760 = vcmp.eq.s32.totalorder %v2660, 1
      %vm2761 = vcmp.eq.s32.totalorder %v2663, 1
      %vm2762 = vcmp.eq.s32.totalorder %v2666, 1
      %vm2763 = vcmp.eq.s32.totalorder %v2669, 1
      %vm2764 = vcmp.eq.s32.totalorder %v2672, 1
      %vm2765 = vcmp.eq.s32.totalorder %v2675, 1
      %vm2766 = vcmp.eq.s32.totalorder %v2678, 1
      %vm2767 = vcmp.eq.s32.totalorder %v2681, 1
      %vm2768 = vcmp.eq.s32.totalorder %v2684, 1
      %vm2769 = vcmp.eq.s32.totalorder %v2687, 1
      %vm2770 = vcmp.eq.s32.totalorder %v2690, 1
      %vm2771 = vcmp.eq.s32.totalorder %v2693, 1
      %vm2772 = vcmp.eq.s32.totalorder %v2696, 1
      %vm2773 = vcmp.eq.s32.totalorder %v2699, 1
      %vm2774 = vcmp.eq.s32.totalorder %v2702, 1
      %vm2775 = vcmp.eq.s32.totalorder %v2705, 1
      %vm2776 = vcmp.eq.s32.totalorder %v2708, 1
      %vm2777 = vcmp.eq.s32.totalorder %v2711, 1
      %vm2778 = vcmp.eq.s32.totalorder %v2714, 1
      %v2779 = vsel %vm2715, %v460, -inf
      %v2780 = vsel %vm2716, %v463, -inf
      %v2781 = vsel %vm2717, %v468, -inf
      %v2782 = vsel %vm2718, %v471, -inf
      %v2783 = vsel %vm2719, %v476, -inf
      %v2784 = vsel %vm2720, %v479, -inf
      %v2785 = vsel %vm2721, %v484, -inf
      %v2786 = vsel %vm2722, %v487, -inf
      %v2787 = vsel %vm2723, %v492, -inf
      %v2788 = vsel %vm2724, %v495, -inf
      %v2789 = vsel %vm2725, %v500, -inf
      %v2790 = vsel %vm2726, %v503, -inf
      %v2791 = vsel %vm2727, %v508, -inf
      %v2792 = vsel %vm2728, %v511, -inf
      %v2793 = vsel %vm2729, %v516, -inf
      %v2794 = vsel %vm2730, %v519, -inf
      %v2795 = vsel %vm2731, %v524, -inf
      %v2796 = vsel %vm2732, %v527, -inf
      %v2797 = vsel %vm2733, %v532, -inf
      %v2798 = vsel %vm2734, %v535, -inf
      %v2799 = vsel %vm2735, %v540, -inf
      %v2800 = vsel %vm2736, %v543, -inf
      %v2801 = vsel %vm2737, %v548, -inf
      %v2802 = vsel %vm2738, %v551, -inf
      %v2803 = vsel %vm2739, %v556, -inf
      %v2804 = vsel %vm2740, %v559, -inf
      %v2805 = vsel %vm2741, %v564, -inf
      %v2806 = vsel %vm2742, %v567, -inf
      %v2807 = vsel %vm2743, %v572, -inf
      %v2808 = vsel %vm2744, %v575, -inf
      %v2809 = vsel %vm2745, %v580, -inf
      %v2810 = vsel %vm2746, %v583, -inf
      %v2811 = vsel %vm2747, %v588, -inf
      %v2812 = vsel %vm2748, %v591, -inf
      %v2813 = vsel %vm2749, %v596, -inf
      %v2814 = vsel %vm2750, %v599, -inf
      %v2815 = vsel %vm2751, %v604, -inf
      %v2816 = vsel %vm2752, %v607, -inf
      %v2817 = vsel %vm2753, %v612, -inf
      %v2818 = vsel %vm2754, %v615, -inf
      %v2819 = vsel %vm2755, %v620, -inf
      %v2820 = vsel %vm2756, %v623, -inf
      %v2821 = vsel %vm2757, %v628, -inf
      %v2822 = vsel %vm2758, %v631, -inf
      %v2823 = vsel %vm2759, %v636, -inf
      %v2824 = vsel %vm2760, %v639, -inf
      %v2825 = vsel %vm2761, %v644, -inf
      %v2826 = vsel %vm2762, %v647, -inf
      %v2827 = vsel %vm2763, %v652, -inf
      %v2828 = vsel %vm2764, %v655, -inf
      %v2829 = vsel %vm2765, %v660, -inf
      %v2830 = vsel %vm2766, %v663, -inf
      %v2831 = vsel %vm2767, %v668, -inf
      %v2832 = vsel %vm2768, %v671, -inf
      %v2833 = vsel %vm2769, %v676, -inf
      %v2834 = vsel %vm2770, %v679, -inf
      %v2835 = vsel %vm2771, %v684, -inf
      %v2836 = vsel %vm2772, %v687, -inf
      %v2837 = vsel %vm2773, %v692, -inf
      %v2838 = vsel %vm2774, %v695, -inf
      %v2839 = vsel %vm2775, %v700, -inf
      %v2840 = vsel %vm2776, %v703, -inf
      %v2841 = vsel %vm2777, %v708, -inf
      %v2842 = vsel %vm2778, %v711, -inf
      %v2843 = vmax.f32 %v2779, %v2783
      %v2844 = vmax.f32 %v2780, %v2784
      %v2845 = vmax.f32 %v2781, %v2785
      %v2846 = vmax.f32 %v2782, %v2786
      %v2847 = vmax.f32 %v2843, %v2787
      %v2848 = vmax.f32 %v2844, %v2788
      %v2849 = vmax.f32 %v2845, %v2789
      %v2850 = vmax.f32 %v2846, %v2790
      %v2851 = vmax.f32 %v2847, %v2791
      %v2852 = vmax.f32 %v2848, %v2792
      %v2853 = vmax.f32 %v2849, %v2793
      %v2854 = vmax.f32 %v2850, %v2794
      %v2855 = vmax.f32 %v2851, %v2795
      %v2856 = vmax.f32 %v2852, %v2796
      %v2857 = vmax.f32 %v2853, %v2797
      %v2858 = vmax.f32 %v2854, %v2798
      %v2859 = vmax.f32 %v2855, %v2799
      %v2860 = vmax.f32 %v2856, %v2800
      %v2861 = vmax.f32 %v2857, %v2801
      %v2862 = vmax.f32 %v2858, %v2802
      %v2863 = vmax.f32 %v2859, %v2803
      %v2864 = vmax.f32 %v2860, %v2804
      %v2865 = vmax.f32 %v2861, %v2805
      %v2866 = vmax.f32 %v2862, %v2806
      %v2867 = vmax.f32 %v2863, %v2807
      %v2868 = vmax.f32 %v2864, %v2808
      %v2869 = vmax.f32 %v2865, %v2809
      %v2870 = vmax.f32 %v2866, %v2810
      %v2871 = vmax.f32 %v2867, %v2811
      %v2872 = vmax.f32 %v2868, %v2812
      %v2873 = vmax.f32 %v2869, %v2813
      %v2874 = vmax.f32 %v2870, %v2814
      %v2875 = vmax.f32 %v2871, %v2815
      %v2876 = vmax.f32 %v2872, %v2816
      %v2877 = vmax.f32 %v2873, %v2817
      %v2878 = vmax.f32 %v2874, %v2818
      %v2879 = vmax.f32 %v2875, %v2819
      %v2880 = vmax.f32 %v2876, %v2820
      %v2881 = vmax.f32 %v2877, %v2821
      %v2882 = vmax.f32 %v2878, %v2822
      %v2883 = vmax.f32 %v2879, %v2823
      %v2884 = vmax.f32 %v2880, %v2824
      %v2885 = vmax.f32 %v2881, %v2825
      %v2886 = vmax.f32 %v2882, %v2826
      %v2887 = vmax.f32 %v2883, %v2827
      %v2888 = vmax.f32 %v2884, %v2828
      %v2889 = vmax.f32 %v2885, %v2829
      %v2890 = vmax.f32 %v2886, %v2830
      %v2891 = vmax.f32 %v2887, %v2831
      %v2892 = vmax.f32 %v2888, %v2832
      %v2893 = vmax.f32 %v2889, %v2833
      %v2894 = vmax.f32 %v2890, %v2834
      %v2895 = vmax.f32 %v2891, %v2835
      %v2896 = vmax.f32 %v2892, %v2836
      %v2897 = vmax.f32 %v2893, %v2837
      %v2898 = vmax.f32 %v2894, %v2838
      %v2899 = vmax.f32 %v2895, %v2839
      %v2900 = vmax.f32 %v2896, %v2840
      %v2901 = vmax.f32 %v2897, %v2841
      %v2902 = vmax.f32 %v2898, %v2842
      %v2903 = vmax.f32 %v2899, %v2900
      %v2904 = vmax.f32 %v2901, %v2902
      %v2905 = vmax.f32 %v2903, %v2904
      %v2906 = vrot.slane %v2905, 4
      %v2907 = vmax.f32 %v2905, %v2906
      %v2908 = vrot.slane %v2907, 2
      %v2909 = vmax.f32 %v2907, %v2908
      %v2910 = vrot.slane %v2909, 1
      %v2911 = vmax.f32 %v2909, %v2910
      %vm2912 = vcmp.eq.s32.totalorder %v780, 4
      %vm2913 = vcmp.eq.s32.totalorder %v781, 4
      %vm2914 = vcmp.eq.s32.totalorder %v782, 4
      %vm2915 = vcmp.eq.s32.totalorder %v783, 4
      %vm2916 = vcmp.eq.s32.totalorder %v784, 4
      %vm2917 = vcmp.eq.s32.totalorder %v785, 4
      %vm2918 = vcmp.eq.s32.totalorder %v786, 4
      %vm2919 = vcmp.eq.s32.totalorder %v787, 4
      %vm2920 = vcmp.eq.s32.totalorder %v788, 4
      %vm2921 = vcmp.eq.s32.totalorder %v789, 4
      %vm2922 = vcmp.eq.s32.totalorder %v790, 4
      %vm2923 = vcmp.eq.s32.totalorder %v791, 4
      %vm2924 = vcmp.eq.s32.totalorder %v792, 4
      %vm2925 = vcmp.eq.s32.totalorder %v793, 4
      %vm2926 = vcmp.eq.s32.totalorder %v794, 4
      %vm2927 = vcmp.eq.s32.totalorder %v795, 4
      %vm2928 = vcmp.eq.s32.totalorder %v796, 4
      %vm2929 = vcmp.eq.s32.totalorder %v797, 4
      %vm2930 = vcmp.eq.s32.totalorder %v798, 4
      %vm2931 = vcmp.eq.s32.totalorder %v799, 4
      %vm2932 = vcmp.eq.s32.totalorder %v800, 4
      %vm2933 = vcmp.eq.s32.totalorder %v801, 4
      %vm2934 = vcmp.eq.s32.totalorder %v802, 4
      %vm2935 = vcmp.eq.s32.totalorder %v803, 4
      %vm2936 = vcmp.eq.s32.totalorder %v804, 4
      %vm2937 = vcmp.eq.s32.totalorder %v805, 4
      %vm2938 = vcmp.eq.s32.totalorder %v806, 4
      %vm2939 = vcmp.eq.s32.totalorder %v807, 4
      %vm2940 = vcmp.eq.s32.totalorder %v808, 4
      %vm2941 = vcmp.eq.s32.totalorder %v809, 4
      %vm2942 = vcmp.eq.s32.totalorder %v810, 4
      %vm2943 = vcmp.eq.s32.totalorder %v811, 4
      %vm2944 = vcmp.eq.s32.totalorder %v812, 4
      %vm2945 = vcmp.eq.s32.totalorder %v813, 4
      %vm2946 = vcmp.eq.s32.totalorder %v814, 4
      %vm2947 = vcmp.eq.s32.totalorder %v815, 4
      %vm2948 = vcmp.eq.s32.totalorder %v816, 4
      %vm2949 = vcmp.eq.s32.totalorder %v817, 4
      %vm2950 = vcmp.eq.s32.totalorder %v818, 4
      %vm2951 = vcmp.eq.s32.totalorder %v819, 4
      %vm2952 = vcmp.eq.s32.totalorder %v820, 4
      %vm2953 = vcmp.eq.s32.totalorder %v821, 4
      %vm2954 = vcmp.eq.s32.totalorder %v822, 4
      %vm2955 = vcmp.eq.s32.totalorder %v823, 4
      %vm2956 = vcmp.eq.s32.totalorder %v824, 4
      %vm2957 = vcmp.eq.s32.totalorder %v825, 4
      %vm2958 = vcmp.eq.s32.totalorder %v826, 4
      %vm2959 = vcmp.eq.s32.totalorder %v827, 4
      %vm2960 = vcmp.eq.s32.totalorder %v828, 4
      %vm2961 = vcmp.eq.s32.totalorder %v829, 4
      %vm2962 = vcmp.eq.s32.totalorder %v830, 4
      %vm2963 = vcmp.eq.s32.totalorder %v831, 4
      %vm2964 = vcmp.eq.s32.totalorder %v832, 4
      %vm2965 = vcmp.eq.s32.totalorder %v833, 4
      %vm2966 = vcmp.eq.s32.totalorder %v834, 4
      %vm2967 = vcmp.eq.s32.totalorder %v835, 4
      %vm2968 = vcmp.eq.s32.totalorder %v836, 4
      %vm2969 = vcmp.eq.s32.totalorder %v837, 4
      %vm2970 = vcmp.eq.s32.totalorder %v838, 4
      %vm2971 = vcmp.eq.s32.totalorder %v839, 4
      %vm2972 = vcmp.eq.s32.totalorder %v840, 4
      %vm2973 = vcmp.eq.s32.totalorder %v841, 4
      %vm2974 = vcmp.eq.s32.totalorder %v842, 4
      %vm2975 = vcmp.eq.s32.totalorder %v843, 4
      %v2976 = vsel %vm2912, 1, 0
      %v2977 = vsel %vm2913, 1, 0
      %v2978 = vsel %vm2914, 1, 0
      %v2979 = vsel %vm2915, 1, 0
      %v2980 = vsel %vm2916, 1, 0
      %v2981 = vsel %vm2917, 1, 0
      %v2982 = vsel %vm2918, 1, 0
      %v2983 = vsel %vm2919, 1, 0
      %v2984 = vsel %vm2920, 1, 0
      %v2985 = vsel %vm2921, 1, 0
      %v2986 = vsel %vm2922, 1, 0
      %v2987 = vsel %vm2923, 1, 0
      %v2988 = vsel %vm2924, 1, 0
      %v2989 = vsel %vm2925, 1, 0
      %v2990 = vsel %vm2926, 1, 0
      %v2991 = vsel %vm2927, 1, 0
      %v2992 = vsel %vm2928, 1, 0
      %v2993 = vsel %vm2929, 1, 0
      %v2994 = vsel %vm2930, 1, 0
      %v2995 = vsel %vm2931, 1, 0
      %v2996 = vsel %vm2932, 1, 0
      %v2997 = vsel %vm2933, 1, 0
      %v2998 = vsel %vm2934, 1, 0
      %v2999 = vsel %vm2935, 1, 0
      %v3000 = vsel %vm2936, 1, 0
      %v3001 = vsel %vm2937, 1, 0
      %v3002 = vsel %vm2938, 1, 0
      %v3003 = vsel %vm2939, 1, 0
      %v3004 = vsel %vm2940, 1, 0
      %v3005 = vsel %vm2941, 1, 0
      %v3006 = vsel %vm2942, 1, 0
      %v3007 = vsel %vm2943, 1, 0
      %v3008 = vsel %vm2944, 1, 0
      %v3009 = vsel %vm2945, 1, 0
      %v3010 = vsel %vm2946, 1, 0
      %v3011 = vsel %vm2947, 1, 0
      %v3012 = vsel %vm2948, 1, 0
      %v3013 = vsel %vm2949, 1, 0
      %v3014 = vsel %vm2950, 1, 0
      %v3015 = vsel %vm2951, 1, 0
      %v3016 = vsel %vm2952, 1, 0
      %v3017 = vsel %vm2953, 1, 0
      %v3018 = vsel %vm2954, 1, 0
      %v3019 = vsel %vm2955, 1, 0
      %v3020 = vsel %vm2956, 1, 0
      %v3021 = vsel %vm2957, 1, 0
      %v3022 = vsel %vm2958, 1, 0
      %v3023 = vsel %vm2959, 1, 0
      %v3024 = vsel %vm2960, 1, 0
      %v3025 = vsel %vm2961, 1, 0
      %v3026 = vsel %vm2962, 1, 0
      %v3027 = vsel %vm2963, 1, 0
      %v3028 = vsel %vm2964, 1, 0
      %v3029 = vsel %vm2965, 1, 0
      %v3030 = vsel %vm2966, 1, 0
      %v3031 = vsel %vm2967, 1, 0
      %v3032 = vsel %vm2968, 1, 0
      %v3033 = vsel %vm2969, 1, 0
      %v3034 = vsel %vm2970, 1, 0
      %v3035 = vsel %vm2971, 1, 0
      %v3036 = vsel %vm2972, 1, 0
      %v3037 = vsel %vm2973, 1, 0
      %v3038 = vsel %vm2974, 1, 0
      %v3039 = vsel %vm2975, 1, 0
      %3040 = vset.pattern.permute.xlu0 0
      %3041 = vperm.xlu0 %3040, %v2976
      %v3042 = vpop.permute.xlu0 %3041
      %3043 = vset.pattern.permute.xlu0 0
      %3044 = vperm.xlu0 %3043, %v2977
      %v3045 = vpop.permute.xlu0 %3044
      %3046 = vset.pattern.permute.xlu0 0
      %3047 = vperm.xlu0 %3046, %v2978
      %v3048 = vpop.permute.xlu0 %3047
      %3049 = vset.pattern.permute.xlu0 0
      %3050 = vperm.xlu0 %3049, %v2979
      %v3051 = vpop.permute.xlu0 %3050
      %3052 = vset.pattern.permute.xlu0 0
      %3053 = vperm.xlu0 %3052, %v2980
      %v3054 = vpop.permute.xlu0 %3053
      %3055 = vset.pattern.permute.xlu0 0
      %3056 = vperm.xlu0 %3055, %v2981
      %v3057 = vpop.permute.xlu0 %3056
      %3058 = vset.pattern.permute.xlu0 0
      %3059 = vperm.xlu0 %3058, %v2982
      %v3060 = vpop.permute.xlu0 %3059
      %3061 = vset.pattern.permute.xlu0 0
      %3062 = vperm.xlu0 %3061, %v2983
      %v3063 = vpop.permute.xlu0 %3062
      %3064 = vset.pattern.permute.xlu0 0
      %3065 = vperm.xlu0 %3064, %v2984
      %v3066 = vpop.permute.xlu0 %3065
      %3067 = vset.pattern.permute.xlu0 0
      %3068 = vperm.xlu0 %3067, %v2985
      %v3069 = vpop.permute.xlu0 %3068
      %3070 = vset.pattern.permute.xlu0 0
      %3071 = vperm.xlu0 %3070, %v2986
      %v3072 = vpop.permute.xlu0 %3071
      %3073 = vset.pattern.permute.xlu0 0
      %3074 = vperm.xlu0 %3073, %v2987
      %v3075 = vpop.permute.xlu0 %3074
      %3076 = vset.pattern.permute.xlu0 0
      %3077 = vperm.xlu0 %3076, %v2988
      %v3078 = vpop.permute.xlu0 %3077
      %3079 = vset.pattern.permute.xlu0 0
      %3080 = vperm.xlu0 %3079, %v2989
      %v3081 = vpop.permute.xlu0 %3080
      %3082 = vset.pattern.permute.xlu0 0
      %3083 = vperm.xlu0 %3082, %v2990
      %v3084 = vpop.permute.xlu0 %3083
      %3085 = vset.pattern.permute.xlu0 0
      %3086 = vperm.xlu0 %3085, %v2991
      %v3087 = vpop.permute.xlu0 %3086
      %3088 = vset.pattern.permute.xlu0 0
      %3089 = vperm.xlu0 %3088, %v2992
      %v3090 = vpop.permute.xlu0 %3089
      %3091 = vset.pattern.permute.xlu0 0
      %3092 = vperm.xlu0 %3091, %v2993
      %v3093 = vpop.permute.xlu0 %3092
      %3094 = vset.pattern.permute.xlu0 0
      %3095 = vperm.xlu0 %3094, %v2994
      %v3096 = vpop.permute.xlu0 %3095
      %3097 = vset.pattern.permute.xlu0 0
      %3098 = vperm.xlu0 %3097, %v2995
      %v3099 = vpop.permute.xlu0 %3098
      %3100 = vset.pattern.permute.xlu0 0
      %3101 = vperm.xlu0 %3100, %v2996
      %v3102 = vpop.permute.xlu0 %3101
      %3103 = vset.pattern.permute.xlu0 0
      %3104 = vperm.xlu0 %3103, %v2997
      %v3105 = vpop.permute.xlu0 %3104
      %3106 = vset.pattern.permute.xlu0 0
      %3107 = vperm.xlu0 %3106, %v2998
      %v3108 = vpop.permute.xlu0 %3107
      %3109 = vset.pattern.permute.xlu0 0
      %3110 = vperm.xlu0 %3109, %v2999
      %v3111 = vpop.permute.xlu0 %3110
      %3112 = vset.pattern.permute.xlu0 0
      %3113 = vperm.xlu0 %3112, %v3000
      %v3114 = vpop.permute.xlu0 %3113
      %3115 = vset.pattern.permute.xlu0 0
      %3116 = vperm.xlu0 %3115, %v3001
      %v3117 = vpop.permute.xlu0 %3116
      %3118 = vset.pattern.permute.xlu0 0
      %3119 = vperm.xlu0 %3118, %v3002
      %v3120 = vpop.permute.xlu0 %3119
      %3121 = vset.pattern.permute.xlu0 0
      %3122 = vperm.xlu0 %3121, %v3003
      %v3123 = vpop.permute.xlu0 %3122
      %3124 = vset.pattern.permute.xlu0 0
      %3125 = vperm.xlu0 %3124, %v3004
      %v3126 = vpop.permute.xlu0 %3125
      %3127 = vset.pattern.permute.xlu0 0
      %3128 = vperm.xlu0 %3127, %v3005
      %v3129 = vpop.permute.xlu0 %3128
      %3130 = vset.pattern.permute.xlu0 0
      %3131 = vperm.xlu0 %3130, %v3006
      %v3132 = vpop.permute.xlu0 %3131
      %3133 = vset.pattern.permute.xlu0 0
      %3134 = vperm.xlu0 %3133, %v3007
      %v3135 = vpop.permute.xlu0 %3134
      %3136 = vset.pattern.permute.xlu0 0
      %3137 = vperm.xlu0 %3136, %v3008
      %v3138 = vpop.permute.xlu0 %3137
      %3139 = vset.pattern.permute.xlu0 0
      %3140 = vperm.xlu0 %3139, %v3009
      %v3141 = vpop.permute.xlu0 %3140
      %3142 = vset.pattern.permute.xlu0 0
      %3143 = vperm.xlu0 %3142, %v3010
      %v3144 = vpop.permute.xlu0 %3143
      %3145 = vset.pattern.permute.xlu0 0
      %3146 = vperm.xlu0 %3145, %v3011
      %v3147 = vpop.permute.xlu0 %3146
      %3148 = vset.pattern.permute.xlu0 0
      %3149 = vperm.xlu0 %3148, %v3012
      %v3150 = vpop.permute.xlu0 %3149
      %3151 = vset.pattern.permute.xlu0 0
      %3152 = vperm.xlu0 %3151, %v3013
      %v3153 = vpop.permute.xlu0 %3152
      %3154 = vset.pattern.permute.xlu0 0
      %3155 = vperm.xlu0 %3154, %v3014
      %v3156 = vpop.permute.xlu0 %3155
      %3157 = vset.pattern.permute.xlu0 0
      %3158 = vperm.xlu0 %3157, %v3015
      %v3159 = vpop.permute.xlu0 %3158
      %3160 = vset.pattern.permute.xlu0 0
      %3161 = vperm.xlu0 %3160, %v3016
      %v3162 = vpop.permute.xlu0 %3161
      %3163 = vset.pattern.permute.xlu0 0
      %3164 = vperm.xlu0 %3163, %v3017
      %v3165 = vpop.permute.xlu0 %3164
      %3166 = vset.pattern.permute.xlu0 0
      %3167 = vperm.xlu0 %3166, %v3018
      %v3168 = vpop.permute.xlu0 %3167
      %3169 = vset.pattern.permute.xlu0 0
      %3170 = vperm.xlu0 %3169, %v3019
      %v3171 = vpop.permute.xlu0 %3170
      %3172 = vset.pattern.permute.xlu0 0
      %3173 = vperm.xlu0 %3172, %v3020
      %v3174 = vpop.permute.xlu0 %3173
      %3175 = vset.pattern.permute.xlu0 0
      %3176 = vperm.xlu0 %3175, %v3021
      %v3177 = vpop.permute.xlu0 %3176
      %3178 = vset.pattern.permute.xlu0 0
      %3179 = vperm.xlu0 %3178, %v3022
      %v3180 = vpop.permute.xlu0 %3179
      %3181 = vset.pattern.permute.xlu0 0
      %3182 = vperm.xlu0 %3181, %v3023
      %v3183 = vpop.permute.xlu0 %3182
      %3184 = vset.pattern.permute.xlu0 0
      %3185 = vperm.xlu0 %3184, %v3024
      %v3186 = vpop.permute.xlu0 %3185
      %3187 = vset.pattern.permute.xlu0 0
      %3188 = vperm.xlu0 %3187, %v3025
      %v3189 = vpop.permute.xlu0 %3188
      %3190 = vset.pattern.permute.xlu0 0
      %3191 = vperm.xlu0 %3190, %v3026
      %v3192 = vpop.permute.xlu0 %3191
      %3193 = vset.pattern.permute.xlu0 0
      %3194 = vperm.xlu0 %3193, %v3027
      %v3195 = vpop.permute.xlu0 %3194
      %3196 = vset.pattern.permute.xlu0 0
      %3197 = vperm.xlu0 %3196, %v3028
      %v3198 = vpop.permute.xlu0 %3197
      %3199 = vset.pattern.permute.xlu0 0
      %3200 = vperm.xlu0 %3199, %v3029
      %v3201 = vpop.permute.xlu0 %3200
      %3202 = vset.pattern.permute.xlu0 0
      %3203 = vperm.xlu0 %3202, %v3030
      %v3204 = vpop.permute.xlu0 %3203
      %3205 = vset.pattern.permute.xlu0 0
      %3206 = vperm.xlu0 %3205, %v3031
      %v3207 = vpop.permute.xlu0 %3206
      %3208 = vset.pattern.permute.xlu0 0
      %3209 = vperm.xlu0 %3208, %v3032
      %v3210 = vpop.permute.xlu0 %3209
      %3211 = vset.pattern.permute.xlu0 0
      %3212 = vperm.xlu0 %3211, %v3033
      %v3213 = vpop.permute.xlu0 %3212
      %3214 = vset.pattern.permute.xlu0 0
      %3215 = vperm.xlu0 %3214, %v3034
      %v3216 = vpop.permute.xlu0 %3215
      %3217 = vset.pattern.permute.xlu0 0
      %3218 = vperm.xlu0 %3217, %v3035
      %v3219 = vpop.permute.xlu0 %3218
      %3220 = vset.pattern.permute.xlu0 0
      %3221 = vperm.xlu0 %3220, %v3036
      %v3222 = vpop.permute.xlu0 %3221
      %3223 = vset.pattern.permute.xlu0 0
      %3224 = vperm.xlu0 %3223, %v3037
      %v3225 = vpop.permute.xlu0 %3224
      %3226 = vset.pattern.permute.xlu0 0
      %3227 = vperm.xlu0 %3226, %v3038
      %v3228 = vpop.permute.xlu0 %3227
      %3229 = vset.pattern.permute.xlu0 0
      %3230 = vperm.xlu0 %3229, %v3039
      %v3231 = vpop.permute.xlu0 %3230
      %vm3232 = vcmp.eq.s32.totalorder %v3042, 1
      %vm3233 = vcmp.eq.s32.totalorder %v3045, 1
      %vm3234 = vcmp.eq.s32.totalorder %v3048, 1
      %vm3235 = vcmp.eq.s32.totalorder %v3051, 1
      %vm3236 = vcmp.eq.s32.totalorder %v3054, 1
      %vm3237 = vcmp.eq.s32.totalorder %v3057, 1
      %vm3238 = vcmp.eq.s32.totalorder %v3060, 1
      %vm3239 = vcmp.eq.s32.totalorder %v3063, 1
      %vm3240 = vcmp.eq.s32.totalorder %v3066, 1
      %vm3241 = vcmp.eq.s32.totalorder %v3069, 1
      %vm3242 = vcmp.eq.s32.totalorder %v3072, 1
      %vm3243 = vcmp.eq.s32.totalorder %v3075, 1
      %vm3244 = vcmp.eq.s32.totalorder %v3078, 1
      %vm3245 = vcmp.eq.s32.totalorder %v3081, 1
      %vm3246 = vcmp.eq.s32.totalorder %v3084, 1
      %vm3247 = vcmp.eq.s32.totalorder %v3087, 1
      %vm3248 = vcmp.eq.s32.totalorder %v3090, 1
      %vm3249 = vcmp.eq.s32.totalorder %v3093, 1
      %vm3250 = vcmp.eq.s32.totalorder %v3096, 1
      %vm3251 = vcmp.eq.s32.totalorder %v3099, 1
      %vm3252 = vcmp.eq.s32.totalorder %v3102, 1
      %vm3253 = vcmp.eq.s32.totalorder %v3105, 1
      %vm3254 = vcmp.eq.s32.totalorder %v3108, 1
      %vm3255 = vcmp.eq.s32.totalorder %v3111, 1
      %vm3256 = vcmp.eq.s32.totalorder %v3114, 1
      %vm3257 = vcmp.eq.s32.totalorder %v3117, 1
      %vm3258 = vcmp.eq.s32.totalorder %v3120, 1
      %vm3259 = vcmp.eq.s32.totalorder %v3123, 1
      %vm3260 = vcmp.eq.s32.totalorder %v3126, 1
      %vm3261 = vcmp.eq.s32.totalorder %v3129, 1
      %vm3262 = vcmp.eq.s32.totalorder %v3132, 1
      %vm3263 = vcmp.eq.s32.totalorder %v3135, 1
      %vm3264 = vcmp.eq.s32.totalorder %v3138, 1
      %vm3265 = vcmp.eq.s32.totalorder %v3141, 1
      %vm3266 = vcmp.eq.s32.totalorder %v3144, 1
      %vm3267 = vcmp.eq.s32.totalorder %v3147, 1
      %vm3268 = vcmp.eq.s32.totalorder %v3150, 1
      %vm3269 = vcmp.eq.s32.totalorder %v3153, 1
      %vm3270 = vcmp.eq.s32.totalorder %v3156, 1
      %vm3271 = vcmp.eq.s32.totalorder %v3159, 1
      %vm3272 = vcmp.eq.s32.totalorder %v3162, 1
      %vm3273 = vcmp.eq.s32.totalorder %v3165, 1
      %vm3274 = vcmp.eq.s32.totalorder %v3168, 1
      %vm3275 = vcmp.eq.s32.totalorder %v3171, 1
      %vm3276 = vcmp.eq.s32.totalorder %v3174, 1
      %vm3277 = vcmp.eq.s32.totalorder %v3177, 1
      %vm3278 = vcmp.eq.s32.totalorder %v3180, 1
      %vm3279 = vcmp.eq.s32.totalorder %v3183, 1
      %vm3280 = vcmp.eq.s32.totalorder %v3186, 1
      %vm3281 = vcmp.eq.s32.totalorder %v3189, 1
      %vm3282 = vcmp.eq.s32.totalorder %v3192, 1
      %vm3283 = vcmp.eq.s32.totalorder %v3195, 1
      %vm3284 = vcmp.eq.s32.totalorder %v3198, 1
      %vm3285 = vcmp.eq.s32.totalorder %v3201, 1
      %vm3286 = vcmp.eq.s32.totalorder %v3204, 1
      %vm3287 = vcmp.eq.s32.totalorder %v3207, 1
      %vm3288 = vcmp.eq.s32.totalorder %v3210, 1
      %vm3289 = vcmp.eq.s32.totalorder %v3213, 1
      %vm3290 = vcmp.eq.s32.totalorder %v3216, 1
      %vm3291 = vcmp.eq.s32.totalorder %v3219, 1
      %vm3292 = vcmp.eq.s32.totalorder %v3222, 1
      %vm3293 = vcmp.eq.s32.totalorder %v3225, 1
      %vm3294 = vcmp.eq.s32.totalorder %v3228, 1
      %vm3295 = vcmp.eq.s32.totalorder %v3231, 1
      %v3296 = vsel %vm3232, %v460, -inf
      %v3297 = vsel %vm3233, %v463, -inf
      %v3298 = vsel %vm3234, %v468, -inf
      %v3299 = vsel %vm3235, %v471, -inf
      %v3300 = vsel %vm3236, %v476, -inf
      %v3301 = vsel %vm3237, %v479, -inf
      %v3302 = vsel %vm3238, %v484, -inf
      %v3303 = vsel %vm3239, %v487, -inf
      %v3304 = vsel %vm3240, %v492, -inf
      %v3305 = vsel %vm3241, %v495, -inf
      %v3306 = vsel %vm3242, %v500, -inf
      %v3307 = vsel %vm3243, %v503, -inf
      %v3308 = vsel %vm3244, %v508, -inf
      %v3309 = vsel %vm3245, %v511, -inf
      %v3310 = vsel %vm3246, %v516, -inf
      %v3311 = vsel %vm3247, %v519, -inf
      %v3312 = vsel %vm3248, %v524, -inf
      %v3313 = vsel %vm3249, %v527, -inf
      %v3314 = vsel %vm3250, %v532, -inf
      %v3315 = vsel %vm3251, %v535, -inf
      %v3316 = vsel %vm3252, %v540, -inf
      %v3317 = vsel %vm3253, %v543, -inf
      %v3318 = vsel %vm3254, %v548, -inf
      %v3319 = vsel %vm3255, %v551, -inf
      %v3320 = vsel %vm3256, %v556, -inf
      %v3321 = vsel %vm3257, %v559, -inf
      %v3322 = vsel %vm3258, %v564, -inf
      %v3323 = vsel %vm3259, %v567, -inf
      %v3324 = vsel %vm3260, %v572, -inf
      %v3325 = vsel %vm3261, %v575, -inf
      %v3326 = vsel %vm3262, %v580, -inf
      %v3327 = vsel %vm3263, %v583, -inf
      %v3328 = vsel %vm3264, %v588, -inf
      %v3329 = vsel %vm3265, %v591, -inf
      %v3330 = vsel %vm3266, %v596, -inf
      %v3331 = vsel %vm3267, %v599, -inf
      %v3332 = vsel %vm3268, %v604, -inf
      %v3333 = vsel %vm3269, %v607, -inf
      %v3334 = vsel %vm3270, %v612, -inf
      %v3335 = vsel %vm3271, %v615, -inf
      %v3336 = vsel %vm3272, %v620, -inf
      %v3337 = vsel %vm3273, %v623, -inf
      %v3338 = vsel %vm3274, %v628, -inf
      %v3339 = vsel %vm3275, %v631, -inf
      %v3340 = vsel %vm3276, %v636, -inf
      %v3341 = vsel %vm3277, %v639, -inf
      %v3342 = vsel %vm3278, %v644, -inf
      %v3343 = vsel %vm3279, %v647, -inf
      %v3344 = vsel %vm3280, %v652, -inf
      %v3345 = vsel %vm3281, %v655, -inf
      %v3346 = vsel %vm3282, %v660, -inf
      %v3347 = vsel %vm3283, %v663, -inf
      %v3348 = vsel %vm3284, %v668, -inf
      %v3349 = vsel %vm3285, %v671, -inf
      %v3350 = vsel %vm3286, %v676, -inf
      %v3351 = vsel %vm3287, %v679, -inf
      %v3352 = vsel %vm3288, %v684, -inf
      %v3353 = vsel %vm3289, %v687, -inf
      %v3354 = vsel %vm3290, %v692, -inf
      %v3355 = vsel %vm3291, %v695, -inf
      %v3356 = vsel %vm3292, %v700, -inf
      %v3357 = vsel %vm3293, %v703, -inf
      %v3358 = vsel %vm3294, %v708, -inf
      %v3359 = vsel %vm3295, %v711, -inf
      %v3360 = vmax.f32 %v3296, %v3300
      %v3361 = vmax.f32 %v3297, %v3301
      %v3362 = vmax.f32 %v3298, %v3302
      %v3363 = vmax.f32 %v3299, %v3303
      %v3364 = vmax.f32 %v3360, %v3304
      %v3365 = vmax.f32 %v3361, %v3305
      %v3366 = vmax.f32 %v3362, %v3306
      %v3367 = vmax.f32 %v3363, %v3307
      %v3368 = vmax.f32 %v3364, %v3308
      %v3369 = vmax.f32 %v3365, %v3309
      %v3370 = vmax.f32 %v3366, %v3310
      %v3371 = vmax.f32 %v3367, %v3311
      %v3372 = vmax.f32 %v3368, %v3312
      %v3373 = vmax.f32 %v3369, %v3313
      %v3374 = vmax.f32 %v3370, %v3314
      %v3375 = vmax.f32 %v3371, %v3315
      %v3376 = vmax.f32 %v3372, %v3316
      %v3377 = vmax.f32 %v3373, %v3317
      %v3378 = vmax.f32 %v3374, %v3318
      %v3379 = vmax.f32 %v3375, %v3319
      %v3380 = vmax.f32 %v3376, %v3320
      %v3381 = vmax.f32 %v3377, %v3321
      %v3382 = vmax.f32 %v3378, %v3322
      %v3383 = vmax.f32 %v3379, %v3323
      %v3384 = vmax.f32 %v3380, %v3324
      %v3385 = vmax.f32 %v3381, %v3325
      %v3386 = vmax.f32 %v3382, %v3326
      %v3387 = vmax.f32 %v3383, %v3327
      %v3388 = vmax.f32 %v3384, %v3328
      %v3389 = vmax.f32 %v3385, %v3329
      %v3390 = vmax.f32 %v3386, %v3330
      %v3391 = vmax.f32 %v3387, %v3331
      %v3392 = vmax.f32 %v3388, %v3332
      %v3393 = vmax.f32 %v3389, %v3333
      %v3394 = vmax.f32 %v3390, %v3334
      %v3395 = vmax.f32 %v3391, %v3335
      %v3396 = vmax.f32 %v3392, %v3336
      %v3397 = vmax.f32 %v3393, %v3337
      %v3398 = vmax.f32 %v3394, %v3338
      %v3399 = vmax.f32 %v3395, %v3339
      %v3400 = vmax.f32 %v3396, %v3340
      %v3401 = vmax.f32 %v3397, %v3341
      %v3402 = vmax.f32 %v3398, %v3342
      %v3403 = vmax.f32 %v3399, %v3343
      %v3404 = vmax.f32 %v3400, %v3344
      %v3405 = vmax.f32 %v3401, %v3345
      %v3406 = vmax.f32 %v3402, %v3346
      %v3407 = vmax.f32 %v3403, %v3347
      %v3408 = vmax.f32 %v3404, %v3348
      %v3409 = vmax.f32 %v3405, %v3349
      %v3410 = vmax.f32 %v3406, %v3350
      %v3411 = vmax.f32 %v3407, %v3351
      %v3412 = vmax.f32 %v3408, %v3352
      %v3413 = vmax.f32 %v3409, %v3353
      %v3414 = vmax.f32 %v3410, %v3354
      %v3415 = vmax.f32 %v3411, %v3355
      %v3416 = vmax.f32 %v3412, %v3356
      %v3417 = vmax.f32 %v3413, %v3357
      %v3418 = vmax.f32 %v3414, %v3358
      %v3419 = vmax.f32 %v3415, %v3359
      %v3420 = vmax.f32 %v3416, %v3417
      %v3421 = vmax.f32 %v3418, %v3419
      %v3422 = vmax.f32 %v3420, %v3421
      %v3423 = vrot.slane %v3422, 4
      %v3424 = vmax.f32 %v3422, %v3423
      %v3425 = vrot.slane %v3424, 2
      %v3426 = vmax.f32 %v3424, %v3425
      %v3427 = vrot.slane %v3426, 1
      %v3428 = vmax.f32 %v3426, %v3427
      %vm3429 = vcmp.eq.s32.totalorder %v780, 5
      %vm3430 = vcmp.eq.s32.totalorder %v781, 5
      %vm3431 = vcmp.eq.s32.totalorder %v782, 5
      %vm3432 = vcmp.eq.s32.totalorder %v783, 5
      %vm3433 = vcmp.eq.s32.totalorder %v784, 5
      %vm3434 = vcmp.eq.s32.totalorder %v785, 5
      %vm3435 = vcmp.eq.s32.totalorder %v786, 5
      %vm3436 = vcmp.eq.s32.totalorder %v787, 5
      %vm3437 = vcmp.eq.s32.totalorder %v788, 5
      %vm3438 = vcmp.eq.s32.totalorder %v789, 5
      %vm3439 = vcmp.eq.s32.totalorder %v790, 5
      %vm3440 = vcmp.eq.s32.totalorder %v791, 5
      %vm3441 = vcmp.eq.s32.totalorder %v792, 5
      %vm3442 = vcmp.eq.s32.totalorder %v793, 5
      %vm3443 = vcmp.eq.s32.totalorder %v794, 5
      %vm3444 = vcmp.eq.s32.totalorder %v795, 5
      %vm3445 = vcmp.eq.s32.totalorder %v796, 5
      %vm3446 = vcmp.eq.s32.totalorder %v797, 5
      %vm3447 = vcmp.eq.s32.totalorder %v798, 5
      %vm3448 = vcmp.eq.s32.totalorder %v799, 5
      %vm3449 = vcmp.eq.s32.totalorder %v800, 5
      %vm3450 = vcmp.eq.s32.totalorder %v801, 5
      %vm3451 = vcmp.eq.s32.totalorder %v802, 5
      %vm3452 = vcmp.eq.s32.totalorder %v803, 5
      %vm3453 = vcmp.eq.s32.totalorder %v804, 5
      %vm3454 = vcmp.eq.s32.totalorder %v805, 5
      %vm3455 = vcmp.eq.s32.totalorder %v806, 5
      %vm3456 = vcmp.eq.s32.totalorder %v807, 5
      %vm3457 = vcmp.eq.s32.totalorder %v808, 5
      %vm3458 = vcmp.eq.s32.totalorder %v809, 5
      %vm3459 = vcmp.eq.s32.totalorder %v810, 5
      %vm3460 = vcmp.eq.s32.totalorder %v811, 5
      %vm3461 = vcmp.eq.s32.totalorder %v812, 5
      %vm3462 = vcmp.eq.s32.totalorder %v813, 5
      %vm3463 = vcmp.eq.s32.totalorder %v814, 5
      %vm3464 = vcmp.eq.s32.totalorder %v815, 5
      %vm3465 = vcmp.eq.s32.totalorder %v816, 5
      %vm3466 = vcmp.eq.s32.totalorder %v817, 5
      %vm3467 = vcmp.eq.s32.totalorder %v818, 5
      %vm3468 = vcmp.eq.s32.totalorder %v819, 5
      %vm3469 = vcmp.eq.s32.totalorder %v820, 5
      %vm3470 = vcmp.eq.s32.totalorder %v821, 5
      %vm3471 = vcmp.eq.s32.totalorder %v822, 5
      %vm3472 = vcmp.eq.s32.totalorder %v823, 5
      %vm3473 = vcmp.eq.s32.totalorder %v824, 5
      %vm3474 = vcmp.eq.s32.totalorder %v825, 5
      %vm3475 = vcmp.eq.s32.totalorder %v826, 5
      %vm3476 = vcmp.eq.s32.totalorder %v827, 5
      %vm3477 = vcmp.eq.s32.totalorder %v828, 5
      %vm3478 = vcmp.eq.s32.totalorder %v829, 5
      %vm3479 = vcmp.eq.s32.totalorder %v830, 5
      %vm3480 = vcmp.eq.s32.totalorder %v831, 5
      %vm3481 = vcmp.eq.s32.totalorder %v832, 5
      %vm3482 = vcmp.eq.s32.totalorder %v833, 5
      %vm3483 = vcmp.eq.s32.totalorder %v834, 5
      %vm3484 = vcmp.eq.s32.totalorder %v835, 5
      %vm3485 = vcmp.eq.s32.totalorder %v836, 5
      %vm3486 = vcmp.eq.s32.totalorder %v837, 5
      %vm3487 = vcmp.eq.s32.totalorder %v838, 5
      %vm3488 = vcmp.eq.s32.totalorder %v839, 5
      %vm3489 = vcmp.eq.s32.totalorder %v840, 5
      %vm3490 = vcmp.eq.s32.totalorder %v841, 5
      %vm3491 = vcmp.eq.s32.totalorder %v842, 5
      %vm3492 = vcmp.eq.s32.totalorder %v843, 5
      %v3493 = vsel %vm3429, 1, 0
      %v3494 = vsel %vm3430, 1, 0
      %v3495 = vsel %vm3431, 1, 0
      %v3496 = vsel %vm3432, 1, 0
      %v3497 = vsel %vm3433, 1, 0
      %v3498 = vsel %vm3434, 1, 0
      %v3499 = vsel %vm3435, 1, 0
      %v3500 = vsel %vm3436, 1, 0
      %v3501 = vsel %vm3437, 1, 0
      %v3502 = vsel %vm3438, 1, 0
      %v3503 = vsel %vm3439, 1, 0
      %v3504 = vsel %vm3440, 1, 0
      %v3505 = vsel %vm3441, 1, 0
      %v3506 = vsel %vm3442, 1, 0
      %v3507 = vsel %vm3443, 1, 0
      %v3508 = vsel %vm3444, 1, 0
      %v3509 = vsel %vm3445, 1, 0
      %v3510 = vsel %vm3446, 1, 0
      %v3511 = vsel %vm3447, 1, 0
      %v3512 = vsel %vm3448, 1, 0
      %v3513 = vsel %vm3449, 1, 0
      %v3514 = vsel %vm3450, 1, 0
      %v3515 = vsel %vm3451, 1, 0
      %v3516 = vsel %vm3452, 1, 0
      %v3517 = vsel %vm3453, 1, 0
      %v3518 = vsel %vm3454, 1, 0
      %v3519 = vsel %vm3455, 1, 0
      %v3520 = vsel %vm3456, 1, 0
      %v3521 = vsel %vm3457, 1, 0
      %v3522 = vsel %vm3458, 1, 0
      %v3523 = vsel %vm3459, 1, 0
      %v3524 = vsel %vm3460, 1, 0
      %v3525 = vsel %vm3461, 1, 0
      %v3526 = vsel %vm3462, 1, 0
      %v3527 = vsel %vm3463, 1, 0
      %v3528 = vsel %vm3464, 1, 0
      %v3529 = vsel %vm3465, 1, 0
      %v3530 = vsel %vm3466, 1, 0
      %v3531 = vsel %vm3467, 1, 0
      %v3532 = vsel %vm3468, 1, 0
      %v3533 = vsel %vm3469, 1, 0
      %v3534 = vsel %vm3470, 1, 0
      %v3535 = vsel %vm3471, 1, 0
      %v3536 = vsel %vm3472, 1, 0
      %v3537 = vsel %vm3473, 1, 0
      %v3538 = vsel %vm3474, 1, 0
      %v3539 = vsel %vm3475, 1, 0
      %v3540 = vsel %vm3476, 1, 0
      %v3541 = vsel %vm3477, 1, 0
      %v3542 = vsel %vm3478, 1, 0
      %v3543 = vsel %vm3479, 1, 0
      %v3544 = vsel %vm3480, 1, 0
      %v3545 = vsel %vm3481, 1, 0
      %v3546 = vsel %vm3482, 1, 0
      %v3547 = vsel %vm3483, 1, 0
      %v3548 = vsel %vm3484, 1, 0
      %v3549 = vsel %vm3485, 1, 0
      %v3550 = vsel %vm3486, 1, 0
      %v3551 = vsel %vm3487, 1, 0
      %v3552 = vsel %vm3488, 1, 0
      %v3553 = vsel %vm3489, 1, 0
      %v3554 = vsel %vm3490, 1, 0
      %v3555 = vsel %vm3491, 1, 0
      %v3556 = vsel %vm3492, 1, 0
      %3557 = vset.pattern.permute.xlu0 0
      %3558 = vperm.xlu0 %3557, %v3493
      %v3559 = vpop.permute.xlu0 %3558
      %3560 = vset.pattern.permute.xlu0 0
      %3561 = vperm.xlu0 %3560, %v3494
      %v3562 = vpop.permute.xlu0 %3561
      %3563 = vset.pattern.permute.xlu0 0
      %3564 = vperm.xlu0 %3563, %v3495
      %v3565 = vpop.permute.xlu0 %3564
      %3566 = vset.pattern.permute.xlu0 0
      %3567 = vperm.xlu0 %3566, %v3496
      %v3568 = vpop.permute.xlu0 %3567
      %3569 = vset.pattern.permute.xlu0 0
      %3570 = vperm.xlu0 %3569, %v3497
      %v3571 = vpop.permute.xlu0 %3570
      %3572 = vset.pattern.permute.xlu0 0
      %3573 = vperm.xlu0 %3572, %v3498
      %v3574 = vpop.permute.xlu0 %3573
      %3575 = vset.pattern.permute.xlu0 0
      %3576 = vperm.xlu0 %3575, %v3499
      %v3577 = vpop.permute.xlu0 %3576
      %3578 = vset.pattern.permute.xlu0 0
      %3579 = vperm.xlu0 %3578, %v3500
      %v3580 = vpop.permute.xlu0 %3579
      %3581 = vset.pattern.permute.xlu0 0
      %3582 = vperm.xlu0 %3581, %v3501
      %v3583 = vpop.permute.xlu0 %3582
      %3584 = vset.pattern.permute.xlu0 0
      %3585 = vperm.xlu0 %3584, %v3502
      %v3586 = vpop.permute.xlu0 %3585
      %3587 = vset.pattern.permute.xlu0 0
      %3588 = vperm.xlu0 %3587, %v3503
      %v3589 = vpop.permute.xlu0 %3588
      %3590 = vset.pattern.permute.xlu0 0
      %3591 = vperm.xlu0 %3590, %v3504
      %v3592 = vpop.permute.xlu0 %3591
      %3593 = vset.pattern.permute.xlu0 0
      %3594 = vperm.xlu0 %3593, %v3505
      %v3595 = vpop.permute.xlu0 %3594
      %3596 = vset.pattern.permute.xlu0 0
      %3597 = vperm.xlu0 %3596, %v3506
      %v3598 = vpop.permute.xlu0 %3597
      %3599 = vset.pattern.permute.xlu0 0
      %3600 = vperm.xlu0 %3599, %v3507
      %v3601 = vpop.permute.xlu0 %3600
      %3602 = vset.pattern.permute.xlu0 0
      %3603 = vperm.xlu0 %3602, %v3508
      %v3604 = vpop.permute.xlu0 %3603
      %3605 = vset.pattern.permute.xlu0 0
      %3606 = vperm.xlu0 %3605, %v3509
      %v3607 = vpop.permute.xlu0 %3606
      %3608 = vset.pattern.permute.xlu0 0
      %3609 = vperm.xlu0 %3608, %v3510
      %v3610 = vpop.permute.xlu0 %3609
      %3611 = vset.pattern.permute.xlu0 0
      %3612 = vperm.xlu0 %3611, %v3511
      %v3613 = vpop.permute.xlu0 %3612
      %3614 = vset.pattern.permute.xlu0 0
      %3615 = vperm.xlu0 %3614, %v3512
      %v3616 = vpop.permute.xlu0 %3615
      %3617 = vset.pattern.permute.xlu0 0
      %3618 = vperm.xlu0 %3617, %v3513
      %v3619 = vpop.permute.xlu0 %3618
      %3620 = vset.pattern.permute.xlu0 0
      %3621 = vperm.xlu0 %3620, %v3514
      %v3622 = vpop.permute.xlu0 %3621
      %3623 = vset.pattern.permute.xlu0 0
      %3624 = vperm.xlu0 %3623, %v3515
      %v3625 = vpop.permute.xlu0 %3624
      %3626 = vset.pattern.permute.xlu0 0
      %3627 = vperm.xlu0 %3626, %v3516
      %v3628 = vpop.permute.xlu0 %3627
      %3629 = vset.pattern.permute.xlu0 0
      %3630 = vperm.xlu0 %3629, %v3517
      %v3631 = vpop.permute.xlu0 %3630
      %3632 = vset.pattern.permute.xlu0 0
      %3633 = vperm.xlu0 %3632, %v3518
      %v3634 = vpop.permute.xlu0 %3633
      %3635 = vset.pattern.permute.xlu0 0
      %3636 = vperm.xlu0 %3635, %v3519
      %v3637 = vpop.permute.xlu0 %3636
      %3638 = vset.pattern.permute.xlu0 0
      %3639 = vperm.xlu0 %3638, %v3520
      %v3640 = vpop.permute.xlu0 %3639
      %3641 = vset.pattern.permute.xlu0 0
      %3642 = vperm.xlu0 %3641, %v3521
      %v3643 = vpop.permute.xlu0 %3642
      %3644 = vset.pattern.permute.xlu0 0
      %3645 = vperm.xlu0 %3644, %v3522
      %v3646 = vpop.permute.xlu0 %3645
      %3647 = vset.pattern.permute.xlu0 0
      %3648 = vperm.xlu0 %3647, %v3523
      %v3649 = vpop.permute.xlu0 %3648
      %3650 = vset.pattern.permute.xlu0 0
      %3651 = vperm.xlu0 %3650, %v3524
      %v3652 = vpop.permute.xlu0 %3651
      %3653 = vset.pattern.permute.xlu0 0
      %3654 = vperm.xlu0 %3653, %v3525
      %v3655 = vpop.permute.xlu0 %3654
      %3656 = vset.pattern.permute.xlu0 0
      %3657 = vperm.xlu0 %3656, %v3526
      %v3658 = vpop.permute.xlu0 %3657
      %3659 = vset.pattern.permute.xlu0 0
      %3660 = vperm.xlu0 %3659, %v3527
      %v3661 = vpop.permute.xlu0 %3660
      %3662 = vset.pattern.permute.xlu0 0
      %3663 = vperm.xlu0 %3662, %v3528
      %v3664 = vpop.permute.xlu0 %3663
      %3665 = vset.pattern.permute.xlu0 0
      %3666 = vperm.xlu0 %3665, %v3529
      %v3667 = vpop.permute.xlu0 %3666
      %3668 = vset.pattern.permute.xlu0 0
      %3669 = vperm.xlu0 %3668, %v3530
      %v3670 = vpop.permute.xlu0 %3669
      %3671 = vset.pattern.permute.xlu0 0
      %3672 = vperm.xlu0 %3671, %v3531
      %v3673 = vpop.permute.xlu0 %3672
      %3674 = vset.pattern.permute.xlu0 0
      %3675 = vperm.xlu0 %3674, %v3532
      %v3676 = vpop.permute.xlu0 %3675
      %3677 = vset.pattern.permute.xlu0 0
      %3678 = vperm.xlu0 %3677, %v3533
      %v3679 = vpop.permute.xlu0 %3678
      %3680 = vset.pattern.permute.xlu0 0
      %3681 = vperm.xlu0 %3680, %v3534
      %v3682 = vpop.permute.xlu0 %3681
      %3683 = vset.pattern.permute.xlu0 0
      %3684 = vperm.xlu0 %3683, %v3535
      %v3685 = vpop.permute.xlu0 %3684
      %3686 = vset.pattern.permute.xlu0 0
      %3687 = vperm.xlu0 %3686, %v3536
      %v3688 = vpop.permute.xlu0 %3687
      %3689 = vset.pattern.permute.xlu0 0
      %3690 = vperm.xlu0 %3689, %v3537
      %v3691 = vpop.permute.xlu0 %3690
      %3692 = vset.pattern.permute.xlu0 0
      %3693 = vperm.xlu0 %3692, %v3538
      %v3694 = vpop.permute.xlu0 %3693
      %3695 = vset.pattern.permute.xlu0 0
      %3696 = vperm.xlu0 %3695, %v3539
      %v3697 = vpop.permute.xlu0 %3696
      %3698 = vset.pattern.permute.xlu0 0
      %3699 = vperm.xlu0 %3698, %v3540
      %v3700 = vpop.permute.xlu0 %3699
      %3701 = vset.pattern.permute.xlu0 0
      %3702 = vperm.xlu0 %3701, %v3541
      %v3703 = vpop.permute.xlu0 %3702
      %3704 = vset.pattern.permute.xlu0 0
      %3705 = vperm.xlu0 %3704, %v3542
      %v3706 = vpop.permute.xlu0 %3705
      %3707 = vset.pattern.permute.xlu0 0
      %3708 = vperm.xlu0 %3707, %v3543
      %v3709 = vpop.permute.xlu0 %3708
      %3710 = vset.pattern.permute.xlu0 0
      %3711 = vperm.xlu0 %3710, %v3544
      %v3712 = vpop.permute.xlu0 %3711
      %3713 = vset.pattern.permute.xlu0 0
      %3714 = vperm.xlu0 %3713, %v3545
      %v3715 = vpop.permute.xlu0 %3714
      %3716 = vset.pattern.permute.xlu0 0
      %3717 = vperm.xlu0 %3716, %v3546
      %v3718 = vpop.permute.xlu0 %3717
      %3719 = vset.pattern.permute.xlu0 0
      %3720 = vperm.xlu0 %3719, %v3547
      %v3721 = vpop.permute.xlu0 %3720
      %3722 = vset.pattern.permute.xlu0 0
      %3723 = vperm.xlu0 %3722, %v3548
      %v3724 = vpop.permute.xlu0 %3723
      %3725 = vset.pattern.permute.xlu0 0
      %3726 = vperm.xlu0 %3725, %v3549
      %v3727 = vpop.permute.xlu0 %3726
      %3728 = vset.pattern.permute.xlu0 0
      %3729 = vperm.xlu0 %3728, %v3550
      %v3730 = vpop.permute.xlu0 %3729
      %3731 = vset.pattern.permute.xlu0 0
      %3732 = vperm.xlu0 %3731, %v3551
      %v3733 = vpop.permute.xlu0 %3732
      %3734 = vset.pattern.permute.xlu0 0
      %3735 = vperm.xlu0 %3734, %v3552
      %v3736 = vpop.permute.xlu0 %3735
      %3737 = vset.pattern.permute.xlu0 0
      %3738 = vperm.xlu0 %3737, %v3553
      %v3739 = vpop.permute.xlu0 %3738
      %3740 = vset.pattern.permute.xlu0 0
      %3741 = vperm.xlu0 %3740, %v3554
      %v3742 = vpop.permute.xlu0 %3741
      %3743 = vset.pattern.permute.xlu0 0
      %3744 = vperm.xlu0 %3743, %v3555
      %v3745 = vpop.permute.xlu0 %3744
      %3746 = vset.pattern.permute.xlu0 0
      %3747 = vperm.xlu0 %3746, %v3556
      %v3748 = vpop.permute.xlu0 %3747
      %vm3749 = vcmp.eq.s32.totalorder %v3559, 1
      %vm3750 = vcmp.eq.s32.totalorder %v3562, 1
      %vm3751 = vcmp.eq.s32.totalorder %v3565, 1
      %vm3752 = vcmp.eq.s32.totalorder %v3568, 1
      %vm3753 = vcmp.eq.s32.totalorder %v3571, 1
      %vm3754 = vcmp.eq.s32.totalorder %v3574, 1
      %vm3755 = vcmp.eq.s32.totalorder %v3577, 1
      %vm3756 = vcmp.eq.s32.totalorder %v3580, 1
      %vm3757 = vcmp.eq.s32.totalorder %v3583, 1
      %vm3758 = vcmp.eq.s32.totalorder %v3586, 1
      %vm3759 = vcmp.eq.s32.totalorder %v3589, 1
      %vm3760 = vcmp.eq.s32.totalorder %v3592, 1
      %vm3761 = vcmp.eq.s32.totalorder %v3595, 1
      %vm3762 = vcmp.eq.s32.totalorder %v3598, 1
      %vm3763 = vcmp.eq.s32.totalorder %v3601, 1
      %vm3764 = vcmp.eq.s32.totalorder %v3604, 1
      %vm3765 = vcmp.eq.s32.totalorder %v3607, 1
      %vm3766 = vcmp.eq.s32.totalorder %v3610, 1
      %vm3767 = vcmp.eq.s32.totalorder %v3613, 1
      %vm3768 = vcmp.eq.s32.totalorder %v3616, 1
      %vm3769 = vcmp.eq.s32.totalorder %v3619, 1
      %vm3770 = vcmp.eq.s32.totalorder %v3622, 1
      %vm3771 = vcmp.eq.s32.totalorder %v3625, 1
      %vm3772 = vcmp.eq.s32.totalorder %v3628, 1
      %vm3773 = vcmp.eq.s32.totalorder %v3631, 1
      %vm3774 = vcmp.eq.s32.totalorder %v3634, 1
      %vm3775 = vcmp.eq.s32.totalorder %v3637, 1
      %vm3776 = vcmp.eq.s32.totalorder %v3640, 1
      %vm3777 = vcmp.eq.s32.totalorder %v3643, 1
      %vm3778 = vcmp.eq.s32.totalorder %v3646, 1
      %vm3779 = vcmp.eq.s32.totalorder %v3649, 1
      %vm3780 = vcmp.eq.s32.totalorder %v3652, 1
      %vm3781 = vcmp.eq.s32.totalorder %v3655, 1
      %vm3782 = vcmp.eq.s32.totalorder %v3658, 1
      %vm3783 = vcmp.eq.s32.totalorder %v3661, 1
      %vm3784 = vcmp.eq.s32.totalorder %v3664, 1
      %vm3785 = vcmp.eq.s32.totalorder %v3667, 1
      %vm3786 = vcmp.eq.s32.totalorder %v3670, 1
      %vm3787 = vcmp.eq.s32.totalorder %v3673, 1
      %vm3788 = vcmp.eq.s32.totalorder %v3676, 1
      %vm3789 = vcmp.eq.s32.totalorder %v3679, 1
      %vm3790 = vcmp.eq.s32.totalorder %v3682, 1
      %vm3791 = vcmp.eq.s32.totalorder %v3685, 1
      %vm3792 = vcmp.eq.s32.totalorder %v3688, 1
      %vm3793 = vcmp.eq.s32.totalorder %v3691, 1
      %vm3794 = vcmp.eq.s32.totalorder %v3694, 1
      %vm3795 = vcmp.eq.s32.totalorder %v3697, 1
      %vm3796 = vcmp.eq.s32.totalorder %v3700, 1
      %vm3797 = vcmp.eq.s32.totalorder %v3703, 1
      %vm3798 = vcmp.eq.s32.totalorder %v3706, 1
      %vm3799 = vcmp.eq.s32.totalorder %v3709, 1
      %vm3800 = vcmp.eq.s32.totalorder %v3712, 1
      %vm3801 = vcmp.eq.s32.totalorder %v3715, 1
      %vm3802 = vcmp.eq.s32.totalorder %v3718, 1
      %vm3803 = vcmp.eq.s32.totalorder %v3721, 1
      %vm3804 = vcmp.eq.s32.totalorder %v3724, 1
      %vm3805 = vcmp.eq.s32.totalorder %v3727, 1
      %vm3806 = vcmp.eq.s32.totalorder %v3730, 1
      %vm3807 = vcmp.eq.s32.totalorder %v3733, 1
      %vm3808 = vcmp.eq.s32.totalorder %v3736, 1
      %vm3809 = vcmp.eq.s32.totalorder %v3739, 1
      %vm3810 = vcmp.eq.s32.totalorder %v3742, 1
      %vm3811 = vcmp.eq.s32.totalorder %v3745, 1
      %vm3812 = vcmp.eq.s32.totalorder %v3748, 1
      %v3813 = vsel %vm3749, %v460, -inf
      %v3814 = vsel %vm3750, %v463, -inf
      %v3815 = vsel %vm3751, %v468, -inf
      %v3816 = vsel %vm3752, %v471, -inf
      %v3817 = vsel %vm3753, %v476, -inf
      %v3818 = vsel %vm3754, %v479, -inf
      %v3819 = vsel %vm3755, %v484, -inf
      %v3820 = vsel %vm3756, %v487, -inf
      %v3821 = vsel %vm3757, %v492, -inf
      %v3822 = vsel %vm3758, %v495, -inf
      %v3823 = vsel %vm3759, %v500, -inf
      %v3824 = vsel %vm3760, %v503, -inf
      %v3825 = vsel %vm3761, %v508, -inf
      %v3826 = vsel %vm3762, %v511, -inf
      %v3827 = vsel %vm3763, %v516, -inf
      %v3828 = vsel %vm3764, %v519, -inf
      %v3829 = vsel %vm3765, %v524, -inf
      %v3830 = vsel %vm3766, %v527, -inf
      %v3831 = vsel %vm3767, %v532, -inf
      %v3832 = vsel %vm3768, %v535, -inf
      %v3833 = vsel %vm3769, %v540, -inf
      %v3834 = vsel %vm3770, %v543, -inf
      %v3835 = vsel %vm3771, %v548, -inf
      %v3836 = vsel %vm3772, %v551, -inf
      %v3837 = vsel %vm3773, %v556, -inf
      %v3838 = vsel %vm3774, %v559, -inf
      %v3839 = vsel %vm3775, %v564, -inf
      %v3840 = vsel %vm3776, %v567, -inf
      %v3841 = vsel %vm3777, %v572, -inf
      %v3842 = vsel %vm3778, %v575, -inf
      %v3843 = vsel %vm3779, %v580, -inf
      %v3844 = vsel %vm3780, %v583, -inf
      %v3845 = vsel %vm3781, %v588, -inf
      %v3846 = vsel %vm3782, %v591, -inf
      %v3847 = vsel %vm3783, %v596, -inf
      %v3848 = vsel %vm3784, %v599, -inf
      %v3849 = vsel %vm3785, %v604, -inf
      %v3850 = vsel %vm3786, %v607, -inf
      %v3851 = vsel %vm3787, %v612, -inf
      %v3852 = vsel %vm3788, %v615, -inf
      %v3853 = vsel %vm3789, %v620, -inf
      %v3854 = vsel %vm3790, %v623, -inf
      %v3855 = vsel %vm3791, %v628, -inf
      %v3856 = vsel %vm3792, %v631, -inf
      %v3857 = vsel %vm3793, %v636, -inf
      %v3858 = vsel %vm3794, %v639, -inf
      %v3859 = vsel %vm3795, %v644, -inf
      %v3860 = vsel %vm3796, %v647, -inf
      %v3861 = vsel %vm3797, %v652, -inf
      %v3862 = vsel %vm3798, %v655, -inf
      %v3863 = vsel %vm3799, %v660, -inf
      %v3864 = vsel %vm3800, %v663, -inf
      %v3865 = vsel %vm3801, %v668, -inf
      %v3866 = vsel %vm3802, %v671, -inf
      %v3867 = vsel %vm3803, %v676, -inf
      %v3868 = vsel %vm3804, %v679, -inf
      %v3869 = vsel %vm3805, %v684, -inf
      %v3870 = vsel %vm3806, %v687, -inf
      %v3871 = vsel %vm3807, %v692, -inf
      %v3872 = vsel %vm3808, %v695, -inf
      %v3873 = vsel %vm3809, %v700, -inf
      %v3874 = vsel %vm3810, %v703, -inf
      %v3875 = vsel %vm3811, %v708, -inf
      %v3876 = vsel %vm3812, %v711, -inf
      %v3877 = vmax.f32 %v3813, %v3817
      %v3878 = vmax.f32 %v3814, %v3818
      %v3879 = vmax.f32 %v3815, %v3819
      %v3880 = vmax.f32 %v3816, %v3820
      %v3881 = vmax.f32 %v3877, %v3821
      %v3882 = vmax.f32 %v3878, %v3822
      %v3883 = vmax.f32 %v3879, %v3823
      %v3884 = vmax.f32 %v3880, %v3824
      %v3885 = vmax.f32 %v3881, %v3825
      %v3886 = vmax.f32 %v3882, %v3826
      %v3887 = vmax.f32 %v3883, %v3827
      %v3888 = vmax.f32 %v3884, %v3828
      %v3889 = vmax.f32 %v3885, %v3829
      %v3890 = vmax.f32 %v3886, %v3830
      %v3891 = vmax.f32 %v3887, %v3831
      %v3892 = vmax.f32 %v3888, %v3832
      %v3893 = vmax.f32 %v3889, %v3833
      %v3894 = vmax.f32 %v3890, %v3834
      %v3895 = vmax.f32 %v3891, %v3835
      %v3896 = vmax.f32 %v3892, %v3836
      %v3897 = vmax.f32 %v3893, %v3837
      %v3898 = vmax.f32 %v3894, %v3838
      %v3899 = vmax.f32 %v3895, %v3839
      %v3900 = vmax.f32 %v3896, %v3840
      %v3901 = vmax.f32 %v3897, %v3841
      %v3902 = vmax.f32 %v3898, %v3842
      %v3903 = vmax.f32 %v3899, %v3843
      %v3904 = vmax.f32 %v3900, %v3844
      %v3905 = vmax.f32 %v3901, %v3845
      %v3906 = vmax.f32 %v3902, %v3846
      %v3907 = vmax.f32 %v3903, %v3847
      %v3908 = vmax.f32 %v3904, %v3848
      %v3909 = vmax.f32 %v3905, %v3849
      %v3910 = vmax.f32 %v3906, %v3850
      %v3911 = vmax.f32 %v3907, %v3851
      %v3912 = vmax.f32 %v3908, %v3852
      %v3913 = vmax.f32 %v3909, %v3853
      %v3914 = vmax.f32 %v3910, %v3854
      %v3915 = vmax.f32 %v3911, %v3855
      %v3916 = vmax.f32 %v3912, %v3856
      %v3917 = vmax.f32 %v3913, %v3857
      %v3918 = vmax.f32 %v3914, %v3858
      %v3919 = vmax.f32 %v3915, %v3859
      %v3920 = vmax.f32 %v3916, %v3860
      %v3921 = vmax.f32 %v3917, %v3861
      %v3922 = vmax.f32 %v3918, %v3862
      %v3923 = vmax.f32 %v3919, %v3863
      %v3924 = vmax.f32 %v3920, %v3864
      %v3925 = vmax.f32 %v3921, %v3865
      %v3926 = vmax.f32 %v3922, %v3866
      %v3927 = vmax.f32 %v3923, %v3867
      %v3928 = vmax.f32 %v3924, %v3868
      %v3929 = vmax.f32 %v3925, %v3869
      %v3930 = vmax.f32 %v3926, %v3870
      %v3931 = vmax.f32 %v3927, %v3871
      %v3932 = vmax.f32 %v3928, %v3872
      %v3933 = vmax.f32 %v3929, %v3873
      %v3934 = vmax.f32 %v3930, %v3874
      %v3935 = vmax.f32 %v3931, %v3875
      %v3936 = vmax.f32 %v3932, %v3876
      %v3937 = vmax.f32 %v3933, %v3934
      %v3938 = vmax.f32 %v3935, %v3936
      %v3939 = vmax.f32 %v3937, %v3938
      %v3940 = vrot.slane %v3939, 4
      %v3941 = vmax.f32 %v3939, %v3940
      %v3942 = vrot.slane %v3941, 2
      %v3943 = vmax.f32 %v3941, %v3942
      %v3944 = vrot.slane %v3943, 1
      %v3945 = vmax.f32 %v3943, %v3944
      %vm3946 = vcmp.eq.s32.totalorder %v780, 6
      %vm3947 = vcmp.eq.s32.totalorder %v781, 6
      %vm3948 = vcmp.eq.s32.totalorder %v782, 6
      %vm3949 = vcmp.eq.s32.totalorder %v783, 6
      %vm3950 = vcmp.eq.s32.totalorder %v784, 6
      %vm3951 = vcmp.eq.s32.totalorder %v785, 6
      %vm3952 = vcmp.eq.s32.totalorder %v786, 6
      %vm3953 = vcmp.eq.s32.totalorder %v787, 6
      %vm3954 = vcmp.eq.s32.totalorder %v788, 6
      %vm3955 = vcmp.eq.s32.totalorder %v789, 6
      %vm3956 = vcmp.eq.s32.totalorder %v790, 6
      %vm3957 = vcmp.eq.s32.totalorder %v791, 6
      %vm3958 = vcmp.eq.s32.totalorder %v792, 6
      %vm3959 = vcmp.eq.s32.totalorder %v793, 6
      %vm3960 = vcmp.eq.s32.totalorder %v794, 6
      %vm3961 = vcmp.eq.s32.totalorder %v795, 6
      %vm3962 = vcmp.eq.s32.totalorder %v796, 6
      %vm3963 = vcmp.eq.s32.totalorder %v797, 6
      %vm3964 = vcmp.eq.s32.totalorder %v798, 6
      %vm3965 = vcmp.eq.s32.totalorder %v799, 6
      %vm3966 = vcmp.eq.s32.totalorder %v800, 6
      %vm3967 = vcmp.eq.s32.totalorder %v801, 6
      %vm3968 = vcmp.eq.s32.totalorder %v802, 6
      %vm3969 = vcmp.eq.s32.totalorder %v803, 6
      %vm3970 = vcmp.eq.s32.totalorder %v804, 6
      %vm3971 = vcmp.eq.s32.totalorder %v805, 6
      %vm3972 = vcmp.eq.s32.totalorder %v806, 6
      %vm3973 = vcmp.eq.s32.totalorder %v807, 6
      %vm3974 = vcmp.eq.s32.totalorder %v808, 6
      %vm3975 = vcmp.eq.s32.totalorder %v809, 6
      %vm3976 = vcmp.eq.s32.totalorder %v810, 6
      %vm3977 = vcmp.eq.s32.totalorder %v811, 6
      %vm3978 = vcmp.eq.s32.totalorder %v812, 6
      %vm3979 = vcmp.eq.s32.totalorder %v813, 6
      %vm3980 = vcmp.eq.s32.totalorder %v814, 6
      %vm3981 = vcmp.eq.s32.totalorder %v815, 6
      %vm3982 = vcmp.eq.s32.totalorder %v816, 6
      %vm3983 = vcmp.eq.s32.totalorder %v817, 6
      %vm3984 = vcmp.eq.s32.totalorder %v818, 6
      %vm3985 = vcmp.eq.s32.totalorder %v819, 6
      %vm3986 = vcmp.eq.s32.totalorder %v820, 6
      %vm3987 = vcmp.eq.s32.totalorder %v821, 6
      %vm3988 = vcmp.eq.s32.totalorder %v822, 6
      %vm3989 = vcmp.eq.s32.totalorder %v823, 6
      %vm3990 = vcmp.eq.s32.totalorder %v824, 6
      %vm3991 = vcmp.eq.s32.totalorder %v825, 6
      %vm3992 = vcmp.eq.s32.totalorder %v826, 6
      %vm3993 = vcmp.eq.s32.totalorder %v827, 6
      %vm3994 = vcmp.eq.s32.totalorder %v828, 6
      %vm3995 = vcmp.eq.s32.totalorder %v829, 6
      %vm3996 = vcmp.eq.s32.totalorder %v830, 6
      %vm3997 = vcmp.eq.s32.totalorder %v831, 6
      %vm3998 = vcmp.eq.s32.totalorder %v832, 6
      %vm3999 = vcmp.eq.s32.totalorder %v833, 6
      %vm4000 = vcmp.eq.s32.totalorder %v834, 6
      %vm4001 = vcmp.eq.s32.totalorder %v835, 6
      %vm4002 = vcmp.eq.s32.totalorder %v836, 6
      %vm4003 = vcmp.eq.s32.totalorder %v837, 6
      %vm4004 = vcmp.eq.s32.totalorder %v838, 6
      %vm4005 = vcmp.eq.s32.totalorder %v839, 6
      %vm4006 = vcmp.eq.s32.totalorder %v840, 6
      %vm4007 = vcmp.eq.s32.totalorder %v841, 6
      %vm4008 = vcmp.eq.s32.totalorder %v842, 6
      %vm4009 = vcmp.eq.s32.totalorder %v843, 6
      %v4010 = vsel %vm3946, 1, 0
      %v4011 = vsel %vm3947, 1, 0
      %v4012 = vsel %vm3948, 1, 0
      %v4013 = vsel %vm3949, 1, 0
      %v4014 = vsel %vm3950, 1, 0
      %v4015 = vsel %vm3951, 1, 0
      %v4016 = vsel %vm3952, 1, 0
      %v4017 = vsel %vm3953, 1, 0
      %v4018 = vsel %vm3954, 1, 0
      %v4019 = vsel %vm3955, 1, 0
      %v4020 = vsel %vm3956, 1, 0
      %v4021 = vsel %vm3957, 1, 0
      %v4022 = vsel %vm3958, 1, 0
      %v4023 = vsel %vm3959, 1, 0
      %v4024 = vsel %vm3960, 1, 0
      %v4025 = vsel %vm3961, 1, 0
      %v4026 = vsel %vm3962, 1, 0
      %v4027 = vsel %vm3963, 1, 0
      %v4028 = vsel %vm3964, 1, 0
      %v4029 = vsel %vm3965, 1, 0
      %v4030 = vsel %vm3966, 1, 0
      %v4031 = vsel %vm3967, 1, 0
      %v4032 = vsel %vm3968, 1, 0
      %v4033 = vsel %vm3969, 1, 0
      %v4034 = vsel %vm3970, 1, 0
      %v4035 = vsel %vm3971, 1, 0
      %v4036 = vsel %vm3972, 1, 0
      %v4037 = vsel %vm3973, 1, 0
      %v4038 = vsel %vm3974, 1, 0
      %v4039 = vsel %vm3975, 1, 0
      %v4040 = vsel %vm3976, 1, 0
      %v4041 = vsel %vm3977, 1, 0
      %v4042 = vsel %vm3978, 1, 0
      %v4043 = vsel %vm3979, 1, 0
      %v4044 = vsel %vm3980, 1, 0
      %v4045 = vsel %vm3981, 1, 0
      %v4046 = vsel %vm3982, 1, 0
      %v4047 = vsel %vm3983, 1, 0
      %v4048 = vsel %vm3984, 1, 0
      %v4049 = vsel %vm3985, 1, 0
      %v4050 = vsel %vm3986, 1, 0
      %v4051 = vsel %vm3987, 1, 0
      %v4052 = vsel %vm3988, 1, 0
      %v4053 = vsel %vm3989, 1, 0
      %v4054 = vsel %vm3990, 1, 0
      %v4055 = vsel %vm3991, 1, 0
      %v4056 = vsel %vm3992, 1, 0
      %v4057 = vsel %vm3993, 1, 0
      %v4058 = vsel %vm3994, 1, 0
      %v4059 = vsel %vm3995, 1, 0
      %v4060 = vsel %vm3996, 1, 0
      %v4061 = vsel %vm3997, 1, 0
      %v4062 = vsel %vm3998, 1, 0
      %v4063 = vsel %vm3999, 1, 0
      %v4064 = vsel %vm4000, 1, 0
      %v4065 = vsel %vm4001, 1, 0
      %v4066 = vsel %vm4002, 1, 0
      %v4067 = vsel %vm4003, 1, 0
      %v4068 = vsel %vm4004, 1, 0
      %v4069 = vsel %vm4005, 1, 0
      %v4070 = vsel %vm4006, 1, 0
      %v4071 = vsel %vm4007, 1, 0
      %v4072 = vsel %vm4008, 1, 0
      %v4073 = vsel %vm4009, 1, 0
      %4074 = vset.pattern.permute.xlu0 0
      %4075 = vperm.xlu0 %4074, %v4010
      %v4076 = vpop.permute.xlu0 %4075
      %4077 = vset.pattern.permute.xlu0 0
      %4078 = vperm.xlu0 %4077, %v4011
      %v4079 = vpop.permute.xlu0 %4078
      %4080 = vset.pattern.permute.xlu0 0
      %4081 = vperm.xlu0 %4080, %v4012
      %v4082 = vpop.permute.xlu0 %4081
      %4083 = vset.pattern.permute.xlu0 0
      %4084 = vperm.xlu0 %4083, %v4013
      %v4085 = vpop.permute.xlu0 %4084
      %4086 = vset.pattern.permute.xlu0 0
      %4087 = vperm.xlu0 %4086, %v4014
      %v4088 = vpop.permute.xlu0 %4087
      %4089 = vset.pattern.permute.xlu0 0
      %4090 = vperm.xlu0 %4089, %v4015
      %v4091 = vpop.permute.xlu0 %4090
      %4092 = vset.pattern.permute.xlu0 0
      %4093 = vperm.xlu0 %4092, %v4016
      %v4094 = vpop.permute.xlu0 %4093
      %4095 = vset.pattern.permute.xlu0 0
      %4096 = vperm.xlu0 %4095, %v4017
      %v4097 = vpop.permute.xlu0 %4096
      %4098 = vset.pattern.permute.xlu0 0
      %4099 = vperm.xlu0 %4098, %v4018
      %v4100 = vpop.permute.xlu0 %4099
      %4101 = vset.pattern.permute.xlu0 0
      %4102 = vperm.xlu0 %4101, %v4019
      %v4103 = vpop.permute.xlu0 %4102
      %4104 = vset.pattern.permute.xlu0 0
      %4105 = vperm.xlu0 %4104, %v4020
      %v4106 = vpop.permute.xlu0 %4105
      %4107 = vset.pattern.permute.xlu0 0
      %4108 = vperm.xlu0 %4107, %v4021
      %v4109 = vpop.permute.xlu0 %4108
      %4110 = vset.pattern.permute.xlu0 0
      %4111 = vperm.xlu0 %4110, %v4022
      %v4112 = vpop.permute.xlu0 %4111
      %4113 = vset.pattern.permute.xlu0 0
      %4114 = vperm.xlu0 %4113, %v4023
      %v4115 = vpop.permute.xlu0 %4114
      %4116 = vset.pattern.permute.xlu0 0
      %4117 = vperm.xlu0 %4116, %v4024
      %v4118 = vpop.permute.xlu0 %4117
      %4119 = vset.pattern.permute.xlu0 0
      %4120 = vperm.xlu0 %4119, %v4025
      %v4121 = vpop.permute.xlu0 %4120
      %4122 = vset.pattern.permute.xlu0 0
      %4123 = vperm.xlu0 %4122, %v4026
      %v4124 = vpop.permute.xlu0 %4123
      %4125 = vset.pattern.permute.xlu0 0
      %4126 = vperm.xlu0 %4125, %v4027
      %v4127 = vpop.permute.xlu0 %4126
      %4128 = vset.pattern.permute.xlu0 0
      %4129 = vperm.xlu0 %4128, %v4028
      %v4130 = vpop.permute.xlu0 %4129
      %4131 = vset.pattern.permute.xlu0 0
      %4132 = vperm.xlu0 %4131, %v4029
      %v4133 = vpop.permute.xlu0 %4132
      %4134 = vset.pattern.permute.xlu0 0
      %4135 = vperm.xlu0 %4134, %v4030
      %v4136 = vpop.permute.xlu0 %4135
      %4137 = vset.pattern.permute.xlu0 0
      %4138 = vperm.xlu0 %4137, %v4031
      %v4139 = vpop.permute.xlu0 %4138
      %4140 = vset.pattern.permute.xlu0 0
      %4141 = vperm.xlu0 %4140, %v4032
      %v4142 = vpop.permute.xlu0 %4141
      %4143 = vset.pattern.permute.xlu0 0
      %4144 = vperm.xlu0 %4143, %v4033
      %v4145 = vpop.permute.xlu0 %4144
      %4146 = vset.pattern.permute.xlu0 0
      %4147 = vperm.xlu0 %4146, %v4034
      %v4148 = vpop.permute.xlu0 %4147
      %4149 = vset.pattern.permute.xlu0 0
      %4150 = vperm.xlu0 %4149, %v4035
      %v4151 = vpop.permute.xlu0 %4150
      %4152 = vset.pattern.permute.xlu0 0
      %4153 = vperm.xlu0 %4152, %v4036
      %v4154 = vpop.permute.xlu0 %4153
      %4155 = vset.pattern.permute.xlu0 0
      %4156 = vperm.xlu0 %4155, %v4037
      %v4157 = vpop.permute.xlu0 %4156
      %4158 = vset.pattern.permute.xlu0 0
      %4159 = vperm.xlu0 %4158, %v4038
      %v4160 = vpop.permute.xlu0 %4159
      %4161 = vset.pattern.permute.xlu0 0
      %4162 = vperm.xlu0 %4161, %v4039
      %v4163 = vpop.permute.xlu0 %4162
      %4164 = vset.pattern.permute.xlu0 0
      %4165 = vperm.xlu0 %4164, %v4040
      %v4166 = vpop.permute.xlu0 %4165
      %4167 = vset.pattern.permute.xlu0 0
      %4168 = vperm.xlu0 %4167, %v4041
      %v4169 = vpop.permute.xlu0 %4168
      %4170 = vset.pattern.permute.xlu0 0
      %4171 = vperm.xlu0 %4170, %v4042
      %v4172 = vpop.permute.xlu0 %4171
      %4173 = vset.pattern.permute.xlu0 0
      %4174 = vperm.xlu0 %4173, %v4043
      %v4175 = vpop.permute.xlu0 %4174
      %4176 = vset.pattern.permute.xlu0 0
      %4177 = vperm.xlu0 %4176, %v4044
      %v4178 = vpop.permute.xlu0 %4177
      %4179 = vset.pattern.permute.xlu0 0
      %4180 = vperm.xlu0 %4179, %v4045
      %v4181 = vpop.permute.xlu0 %4180
      %4182 = vset.pattern.permute.xlu0 0
      %4183 = vperm.xlu0 %4182, %v4046
      %v4184 = vpop.permute.xlu0 %4183
      %4185 = vset.pattern.permute.xlu0 0
      %4186 = vperm.xlu0 %4185, %v4047
      %v4187 = vpop.permute.xlu0 %4186
      %4188 = vset.pattern.permute.xlu0 0
      %4189 = vperm.xlu0 %4188, %v4048
      %v4190 = vpop.permute.xlu0 %4189
      %4191 = vset.pattern.permute.xlu0 0
      %4192 = vperm.xlu0 %4191, %v4049
      %v4193 = vpop.permute.xlu0 %4192
      %4194 = vset.pattern.permute.xlu0 0
      %4195 = vperm.xlu0 %4194, %v4050
      %v4196 = vpop.permute.xlu0 %4195
      %4197 = vset.pattern.permute.xlu0 0
      %4198 = vperm.xlu0 %4197, %v4051
      %v4199 = vpop.permute.xlu0 %4198
      %4200 = vset.pattern.permute.xlu0 0
      %4201 = vperm.xlu0 %4200, %v4052
      %v4202 = vpop.permute.xlu0 %4201
      %4203 = vset.pattern.permute.xlu0 0
      %4204 = vperm.xlu0 %4203, %v4053
      %v4205 = vpop.permute.xlu0 %4204
      %4206 = vset.pattern.permute.xlu0 0
      %4207 = vperm.xlu0 %4206, %v4054
      %v4208 = vpop.permute.xlu0 %4207
      %4209 = vset.pattern.permute.xlu0 0
      %4210 = vperm.xlu0 %4209, %v4055
      %v4211 = vpop.permute.xlu0 %4210
      %4212 = vset.pattern.permute.xlu0 0
      %4213 = vperm.xlu0 %4212, %v4056
      %v4214 = vpop.permute.xlu0 %4213
      %4215 = vset.pattern.permute.xlu0 0
      %4216 = vperm.xlu0 %4215, %v4057
      %v4217 = vpop.permute.xlu0 %4216
      %4218 = vset.pattern.permute.xlu0 0
      %4219 = vperm.xlu0 %4218, %v4058
      %v4220 = vpop.permute.xlu0 %4219
      %4221 = vset.pattern.permute.xlu0 0
      %4222 = vperm.xlu0 %4221, %v4059
      %v4223 = vpop.permute.xlu0 %4222
      %4224 = vset.pattern.permute.xlu0 0
      %4225 = vperm.xlu0 %4224, %v4060
      %v4226 = vpop.permute.xlu0 %4225
      %4227 = vset.pattern.permute.xlu0 0
      %4228 = vperm.xlu0 %4227, %v4061
      %v4229 = vpop.permute.xlu0 %4228
      %4230 = vset.pattern.permute.xlu0 0
      %4231 = vperm.xlu0 %4230, %v4062
      %v4232 = vpop.permute.xlu0 %4231
      %4233 = vset.pattern.permute.xlu0 0
      %4234 = vperm.xlu0 %4233, %v4063
      %v4235 = vpop.permute.xlu0 %4234
      %4236 = vset.pattern.permute.xlu0 0
      %4237 = vperm.xlu0 %4236, %v4064
      %v4238 = vpop.permute.xlu0 %4237
      %4239 = vset.pattern.permute.xlu0 0
      %4240 = vperm.xlu0 %4239, %v4065
      %v4241 = vpop.permute.xlu0 %4240
      %4242 = vset.pattern.permute.xlu0 0
      %4243 = vperm.xlu0 %4242, %v4066
      %v4244 = vpop.permute.xlu0 %4243
      %4245 = vset.pattern.permute.xlu0 0
      %4246 = vperm.xlu0 %4245, %v4067
      %v4247 = vpop.permute.xlu0 %4246
      %4248 = vset.pattern.permute.xlu0 0
      %4249 = vperm.xlu0 %4248, %v4068
      %v4250 = vpop.permute.xlu0 %4249
      %4251 = vset.pattern.permute.xlu0 0
      %4252 = vperm.xlu0 %4251, %v4069
      %v4253 = vpop.permute.xlu0 %4252
      %4254 = vset.pattern.permute.xlu0 0
      %4255 = vperm.xlu0 %4254, %v4070
      %v4256 = vpop.permute.xlu0 %4255
      %4257 = vset.pattern.permute.xlu0 0
      %4258 = vperm.xlu0 %4257, %v4071
      %v4259 = vpop.permute.xlu0 %4258
      %4260 = vset.pattern.permute.xlu0 0
      %4261 = vperm.xlu0 %4260, %v4072
      %v4262 = vpop.permute.xlu0 %4261
      %4263 = vset.pattern.permute.xlu0 0
      %4264 = vperm.xlu0 %4263, %v4073
      %v4265 = vpop.permute.xlu0 %4264
      %vm4266 = vcmp.eq.s32.totalorder %v4076, 1
      %vm4267 = vcmp.eq.s32.totalorder %v4079, 1
      %vm4268 = vcmp.eq.s32.totalorder %v4082, 1
      %vm4269 = vcmp.eq.s32.totalorder %v4085, 1
      %vm4270 = vcmp.eq.s32.totalorder %v4088, 1
      %vm4271 = vcmp.eq.s32.totalorder %v4091, 1
      %vm4272 = vcmp.eq.s32.totalorder %v4094, 1
      %vm4273 = vcmp.eq.s32.totalorder %v4097, 1
      %vm4274 = vcmp.eq.s32.totalorder %v4100, 1
      %vm4275 = vcmp.eq.s32.totalorder %v4103, 1
      %vm4276 = vcmp.eq.s32.totalorder %v4106, 1
      %vm4277 = vcmp.eq.s32.totalorder %v4109, 1
      %vm4278 = vcmp.eq.s32.totalorder %v4112, 1
      %vm4279 = vcmp.eq.s32.totalorder %v4115, 1
      %vm4280 = vcmp.eq.s32.totalorder %v4118, 1
      %vm4281 = vcmp.eq.s32.totalorder %v4121, 1
      %vm4282 = vcmp.eq.s32.totalorder %v4124, 1
      %vm4283 = vcmp.eq.s32.totalorder %v4127, 1
      %vm4284 = vcmp.eq.s32.totalorder %v4130, 1
      %vm4285 = vcmp.eq.s32.totalorder %v4133, 1
      %vm4286 = vcmp.eq.s32.totalorder %v4136, 1
      %vm4287 = vcmp.eq.s32.totalorder %v4139, 1
      %vm4288 = vcmp.eq.s32.totalorder %v4142, 1
      %vm4289 = vcmp.eq.s32.totalorder %v4145, 1
      %vm4290 = vcmp.eq.s32.totalorder %v4148, 1
      %vm4291 = vcmp.eq.s32.totalorder %v4151, 1
      %vm4292 = vcmp.eq.s32.totalorder %v4154, 1
      %vm4293 = vcmp.eq.s32.totalorder %v4157, 1
      %vm4294 = vcmp.eq.s32.totalorder %v4160, 1
      %vm4295 = vcmp.eq.s32.totalorder %v4163, 1
      %vm4296 = vcmp.eq.s32.totalorder %v4166, 1
      %vm4297 = vcmp.eq.s32.totalorder %v4169, 1
      %vm4298 = vcmp.eq.s32.totalorder %v4172, 1
      %vm4299 = vcmp.eq.s32.totalorder %v4175, 1
      %vm4300 = vcmp.eq.s32.totalorder %v4178, 1
      %vm4301 = vcmp.eq.s32.totalorder %v4181, 1
      %vm4302 = vcmp.eq.s32.totalorder %v4184, 1
      %vm4303 = vcmp.eq.s32.totalorder %v4187, 1
      %vm4304 = vcmp.eq.s32.totalorder %v4190, 1
      %vm4305 = vcmp.eq.s32.totalorder %v4193, 1
      %vm4306 = vcmp.eq.s32.totalorder %v4196, 1
      %vm4307 = vcmp.eq.s32.totalorder %v4199, 1
      %vm4308 = vcmp.eq.s32.totalorder %v4202, 1
      %vm4309 = vcmp.eq.s32.totalorder %v4205, 1
      %vm4310 = vcmp.eq.s32.totalorder %v4208, 1
      %vm4311 = vcmp.eq.s32.totalorder %v4211, 1
      %vm4312 = vcmp.eq.s32.totalorder %v4214, 1
      %vm4313 = vcmp.eq.s32.totalorder %v4217, 1
      %vm4314 = vcmp.eq.s32.totalorder %v4220, 1
      %vm4315 = vcmp.eq.s32.totalorder %v4223, 1
      %vm4316 = vcmp.eq.s32.totalorder %v4226, 1
      %vm4317 = vcmp.eq.s32.totalorder %v4229, 1
      %vm4318 = vcmp.eq.s32.totalorder %v4232, 1
      %vm4319 = vcmp.eq.s32.totalorder %v4235, 1
      %vm4320 = vcmp.eq.s32.totalorder %v4238, 1
      %vm4321 = vcmp.eq.s32.totalorder %v4241, 1
      %vm4322 = vcmp.eq.s32.totalorder %v4244, 1
      %vm4323 = vcmp.eq.s32.totalorder %v4247, 1
      %vm4324 = vcmp.eq.s32.totalorder %v4250, 1
      %vm4325 = vcmp.eq.s32.totalorder %v4253, 1
      %vm4326 = vcmp.eq.s32.totalorder %v4256, 1
      %vm4327 = vcmp.eq.s32.totalorder %v4259, 1
      %vm4328 = vcmp.eq.s32.totalorder %v4262, 1
      %vm4329 = vcmp.eq.s32.totalorder %v4265, 1
      %v4330 = vsel %vm4266, %v460, -inf
      %v4331 = vsel %vm4267, %v463, -inf
      %v4332 = vsel %vm4268, %v468, -inf
      %v4333 = vsel %vm4269, %v471, -inf
      %v4334 = vsel %vm4270, %v476, -inf
      %v4335 = vsel %vm4271, %v479, -inf
      %v4336 = vsel %vm4272, %v484, -inf
      %v4337 = vsel %vm4273, %v487, -inf
      %v4338 = vsel %vm4274, %v492, -inf
      %v4339 = vsel %vm4275, %v495, -inf
      %v4340 = vsel %vm4276, %v500, -inf
      %v4341 = vsel %vm4277, %v503, -inf
      %v4342 = vsel %vm4278, %v508, -inf
      %v4343 = vsel %vm4279, %v511, -inf
      %v4344 = vsel %vm4280, %v516, -inf
      %v4345 = vsel %vm4281, %v519, -inf
      %v4346 = vsel %vm4282, %v524, -inf
      %v4347 = vsel %vm4283, %v527, -inf
      %v4348 = vsel %vm4284, %v532, -inf
      %v4349 = vsel %vm4285, %v535, -inf
      %v4350 = vsel %vm4286, %v540, -inf
      %v4351 = vsel %vm4287, %v543, -inf
      %v4352 = vsel %vm4288, %v548, -inf
      %v4353 = vsel %vm4289, %v551, -inf
      %v4354 = vsel %vm4290, %v556, -inf
      %v4355 = vsel %vm4291, %v559, -inf
      %v4356 = vsel %vm4292, %v564, -inf
      %v4357 = vsel %vm4293, %v567, -inf
      %v4358 = vsel %vm4294, %v572, -inf
      %v4359 = vsel %vm4295, %v575, -inf
      %v4360 = vsel %vm4296, %v580, -inf
      %v4361 = vsel %vm4297, %v583, -inf
      %v4362 = vsel %vm4298, %v588, -inf
      %v4363 = vsel %vm4299, %v591, -inf
      %v4364 = vsel %vm4300, %v596, -inf
      %v4365 = vsel %vm4301, %v599, -inf
      %v4366 = vsel %vm4302, %v604, -inf
      %v4367 = vsel %vm4303, %v607, -inf
      %v4368 = vsel %vm4304, %v612, -inf
      %v4369 = vsel %vm4305, %v615, -inf
      %v4370 = vsel %vm4306, %v620, -inf
      %v4371 = vsel %vm4307, %v623, -inf
      %v4372 = vsel %vm4308, %v628, -inf
      %v4373 = vsel %vm4309, %v631, -inf
      %v4374 = vsel %vm4310, %v636, -inf
      %v4375 = vsel %vm4311, %v639, -inf
      %v4376 = vsel %vm4312, %v644, -inf
      %v4377 = vsel %vm4313, %v647, -inf
      %v4378 = vsel %vm4314, %v652, -inf
      %v4379 = vsel %vm4315, %v655, -inf
      %v4380 = vsel %vm4316, %v660, -inf
      %v4381 = vsel %vm4317, %v663, -inf
      %v4382 = vsel %vm4318, %v668, -inf
      %v4383 = vsel %vm4319, %v671, -inf
      %v4384 = vsel %vm4320, %v676, -inf
      %v4385 = vsel %vm4321, %v679, -inf
      %v4386 = vsel %vm4322, %v684, -inf
      %v4387 = vsel %vm4323, %v687, -inf
      %v4388 = vsel %vm4324, %v692, -inf
      %v4389 = vsel %vm4325, %v695, -inf
      %v4390 = vsel %vm4326, %v700, -inf
      %v4391 = vsel %vm4327, %v703, -inf
      %v4392 = vsel %vm4328, %v708, -inf
      %v4393 = vsel %vm4329, %v711, -inf
      %v4394 = vmax.f32 %v4330, %v4334
      %v4395 = vmax.f32 %v4331, %v4335
      %v4396 = vmax.f32 %v4332, %v4336
      %v4397 = vmax.f32 %v4333, %v4337
      %v4398 = vmax.f32 %v4394, %v4338
      %v4399 = vmax.f32 %v4395, %v4339
      %v4400 = vmax.f32 %v4396, %v4340
      %v4401 = vmax.f32 %v4397, %v4341
      %v4402 = vmax.f32 %v4398, %v4342
      %v4403 = vmax.f32 %v4399, %v4343
      %v4404 = vmax.f32 %v4400, %v4344
      %v4405 = vmax.f32 %v4401, %v4345
      %v4406 = vmax.f32 %v4402, %v4346
      %v4407 = vmax.f32 %v4403, %v4347
      %v4408 = vmax.f32 %v4404, %v4348
      %v4409 = vmax.f32 %v4405, %v4349
      %v4410 = vmax.f32 %v4406, %v4350
      %v4411 = vmax.f32 %v4407, %v4351
      %v4412 = vmax.f32 %v4408, %v4352
      %v4413 = vmax.f32 %v4409, %v4353
      %v4414 = vmax.f32 %v4410, %v4354
      %v4415 = vmax.f32 %v4411, %v4355
      %v4416 = vmax.f32 %v4412, %v4356
      %v4417 = vmax.f32 %v4413, %v4357
      %v4418 = vmax.f32 %v4414, %v4358
      %v4419 = vmax.f32 %v4415, %v4359
      %v4420 = vmax.f32 %v4416, %v4360
      %v4421 = vmax.f32 %v4417, %v4361
      %v4422 = vmax.f32 %v4418, %v4362
      %v4423 = vmax.f32 %v4419, %v4363
      %v4424 = vmax.f32 %v4420, %v4364
      %v4425 = vmax.f32 %v4421, %v4365
      %v4426 = vmax.f32 %v4422, %v4366
      %v4427 = vmax.f32 %v4423, %v4367
      %v4428 = vmax.f32 %v4424, %v4368
      %v4429 = vmax.f32 %v4425, %v4369
      %v4430 = vmax.f32 %v4426, %v4370
      %v4431 = vmax.f32 %v4427, %v4371
      %v4432 = vmax.f32 %v4428, %v4372
      %v4433 = vmax.f32 %v4429, %v4373
      %v4434 = vmax.f32 %v4430, %v4374
      %v4435 = vmax.f32 %v4431, %v4375
      %v4436 = vmax.f32 %v4432, %v4376
      %v4437 = vmax.f32 %v4433, %v4377
      %v4438 = vmax.f32 %v4434, %v4378
      %v4439 = vmax.f32 %v4435, %v4379
      %v4440 = vmax.f32 %v4436, %v4380
      %v4441 = vmax.f32 %v4437, %v4381
      %v4442 = vmax.f32 %v4438, %v4382
      %v4443 = vmax.f32 %v4439, %v4383
      %v4444 = vmax.f32 %v4440, %v4384
      %v4445 = vmax.f32 %v4441, %v4385
      %v4446 = vmax.f32 %v4442, %v4386
      %v4447 = vmax.f32 %v4443, %v4387
      %v4448 = vmax.f32 %v4444, %v4388
      %v4449 = vmax.f32 %v4445, %v4389
      %v4450 = vmax.f32 %v4446, %v4390
      %v4451 = vmax.f32 %v4447, %v4391
      %v4452 = vmax.f32 %v4448, %v4392
      %v4453 = vmax.f32 %v4449, %v4393
      %v4454 = vmax.f32 %v4450, %v4451
      %v4455 = vmax.f32 %v4452, %v4453
      %v4456 = vmax.f32 %v4454, %v4455
      %v4457 = vrot.slane %v4456, 4
      %v4458 = vmax.f32 %v4456, %v4457
      %v4459 = vrot.slane %v4458, 2
      %v4460 = vmax.f32 %v4458, %v4459
      %v4461 = vrot.slane %v4460, 1
      %v4462 = vmax.f32 %v4460, %v4461
      %vm4463 = vcmp.eq.s32.totalorder %v780, 7
      %vm4464 = vcmp.eq.s32.totalorder %v781, 7
      %vm4465 = vcmp.eq.s32.totalorder %v782, 7
      %vm4466 = vcmp.eq.s32.totalorder %v783, 7
      %vm4467 = vcmp.eq.s32.totalorder %v784, 7
      %vm4468 = vcmp.eq.s32.totalorder %v785, 7
      %vm4469 = vcmp.eq.s32.totalorder %v786, 7
      %vm4470 = vcmp.eq.s32.totalorder %v787, 7
      %vm4471 = vcmp.eq.s32.totalorder %v788, 7
      %vm4472 = vcmp.eq.s32.totalorder %v789, 7
      %vm4473 = vcmp.eq.s32.totalorder %v790, 7
      %vm4474 = vcmp.eq.s32.totalorder %v791, 7
      %vm4475 = vcmp.eq.s32.totalorder %v792, 7
      %vm4476 = vcmp.eq.s32.totalorder %v793, 7
      %vm4477 = vcmp.eq.s32.totalorder %v794, 7
      %vm4478 = vcmp.eq.s32.totalorder %v795, 7
      %vm4479 = vcmp.eq.s32.totalorder %v796, 7
      %vm4480 = vcmp.eq.s32.totalorder %v797, 7
      %vm4481 = vcmp.eq.s32.totalorder %v798, 7
      %vm4482 = vcmp.eq.s32.totalorder %v799, 7
      %vm4483 = vcmp.eq.s32.totalorder %v800, 7
      %vm4484 = vcmp.eq.s32.totalorder %v801, 7
      %vm4485 = vcmp.eq.s32.totalorder %v802, 7
      %vm4486 = vcmp.eq.s32.totalorder %v803, 7
      %vm4487 = vcmp.eq.s32.totalorder %v804, 7
      %vm4488 = vcmp.eq.s32.totalorder %v805, 7
      %vm4489 = vcmp.eq.s32.totalorder %v806, 7
      %vm4490 = vcmp.eq.s32.totalorder %v807, 7
      %vm4491 = vcmp.eq.s32.totalorder %v808, 7
      %vm4492 = vcmp.eq.s32.totalorder %v809, 7
      %vm4493 = vcmp.eq.s32.totalorder %v810, 7
      %vm4494 = vcmp.eq.s32.totalorder %v811, 7
      %vm4495 = vcmp.eq.s32.totalorder %v812, 7
      %vm4496 = vcmp.eq.s32.totalorder %v813, 7
      %vm4497 = vcmp.eq.s32.totalorder %v814, 7
      %vm4498 = vcmp.eq.s32.totalorder %v815, 7
      %vm4499 = vcmp.eq.s32.totalorder %v816, 7
      %vm4500 = vcmp.eq.s32.totalorder %v817, 7
      %vm4501 = vcmp.eq.s32.totalorder %v818, 7
      %vm4502 = vcmp.eq.s32.totalorder %v819, 7
      %vm4503 = vcmp.eq.s32.totalorder %v820, 7
      %vm4504 = vcmp.eq.s32.totalorder %v821, 7
      %vm4505 = vcmp.eq.s32.totalorder %v822, 7
      %vm4506 = vcmp.eq.s32.totalorder %v823, 7
      %vm4507 = vcmp.eq.s32.totalorder %v824, 7
      %vm4508 = vcmp.eq.s32.totalorder %v825, 7
      %vm4509 = vcmp.eq.s32.totalorder %v826, 7
      %vm4510 = vcmp.eq.s32.totalorder %v827, 7
      %vm4511 = vcmp.eq.s32.totalorder %v828, 7
      %vm4512 = vcmp.eq.s32.totalorder %v829, 7
      %vm4513 = vcmp.eq.s32.totalorder %v830, 7
      %vm4514 = vcmp.eq.s32.totalorder %v831, 7
      %vm4515 = vcmp.eq.s32.totalorder %v832, 7
      %vm4516 = vcmp.eq.s32.totalorder %v833, 7
      %vm4517 = vcmp.eq.s32.totalorder %v834, 7
      %vm4518 = vcmp.eq.s32.totalorder %v835, 7
      %vm4519 = vcmp.eq.s32.totalorder %v836, 7
      %vm4520 = vcmp.eq.s32.totalorder %v837, 7
      %vm4521 = vcmp.eq.s32.totalorder %v838, 7
      %vm4522 = vcmp.eq.s32.totalorder %v839, 7
      %vm4523 = vcmp.eq.s32.totalorder %v840, 7
      %vm4524 = vcmp.eq.s32.totalorder %v841, 7
      %vm4525 = vcmp.eq.s32.totalorder %v842, 7
      %vm4526 = vcmp.eq.s32.totalorder %v843, 7
      %v4527 = vsel %vm4463, 1, 0
      %v4528 = vsel %vm4464, 1, 0
      %v4529 = vsel %vm4465, 1, 0
      %v4530 = vsel %vm4466, 1, 0
      %v4531 = vsel %vm4467, 1, 0
      %v4532 = vsel %vm4468, 1, 0
      %v4533 = vsel %vm4469, 1, 0
      %v4534 = vsel %vm4470, 1, 0
      %v4535 = vsel %vm4471, 1, 0
      %v4536 = vsel %vm4472, 1, 0
      %v4537 = vsel %vm4473, 1, 0
      %v4538 = vsel %vm4474, 1, 0
      %v4539 = vsel %vm4475, 1, 0
      %v4540 = vsel %vm4476, 1, 0
      %v4541 = vsel %vm4477, 1, 0
      %v4542 = vsel %vm4478, 1, 0
      %v4543 = vsel %vm4479, 1, 0
      %v4544 = vsel %vm4480, 1, 0
      %v4545 = vsel %vm4481, 1, 0
      %v4546 = vsel %vm4482, 1, 0
      %v4547 = vsel %vm4483, 1, 0
      %v4548 = vsel %vm4484, 1, 0
      %v4549 = vsel %vm4485, 1, 0
      %v4550 = vsel %vm4486, 1, 0
      %v4551 = vsel %vm4487, 1, 0
      %v4552 = vsel %vm4488, 1, 0
      %v4553 = vsel %vm4489, 1, 0
      %v4554 = vsel %vm4490, 1, 0
      %v4555 = vsel %vm4491, 1, 0
      %v4556 = vsel %vm4492, 1, 0
      %v4557 = vsel %vm4493, 1, 0
      %v4558 = vsel %vm4494, 1, 0
      %v4559 = vsel %vm4495, 1, 0
      %v4560 = vsel %vm4496, 1, 0
      %v4561 = vsel %vm4497, 1, 0
      %v4562 = vsel %vm4498, 1, 0
      %v4563 = vsel %vm4499, 1, 0
      %v4564 = vsel %vm4500, 1, 0
      %v4565 = vsel %vm4501, 1, 0
      %v4566 = vsel %vm4502, 1, 0
      %v4567 = vsel %vm4503, 1, 0
      %v4568 = vsel %vm4504, 1, 0
      %v4569 = vsel %vm4505, 1, 0
      %v4570 = vsel %vm4506, 1, 0
      %v4571 = vsel %vm4507, 1, 0
      %v4572 = vsel %vm4508, 1, 0
      %v4573 = vsel %vm4509, 1, 0
      %v4574 = vsel %vm4510, 1, 0
      %v4575 = vsel %vm4511, 1, 0
      %v4576 = vsel %vm4512, 1, 0
      %v4577 = vsel %vm4513, 1, 0
      %v4578 = vsel %vm4514, 1, 0
      %v4579 = vsel %vm4515, 1, 0
      %v4580 = vsel %vm4516, 1, 0
      %v4581 = vsel %vm4517, 1, 0
      %v4582 = vsel %vm4518, 1, 0
      %v4583 = vsel %vm4519, 1, 0
      %v4584 = vsel %vm4520, 1, 0
      %v4585 = vsel %vm4521, 1, 0
      %v4586 = vsel %vm4522, 1, 0
      %v4587 = vsel %vm4523, 1, 0
      %v4588 = vsel %vm4524, 1, 0
      %v4589 = vsel %vm4525, 1, 0
      %v4590 = vsel %vm4526, 1, 0
      %4591 = vset.pattern.permute.xlu0 0
      %4592 = vperm.xlu0 %4591, %v4527
      %v4593 = vpop.permute.xlu0 %4592
      %4594 = vset.pattern.permute.xlu0 0
      %4595 = vperm.xlu0 %4594, %v4528
      %v4596 = vpop.permute.xlu0 %4595
      %4597 = vset.pattern.permute.xlu0 0
      %4598 = vperm.xlu0 %4597, %v4529
      %v4599 = vpop.permute.xlu0 %4598
      %4600 = vset.pattern.permute.xlu0 0
      %4601 = vperm.xlu0 %4600, %v4530
      %v4602 = vpop.permute.xlu0 %4601
      %4603 = vset.pattern.permute.xlu0 0
      %4604 = vperm.xlu0 %4603, %v4531
      %v4605 = vpop.permute.xlu0 %4604
      %4606 = vset.pattern.permute.xlu0 0
      %4607 = vperm.xlu0 %4606, %v4532
      %v4608 = vpop.permute.xlu0 %4607
      %4609 = vset.pattern.permute.xlu0 0
      %4610 = vperm.xlu0 %4609, %v4533
      %v4611 = vpop.permute.xlu0 %4610
      %4612 = vset.pattern.permute.xlu0 0
      %4613 = vperm.xlu0 %4612, %v4534
      %v4614 = vpop.permute.xlu0 %4613
      %4615 = vset.pattern.permute.xlu0 0
      %4616 = vperm.xlu0 %4615, %v4535
      %v4617 = vpop.permute.xlu0 %4616
      %4618 = vset.pattern.permute.xlu0 0
      %4619 = vperm.xlu0 %4618, %v4536
      %v4620 = vpop.permute.xlu0 %4619
      %4621 = vset.pattern.permute.xlu0 0
      %4622 = vperm.xlu0 %4621, %v4537
      %v4623 = vpop.permute.xlu0 %4622
      %4624 = vset.pattern.permute.xlu0 0
      %4625 = vperm.xlu0 %4624, %v4538
      %v4626 = vpop.permute.xlu0 %4625
      %4627 = vset.pattern.permute.xlu0 0
      %4628 = vperm.xlu0 %4627, %v4539
      %v4629 = vpop.permute.xlu0 %4628
      %4630 = vset.pattern.permute.xlu0 0
      %4631 = vperm.xlu0 %4630, %v4540
      %v4632 = vpop.permute.xlu0 %4631
      %4633 = vset.pattern.permute.xlu0 0
      %4634 = vperm.xlu0 %4633, %v4541
      %v4635 = vpop.permute.xlu0 %4634
      %4636 = vset.pattern.permute.xlu0 0
      %4637 = vperm.xlu0 %4636, %v4542
      %v4638 = vpop.permute.xlu0 %4637
      %4639 = vset.pattern.permute.xlu0 0
      %4640 = vperm.xlu0 %4639, %v4543
      %v4641 = vpop.permute.xlu0 %4640
      %4642 = vset.pattern.permute.xlu0 0
      %4643 = vperm.xlu0 %4642, %v4544
      %v4644 = vpop.permute.xlu0 %4643
      %4645 = vset.pattern.permute.xlu0 0
      %4646 = vperm.xlu0 %4645, %v4545
      %v4647 = vpop.permute.xlu0 %4646
      %4648 = vset.pattern.permute.xlu0 0
      %4649 = vperm.xlu0 %4648, %v4546
      %v4650 = vpop.permute.xlu0 %4649
      %4651 = vset.pattern.permute.xlu0 0
      %4652 = vperm.xlu0 %4651, %v4547
      %v4653 = vpop.permute.xlu0 %4652
      %4654 = vset.pattern.permute.xlu0 0
      %4655 = vperm.xlu0 %4654, %v4548
      %v4656 = vpop.permute.xlu0 %4655
      %4657 = vset.pattern.permute.xlu0 0
      %4658 = vperm.xlu0 %4657, %v4549
      %v4659 = vpop.permute.xlu0 %4658
      %4660 = vset.pattern.permute.xlu0 0
      %4661 = vperm.xlu0 %4660, %v4550
      %v4662 = vpop.permute.xlu0 %4661
      %4663 = vset.pattern.permute.xlu0 0
      %4664 = vperm.xlu0 %4663, %v4551
      %v4665 = vpop.permute.xlu0 %4664
      %4666 = vset.pattern.permute.xlu0 0
      %4667 = vperm.xlu0 %4666, %v4552
      %v4668 = vpop.permute.xlu0 %4667
      %4669 = vset.pattern.permute.xlu0 0
      %4670 = vperm.xlu0 %4669, %v4553
      %v4671 = vpop.permute.xlu0 %4670
      %4672 = vset.pattern.permute.xlu0 0
      %4673 = vperm.xlu0 %4672, %v4554
      %v4674 = vpop.permute.xlu0 %4673
      %4675 = vset.pattern.permute.xlu0 0
      %4676 = vperm.xlu0 %4675, %v4555
      %v4677 = vpop.permute.xlu0 %4676
      %4678 = vset.pattern.permute.xlu0 0
      %4679 = vperm.xlu0 %4678, %v4556
      %v4680 = vpop.permute.xlu0 %4679
      %4681 = vset.pattern.permute.xlu0 0
      %4682 = vperm.xlu0 %4681, %v4557
      %v4683 = vpop.permute.xlu0 %4682
      %4684 = vset.pattern.permute.xlu0 0
      %4685 = vperm.xlu0 %4684, %v4558
      %v4686 = vpop.permute.xlu0 %4685
      %4687 = vset.pattern.permute.xlu0 0
      %4688 = vperm.xlu0 %4687, %v4559
      %v4689 = vpop.permute.xlu0 %4688
      %4690 = vset.pattern.permute.xlu0 0
      %4691 = vperm.xlu0 %4690, %v4560
      %v4692 = vpop.permute.xlu0 %4691
      %4693 = vset.pattern.permute.xlu0 0
      %4694 = vperm.xlu0 %4693, %v4561
      %v4695 = vpop.permute.xlu0 %4694
      %4696 = vset.pattern.permute.xlu0 0
      %4697 = vperm.xlu0 %4696, %v4562
      %v4698 = vpop.permute.xlu0 %4697
      %4699 = vset.pattern.permute.xlu0 0
      %4700 = vperm.xlu0 %4699, %v4563
      %v4701 = vpop.permute.xlu0 %4700
      %4702 = vset.pattern.permute.xlu0 0
      %4703 = vperm.xlu0 %4702, %v4564
      %v4704 = vpop.permute.xlu0 %4703
      %4705 = vset.pattern.permute.xlu0 0
      %4706 = vperm.xlu0 %4705, %v4565
      %v4707 = vpop.permute.xlu0 %4706
      %4708 = vset.pattern.permute.xlu0 0
      %4709 = vperm.xlu0 %4708, %v4566
      %v4710 = vpop.permute.xlu0 %4709
      %4711 = vset.pattern.permute.xlu0 0
      %4712 = vperm.xlu0 %4711, %v4567
      %v4713 = vpop.permute.xlu0 %4712
      %4714 = vset.pattern.permute.xlu0 0
      %4715 = vperm.xlu0 %4714, %v4568
      %v4716 = vpop.permute.xlu0 %4715
      %4717 = vset.pattern.permute.xlu0 0
      %4718 = vperm.xlu0 %4717, %v4569
      %v4719 = vpop.permute.xlu0 %4718
      %4720 = vset.pattern.permute.xlu0 0
      %4721 = vperm.xlu0 %4720, %v4570
      %v4722 = vpop.permute.xlu0 %4721
      %4723 = vset.pattern.permute.xlu0 0
      %4724 = vperm.xlu0 %4723, %v4571
      %v4725 = vpop.permute.xlu0 %4724
      %4726 = vset.pattern.permute.xlu0 0
      %4727 = vperm.xlu0 %4726, %v4572
      %v4728 = vpop.permute.xlu0 %4727
      %4729 = vset.pattern.permute.xlu0 0
      %4730 = vperm.xlu0 %4729, %v4573
      %v4731 = vpop.permute.xlu0 %4730
      %4732 = vset.pattern.permute.xlu0 0
      %4733 = vperm.xlu0 %4732, %v4574
      %v4734 = vpop.permute.xlu0 %4733
      %4735 = vset.pattern.permute.xlu0 0
      %4736 = vperm.xlu0 %4735, %v4575
      %v4737 = vpop.permute.xlu0 %4736
      %4738 = vset.pattern.permute.xlu0 0
      %4739 = vperm.xlu0 %4738, %v4576
      %v4740 = vpop.permute.xlu0 %4739
      %4741 = vset.pattern.permute.xlu0 0
      %4742 = vperm.xlu0 %4741, %v4577
      %v4743 = vpop.permute.xlu0 %4742
      %4744 = vset.pattern.permute.xlu0 0
      %4745 = vperm.xlu0 %4744, %v4578
      %v4746 = vpop.permute.xlu0 %4745
      %4747 = vset.pattern.permute.xlu0 0
      %4748 = vperm.xlu0 %4747, %v4579
      %v4749 = vpop.permute.xlu0 %4748
      %4750 = vset.pattern.permute.xlu0 0
      %4751 = vperm.xlu0 %4750, %v4580
      %v4752 = vpop.permute.xlu0 %4751
      %4753 = vset.pattern.permute.xlu0 0
      %4754 = vperm.xlu0 %4753, %v4581
      %v4755 = vpop.permute.xlu0 %4754
      %4756 = vset.pattern.permute.xlu0 0
      %4757 = vperm.xlu0 %4756, %v4582
      %v4758 = vpop.permute.xlu0 %4757
      %4759 = vset.pattern.permute.xlu0 0
      %4760 = vperm.xlu0 %4759, %v4583
      %v4761 = vpop.permute.xlu0 %4760
      %4762 = vset.pattern.permute.xlu0 0
      %4763 = vperm.xlu0 %4762, %v4584
      %v4764 = vpop.permute.xlu0 %4763
      %4765 = vset.pattern.permute.xlu0 0
      %4766 = vperm.xlu0 %4765, %v4585
      %v4767 = vpop.permute.xlu0 %4766
      %4768 = vset.pattern.permute.xlu0 0
      %4769 = vperm.xlu0 %4768, %v4586
      %v4770 = vpop.permute.xlu0 %4769
      %4771 = vset.pattern.permute.xlu0 0
      %4772 = vperm.xlu0 %4771, %v4587
      %v4773 = vpop.permute.xlu0 %4772
      %4774 = vset.pattern.permute.xlu0 0
      %4775 = vperm.xlu0 %4774, %v4588
      %v4776 = vpop.permute.xlu0 %4775
      %4777 = vset.pattern.permute.xlu0 0
      %4778 = vperm.xlu0 %4777, %v4589
      %v4779 = vpop.permute.xlu0 %4778
      %4780 = vset.pattern.permute.xlu0 0
      %4781 = vperm.xlu0 %4780, %v4590
      %v4782 = vpop.permute.xlu0 %4781
      %vm4783 = vcmp.eq.s32.totalorder %v4593, 1
      %vm4784 = vcmp.eq.s32.totalorder %v4596, 1
      %vm4785 = vcmp.eq.s32.totalorder %v4599, 1
      %vm4786 = vcmp.eq.s32.totalorder %v4602, 1
      %vm4787 = vcmp.eq.s32.totalorder %v4605, 1
      %vm4788 = vcmp.eq.s32.totalorder %v4608, 1
      %vm4789 = vcmp.eq.s32.totalorder %v4611, 1
      %vm4790 = vcmp.eq.s32.totalorder %v4614, 1
      %vm4791 = vcmp.eq.s32.totalorder %v4617, 1
      %vm4792 = vcmp.eq.s32.totalorder %v4620, 1
      %vm4793 = vcmp.eq.s32.totalorder %v4623, 1
      %vm4794 = vcmp.eq.s32.totalorder %v4626, 1
      %vm4795 = vcmp.eq.s32.totalorder %v4629, 1
      %vm4796 = vcmp.eq.s32.totalorder %v4632, 1
      %vm4797 = vcmp.eq.s32.totalorder %v4635, 1
      %vm4798 = vcmp.eq.s32.totalorder %v4638, 1
      %vm4799 = vcmp.eq.s32.totalorder %v4641, 1
      %vm4800 = vcmp.eq.s32.totalorder %v4644, 1
      %vm4801 = vcmp.eq.s32.totalorder %v4647, 1
      %vm4802 = vcmp.eq.s32.totalorder %v4650, 1
      %vm4803 = vcmp.eq.s32.totalorder %v4653, 1
      %vm4804 = vcmp.eq.s32.totalorder %v4656, 1
      %vm4805 = vcmp.eq.s32.totalorder %v4659, 1
      %vm4806 = vcmp.eq.s32.totalorder %v4662, 1
      %vm4807 = vcmp.eq.s32.totalorder %v4665, 1
      %vm4808 = vcmp.eq.s32.totalorder %v4668, 1
      %vm4809 = vcmp.eq.s32.totalorder %v4671, 1
      %vm4810 = vcmp.eq.s32.totalorder %v4674, 1
      %vm4811 = vcmp.eq.s32.totalorder %v4677, 1
      %vm4812 = vcmp.eq.s32.totalorder %v4680, 1
      %vm4813 = vcmp.eq.s32.totalorder %v4683, 1
      %vm4814 = vcmp.eq.s32.totalorder %v4686, 1
      %vm4815 = vcmp.eq.s32.totalorder %v4689, 1
      %vm4816 = vcmp.eq.s32.totalorder %v4692, 1
      %vm4817 = vcmp.eq.s32.totalorder %v4695, 1
      %vm4818 = vcmp.eq.s32.totalorder %v4698, 1
      %vm4819 = vcmp.eq.s32.totalorder %v4701, 1
      %vm4820 = vcmp.eq.s32.totalorder %v4704, 1
      %vm4821 = vcmp.eq.s32.totalorder %v4707, 1
      %vm4822 = vcmp.eq.s32.totalorder %v4710, 1
      %vm4823 = vcmp.eq.s32.totalorder %v4713, 1
      %vm4824 = vcmp.eq.s32.totalorder %v4716, 1
      %vm4825 = vcmp.eq.s32.totalorder %v4719, 1
      %vm4826 = vcmp.eq.s32.totalorder %v4722, 1
      %vm4827 = vcmp.eq.s32.totalorder %v4725, 1
      %vm4828 = vcmp.eq.s32.totalorder %v4728, 1
      %vm4829 = vcmp.eq.s32.totalorder %v4731, 1
      %vm4830 = vcmp.eq.s32.totalorder %v4734, 1
      %vm4831 = vcmp.eq.s32.totalorder %v4737, 1
      %vm4832 = vcmp.eq.s32.totalorder %v4740, 1
      %vm4833 = vcmp.eq.s32.totalorder %v4743, 1
      %vm4834 = vcmp.eq.s32.totalorder %v4746, 1
      %vm4835 = vcmp.eq.s32.totalorder %v4749, 1
      %vm4836 = vcmp.eq.s32.totalorder %v4752, 1
      %vm4837 = vcmp.eq.s32.totalorder %v4755, 1
      %vm4838 = vcmp.eq.s32.totalorder %v4758, 1
      %vm4839 = vcmp.eq.s32.totalorder %v4761, 1
      %vm4840 = vcmp.eq.s32.totalorder %v4764, 1
      %vm4841 = vcmp.eq.s32.totalorder %v4767, 1
      %vm4842 = vcmp.eq.s32.totalorder %v4770, 1
      %vm4843 = vcmp.eq.s32.totalorder %v4773, 1
      %vm4844 = vcmp.eq.s32.totalorder %v4776, 1
      %vm4845 = vcmp.eq.s32.totalorder %v4779, 1
      %vm4846 = vcmp.eq.s32.totalorder %v4782, 1
      %v4847 = vsel %vm4783, %v460, -inf
      %v4848 = vsel %vm4784, %v463, -inf
      %v4849 = vsel %vm4785, %v468, -inf
      %v4850 = vsel %vm4786, %v471, -inf
      %v4851 = vsel %vm4787, %v476, -inf
      %v4852 = vsel %vm4788, %v479, -inf
      %v4853 = vsel %vm4789, %v484, -inf
      %v4854 = vsel %vm4790, %v487, -inf
      %v4855 = vsel %vm4791, %v492, -inf
      %v4856 = vsel %vm4792, %v495, -inf
      %v4857 = vsel %vm4793, %v500, -inf
      %v4858 = vsel %vm4794, %v503, -inf
      %v4859 = vsel %vm4795, %v508, -inf
      %v4860 = vsel %vm4796, %v511, -inf
      %v4861 = vsel %vm4797, %v516, -inf
      %v4862 = vsel %vm4798, %v519, -inf
      %v4863 = vsel %vm4799, %v524, -inf
      %v4864 = vsel %vm4800, %v527, -inf
      %v4865 = vsel %vm4801, %v532, -inf
      %v4866 = vsel %vm4802, %v535, -inf
      %v4867 = vsel %vm4803, %v540, -inf
      %v4868 = vsel %vm4804, %v543, -inf
      %v4869 = vsel %vm4805, %v548, -inf
      %v4870 = vsel %vm4806, %v551, -inf
      %v4871 = vsel %vm4807, %v556, -inf
      %v4872 = vsel %vm4808, %v559, -inf
      %v4873 = vsel %vm4809, %v564, -inf
      %v4874 = vsel %vm4810, %v567, -inf
      %v4875 = vsel %vm4811, %v572, -inf
      %v4876 = vsel %vm4812, %v575, -inf
      %v4877 = vsel %vm4813, %v580, -inf
      %v4878 = vsel %vm4814, %v583, -inf
      %v4879 = vsel %vm4815, %v588, -inf
      %v4880 = vsel %vm4816, %v591, -inf
      %v4881 = vsel %vm4817, %v596, -inf
      %v4882 = vsel %vm4818, %v599, -inf
      %v4883 = vsel %vm4819, %v604, -inf
      %v4884 = vsel %vm4820, %v607, -inf
      %v4885 = vsel %vm4821, %v612, -inf
      %v4886 = vsel %vm4822, %v615, -inf
      %v4887 = vsel %vm4823, %v620, -inf
      %v4888 = vsel %vm4824, %v623, -inf
      %v4889 = vsel %vm4825, %v628, -inf
      %v4890 = vsel %vm4826, %v631, -inf
      %v4891 = vsel %vm4827, %v636, -inf
      %v4892 = vsel %vm4828, %v639, -inf
      %v4893 = vsel %vm4829, %v644, -inf
      %v4894 = vsel %vm4830, %v647, -inf
      %v4895 = vsel %vm4831, %v652, -inf
      %v4896 = vsel %vm4832, %v655, -inf
      %v4897 = vsel %vm4833, %v660, -inf
      %v4898 = vsel %vm4834, %v663, -inf
      %v4899 = vsel %vm4835, %v668, -inf
      %v4900 = vsel %vm4836, %v671, -inf
      %v4901 = vsel %vm4837, %v676, -inf
      %v4902 = vsel %vm4838, %v679, -inf
      %v4903 = vsel %vm4839, %v684, -inf
      %v4904 = vsel %vm4840, %v687, -inf
      %v4905 = vsel %vm4841, %v692, -inf
      %v4906 = vsel %vm4842, %v695, -inf
      %v4907 = vsel %vm4843, %v700, -inf
      %v4908 = vsel %vm4844, %v703, -inf
      %v4909 = vsel %vm4845, %v708, -inf
      %v4910 = vsel %vm4846, %v711, -inf
      %v4911 = vmax.f32 %v4847, %v4851
      %v4912 = vmax.f32 %v4848, %v4852
      %v4913 = vmax.f32 %v4849, %v4853
      %v4914 = vmax.f32 %v4850, %v4854
      %v4915 = vmax.f32 %v4911, %v4855
      %v4916 = vmax.f32 %v4912, %v4856
      %v4917 = vmax.f32 %v4913, %v4857
      %v4918 = vmax.f32 %v4914, %v4858
      %v4919 = vmax.f32 %v4915, %v4859
      %v4920 = vmax.f32 %v4916, %v4860
      %v4921 = vmax.f32 %v4917, %v4861
      %v4922 = vmax.f32 %v4918, %v4862
      %v4923 = vmax.f32 %v4919, %v4863
      %v4924 = vmax.f32 %v4920, %v4864
      %v4925 = vmax.f32 %v4921, %v4865
      %v4926 = vmax.f32 %v4922, %v4866
      %v4927 = vmax.f32 %v4923, %v4867
      %v4928 = vmax.f32 %v4924, %v4868
      %v4929 = vmax.f32 %v4925, %v4869
      %v4930 = vmax.f32 %v4926, %v4870
      %v4931 = vmax.f32 %v4927, %v4871
      %v4932 = vmax.f32 %v4928, %v4872
      %v4933 = vmax.f32 %v4929, %v4873
      %v4934 = vmax.f32 %v4930, %v4874
      %v4935 = vmax.f32 %v4931, %v4875
      %v4936 = vmax.f32 %v4932, %v4876
      %v4937 = vmax.f32 %v4933, %v4877
      %v4938 = vmax.f32 %v4934, %v4878
      %v4939 = vmax.f32 %v4935, %v4879
      %v4940 = vmax.f32 %v4936, %v4880
      %v4941 = vmax.f32 %v4937, %v4881
      %v4942 = vmax.f32 %v4938, %v4882
      %v4943 = vmax.f32 %v4939, %v4883
      %v4944 = vmax.f32 %v4940, %v4884
      %v4945 = vmax.f32 %v4941, %v4885
      %v4946 = vmax.f32 %v4942, %v4886
      %v4947 = vmax.f32 %v4943, %v4887
      %v4948 = vmax.f32 %v4944, %v4888
      %v4949 = vmax.f32 %v4945, %v4889
      %v4950 = vmax.f32 %v4946, %v4890
      %v4951 = vmax.f32 %v4947, %v4891
      %v4952 = vmax.f32 %v4948, %v4892
      %v4953 = vmax.f32 %v4949, %v4893
      %v4954 = vmax.f32 %v4950, %v4894
      %v4955 = vmax.f32 %v4951, %v4895
      %v4956 = vmax.f32 %v4952, %v4896
      %v4957 = vmax.f32 %v4953, %v4897
      %v4958 = vmax.f32 %v4954, %v4898
      %v4959 = vmax.f32 %v4955, %v4899
      %v4960 = vmax.f32 %v4956, %v4900
      %v4961 = vmax.f32 %v4957, %v4901
      %v4962 = vmax.f32 %v4958, %v4902
      %v4963 = vmax.f32 %v4959, %v4903
      %v4964 = vmax.f32 %v4960, %v4904
      %v4965 = vmax.f32 %v4961, %v4905
      %v4966 = vmax.f32 %v4962, %v4906
      %v4967 = vmax.f32 %v4963, %v4907
      %v4968 = vmax.f32 %v4964, %v4908
      %v4969 = vmax.f32 %v4965, %v4909
      %v4970 = vmax.f32 %v4966, %v4910
      %v4971 = vmax.f32 %v4967, %v4968
      %v4972 = vmax.f32 %v4969, %v4970
      %v4973 = vmax.f32 %v4971, %v4972
      %v4974 = vrot.slane %v4973, 4
      %v4975 = vmax.f32 %v4973, %v4974
      %v4976 = vrot.slane %v4975, 2
      %v4977 = vmax.f32 %v4975, %v4976
      %v4978 = vrot.slane %v4977, 1
      %v4979 = vmax.f32 %v4977, %v4978
      %vm4980 = vcmp.eq.s32.totalorder %v780, 8
      %vm4981 = vcmp.eq.s32.totalorder %v781, 8
      %vm4982 = vcmp.eq.s32.totalorder %v782, 8
      %vm4983 = vcmp.eq.s32.totalorder %v783, 8
      %vm4984 = vcmp.eq.s32.totalorder %v784, 8
      %vm4985 = vcmp.eq.s32.totalorder %v785, 8
      %vm4986 = vcmp.eq.s32.totalorder %v786, 8
      %vm4987 = vcmp.eq.s32.totalorder %v787, 8
      %vm4988 = vcmp.eq.s32.totalorder %v788, 8
      %vm4989 = vcmp.eq.s32.totalorder %v789, 8
      %vm4990 = vcmp.eq.s32.totalorder %v790, 8
      %vm4991 = vcmp.eq.s32.totalorder %v791, 8
      %vm4992 = vcmp.eq.s32.totalorder %v792, 8
      %vm4993 = vcmp.eq.s32.totalorder %v793, 8
      %vm4994 = vcmp.eq.s32.totalorder %v794, 8
      %vm4995 = vcmp.eq.s32.totalorder %v795, 8
      %vm4996 = vcmp.eq.s32.totalorder %v796, 8
      %vm4997 = vcmp.eq.s32.totalorder %v797, 8
      %vm4998 = vcmp.eq.s32.totalorder %v798, 8
      %vm4999 = vcmp.eq.s32.totalorder %v799, 8
      %vm5000 = vcmp.eq.s32.totalorder %v800, 8
      %vm5001 = vcmp.eq.s32.totalorder %v801, 8
      %vm5002 = vcmp.eq.s32.totalorder %v802, 8
      %vm5003 = vcmp.eq.s32.totalorder %v803, 8
      %vm5004 = vcmp.eq.s32.totalorder %v804, 8
      %vm5005 = vcmp.eq.s32.totalorder %v805, 8
      %vm5006 = vcmp.eq.s32.totalorder %v806, 8
      %vm5007 = vcmp.eq.s32.totalorder %v807, 8
      %vm5008 = vcmp.eq.s32.totalorder %v808, 8
      %vm5009 = vcmp.eq.s32.totalorder %v809, 8
      %vm5010 = vcmp.eq.s32.totalorder %v810, 8
      %vm5011 = vcmp.eq.s32.totalorder %v811, 8
      %vm5012 = vcmp.eq.s32.totalorder %v812, 8
      %vm5013 = vcmp.eq.s32.totalorder %v813, 8
      %vm5014 = vcmp.eq.s32.totalorder %v814, 8
      %vm5015 = vcmp.eq.s32.totalorder %v815, 8
      %vm5016 = vcmp.eq.s32.totalorder %v816, 8
      %vm5017 = vcmp.eq.s32.totalorder %v817, 8
      %vm5018 = vcmp.eq.s32.totalorder %v818, 8
      %vm5019 = vcmp.eq.s32.totalorder %v819, 8
      %vm5020 = vcmp.eq.s32.totalorder %v820, 8
      %vm5021 = vcmp.eq.s32.totalorder %v821, 8
      %vm5022 = vcmp.eq.s32.totalorder %v822, 8
      %vm5023 = vcmp.eq.s32.totalorder %v823, 8
      %vm5024 = vcmp.eq.s32.totalorder %v824, 8
      %vm5025 = vcmp.eq.s32.totalorder %v825, 8
      %vm5026 = vcmp.eq.s32.totalorder %v826, 8
      %vm5027 = vcmp.eq.s32.totalorder %v827, 8
      %vm5028 = vcmp.eq.s32.totalorder %v828, 8
      %vm5029 = vcmp.eq.s32.totalorder %v829, 8
      %vm5030 = vcmp.eq.s32.totalorder %v830, 8
      %vm5031 = vcmp.eq.s32.totalorder %v831, 8
      %vm5032 = vcmp.eq.s32.totalorder %v832, 8
      %vm5033 = vcmp.eq.s32.totalorder %v833, 8
      %vm5034 = vcmp.eq.s32.totalorder %v834, 8
      %vm5035 = vcmp.eq.s32.totalorder %v835, 8
      %vm5036 = vcmp.eq.s32.totalorder %v836, 8
      %vm5037 = vcmp.eq.s32.totalorder %v837, 8
      %vm5038 = vcmp.eq.s32.totalorder %v838, 8
      %vm5039 = vcmp.eq.s32.totalorder %v839, 8
      %vm5040 = vcmp.eq.s32.totalorder %v840, 8
      %vm5041 = vcmp.eq.s32.totalorder %v841, 8
      %vm5042 = vcmp.eq.s32.totalorder %v842, 8
      %vm5043 = vcmp.eq.s32.totalorder %v843, 8
      %v5044 = vsel %vm4980, 1, 0
      %v5045 = vsel %vm4981, 1, 0
      %v5046 = vsel %vm4982, 1, 0
      %v5047 = vsel %vm4983, 1, 0
      %v5048 = vsel %vm4984, 1, 0
      %v5049 = vsel %vm4985, 1, 0
      %v5050 = vsel %vm4986, 1, 0
      %v5051 = vsel %vm4987, 1, 0
      %v5052 = vsel %vm4988, 1, 0
      %v5053 = vsel %vm4989, 1, 0
      %v5054 = vsel %vm4990, 1, 0
      %v5055 = vsel %vm4991, 1, 0
      %v5056 = vsel %vm4992, 1, 0
      %v5057 = vsel %vm4993, 1, 0
      %v5058 = vsel %vm4994, 1, 0
      %v5059 = vsel %vm4995, 1, 0
      %v5060 = vsel %vm4996, 1, 0
      %v5061 = vsel %vm4997, 1, 0
      %v5062 = vsel %vm4998, 1, 0
      %v5063 = vsel %vm4999, 1, 0
      %v5064 = vsel %vm5000, 1, 0
      %v5065 = vsel %vm5001, 1, 0
      %v5066 = vsel %vm5002, 1, 0
      %v5067 = vsel %vm5003, 1, 0
      %v5068 = vsel %vm5004, 1, 0
      %v5069 = vsel %vm5005, 1, 0
      %v5070 = vsel %vm5006, 1, 0
      %v5071 = vsel %vm5007, 1, 0
      %v5072 = vsel %vm5008, 1, 0
      %v5073 = vsel %vm5009, 1, 0
      %v5074 = vsel %vm5010, 1, 0
      %v5075 = vsel %vm5011, 1, 0
      %v5076 = vsel %vm5012, 1, 0
      %v5077 = vsel %vm5013, 1, 0
      %v5078 = vsel %vm5014, 1, 0
      %v5079 = vsel %vm5015, 1, 0
      %v5080 = vsel %vm5016, 1, 0
      %v5081 = vsel %vm5017, 1, 0
      %v5082 = vsel %vm5018, 1, 0
      %v5083 = vsel %vm5019, 1, 0
      %v5084 = vsel %vm5020, 1, 0
      %v5085 = vsel %vm5021, 1, 0
      %v5086 = vsel %vm5022, 1, 0
      %v5087 = vsel %vm5023, 1, 0
      %v5088 = vsel %vm5024, 1, 0
      %v5089 = vsel %vm5025, 1, 0
      %v5090 = vsel %vm5026, 1, 0
      %v5091 = vsel %vm5027, 1, 0
      %v5092 = vsel %vm5028, 1, 0
      %v5093 = vsel %vm5029, 1, 0
      %v5094 = vsel %vm5030, 1, 0
      %v5095 = vsel %vm5031, 1, 0
      %v5096 = vsel %vm5032, 1, 0
      %v5097 = vsel %vm5033, 1, 0
      %v5098 = vsel %vm5034, 1, 0
      %v5099 = vsel %vm5035, 1, 0
      %v5100 = vsel %vm5036, 1, 0
      %v5101 = vsel %vm5037, 1, 0
      %v5102 = vsel %vm5038, 1, 0
      %v5103 = vsel %vm5039, 1, 0
      %v5104 = vsel %vm5040, 1, 0
      %v5105 = vsel %vm5041, 1, 0
      %v5106 = vsel %vm5042, 1, 0
      %v5107 = vsel %vm5043, 1, 0
      %5108 = vset.pattern.permute.xlu0 0
      %5109 = vperm.xlu0 %5108, %v5044
      %v5110 = vpop.permute.xlu0 %5109
      %5111 = vset.pattern.permute.xlu0 0
      %5112 = vperm.xlu0 %5111, %v5045
      %v5113 = vpop.permute.xlu0 %5112
      %5114 = vset.pattern.permute.xlu0 0
      %5115 = vperm.xlu0 %5114, %v5046
      %v5116 = vpop.permute.xlu0 %5115
      %5117 = vset.pattern.permute.xlu0 0
      %5118 = vperm.xlu0 %5117, %v5047
      %v5119 = vpop.permute.xlu0 %5118
      %5120 = vset.pattern.permute.xlu0 0
      %5121 = vperm.xlu0 %5120, %v5048
      %v5122 = vpop.permute.xlu0 %5121
      %5123 = vset.pattern.permute.xlu0 0
      %5124 = vperm.xlu0 %5123, %v5049
      %v5125 = vpop.permute.xlu0 %5124
      %5126 = vset.pattern.permute.xlu0 0
      %5127 = vperm.xlu0 %5126, %v5050
      %v5128 = vpop.permute.xlu0 %5127
      %5129 = vset.pattern.permute.xlu0 0
      %5130 = vperm.xlu0 %5129, %v5051
      %v5131 = vpop.permute.xlu0 %5130
      %5132 = vset.pattern.permute.xlu0 0
      %5133 = vperm.xlu0 %5132, %v5052
      %v5134 = vpop.permute.xlu0 %5133
      %5135 = vset.pattern.permute.xlu0 0
      %5136 = vperm.xlu0 %5135, %v5053
      %v5137 = vpop.permute.xlu0 %5136
      %5138 = vset.pattern.permute.xlu0 0
      %5139 = vperm.xlu0 %5138, %v5054
      %v5140 = vpop.permute.xlu0 %5139
      %5141 = vset.pattern.permute.xlu0 0
      %5142 = vperm.xlu0 %5141, %v5055
      %v5143 = vpop.permute.xlu0 %5142
      %5144 = vset.pattern.permute.xlu0 0
      %5145 = vperm.xlu0 %5144, %v5056
      %v5146 = vpop.permute.xlu0 %5145
      %5147 = vset.pattern.permute.xlu0 0
      %5148 = vperm.xlu0 %5147, %v5057
      %v5149 = vpop.permute.xlu0 %5148
      %5150 = vset.pattern.permute.xlu0 0
      %5151 = vperm.xlu0 %5150, %v5058
      %v5152 = vpop.permute.xlu0 %5151
      %5153 = vset.pattern.permute.xlu0 0
      %5154 = vperm.xlu0 %5153, %v5059
      %v5155 = vpop.permute.xlu0 %5154
      %5156 = vset.pattern.permute.xlu0 0
      %5157 = vperm.xlu0 %5156, %v5060
      %v5158 = vpop.permute.xlu0 %5157
      %5159 = vset.pattern.permute.xlu0 0
      %5160 = vperm.xlu0 %5159, %v5061
      %v5161 = vpop.permute.xlu0 %5160
      %5162 = vset.pattern.permute.xlu0 0
      %5163 = vperm.xlu0 %5162, %v5062
      %v5164 = vpop.permute.xlu0 %5163
      %5165 = vset.pattern.permute.xlu0 0
      %5166 = vperm.xlu0 %5165, %v5063
      %v5167 = vpop.permute.xlu0 %5166
      %5168 = vset.pattern.permute.xlu0 0
      %5169 = vperm.xlu0 %5168, %v5064
      %v5170 = vpop.permute.xlu0 %5169
      %5171 = vset.pattern.permute.xlu0 0
      %5172 = vperm.xlu0 %5171, %v5065
      %v5173 = vpop.permute.xlu0 %5172
      %5174 = vset.pattern.permute.xlu0 0
      %5175 = vperm.xlu0 %5174, %v5066
      %v5176 = vpop.permute.xlu0 %5175
      %5177 = vset.pattern.permute.xlu0 0
      %5178 = vperm.xlu0 %5177, %v5067
      %v5179 = vpop.permute.xlu0 %5178
      %5180 = vset.pattern.permute.xlu0 0
      %5181 = vperm.xlu0 %5180, %v5068
      %v5182 = vpop.permute.xlu0 %5181
      %5183 = vset.pattern.permute.xlu0 0
      %5184 = vperm.xlu0 %5183, %v5069
      %v5185 = vpop.permute.xlu0 %5184
      %5186 = vset.pattern.permute.xlu0 0
      %5187 = vperm.xlu0 %5186, %v5070
      %v5188 = vpop.permute.xlu0 %5187
      %5189 = vset.pattern.permute.xlu0 0
      %5190 = vperm.xlu0 %5189, %v5071
      %v5191 = vpop.permute.xlu0 %5190
      %5192 = vset.pattern.permute.xlu0 0
      %5193 = vperm.xlu0 %5192, %v5072
      %v5194 = vpop.permute.xlu0 %5193
      %5195 = vset.pattern.permute.xlu0 0
      %5196 = vperm.xlu0 %5195, %v5073
      %v5197 = vpop.permute.xlu0 %5196
      %5198 = vset.pattern.permute.xlu0 0
      %5199 = vperm.xlu0 %5198, %v5074
      %v5200 = vpop.permute.xlu0 %5199
      %5201 = vset.pattern.permute.xlu0 0
      %5202 = vperm.xlu0 %5201, %v5075
      %v5203 = vpop.permute.xlu0 %5202
      %5204 = vset.pattern.permute.xlu0 0
      %5205 = vperm.xlu0 %5204, %v5076
      %v5206 = vpop.permute.xlu0 %5205
      %5207 = vset.pattern.permute.xlu0 0
      %5208 = vperm.xlu0 %5207, %v5077
      %v5209 = vpop.permute.xlu0 %5208
      %5210 = vset.pattern.permute.xlu0 0
      %5211 = vperm.xlu0 %5210, %v5078
      %v5212 = vpop.permute.xlu0 %5211
      %5213 = vset.pattern.permute.xlu0 0
      %5214 = vperm.xlu0 %5213, %v5079
      %v5215 = vpop.permute.xlu0 %5214
      %5216 = vset.pattern.permute.xlu0 0
      %5217 = vperm.xlu0 %5216, %v5080
      %v5218 = vpop.permute.xlu0 %5217
      %5219 = vset.pattern.permute.xlu0 0
      %5220 = vperm.xlu0 %5219, %v5081
      %v5221 = vpop.permute.xlu0 %5220
      %5222 = vset.pattern.permute.xlu0 0
      %5223 = vperm.xlu0 %5222, %v5082
      %v5224 = vpop.permute.xlu0 %5223
      %5225 = vset.pattern.permute.xlu0 0
      %5226 = vperm.xlu0 %5225, %v5083
      %v5227 = vpop.permute.xlu0 %5226
      %5228 = vset.pattern.permute.xlu0 0
      %5229 = vperm.xlu0 %5228, %v5084
      %v5230 = vpop.permute.xlu0 %5229
      %5231 = vset.pattern.permute.xlu0 0
      %5232 = vperm.xlu0 %5231, %v5085
      %v5233 = vpop.permute.xlu0 %5232
      %5234 = vset.pattern.permute.xlu0 0
      %5235 = vperm.xlu0 %5234, %v5086
      %v5236 = vpop.permute.xlu0 %5235
      %5237 = vset.pattern.permute.xlu0 0
      %5238 = vperm.xlu0 %5237, %v5087
      %v5239 = vpop.permute.xlu0 %5238
      %5240 = vset.pattern.permute.xlu0 0
      %5241 = vperm.xlu0 %5240, %v5088
      %v5242 = vpop.permute.xlu0 %5241
      %5243 = vset.pattern.permute.xlu0 0
      %5244 = vperm.xlu0 %5243, %v5089
      %v5245 = vpop.permute.xlu0 %5244
      %5246 = vset.pattern.permute.xlu0 0
      %5247 = vperm.xlu0 %5246, %v5090
      %v5248 = vpop.permute.xlu0 %5247
      %5249 = vset.pattern.permute.xlu0 0
      %5250 = vperm.xlu0 %5249, %v5091
      %v5251 = vpop.permute.xlu0 %5250
      %5252 = vset.pattern.permute.xlu0 0
      %5253 = vperm.xlu0 %5252, %v5092
      %v5254 = vpop.permute.xlu0 %5253
      %5255 = vset.pattern.permute.xlu0 0
      %5256 = vperm.xlu0 %5255, %v5093
      %v5257 = vpop.permute.xlu0 %5256
      %5258 = vset.pattern.permute.xlu0 0
      %5259 = vperm.xlu0 %5258, %v5094
      %v5260 = vpop.permute.xlu0 %5259
      %5261 = vset.pattern.permute.xlu0 0
      %5262 = vperm.xlu0 %5261, %v5095
      %v5263 = vpop.permute.xlu0 %5262
      %5264 = vset.pattern.permute.xlu0 0
      %5265 = vperm.xlu0 %5264, %v5096
      %v5266 = vpop.permute.xlu0 %5265
      %5267 = vset.pattern.permute.xlu0 0
      %5268 = vperm.xlu0 %5267, %v5097
      %v5269 = vpop.permute.xlu0 %5268
      %5270 = vset.pattern.permute.xlu0 0
      %5271 = vperm.xlu0 %5270, %v5098
      %v5272 = vpop.permute.xlu0 %5271
      %5273 = vset.pattern.permute.xlu0 0
      %5274 = vperm.xlu0 %5273, %v5099
      %v5275 = vpop.permute.xlu0 %5274
      %5276 = vset.pattern.permute.xlu0 0
      %5277 = vperm.xlu0 %5276, %v5100
      %v5278 = vpop.permute.xlu0 %5277
      %5279 = vset.pattern.permute.xlu0 0
      %5280 = vperm.xlu0 %5279, %v5101
      %v5281 = vpop.permute.xlu0 %5280
      %5282 = vset.pattern.permute.xlu0 0
      %5283 = vperm.xlu0 %5282, %v5102
      %v5284 = vpop.permute.xlu0 %5283
      %5285 = vset.pattern.permute.xlu0 0
      %5286 = vperm.xlu0 %5285, %v5103
      %v5287 = vpop.permute.xlu0 %5286
      %5288 = vset.pattern.permute.xlu0 0
      %5289 = vperm.xlu0 %5288, %v5104
      %v5290 = vpop.permute.xlu0 %5289
      %5291 = vset.pattern.permute.xlu0 0
      %5292 = vperm.xlu0 %5291, %v5105
      %v5293 = vpop.permute.xlu0 %5292
      %5294 = vset.pattern.permute.xlu0 0
      %5295 = vperm.xlu0 %5294, %v5106
      %v5296 = vpop.permute.xlu0 %5295
      %5297 = vset.pattern.permute.xlu0 0
      %5298 = vperm.xlu0 %5297, %v5107
      %v5299 = vpop.permute.xlu0 %5298
      %vm5300 = vcmp.eq.s32.totalorder %v5110, 1
      %vm5301 = vcmp.eq.s32.totalorder %v5113, 1
      %vm5302 = vcmp.eq.s32.totalorder %v5116, 1
      %vm5303 = vcmp.eq.s32.totalorder %v5119, 1
      %vm5304 = vcmp.eq.s32.totalorder %v5122, 1
      %vm5305 = vcmp.eq.s32.totalorder %v5125, 1
      %vm5306 = vcmp.eq.s32.totalorder %v5128, 1
      %vm5307 = vcmp.eq.s32.totalorder %v5131, 1
      %vm5308 = vcmp.eq.s32.totalorder %v5134, 1
      %vm5309 = vcmp.eq.s32.totalorder %v5137, 1
      %vm5310 = vcmp.eq.s32.totalorder %v5140, 1
      %vm5311 = vcmp.eq.s32.totalorder %v5143, 1
      %vm5312 = vcmp.eq.s32.totalorder %v5146, 1
      %vm5313 = vcmp.eq.s32.totalorder %v5149, 1
      %vm5314 = vcmp.eq.s32.totalorder %v5152, 1
      %vm5315 = vcmp.eq.s32.totalorder %v5155, 1
      %vm5316 = vcmp.eq.s32.totalorder %v5158, 1
      %vm5317 = vcmp.eq.s32.totalorder %v5161, 1
      %vm5318 = vcmp.eq.s32.totalorder %v5164, 1
      %vm5319 = vcmp.eq.s32.totalorder %v5167, 1
      %vm5320 = vcmp.eq.s32.totalorder %v5170, 1
      %vm5321 = vcmp.eq.s32.totalorder %v5173, 1
      %vm5322 = vcmp.eq.s32.totalorder %v5176, 1
      %vm5323 = vcmp.eq.s32.totalorder %v5179, 1
      %vm5324 = vcmp.eq.s32.totalorder %v5182, 1
      %vm5325 = vcmp.eq.s32.totalorder %v5185, 1
      %vm5326 = vcmp.eq.s32.totalorder %v5188, 1
      %vm5327 = vcmp.eq.s32.totalorder %v5191, 1
      %vm5328 = vcmp.eq.s32.totalorder %v5194, 1
      %vm5329 = vcmp.eq.s32.totalorder %v5197, 1
      %vm5330 = vcmp.eq.s32.totalorder %v5200, 1
      %vm5331 = vcmp.eq.s32.totalorder %v5203, 1
      %vm5332 = vcmp.eq.s32.totalorder %v5206, 1
      %vm5333 = vcmp.eq.s32.totalorder %v5209, 1
      %vm5334 = vcmp.eq.s32.totalorder %v5212, 1
      %vm5335 = vcmp.eq.s32.totalorder %v5215, 1
      %vm5336 = vcmp.eq.s32.totalorder %v5218, 1
      %vm5337 = vcmp.eq.s32.totalorder %v5221, 1
      %vm5338 = vcmp.eq.s32.totalorder %v5224, 1
      %vm5339 = vcmp.eq.s32.totalorder %v5227, 1
      %vm5340 = vcmp.eq.s32.totalorder %v5230, 1
      %vm5341 = vcmp.eq.s32.totalorder %v5233, 1
      %vm5342 = vcmp.eq.s32.totalorder %v5236, 1
      %vm5343 = vcmp.eq.s32.totalorder %v5239, 1
      %vm5344 = vcmp.eq.s32.totalorder %v5242, 1
      %vm5345 = vcmp.eq.s32.totalorder %v5245, 1
      %vm5346 = vcmp.eq.s32.totalorder %v5248, 1
      %vm5347 = vcmp.eq.s32.totalorder %v5251, 1
      %vm5348 = vcmp.eq.s32.totalorder %v5254, 1
      %vm5349 = vcmp.eq.s32.totalorder %v5257, 1
      %vm5350 = vcmp.eq.s32.totalorder %v5260, 1
      %vm5351 = vcmp.eq.s32.totalorder %v5263, 1
      %vm5352 = vcmp.eq.s32.totalorder %v5266, 1
      %vm5353 = vcmp.eq.s32.totalorder %v5269, 1
      %vm5354 = vcmp.eq.s32.totalorder %v5272, 1
      %vm5355 = vcmp.eq.s32.totalorder %v5275, 1
      %vm5356 = vcmp.eq.s32.totalorder %v5278, 1
      %vm5357 = vcmp.eq.s32.totalorder %v5281, 1
      %vm5358 = vcmp.eq.s32.totalorder %v5284, 1
      %vm5359 = vcmp.eq.s32.totalorder %v5287, 1
      %vm5360 = vcmp.eq.s32.totalorder %v5290, 1
      %vm5361 = vcmp.eq.s32.totalorder %v5293, 1
      %vm5362 = vcmp.eq.s32.totalorder %v5296, 1
      %vm5363 = vcmp.eq.s32.totalorder %v5299, 1
      %v5364 = vsel %vm5300, %v460, -inf
      %v5365 = vsel %vm5301, %v463, -inf
      %v5366 = vsel %vm5302, %v468, -inf
      %v5367 = vsel %vm5303, %v471, -inf
      %v5368 = vsel %vm5304, %v476, -inf
      %v5369 = vsel %vm5305, %v479, -inf
      %v5370 = vsel %vm5306, %v484, -inf
      %v5371 = vsel %vm5307, %v487, -inf
      %v5372 = vsel %vm5308, %v492, -inf
      %v5373 = vsel %vm5309, %v495, -inf
      %v5374 = vsel %vm5310, %v500, -inf
      %v5375 = vsel %vm5311, %v503, -inf
      %v5376 = vsel %vm5312, %v508, -inf
      %v5377 = vsel %vm5313, %v511, -inf
      %v5378 = vsel %vm5314, %v516, -inf
      %v5379 = vsel %vm5315, %v519, -inf
      %v5380 = vsel %vm5316, %v524, -inf
      %v5381 = vsel %vm5317, %v527, -inf
      %v5382 = vsel %vm5318, %v532, -inf
      %v5383 = vsel %vm5319, %v535, -inf
      %v5384 = vsel %vm5320, %v540, -inf
      %v5385 = vsel %vm5321, %v543, -inf
      %v5386 = vsel %vm5322, %v548, -inf
      %v5387 = vsel %vm5323, %v551, -inf
      %v5388 = vsel %vm5324, %v556, -inf
      %v5389 = vsel %vm5325, %v559, -inf
      %v5390 = vsel %vm5326, %v564, -inf
      %v5391 = vsel %vm5327, %v567, -inf
      %v5392 = vsel %vm5328, %v572, -inf
      %v5393 = vsel %vm5329, %v575, -inf
      %v5394 = vsel %vm5330, %v580, -inf
      %v5395 = vsel %vm5331, %v583, -inf
      %v5396 = vsel %vm5332, %v588, -inf
      %v5397 = vsel %vm5333, %v591, -inf
      %v5398 = vsel %vm5334, %v596, -inf
      %v5399 = vsel %vm5335, %v599, -inf
      %v5400 = vsel %vm5336, %v604, -inf
      %v5401 = vsel %vm5337, %v607, -inf
      %v5402 = vsel %vm5338, %v612, -inf
      %v5403 = vsel %vm5339, %v615, -inf
      %v5404 = vsel %vm5340, %v620, -inf
      %v5405 = vsel %vm5341, %v623, -inf
      %v5406 = vsel %vm5342, %v628, -inf
      %v5407 = vsel %vm5343, %v631, -inf
      %v5408 = vsel %vm5344, %v636, -inf
      %v5409 = vsel %vm5345, %v639, -inf
      %v5410 = vsel %vm5346, %v644, -inf
      %v5411 = vsel %vm5347, %v647, -inf
      %v5412 = vsel %vm5348, %v652, -inf
      %v5413 = vsel %vm5349, %v655, -inf
      %v5414 = vsel %vm5350, %v660, -inf
      %v5415 = vsel %vm5351, %v663, -inf
      %v5416 = vsel %vm5352, %v668, -inf
      %v5417 = vsel %vm5353, %v671, -inf
      %v5418 = vsel %vm5354, %v676, -inf
      %v5419 = vsel %vm5355, %v679, -inf
      %v5420 = vsel %vm5356, %v684, -inf
      %v5421 = vsel %vm5357, %v687, -inf
      %v5422 = vsel %vm5358, %v692, -inf
      %v5423 = vsel %vm5359, %v695, -inf
      %v5424 = vsel %vm5360, %v700, -inf
      %v5425 = vsel %vm5361, %v703, -inf
      %v5426 = vsel %vm5362, %v708, -inf
      %v5427 = vsel %vm5363, %v711, -inf
      %v5428 = vmax.f32 %v5364, %v5368
      %v5429 = vmax.f32 %v5365, %v5369
      %v5430 = vmax.f32 %v5366, %v5370
      %v5431 = vmax.f32 %v5367, %v5371
      %v5432 = vmax.f32 %v5428, %v5372
      %v5433 = vmax.f32 %v5429, %v5373
      %v5434 = vmax.f32 %v5430, %v5374
      %v5435 = vmax.f32 %v5431, %v5375
      %v5436 = vmax.f32 %v5432, %v5376
      %v5437 = vmax.f32 %v5433, %v5377
      %v5438 = vmax.f32 %v5434, %v5378
      %v5439 = vmax.f32 %v5435, %v5379
      %v5440 = vmax.f32 %v5436, %v5380
      %v5441 = vmax.f32 %v5437, %v5381
      %v5442 = vmax.f32 %v5438, %v5382
      %v5443 = vmax.f32 %v5439, %v5383
      %v5444 = vmax.f32 %v5440, %v5384
      %v5445 = vmax.f32 %v5441, %v5385
      %v5446 = vmax.f32 %v5442, %v5386
      %v5447 = vmax.f32 %v5443, %v5387
      %v5448 = vmax.f32 %v5444, %v5388
      %v5449 = vmax.f32 %v5445, %v5389
      %v5450 = vmax.f32 %v5446, %v5390
      %v5451 = vmax.f32 %v5447, %v5391
      %v5452 = vmax.f32 %v5448, %v5392
      %v5453 = vmax.f32 %v5449, %v5393
      %v5454 = vmax.f32 %v5450, %v5394
      %v5455 = vmax.f32 %v5451, %v5395
      %v5456 = vmax.f32 %v5452, %v5396
      %v5457 = vmax.f32 %v5453, %v5397
      %v5458 = vmax.f32 %v5454, %v5398
      %v5459 = vmax.f32 %v5455, %v5399
      %v5460 = vmax.f32 %v5456, %v5400
      %v5461 = vmax.f32 %v5457, %v5401
      %v5462 = vmax.f32 %v5458, %v5402
      %v5463 = vmax.f32 %v5459, %v5403
      %v5464 = vmax.f32 %v5460, %v5404
      %v5465 = vmax.f32 %v5461, %v5405
      %v5466 = vmax.f32 %v5462, %v5406
      %v5467 = vmax.f32 %v5463, %v5407
      %v5468 = vmax.f32 %v5464, %v5408
      %v5469 = vmax.f32 %v5465, %v5409
      %v5470 = vmax.f32 %v5466, %v5410
      %v5471 = vmax.f32 %v5467, %v5411
      %v5472 = vmax.f32 %v5468, %v5412
      %v5473 = vmax.f32 %v5469, %v5413
      %v5474 = vmax.f32 %v5470, %v5414
      %v5475 = vmax.f32 %v5471, %v5415
      %v5476 = vmax.f32 %v5472, %v5416
      %v5477 = vmax.f32 %v5473, %v5417
      %v5478 = vmax.f32 %v5474, %v5418
      %v5479 = vmax.f32 %v5475, %v5419
      %v5480 = vmax.f32 %v5476, %v5420
      %v5481 = vmax.f32 %v5477, %v5421
      %v5482 = vmax.f32 %v5478, %v5422
      %v5483 = vmax.f32 %v5479, %v5423
      %v5484 = vmax.f32 %v5480, %v5424
      %v5485 = vmax.f32 %v5481, %v5425
      %v5486 = vmax.f32 %v5482, %v5426
      %v5487 = vmax.f32 %v5483, %v5427
      %v5488 = vmax.f32 %v5484, %v5485
      %v5489 = vmax.f32 %v5486, %v5487
      %v5490 = vmax.f32 %v5488, %v5489
      %v5491 = vrot.slane %v5490, 4
      %v5492 = vmax.f32 %v5490, %v5491
      %v5493 = vrot.slane %v5492, 2
      %v5494 = vmax.f32 %v5492, %v5493
      %v5495 = vrot.slane %v5494, 1
      %v5496 = vmax.f32 %v5494, %v5495
      %vm5497 = vcmp.eq.s32.totalorder %v780, 9
      %vm5498 = vcmp.eq.s32.totalorder %v781, 9
      %vm5499 = vcmp.eq.s32.totalorder %v782, 9
      %vm5500 = vcmp.eq.s32.totalorder %v783, 9
      %vm5501 = vcmp.eq.s32.totalorder %v784, 9
      %vm5502 = vcmp.eq.s32.totalorder %v785, 9
      %vm5503 = vcmp.eq.s32.totalorder %v786, 9
      %vm5504 = vcmp.eq.s32.totalorder %v787, 9
      %vm5505 = vcmp.eq.s32.totalorder %v788, 9
      %vm5506 = vcmp.eq.s32.totalorder %v789, 9
      %vm5507 = vcmp.eq.s32.totalorder %v790, 9
      %vm5508 = vcmp.eq.s32.totalorder %v791, 9
      %vm5509 = vcmp.eq.s32.totalorder %v792, 9
      %vm5510 = vcmp.eq.s32.totalorder %v793, 9
      %vm5511 = vcmp.eq.s32.totalorder %v794, 9
      %vm5512 = vcmp.eq.s32.totalorder %v795, 9
      %vm5513 = vcmp.eq.s32.totalorder %v796, 9
      %vm5514 = vcmp.eq.s32.totalorder %v797, 9
      %vm5515 = vcmp.eq.s32.totalorder %v798, 9
      %vm5516 = vcmp.eq.s32.totalorder %v799, 9
      %vm5517 = vcmp.eq.s32.totalorder %v800, 9
      %vm5518 = vcmp.eq.s32.totalorder %v801, 9
      %vm5519 = vcmp.eq.s32.totalorder %v802, 9
      %vm5520 = vcmp.eq.s32.totalorder %v803, 9
      %vm5521 = vcmp.eq.s32.totalorder %v804, 9
      %vm5522 = vcmp.eq.s32.totalorder %v805, 9
      %vm5523 = vcmp.eq.s32.totalorder %v806, 9
      %vm5524 = vcmp.eq.s32.totalorder %v807, 9
      %vm5525 = vcmp.eq.s32.totalorder %v808, 9
      %vm5526 = vcmp.eq.s32.totalorder %v809, 9
      %vm5527 = vcmp.eq.s32.totalorder %v810, 9
      %vm5528 = vcmp.eq.s32.totalorder %v811, 9
      %vm5529 = vcmp.eq.s32.totalorder %v812, 9
      %vm5530 = vcmp.eq.s32.totalorder %v813, 9
      %vm5531 = vcmp.eq.s32.totalorder %v814, 9
      %vm5532 = vcmp.eq.s32.totalorder %v815, 9
      %vm5533 = vcmp.eq.s32.totalorder %v816, 9
      %vm5534 = vcmp.eq.s32.totalorder %v817, 9
      %vm5535 = vcmp.eq.s32.totalorder %v818, 9
      %vm5536 = vcmp.eq.s32.totalorder %v819, 9
      %vm5537 = vcmp.eq.s32.totalorder %v820, 9
      %vm5538 = vcmp.eq.s32.totalorder %v821, 9
      %vm5539 = vcmp.eq.s32.totalorder %v822, 9
      %vm5540 = vcmp.eq.s32.totalorder %v823, 9
      %vm5541 = vcmp.eq.s32.totalorder %v824, 9
      %vm5542 = vcmp.eq.s32.totalorder %v825, 9
      %vm5543 = vcmp.eq.s32.totalorder %v826, 9
      %vm5544 = vcmp.eq.s32.totalorder %v827, 9
      %vm5545 = vcmp.eq.s32.totalorder %v828, 9
      %vm5546 = vcmp.eq.s32.totalorder %v829, 9
      %vm5547 = vcmp.eq.s32.totalorder %v830, 9
      %vm5548 = vcmp.eq.s32.totalorder %v831, 9
      %vm5549 = vcmp.eq.s32.totalorder %v832, 9
      %vm5550 = vcmp.eq.s32.totalorder %v833, 9
      %vm5551 = vcmp.eq.s32.totalorder %v834, 9
      %vm5552 = vcmp.eq.s32.totalorder %v835, 9
      %vm5553 = vcmp.eq.s32.totalorder %v836, 9
      %vm5554 = vcmp.eq.s32.totalorder %v837, 9
      %vm5555 = vcmp.eq.s32.totalorder %v838, 9
      %vm5556 = vcmp.eq.s32.totalorder %v839, 9
      %vm5557 = vcmp.eq.s32.totalorder %v840, 9
      %vm5558 = vcmp.eq.s32.totalorder %v841, 9
      %vm5559 = vcmp.eq.s32.totalorder %v842, 9
      %vm5560 = vcmp.eq.s32.totalorder %v843, 9
      %v5561 = vsel %vm5497, 1, 0
      %v5562 = vsel %vm5498, 1, 0
      %v5563 = vsel %vm5499, 1, 0
      %v5564 = vsel %vm5500, 1, 0
      %v5565 = vsel %vm5501, 1, 0
      %v5566 = vsel %vm5502, 1, 0
      %v5567 = vsel %vm5503, 1, 0
      %v5568 = vsel %vm5504, 1, 0
      %v5569 = vsel %vm5505, 1, 0
      %v5570 = vsel %vm5506, 1, 0
      %v5571 = vsel %vm5507, 1, 0
      %v5572 = vsel %vm5508, 1, 0
      %v5573 = vsel %vm5509, 1, 0
      %v5574 = vsel %vm5510, 1, 0
      %v5575 = vsel %vm5511, 1, 0
      %v5576 = vsel %vm5512, 1, 0
      %v5577 = vsel %vm5513, 1, 0
      %v5578 = vsel %vm5514, 1, 0
      %v5579 = vsel %vm5515, 1, 0
      %v5580 = vsel %vm5516, 1, 0
      %v5581 = vsel %vm5517, 1, 0
      %v5582 = vsel %vm5518, 1, 0
      %v5583 = vsel %vm5519, 1, 0
      %v5584 = vsel %vm5520, 1, 0
      %v5585 = vsel %vm5521, 1, 0
      %v5586 = vsel %vm5522, 1, 0
      %v5587 = vsel %vm5523, 1, 0
      %v5588 = vsel %vm5524, 1, 0
      %v5589 = vsel %vm5525, 1, 0
      %v5590 = vsel %vm5526, 1, 0
      %v5591 = vsel %vm5527, 1, 0
      %v5592 = vsel %vm5528, 1, 0
      %v5593 = vsel %vm5529, 1, 0
      %v5594 = vsel %vm5530, 1, 0
      %v5595 = vsel %vm5531, 1, 0
      %v5596 = vsel %vm5532, 1, 0
      %v5597 = vsel %vm5533, 1, 0
      %v5598 = vsel %vm5534, 1, 0
      %v5599 = vsel %vm5535, 1, 0
      %v5600 = vsel %vm5536, 1, 0
      %v5601 = vsel %vm5537, 1, 0
      %v5602 = vsel %vm5538, 1, 0
      %v5603 = vsel %vm5539, 1, 0
      %v5604 = vsel %vm5540, 1, 0
      %v5605 = vsel %vm5541, 1, 0
      %v5606 = vsel %vm5542, 1, 0
      %v5607 = vsel %vm5543, 1, 0
      %v5608 = vsel %vm5544, 1, 0
      %v5609 = vsel %vm5545, 1, 0
      %v5610 = vsel %vm5546, 1, 0
      %v5611 = vsel %vm5547, 1, 0
      %v5612 = vsel %vm5548, 1, 0
      %v5613 = vsel %vm5549, 1, 0
      %v5614 = vsel %vm5550, 1, 0
      %v5615 = vsel %vm5551, 1, 0
      %v5616 = vsel %vm5552, 1, 0
      %v5617 = vsel %vm5553, 1, 0
      %v5618 = vsel %vm5554, 1, 0
      %v5619 = vsel %vm5555, 1, 0
      %v5620 = vsel %vm5556, 1, 0
      %v5621 = vsel %vm5557, 1, 0
      %v5622 = vsel %vm5558, 1, 0
      %v5623 = vsel %vm5559, 1, 0
      %v5624 = vsel %vm5560, 1, 0
      %5625 = vset.pattern.permute.xlu0 0
      %5626 = vperm.xlu0 %5625, %v5561
      %v5627 = vpop.permute.xlu0 %5626
      %5628 = vset.pattern.permute.xlu0 0
      %5629 = vperm.xlu0 %5628, %v5562
      %v5630 = vpop.permute.xlu0 %5629
      %5631 = vset.pattern.permute.xlu0 0
      %5632 = vperm.xlu0 %5631, %v5563
      %v5633 = vpop.permute.xlu0 %5632
      %5634 = vset.pattern.permute.xlu0 0
      %5635 = vperm.xlu0 %5634, %v5564
      %v5636 = vpop.permute.xlu0 %5635
      %5637 = vset.pattern.permute.xlu0 0
      %5638 = vperm.xlu0 %5637, %v5565
      %v5639 = vpop.permute.xlu0 %5638
      %5640 = vset.pattern.permute.xlu0 0
      %5641 = vperm.xlu0 %5640, %v5566
      %v5642 = vpop.permute.xlu0 %5641
      %5643 = vset.pattern.permute.xlu0 0
      %5644 = vperm.xlu0 %5643, %v5567
      %v5645 = vpop.permute.xlu0 %5644
      %5646 = vset.pattern.permute.xlu0 0
      %5647 = vperm.xlu0 %5646, %v5568
      %v5648 = vpop.permute.xlu0 %5647
      %5649 = vset.pattern.permute.xlu0 0
      %5650 = vperm.xlu0 %5649, %v5569
      %v5651 = vpop.permute.xlu0 %5650
      %5652 = vset.pattern.permute.xlu0 0
      %5653 = vperm.xlu0 %5652, %v5570
      %v5654 = vpop.permute.xlu0 %5653
      %5655 = vset.pattern.permute.xlu0 0
      %5656 = vperm.xlu0 %5655, %v5571
      %v5657 = vpop.permute.xlu0 %5656
      %5658 = vset.pattern.permute.xlu0 0
      %5659 = vperm.xlu0 %5658, %v5572
      %v5660 = vpop.permute.xlu0 %5659
      %5661 = vset.pattern.permute.xlu0 0
      %5662 = vperm.xlu0 %5661, %v5573
      %v5663 = vpop.permute.xlu0 %5662
      %5664 = vset.pattern.permute.xlu0 0
      %5665 = vperm.xlu0 %5664, %v5574
      %v5666 = vpop.permute.xlu0 %5665
      %5667 = vset.pattern.permute.xlu0 0
      %5668 = vperm.xlu0 %5667, %v5575
      %v5669 = vpop.permute.xlu0 %5668
      %5670 = vset.pattern.permute.xlu0 0
      %5671 = vperm.xlu0 %5670, %v5576
      %v5672 = vpop.permute.xlu0 %5671
      %5673 = vset.pattern.permute.xlu0 0
      %5674 = vperm.xlu0 %5673, %v5577
      %v5675 = vpop.permute.xlu0 %5674
      %5676 = vset.pattern.permute.xlu0 0
      %5677 = vperm.xlu0 %5676, %v5578
      %v5678 = vpop.permute.xlu0 %5677
      %5679 = vset.pattern.permute.xlu0 0
      %5680 = vperm.xlu0 %5679, %v5579
      %v5681 = vpop.permute.xlu0 %5680
      %5682 = vset.pattern.permute.xlu0 0
      %5683 = vperm.xlu0 %5682, %v5580
      %v5684 = vpop.permute.xlu0 %5683
      %5685 = vset.pattern.permute.xlu0 0
      %5686 = vperm.xlu0 %5685, %v5581
      %v5687 = vpop.permute.xlu0 %5686
      %5688 = vset.pattern.permute.xlu0 0
      %5689 = vperm.xlu0 %5688, %v5582
      %v5690 = vpop.permute.xlu0 %5689
      %5691 = vset.pattern.permute.xlu0 0
      %5692 = vperm.xlu0 %5691, %v5583
      %v5693 = vpop.permute.xlu0 %5692
      %5694 = vset.pattern.permute.xlu0 0
      %5695 = vperm.xlu0 %5694, %v5584
      %v5696 = vpop.permute.xlu0 %5695
      %5697 = vset.pattern.permute.xlu0 0
      %5698 = vperm.xlu0 %5697, %v5585
      %v5699 = vpop.permute.xlu0 %5698
      %5700 = vset.pattern.permute.xlu0 0
      %5701 = vperm.xlu0 %5700, %v5586
      %v5702 = vpop.permute.xlu0 %5701
      %5703 = vset.pattern.permute.xlu0 0
      %5704 = vperm.xlu0 %5703, %v5587
      %v5705 = vpop.permute.xlu0 %5704
      %5706 = vset.pattern.permute.xlu0 0
      %5707 = vperm.xlu0 %5706, %v5588
      %v5708 = vpop.permute.xlu0 %5707
      %5709 = vset.pattern.permute.xlu0 0
      %5710 = vperm.xlu0 %5709, %v5589
      %v5711 = vpop.permute.xlu0 %5710
      %5712 = vset.pattern.permute.xlu0 0
      %5713 = vperm.xlu0 %5712, %v5590
      %v5714 = vpop.permute.xlu0 %5713
      %5715 = vset.pattern.permute.xlu0 0
      %5716 = vperm.xlu0 %5715, %v5591
      %v5717 = vpop.permute.xlu0 %5716
      %5718 = vset.pattern.permute.xlu0 0
      %5719 = vperm.xlu0 %5718, %v5592
      %v5720 = vpop.permute.xlu0 %5719
      %5721 = vset.pattern.permute.xlu0 0
      %5722 = vperm.xlu0 %5721, %v5593
      %v5723 = vpop.permute.xlu0 %5722
      %5724 = vset.pattern.permute.xlu0 0
      %5725 = vperm.xlu0 %5724, %v5594
      %v5726 = vpop.permute.xlu0 %5725
      %5727 = vset.pattern.permute.xlu0 0
      %5728 = vperm.xlu0 %5727, %v5595
      %v5729 = vpop.permute.xlu0 %5728
      %5730 = vset.pattern.permute.xlu0 0
      %5731 = vperm.xlu0 %5730, %v5596
      %v5732 = vpop.permute.xlu0 %5731
      %5733 = vset.pattern.permute.xlu0 0
      %5734 = vperm.xlu0 %5733, %v5597
      %v5735 = vpop.permute.xlu0 %5734
      %5736 = vset.pattern.permute.xlu0 0
      %5737 = vperm.xlu0 %5736, %v5598
      %v5738 = vpop.permute.xlu0 %5737
      %5739 = vset.pattern.permute.xlu0 0
      %5740 = vperm.xlu0 %5739, %v5599
      %v5741 = vpop.permute.xlu0 %5740
      %5742 = vset.pattern.permute.xlu0 0
      %5743 = vperm.xlu0 %5742, %v5600
      %v5744 = vpop.permute.xlu0 %5743
      %5745 = vset.pattern.permute.xlu0 0
      %5746 = vperm.xlu0 %5745, %v5601
      %v5747 = vpop.permute.xlu0 %5746
      %5748 = vset.pattern.permute.xlu0 0
      %5749 = vperm.xlu0 %5748, %v5602
      %v5750 = vpop.permute.xlu0 %5749
      %5751 = vset.pattern.permute.xlu0 0
      %5752 = vperm.xlu0 %5751, %v5603
      %v5753 = vpop.permute.xlu0 %5752
      %5754 = vset.pattern.permute.xlu0 0
      %5755 = vperm.xlu0 %5754, %v5604
      %v5756 = vpop.permute.xlu0 %5755
      %5757 = vset.pattern.permute.xlu0 0
      %5758 = vperm.xlu0 %5757, %v5605
      %v5759 = vpop.permute.xlu0 %5758
      %5760 = vset.pattern.permute.xlu0 0
      %5761 = vperm.xlu0 %5760, %v5606
      %v5762 = vpop.permute.xlu0 %5761
      %5763 = vset.pattern.permute.xlu0 0
      %5764 = vperm.xlu0 %5763, %v5607
      %v5765 = vpop.permute.xlu0 %5764
      %5766 = vset.pattern.permute.xlu0 0
      %5767 = vperm.xlu0 %5766, %v5608
      %v5768 = vpop.permute.xlu0 %5767
      %5769 = vset.pattern.permute.xlu0 0
      %5770 = vperm.xlu0 %5769, %v5609
      %v5771 = vpop.permute.xlu0 %5770
      %5772 = vset.pattern.permute.xlu0 0
      %5773 = vperm.xlu0 %5772, %v5610
      %v5774 = vpop.permute.xlu0 %5773
      %5775 = vset.pattern.permute.xlu0 0
      %5776 = vperm.xlu0 %5775, %v5611
      %v5777 = vpop.permute.xlu0 %5776
      %5778 = vset.pattern.permute.xlu0 0
      %5779 = vperm.xlu0 %5778, %v5612
      %v5780 = vpop.permute.xlu0 %5779
      %5781 = vset.pattern.permute.xlu0 0
      %5782 = vperm.xlu0 %5781, %v5613
      %v5783 = vpop.permute.xlu0 %5782
      %5784 = vset.pattern.permute.xlu0 0
      %5785 = vperm.xlu0 %5784, %v5614
      %v5786 = vpop.permute.xlu0 %5785
      %5787 = vset.pattern.permute.xlu0 0
      %5788 = vperm.xlu0 %5787, %v5615
      %v5789 = vpop.permute.xlu0 %5788
      %5790 = vset.pattern.permute.xlu0 0
      %5791 = vperm.xlu0 %5790, %v5616
      %v5792 = vpop.permute.xlu0 %5791
      %5793 = vset.pattern.permute.xlu0 0
      %5794 = vperm.xlu0 %5793, %v5617
      %v5795 = vpop.permute.xlu0 %5794
      %5796 = vset.pattern.permute.xlu0 0
      %5797 = vperm.xlu0 %5796, %v5618
      %v5798 = vpop.permute.xlu0 %5797
      %5799 = vset.pattern.permute.xlu0 0
      %5800 = vperm.xlu0 %5799, %v5619
      %v5801 = vpop.permute.xlu0 %5800
      %5802 = vset.pattern.permute.xlu0 0
      %5803 = vperm.xlu0 %5802, %v5620
      %v5804 = vpop.permute.xlu0 %5803
      %5805 = vset.pattern.permute.xlu0 0
      %5806 = vperm.xlu0 %5805, %v5621
      %v5807 = vpop.permute.xlu0 %5806
      %5808 = vset.pattern.permute.xlu0 0
      %5809 = vperm.xlu0 %5808, %v5622
      %v5810 = vpop.permute.xlu0 %5809
      %5811 = vset.pattern.permute.xlu0 0
      %5812 = vperm.xlu0 %5811, %v5623
      %v5813 = vpop.permute.xlu0 %5812
      %5814 = vset.pattern.permute.xlu0 0
      %5815 = vperm.xlu0 %5814, %v5624
      %v5816 = vpop.permute.xlu0 %5815
      %vm5817 = vcmp.eq.s32.totalorder %v5627, 1
      %vm5818 = vcmp.eq.s32.totalorder %v5630, 1
      %vm5819 = vcmp.eq.s32.totalorder %v5633, 1
      %vm5820 = vcmp.eq.s32.totalorder %v5636, 1
      %vm5821 = vcmp.eq.s32.totalorder %v5639, 1
      %vm5822 = vcmp.eq.s32.totalorder %v5642, 1
      %vm5823 = vcmp.eq.s32.totalorder %v5645, 1
      %vm5824 = vcmp.eq.s32.totalorder %v5648, 1
      %vm5825 = vcmp.eq.s32.totalorder %v5651, 1
      %vm5826 = vcmp.eq.s32.totalorder %v5654, 1
      %vm5827 = vcmp.eq.s32.totalorder %v5657, 1
      %vm5828 = vcmp.eq.s32.totalorder %v5660, 1
      %vm5829 = vcmp.eq.s32.totalorder %v5663, 1
      %vm5830 = vcmp.eq.s32.totalorder %v5666, 1
      %vm5831 = vcmp.eq.s32.totalorder %v5669, 1
      %vm5832 = vcmp.eq.s32.totalorder %v5672, 1
      %vm5833 = vcmp.eq.s32.totalorder %v5675, 1
      %vm5834 = vcmp.eq.s32.totalorder %v5678, 1
      %vm5835 = vcmp.eq.s32.totalorder %v5681, 1
      %vm5836 = vcmp.eq.s32.totalorder %v5684, 1
      %vm5837 = vcmp.eq.s32.totalorder %v5687, 1
      %vm5838 = vcmp.eq.s32.totalorder %v5690, 1
      %vm5839 = vcmp.eq.s32.totalorder %v5693, 1
      %vm5840 = vcmp.eq.s32.totalorder %v5696, 1
      %vm5841 = vcmp.eq.s32.totalorder %v5699, 1
      %vm5842 = vcmp.eq.s32.totalorder %v5702, 1
      %vm5843 = vcmp.eq.s32.totalorder %v5705, 1
      %vm5844 = vcmp.eq.s32.totalorder %v5708, 1
      %vm5845 = vcmp.eq.s32.totalorder %v5711, 1
      %vm5846 = vcmp.eq.s32.totalorder %v5714, 1
      %vm5847 = vcmp.eq.s32.totalorder %v5717, 1
      %vm5848 = vcmp.eq.s32.totalorder %v5720, 1
      %vm5849 = vcmp.eq.s32.totalorder %v5723, 1
      %vm5850 = vcmp.eq.s32.totalorder %v5726, 1
      %vm5851 = vcmp.eq.s32.totalorder %v5729, 1
      %vm5852 = vcmp.eq.s32.totalorder %v5732, 1
      %vm5853 = vcmp.eq.s32.totalorder %v5735, 1
      %vm5854 = vcmp.eq.s32.totalorder %v5738, 1
      %vm5855 = vcmp.eq.s32.totalorder %v5741, 1
      %vm5856 = vcmp.eq.s32.totalorder %v5744, 1
      %vm5857 = vcmp.eq.s32.totalorder %v5747, 1
      %vm5858 = vcmp.eq.s32.totalorder %v5750, 1
      %vm5859 = vcmp.eq.s32.totalorder %v5753, 1
      %vm5860 = vcmp.eq.s32.totalorder %v5756, 1
      %vm5861 = vcmp.eq.s32.totalorder %v5759, 1
      %vm5862 = vcmp.eq.s32.totalorder %v5762, 1
      %vm5863 = vcmp.eq.s32.totalorder %v5765, 1
      %vm5864 = vcmp.eq.s32.totalorder %v5768, 1
      %vm5865 = vcmp.eq.s32.totalorder %v5771, 1
      %vm5866 = vcmp.eq.s32.totalorder %v5774, 1
      %vm5867 = vcmp.eq.s32.totalorder %v5777, 1
      %vm5868 = vcmp.eq.s32.totalorder %v5780, 1
      %vm5869 = vcmp.eq.s32.totalorder %v5783, 1
      %vm5870 = vcmp.eq.s32.totalorder %v5786, 1
      %vm5871 = vcmp.eq.s32.totalorder %v5789, 1
      %vm5872 = vcmp.eq.s32.totalorder %v5792, 1
      %vm5873 = vcmp.eq.s32.totalorder %v5795, 1
      %vm5874 = vcmp.eq.s32.totalorder %v5798, 1
      %vm5875 = vcmp.eq.s32.totalorder %v5801, 1
      %vm5876 = vcmp.eq.s32.totalorder %v5804, 1
      %vm5877 = vcmp.eq.s32.totalorder %v5807, 1
      %vm5878 = vcmp.eq.s32.totalorder %v5810, 1
      %vm5879 = vcmp.eq.s32.totalorder %v5813, 1
      %vm5880 = vcmp.eq.s32.totalorder %v5816, 1
      %v5881 = vsel %vm5817, %v460, -inf
      %v5882 = vsel %vm5818, %v463, -inf
      %v5883 = vsel %vm5819, %v468, -inf
      %v5884 = vsel %vm5820, %v471, -inf
      %v5885 = vsel %vm5821, %v476, -inf
      %v5886 = vsel %vm5822, %v479, -inf
      %v5887 = vsel %vm5823, %v484, -inf
      %v5888 = vsel %vm5824, %v487, -inf
      %v5889 = vsel %vm5825, %v492, -inf
      %v5890 = vsel %vm5826, %v495, -inf
      %v5891 = vsel %vm5827, %v500, -inf
      %v5892 = vsel %vm5828, %v503, -inf
      %v5893 = vsel %vm5829, %v508, -inf
      %v5894 = vsel %vm5830, %v511, -inf
      %v5895 = vsel %vm5831, %v516, -inf
      %v5896 = vsel %vm5832, %v519, -inf
      %v5897 = vsel %vm5833, %v524, -inf
      %v5898 = vsel %vm5834, %v527, -inf
      %v5899 = vsel %vm5835, %v532, -inf
      %v5900 = vsel %vm5836, %v535, -inf
      %v5901 = vsel %vm5837, %v540, -inf
      %v5902 = vsel %vm5838, %v543, -inf
      %v5903 = vsel %vm5839, %v548, -inf
      %v5904 = vsel %vm5840, %v551, -inf
      %v5905 = vsel %vm5841, %v556, -inf
      %v5906 = vsel %vm5842, %v559, -inf
      %v5907 = vsel %vm5843, %v564, -inf
      %v5908 = vsel %vm5844, %v567, -inf
      %v5909 = vsel %vm5845, %v572, -inf
      %v5910 = vsel %vm5846, %v575, -inf
      %v5911 = vsel %vm5847, %v580, -inf
      %v5912 = vsel %vm5848, %v583, -inf
      %v5913 = vsel %vm5849, %v588, -inf
      %v5914 = vsel %vm5850, %v591, -inf
      %v5915 = vsel %vm5851, %v596, -inf
      %v5916 = vsel %vm5852, %v599, -inf
      %v5917 = vsel %vm5853, %v604, -inf
      %v5918 = vsel %vm5854, %v607, -inf
      %v5919 = vsel %vm5855, %v612, -inf
      %v5920 = vsel %vm5856, %v615, -inf
      %v5921 = vsel %vm5857, %v620, -inf
      %v5922 = vsel %vm5858, %v623, -inf
      %v5923 = vsel %vm5859, %v628, -inf
      %v5924 = vsel %vm5860, %v631, -inf
      %v5925 = vsel %vm5861, %v636, -inf
      %v5926 = vsel %vm5862, %v639, -inf
      %v5927 = vsel %vm5863, %v644, -inf
      %v5928 = vsel %vm5864, %v647, -inf
      %v5929 = vsel %vm5865, %v652, -inf
      %v5930 = vsel %vm5866, %v655, -inf
      %v5931 = vsel %vm5867, %v660, -inf
      %v5932 = vsel %vm5868, %v663, -inf
      %v5933 = vsel %vm5869, %v668, -inf
      %v5934 = vsel %vm5870, %v671, -inf
      %v5935 = vsel %vm5871, %v676, -inf
      %v5936 = vsel %vm5872, %v679, -inf
      %v5937 = vsel %vm5873, %v684, -inf
      %v5938 = vsel %vm5874, %v687, -inf
      %v5939 = vsel %vm5875, %v692, -inf
      %v5940 = vsel %vm5876, %v695, -inf
      %v5941 = vsel %vm5877, %v700, -inf
      %v5942 = vsel %vm5878, %v703, -inf
      %v5943 = vsel %vm5879, %v708, -inf
      %v5944 = vsel %vm5880, %v711, -inf
      %v5945 = vmax.f32 %v5881, %v5885
      %v5946 = vmax.f32 %v5882, %v5886
      %v5947 = vmax.f32 %v5883, %v5887
      %v5948 = vmax.f32 %v5884, %v5888
      %v5949 = vmax.f32 %v5945, %v5889
      %v5950 = vmax.f32 %v5946, %v5890
      %v5951 = vmax.f32 %v5947, %v5891
      %v5952 = vmax.f32 %v5948, %v5892
      %v5953 = vmax.f32 %v5949, %v5893
      %v5954 = vmax.f32 %v5950, %v5894
      %v5955 = vmax.f32 %v5951, %v5895
      %v5956 = vmax.f32 %v5952, %v5896
      %v5957 = vmax.f32 %v5953, %v5897
      %v5958 = vmax.f32 %v5954, %v5898
      %v5959 = vmax.f32 %v5955, %v5899
      %v5960 = vmax.f32 %v5956, %v5900
      %v5961 = vmax.f32 %v5957, %v5901
      %v5962 = vmax.f32 %v5958, %v5902
      %v5963 = vmax.f32 %v5959, %v5903
      %v5964 = vmax.f32 %v5960, %v5904
      %v5965 = vmax.f32 %v5961, %v5905
      %v5966 = vmax.f32 %v5962, %v5906
      %v5967 = vmax.f32 %v5963, %v5907
      %v5968 = vmax.f32 %v5964, %v5908
      %v5969 = vmax.f32 %v5965, %v5909
      %v5970 = vmax.f32 %v5966, %v5910
      %v5971 = vmax.f32 %v5967, %v5911
      %v5972 = vmax.f32 %v5968, %v5912
      %v5973 = vmax.f32 %v5969, %v5913
      %v5974 = vmax.f32 %v5970, %v5914
      %v5975 = vmax.f32 %v5971, %v5915
      %v5976 = vmax.f32 %v5972, %v5916
      %v5977 = vmax.f32 %v5973, %v5917
      %v5978 = vmax.f32 %v5974, %v5918
      %v5979 = vmax.f32 %v5975, %v5919
      %v5980 = vmax.f32 %v5976, %v5920
      %v5981 = vmax.f32 %v5977, %v5921
      %v5982 = vmax.f32 %v5978, %v5922
      %v5983 = vmax.f32 %v5979, %v5923
      %v5984 = vmax.f32 %v5980, %v5924
      %v5985 = vmax.f32 %v5981, %v5925
      %v5986 = vmax.f32 %v5982, %v5926
      %v5987 = vmax.f32 %v5983, %v5927
      %v5988 = vmax.f32 %v5984, %v5928
      %v5989 = vmax.f32 %v5985, %v5929
      %v5990 = vmax.f32 %v5986, %v5930
      %v5991 = vmax.f32 %v5987, %v5931
      %v5992 = vmax.f32 %v5988, %v5932
      %v5993 = vmax.f32 %v5989, %v5933
      %v5994 = vmax.f32 %v5990, %v5934
      %v5995 = vmax.f32 %v5991, %v5935
      %v5996 = vmax.f32 %v5992, %v5936
      %v5997 = vmax.f32 %v5993, %v5937
      %v5998 = vmax.f32 %v5994, %v5938
      %v5999 = vmax.f32 %v5995, %v5939
      %v6000 = vmax.f32 %v5996, %v5940
      %v6001 = vmax.f32 %v5997, %v5941
      %v6002 = vmax.f32 %v5998, %v5942
      %v6003 = vmax.f32 %v5999, %v5943
      %v6004 = vmax.f32 %v6000, %v5944
      %v6005 = vmax.f32 %v6001, %v6002
      %v6006 = vmax.f32 %v6003, %v6004
      %v6007 = vmax.f32 %v6005, %v6006
      %v6008 = vrot.slane %v6007, 4
      %v6009 = vmax.f32 %v6007, %v6008
      %v6010 = vrot.slane %v6009, 2
      %v6011 = vmax.f32 %v6009, %v6010
      %v6012 = vrot.slane %v6011, 1
      %v6013 = vmax.f32 %v6011, %v6012
      %vm6014 = vcmp.eq.s32.totalorder %v780, 10
      %vm6015 = vcmp.eq.s32.totalorder %v781, 10
      %vm6016 = vcmp.eq.s32.totalorder %v782, 10
      %vm6017 = vcmp.eq.s32.totalorder %v783, 10
      %vm6018 = vcmp.eq.s32.totalorder %v784, 10
      %vm6019 = vcmp.eq.s32.totalorder %v785, 10
      %vm6020 = vcmp.eq.s32.totalorder %v786, 10
      %vm6021 = vcmp.eq.s32.totalorder %v787, 10
      %vm6022 = vcmp.eq.s32.totalorder %v788, 10
      %vm6023 = vcmp.eq.s32.totalorder %v789, 10
      %vm6024 = vcmp.eq.s32.totalorder %v790, 10
      %vm6025 = vcmp.eq.s32.totalorder %v791, 10
      %vm6026 = vcmp.eq.s32.totalorder %v792, 10
      %vm6027 = vcmp.eq.s32.totalorder %v793, 10
      %vm6028 = vcmp.eq.s32.totalorder %v794, 10
      %vm6029 = vcmp.eq.s32.totalorder %v795, 10
      %vm6030 = vcmp.eq.s32.totalorder %v796, 10
      %vm6031 = vcmp.eq.s32.totalorder %v797, 10
      %vm6032 = vcmp.eq.s32.totalorder %v798, 10
      %vm6033 = vcmp.eq.s32.totalorder %v799, 10
      %vm6034 = vcmp.eq.s32.totalorder %v800, 10
      %vm6035 = vcmp.eq.s32.totalorder %v801, 10
      %vm6036 = vcmp.eq.s32.totalorder %v802, 10
      %vm6037 = vcmp.eq.s32.totalorder %v803, 10
      %vm6038 = vcmp.eq.s32.totalorder %v804, 10
      %vm6039 = vcmp.eq.s32.totalorder %v805, 10
      %vm6040 = vcmp.eq.s32.totalorder %v806, 10
      %vm6041 = vcmp.eq.s32.totalorder %v807, 10
      %vm6042 = vcmp.eq.s32.totalorder %v808, 10
      %vm6043 = vcmp.eq.s32.totalorder %v809, 10
      %vm6044 = vcmp.eq.s32.totalorder %v810, 10
      %vm6045 = vcmp.eq.s32.totalorder %v811, 10
      %vm6046 = vcmp.eq.s32.totalorder %v812, 10
      %vm6047 = vcmp.eq.s32.totalorder %v813, 10
      %vm6048 = vcmp.eq.s32.totalorder %v814, 10
      %vm6049 = vcmp.eq.s32.totalorder %v815, 10
      %vm6050 = vcmp.eq.s32.totalorder %v816, 10
      %vm6051 = vcmp.eq.s32.totalorder %v817, 10
      %vm6052 = vcmp.eq.s32.totalorder %v818, 10
      %vm6053 = vcmp.eq.s32.totalorder %v819, 10
      %vm6054 = vcmp.eq.s32.totalorder %v820, 10
      %vm6055 = vcmp.eq.s32.totalorder %v821, 10
      %vm6056 = vcmp.eq.s32.totalorder %v822, 10
      %vm6057 = vcmp.eq.s32.totalorder %v823, 10
      %vm6058 = vcmp.eq.s32.totalorder %v824, 10
      %vm6059 = vcmp.eq.s32.totalorder %v825, 10
      %vm6060 = vcmp.eq.s32.totalorder %v826, 10
      %vm6061 = vcmp.eq.s32.totalorder %v827, 10
      %vm6062 = vcmp.eq.s32.totalorder %v828, 10
      %vm6063 = vcmp.eq.s32.totalorder %v829, 10
      %vm6064 = vcmp.eq.s32.totalorder %v830, 10
      %vm6065 = vcmp.eq.s32.totalorder %v831, 10
      %vm6066 = vcmp.eq.s32.totalorder %v832, 10
      %vm6067 = vcmp.eq.s32.totalorder %v833, 10
      %vm6068 = vcmp.eq.s32.totalorder %v834, 10
      %vm6069 = vcmp.eq.s32.totalorder %v835, 10
      %vm6070 = vcmp.eq.s32.totalorder %v836, 10
      %vm6071 = vcmp.eq.s32.totalorder %v837, 10
      %vm6072 = vcmp.eq.s32.totalorder %v838, 10
      %vm6073 = vcmp.eq.s32.totalorder %v839, 10
      %vm6074 = vcmp.eq.s32.totalorder %v840, 10
      %vm6075 = vcmp.eq.s32.totalorder %v841, 10
      %vm6076 = vcmp.eq.s32.totalorder %v842, 10
      %vm6077 = vcmp.eq.s32.totalorder %v843, 10
      %v6078 = vsel %vm6014, 1, 0
      %v6079 = vsel %vm6015, 1, 0
      %v6080 = vsel %vm6016, 1, 0
      %v6081 = vsel %vm6017, 1, 0
      %v6082 = vsel %vm6018, 1, 0
      %v6083 = vsel %vm6019, 1, 0
      %v6084 = vsel %vm6020, 1, 0
      %v6085 = vsel %vm6021, 1, 0
      %v6086 = vsel %vm6022, 1, 0
      %v6087 = vsel %vm6023, 1, 0
      %v6088 = vsel %vm6024, 1, 0
      %v6089 = vsel %vm6025, 1, 0
      %v6090 = vsel %vm6026, 1, 0
      %v6091 = vsel %vm6027, 1, 0
      %v6092 = vsel %vm6028, 1, 0
      %v6093 = vsel %vm6029, 1, 0
      %v6094 = vsel %vm6030, 1, 0
      %v6095 = vsel %vm6031, 1, 0
      %v6096 = vsel %vm6032, 1, 0
      %v6097 = vsel %vm6033, 1, 0
      %v6098 = vsel %vm6034, 1, 0
      %v6099 = vsel %vm6035, 1, 0
      %v6100 = vsel %vm6036, 1, 0
      %v6101 = vsel %vm6037, 1, 0
      %v6102 = vsel %vm6038, 1, 0
      %v6103 = vsel %vm6039, 1, 0
      %v6104 = vsel %vm6040, 1, 0
      %v6105 = vsel %vm6041, 1, 0
      %v6106 = vsel %vm6042, 1, 0
      %v6107 = vsel %vm6043, 1, 0
      %v6108 = vsel %vm6044, 1, 0
      %v6109 = vsel %vm6045, 1, 0
      %v6110 = vsel %vm6046, 1, 0
      %v6111 = vsel %vm6047, 1, 0
      %v6112 = vsel %vm6048, 1, 0
      %v6113 = vsel %vm6049, 1, 0
      %v6114 = vsel %vm6050, 1, 0
      %v6115 = vsel %vm6051, 1, 0
      %v6116 = vsel %vm6052, 1, 0
      %v6117 = vsel %vm6053, 1, 0
      %v6118 = vsel %vm6054, 1, 0
      %v6119 = vsel %vm6055, 1, 0
      %v6120 = vsel %vm6056, 1, 0
      %v6121 = vsel %vm6057, 1, 0
      %v6122 = vsel %vm6058, 1, 0
      %v6123 = vsel %vm6059, 1, 0
      %v6124 = vsel %vm6060, 1, 0
      %v6125 = vsel %vm6061, 1, 0
      %v6126 = vsel %vm6062, 1, 0
      %v6127 = vsel %vm6063, 1, 0
      %v6128 = vsel %vm6064, 1, 0
      %v6129 = vsel %vm6065, 1, 0
      %v6130 = vsel %vm6066, 1, 0
      %v6131 = vsel %vm6067, 1, 0
      %v6132 = vsel %vm6068, 1, 0
      %v6133 = vsel %vm6069, 1, 0
      %v6134 = vsel %vm6070, 1, 0
      %v6135 = vsel %vm6071, 1, 0
      %v6136 = vsel %vm6072, 1, 0
      %v6137 = vsel %vm6073, 1, 0
      %v6138 = vsel %vm6074, 1, 0
      %v6139 = vsel %vm6075, 1, 0
      %v6140 = vsel %vm6076, 1, 0
      %v6141 = vsel %vm6077, 1, 0
      %6142 = vset.pattern.permute.xlu0 0
      %6143 = vperm.xlu0 %6142, %v6078
      %v6144 = vpop.permute.xlu0 %6143
      %6145 = vset.pattern.permute.xlu0 0
      %6146 = vperm.xlu0 %6145, %v6079
      %v6147 = vpop.permute.xlu0 %6146
      %6148 = vset.pattern.permute.xlu0 0
      %6149 = vperm.xlu0 %6148, %v6080
      %v6150 = vpop.permute.xlu0 %6149
      %6151 = vset.pattern.permute.xlu0 0
      %6152 = vperm.xlu0 %6151, %v6081
      %v6153 = vpop.permute.xlu0 %6152
      %6154 = vset.pattern.permute.xlu0 0
      %6155 = vperm.xlu0 %6154, %v6082
      %v6156 = vpop.permute.xlu0 %6155
      %6157 = vset.pattern.permute.xlu0 0
      %6158 = vperm.xlu0 %6157, %v6083
      %v6159 = vpop.permute.xlu0 %6158
      %6160 = vset.pattern.permute.xlu0 0
      %6161 = vperm.xlu0 %6160, %v6084
      %v6162 = vpop.permute.xlu0 %6161
      %6163 = vset.pattern.permute.xlu0 0
      %6164 = vperm.xlu0 %6163, %v6085
      %v6165 = vpop.permute.xlu0 %6164
      %6166 = vset.pattern.permute.xlu0 0
      %6167 = vperm.xlu0 %6166, %v6086
      %v6168 = vpop.permute.xlu0 %6167
      %6169 = vset.pattern.permute.xlu0 0
      %6170 = vperm.xlu0 %6169, %v6087
      %v6171 = vpop.permute.xlu0 %6170
      %6172 = vset.pattern.permute.xlu0 0
      %6173 = vperm.xlu0 %6172, %v6088
      %v6174 = vpop.permute.xlu0 %6173
      %6175 = vset.pattern.permute.xlu0 0
      %6176 = vperm.xlu0 %6175, %v6089
      %v6177 = vpop.permute.xlu0 %6176
      %6178 = vset.pattern.permute.xlu0 0
      %6179 = vperm.xlu0 %6178, %v6090
      %v6180 = vpop.permute.xlu0 %6179
      %6181 = vset.pattern.permute.xlu0 0
      %6182 = vperm.xlu0 %6181, %v6091
      %v6183 = vpop.permute.xlu0 %6182
      %6184 = vset.pattern.permute.xlu0 0
      %6185 = vperm.xlu0 %6184, %v6092
      %v6186 = vpop.permute.xlu0 %6185
      %6187 = vset.pattern.permute.xlu0 0
      %6188 = vperm.xlu0 %6187, %v6093
      %v6189 = vpop.permute.xlu0 %6188
      %6190 = vset.pattern.permute.xlu0 0
      %6191 = vperm.xlu0 %6190, %v6094
      %v6192 = vpop.permute.xlu0 %6191
      %6193 = vset.pattern.permute.xlu0 0
      %6194 = vperm.xlu0 %6193, %v6095
      %v6195 = vpop.permute.xlu0 %6194
      %6196 = vset.pattern.permute.xlu0 0
      %6197 = vperm.xlu0 %6196, %v6096
      %v6198 = vpop.permute.xlu0 %6197
      %6199 = vset.pattern.permute.xlu0 0
      %6200 = vperm.xlu0 %6199, %v6097
      %v6201 = vpop.permute.xlu0 %6200
      %6202 = vset.pattern.permute.xlu0 0
      %6203 = vperm.xlu0 %6202, %v6098
      %v6204 = vpop.permute.xlu0 %6203
      %6205 = vset.pattern.permute.xlu0 0
      %6206 = vperm.xlu0 %6205, %v6099
      %v6207 = vpop.permute.xlu0 %6206
      %6208 = vset.pattern.permute.xlu0 0
      %6209 = vperm.xlu0 %6208, %v6100
      %v6210 = vpop.permute.xlu0 %6209
      %6211 = vset.pattern.permute.xlu0 0
      %6212 = vperm.xlu0 %6211, %v6101
      %v6213 = vpop.permute.xlu0 %6212
      %6214 = vset.pattern.permute.xlu0 0
      %6215 = vperm.xlu0 %6214, %v6102
      %v6216 = vpop.permute.xlu0 %6215
      %6217 = vset.pattern.permute.xlu0 0
      %6218 = vperm.xlu0 %6217, %v6103
      %v6219 = vpop.permute.xlu0 %6218
      %6220 = vset.pattern.permute.xlu0 0
      %6221 = vperm.xlu0 %6220, %v6104
      %v6222 = vpop.permute.xlu0 %6221
      %6223 = vset.pattern.permute.xlu0 0
      %6224 = vperm.xlu0 %6223, %v6105
      %v6225 = vpop.permute.xlu0 %6224
      %6226 = vset.pattern.permute.xlu0 0
      %6227 = vperm.xlu0 %6226, %v6106
      %v6228 = vpop.permute.xlu0 %6227
      %6229 = vset.pattern.permute.xlu0 0
      %6230 = vperm.xlu0 %6229, %v6107
      %v6231 = vpop.permute.xlu0 %6230
      %6232 = vset.pattern.permute.xlu0 0
      %6233 = vperm.xlu0 %6232, %v6108
      %v6234 = vpop.permute.xlu0 %6233
      %6235 = vset.pattern.permute.xlu0 0
      %6236 = vperm.xlu0 %6235, %v6109
      %v6237 = vpop.permute.xlu0 %6236
      %6238 = vset.pattern.permute.xlu0 0
      %6239 = vperm.xlu0 %6238, %v6110
      %v6240 = vpop.permute.xlu0 %6239
      %6241 = vset.pattern.permute.xlu0 0
      %6242 = vperm.xlu0 %6241, %v6111
      %v6243 = vpop.permute.xlu0 %6242
      %6244 = vset.pattern.permute.xlu0 0
      %6245 = vperm.xlu0 %6244, %v6112
      %v6246 = vpop.permute.xlu0 %6245
      %6247 = vset.pattern.permute.xlu0 0
      %6248 = vperm.xlu0 %6247, %v6113
      %v6249 = vpop.permute.xlu0 %6248
      %6250 = vset.pattern.permute.xlu0 0
      %6251 = vperm.xlu0 %6250, %v6114
      %v6252 = vpop.permute.xlu0 %6251
      %6253 = vset.pattern.permute.xlu0 0
      %6254 = vperm.xlu0 %6253, %v6115
      %v6255 = vpop.permute.xlu0 %6254
      %6256 = vset.pattern.permute.xlu0 0
      %6257 = vperm.xlu0 %6256, %v6116
      %v6258 = vpop.permute.xlu0 %6257
      %6259 = vset.pattern.permute.xlu0 0
      %6260 = vperm.xlu0 %6259, %v6117
      %v6261 = vpop.permute.xlu0 %6260
      %6262 = vset.pattern.permute.xlu0 0
      %6263 = vperm.xlu0 %6262, %v6118
      %v6264 = vpop.permute.xlu0 %6263
      %6265 = vset.pattern.permute.xlu0 0
      %6266 = vperm.xlu0 %6265, %v6119
      %v6267 = vpop.permute.xlu0 %6266
      %6268 = vset.pattern.permute.xlu0 0
      %6269 = vperm.xlu0 %6268, %v6120
      %v6270 = vpop.permute.xlu0 %6269
      %6271 = vset.pattern.permute.xlu0 0
      %6272 = vperm.xlu0 %6271, %v6121
      %v6273 = vpop.permute.xlu0 %6272
      %6274 = vset.pattern.permute.xlu0 0
      %6275 = vperm.xlu0 %6274, %v6122
      %v6276 = vpop.permute.xlu0 %6275
      %6277 = vset.pattern.permute.xlu0 0
      %6278 = vperm.xlu0 %6277, %v6123
      %v6279 = vpop.permute.xlu0 %6278
      %6280 = vset.pattern.permute.xlu0 0
      %6281 = vperm.xlu0 %6280, %v6124
      %v6282 = vpop.permute.xlu0 %6281
      %6283 = vset.pattern.permute.xlu0 0
      %6284 = vperm.xlu0 %6283, %v6125
      %v6285 = vpop.permute.xlu0 %6284
      %6286 = vset.pattern.permute.xlu0 0
      %6287 = vperm.xlu0 %6286, %v6126
      %v6288 = vpop.permute.xlu0 %6287
      %6289 = vset.pattern.permute.xlu0 0
      %6290 = vperm.xlu0 %6289, %v6127
      %v6291 = vpop.permute.xlu0 %6290
      %6292 = vset.pattern.permute.xlu0 0
      %6293 = vperm.xlu0 %6292, %v6128
      %v6294 = vpop.permute.xlu0 %6293
      %6295 = vset.pattern.permute.xlu0 0
      %6296 = vperm.xlu0 %6295, %v6129
      %v6297 = vpop.permute.xlu0 %6296
      %6298 = vset.pattern.permute.xlu0 0
      %6299 = vperm.xlu0 %6298, %v6130
      %v6300 = vpop.permute.xlu0 %6299
      %6301 = vset.pattern.permute.xlu0 0
      %6302 = vperm.xlu0 %6301, %v6131
      %v6303 = vpop.permute.xlu0 %6302
      %6304 = vset.pattern.permute.xlu0 0
      %6305 = vperm.xlu0 %6304, %v6132
      %v6306 = vpop.permute.xlu0 %6305
      %6307 = vset.pattern.permute.xlu0 0
      %6308 = vperm.xlu0 %6307, %v6133
      %v6309 = vpop.permute.xlu0 %6308
      %6310 = vset.pattern.permute.xlu0 0
      %6311 = vperm.xlu0 %6310, %v6134
      %v6312 = vpop.permute.xlu0 %6311
      %6313 = vset.pattern.permute.xlu0 0
      %6314 = vperm.xlu0 %6313, %v6135
      %v6315 = vpop.permute.xlu0 %6314
      %6316 = vset.pattern.permute.xlu0 0
      %6317 = vperm.xlu0 %6316, %v6136
      %v6318 = vpop.permute.xlu0 %6317
      %6319 = vset.pattern.permute.xlu0 0
      %6320 = vperm.xlu0 %6319, %v6137
      %v6321 = vpop.permute.xlu0 %6320
      %6322 = vset.pattern.permute.xlu0 0
      %6323 = vperm.xlu0 %6322, %v6138
      %v6324 = vpop.permute.xlu0 %6323
      %6325 = vset.pattern.permute.xlu0 0
      %6326 = vperm.xlu0 %6325, %v6139
      %v6327 = vpop.permute.xlu0 %6326
      %6328 = vset.pattern.permute.xlu0 0
      %6329 = vperm.xlu0 %6328, %v6140
      %v6330 = vpop.permute.xlu0 %6329
      %6331 = vset.pattern.permute.xlu0 0
      %6332 = vperm.xlu0 %6331, %v6141
      %v6333 = vpop.permute.xlu0 %6332
      %vm6334 = vcmp.eq.s32.totalorder %v6144, 1
      %vm6335 = vcmp.eq.s32.totalorder %v6147, 1
      %vm6336 = vcmp.eq.s32.totalorder %v6150, 1
      %vm6337 = vcmp.eq.s32.totalorder %v6153, 1
      %vm6338 = vcmp.eq.s32.totalorder %v6156, 1
      %vm6339 = vcmp.eq.s32.totalorder %v6159, 1
      %vm6340 = vcmp.eq.s32.totalorder %v6162, 1
      %vm6341 = vcmp.eq.s32.totalorder %v6165, 1
      %vm6342 = vcmp.eq.s32.totalorder %v6168, 1
      %vm6343 = vcmp.eq.s32.totalorder %v6171, 1
      %vm6344 = vcmp.eq.s32.totalorder %v6174, 1
      %vm6345 = vcmp.eq.s32.totalorder %v6177, 1
      %vm6346 = vcmp.eq.s32.totalorder %v6180, 1
      %vm6347 = vcmp.eq.s32.totalorder %v6183, 1
      %vm6348 = vcmp.eq.s32.totalorder %v6186, 1
      %vm6349 = vcmp.eq.s32.totalorder %v6189, 1
      %vm6350 = vcmp.eq.s32.totalorder %v6192, 1
      %vm6351 = vcmp.eq.s32.totalorder %v6195, 1
      %vm6352 = vcmp.eq.s32.totalorder %v6198, 1
      %vm6353 = vcmp.eq.s32.totalorder %v6201, 1
      %vm6354 = vcmp.eq.s32.totalorder %v6204, 1
      %vm6355 = vcmp.eq.s32.totalorder %v6207, 1
      %vm6356 = vcmp.eq.s32.totalorder %v6210, 1
      %vm6357 = vcmp.eq.s32.totalorder %v6213, 1
      %vm6358 = vcmp.eq.s32.totalorder %v6216, 1
      %vm6359 = vcmp.eq.s32.totalorder %v6219, 1
      %vm6360 = vcmp.eq.s32.totalorder %v6222, 1
      %vm6361 = vcmp.eq.s32.totalorder %v6225, 1
      %vm6362 = vcmp.eq.s32.totalorder %v6228, 1
      %vm6363 = vcmp.eq.s32.totalorder %v6231, 1
      %vm6364 = vcmp.eq.s32.totalorder %v6234, 1
      %vm6365 = vcmp.eq.s32.totalorder %v6237, 1
      %vm6366 = vcmp.eq.s32.totalorder %v6240, 1
      %vm6367 = vcmp.eq.s32.totalorder %v6243, 1
      %vm6368 = vcmp.eq.s32.totalorder %v6246, 1
      %vm6369 = vcmp.eq.s32.totalorder %v6249, 1
      %vm6370 = vcmp.eq.s32.totalorder %v6252, 1
      %vm6371 = vcmp.eq.s32.totalorder %v6255, 1
      %vm6372 = vcmp.eq.s32.totalorder %v6258, 1
      %vm6373 = vcmp.eq.s32.totalorder %v6261, 1
      %vm6374 = vcmp.eq.s32.totalorder %v6264, 1
      %vm6375 = vcmp.eq.s32.totalorder %v6267, 1
      %vm6376 = vcmp.eq.s32.totalorder %v6270, 1
      %vm6377 = vcmp.eq.s32.totalorder %v6273, 1
      %vm6378 = vcmp.eq.s32.totalorder %v6276, 1
      %vm6379 = vcmp.eq.s32.totalorder %v6279, 1
      %vm6380 = vcmp.eq.s32.totalorder %v6282, 1
      %vm6381 = vcmp.eq.s32.totalorder %v6285, 1
      %vm6382 = vcmp.eq.s32.totalorder %v6288, 1
      %vm6383 = vcmp.eq.s32.totalorder %v6291, 1
      %vm6384 = vcmp.eq.s32.totalorder %v6294, 1
      %vm6385 = vcmp.eq.s32.totalorder %v6297, 1
      %vm6386 = vcmp.eq.s32.totalorder %v6300, 1
      %vm6387 = vcmp.eq.s32.totalorder %v6303, 1
      %vm6388 = vcmp.eq.s32.totalorder %v6306, 1
      %vm6389 = vcmp.eq.s32.totalorder %v6309, 1
      %vm6390 = vcmp.eq.s32.totalorder %v6312, 1
      %vm6391 = vcmp.eq.s32.totalorder %v6315, 1
      %vm6392 = vcmp.eq.s32.totalorder %v6318, 1
      %vm6393 = vcmp.eq.s32.totalorder %v6321, 1
      %vm6394 = vcmp.eq.s32.totalorder %v6324, 1
      %vm6395 = vcmp.eq.s32.totalorder %v6327, 1
      %vm6396 = vcmp.eq.s32.totalorder %v6330, 1
      %vm6397 = vcmp.eq.s32.totalorder %v6333, 1
      %v6398 = vsel %vm6334, %v460, -inf
      %v6399 = vsel %vm6335, %v463, -inf
      %v6400 = vsel %vm6336, %v468, -inf
      %v6401 = vsel %vm6337, %v471, -inf
      %v6402 = vsel %vm6338, %v476, -inf
      %v6403 = vsel %vm6339, %v479, -inf
      %v6404 = vsel %vm6340, %v484, -inf
      %v6405 = vsel %vm6341, %v487, -inf
      %v6406 = vsel %vm6342, %v492, -inf
      %v6407 = vsel %vm6343, %v495, -inf
      %v6408 = vsel %vm6344, %v500, -inf
      %v6409 = vsel %vm6345, %v503, -inf
      %v6410 = vsel %vm6346, %v508, -inf
      %v6411 = vsel %vm6347, %v511, -inf
      %v6412 = vsel %vm6348, %v516, -inf
      %v6413 = vsel %vm6349, %v519, -inf
      %v6414 = vsel %vm6350, %v524, -inf
      %v6415 = vsel %vm6351, %v527, -inf
      %v6416 = vsel %vm6352, %v532, -inf
      %v6417 = vsel %vm6353, %v535, -inf
      %v6418 = vsel %vm6354, %v540, -inf
      %v6419 = vsel %vm6355, %v543, -inf
      %v6420 = vsel %vm6356, %v548, -inf
      %v6421 = vsel %vm6357, %v551, -inf
      %v6422 = vsel %vm6358, %v556, -inf
      %v6423 = vsel %vm6359, %v559, -inf
      %v6424 = vsel %vm6360, %v564, -inf
      %v6425 = vsel %vm6361, %v567, -inf
      %v6426 = vsel %vm6362, %v572, -inf
      %v6427 = vsel %vm6363, %v575, -inf
      %v6428 = vsel %vm6364, %v580, -inf
      %v6429 = vsel %vm6365, %v583, -inf
      %v6430 = vsel %vm6366, %v588, -inf
      %v6431 = vsel %vm6367, %v591, -inf
      %v6432 = vsel %vm6368, %v596, -inf
      %v6433 = vsel %vm6369, %v599, -inf
      %v6434 = vsel %vm6370, %v604, -inf
      %v6435 = vsel %vm6371, %v607, -inf
      %v6436 = vsel %vm6372, %v612, -inf
      %v6437 = vsel %vm6373, %v615, -inf
      %v6438 = vsel %vm6374, %v620, -inf
      %v6439 = vsel %vm6375, %v623, -inf
      %v6440 = vsel %vm6376, %v628, -inf
      %v6441 = vsel %vm6377, %v631, -inf
      %v6442 = vsel %vm6378, %v636, -inf
      %v6443 = vsel %vm6379, %v639, -inf
      %v6444 = vsel %vm6380, %v644, -inf
      %v6445 = vsel %vm6381, %v647, -inf
      %v6446 = vsel %vm6382, %v652, -inf
      %v6447 = vsel %vm6383, %v655, -inf
      %v6448 = vsel %vm6384, %v660, -inf
      %v6449 = vsel %vm6385, %v663, -inf
      %v6450 = vsel %vm6386, %v668, -inf
      %v6451 = vsel %vm6387, %v671, -inf
      %v6452 = vsel %vm6388, %v676, -inf
      %v6453 = vsel %vm6389, %v679, -inf
      %v6454 = vsel %vm6390, %v684, -inf
      %v6455 = vsel %vm6391, %v687, -inf
      %v6456 = vsel %vm6392, %v692, -inf
      %v6457 = vsel %vm6393, %v695, -inf
      %v6458 = vsel %vm6394, %v700, -inf
      %v6459 = vsel %vm6395, %v703, -inf
      %v6460 = vsel %vm6396, %v708, -inf
      %v6461 = vsel %vm6397, %v711, -inf
      %v6462 = vmax.f32 %v6398, %v6402
      %v6463 = vmax.f32 %v6399, %v6403
      %v6464 = vmax.f32 %v6400, %v6404
      %v6465 = vmax.f32 %v6401, %v6405
      %v6466 = vmax.f32 %v6462, %v6406
      %v6467 = vmax.f32 %v6463, %v6407
      %v6468 = vmax.f32 %v6464, %v6408
      %v6469 = vmax.f32 %v6465, %v6409
      %v6470 = vmax.f32 %v6466, %v6410
      %v6471 = vmax.f32 %v6467, %v6411
      %v6472 = vmax.f32 %v6468, %v6412
      %v6473 = vmax.f32 %v6469, %v6413
      %v6474 = vmax.f32 %v6470, %v6414
      %v6475 = vmax.f32 %v6471, %v6415
      %v6476 = vmax.f32 %v6472, %v6416
      %v6477 = vmax.f32 %v6473, %v6417
      %v6478 = vmax.f32 %v6474, %v6418
      %v6479 = vmax.f32 %v6475, %v6419
      %v6480 = vmax.f32 %v6476, %v6420
      %v6481 = vmax.f32 %v6477, %v6421
      %v6482 = vmax.f32 %v6478, %v6422
      %v6483 = vmax.f32 %v6479, %v6423
      %v6484 = vmax.f32 %v6480, %v6424
      %v6485 = vmax.f32 %v6481, %v6425
      %v6486 = vmax.f32 %v6482, %v6426
      %v6487 = vmax.f32 %v6483, %v6427
      %v6488 = vmax.f32 %v6484, %v6428
      %v6489 = vmax.f32 %v6485, %v6429
      %v6490 = vmax.f32 %v6486, %v6430
      %v6491 = vmax.f32 %v6487, %v6431
      %v6492 = vmax.f32 %v6488, %v6432
      %v6493 = vmax.f32 %v6489, %v6433
      %v6494 = vmax.f32 %v6490, %v6434
      %v6495 = vmax.f32 %v6491, %v6435
      %v6496 = vmax.f32 %v6492, %v6436
      %v6497 = vmax.f32 %v6493, %v6437
      %v6498 = vmax.f32 %v6494, %v6438
      %v6499 = vmax.f32 %v6495, %v6439
      %v6500 = vmax.f32 %v6496, %v6440
      %v6501 = vmax.f32 %v6497, %v6441
      %v6502 = vmax.f32 %v6498, %v6442
      %v6503 = vmax.f32 %v6499, %v6443
      %v6504 = vmax.f32 %v6500, %v6444
      %v6505 = vmax.f32 %v6501, %v6445
      %v6506 = vmax.f32 %v6502, %v6446
      %v6507 = vmax.f32 %v6503, %v6447
      %v6508 = vmax.f32 %v6504, %v6448
      %v6509 = vmax.f32 %v6505, %v6449
      %v6510 = vmax.f32 %v6506, %v6450
      %v6511 = vmax.f32 %v6507, %v6451
      %v6512 = vmax.f32 %v6508, %v6452
      %v6513 = vmax.f32 %v6509, %v6453
      %v6514 = vmax.f32 %v6510, %v6454
      %v6515 = vmax.f32 %v6511, %v6455
      %v6516 = vmax.f32 %v6512, %v6456
      %v6517 = vmax.f32 %v6513, %v6457
      %v6518 = vmax.f32 %v6514, %v6458
      %v6519 = vmax.f32 %v6515, %v6459
      %v6520 = vmax.f32 %v6516, %v6460
      %v6521 = vmax.f32 %v6517, %v6461
      %v6522 = vmax.f32 %v6518, %v6519
      %v6523 = vmax.f32 %v6520, %v6521
      %v6524 = vmax.f32 %v6522, %v6523
      %v6525 = vrot.slane %v6524, 4
      %v6526 = vmax.f32 %v6524, %v6525
      %v6527 = vrot.slane %v6526, 2
      %v6528 = vmax.f32 %v6526, %v6527
      %v6529 = vrot.slane %v6528, 1
      %v6530 = vmax.f32 %v6528, %v6529
      %vm6531 = vcmp.eq.s32.totalorder %v780, 11
      %vm6532 = vcmp.eq.s32.totalorder %v781, 11
      %vm6533 = vcmp.eq.s32.totalorder %v782, 11
      %vm6534 = vcmp.eq.s32.totalorder %v783, 11
      %vm6535 = vcmp.eq.s32.totalorder %v784, 11
      %vm6536 = vcmp.eq.s32.totalorder %v785, 11
      %vm6537 = vcmp.eq.s32.totalorder %v786, 11
      %vm6538 = vcmp.eq.s32.totalorder %v787, 11
      %vm6539 = vcmp.eq.s32.totalorder %v788, 11
      %vm6540 = vcmp.eq.s32.totalorder %v789, 11
      %vm6541 = vcmp.eq.s32.totalorder %v790, 11
      %vm6542 = vcmp.eq.s32.totalorder %v791, 11
      %vm6543 = vcmp.eq.s32.totalorder %v792, 11
      %vm6544 = vcmp.eq.s32.totalorder %v793, 11
      %vm6545 = vcmp.eq.s32.totalorder %v794, 11
      %vm6546 = vcmp.eq.s32.totalorder %v795, 11
      %vm6547 = vcmp.eq.s32.totalorder %v796, 11
      %vm6548 = vcmp.eq.s32.totalorder %v797, 11
      %vm6549 = vcmp.eq.s32.totalorder %v798, 11
      %vm6550 = vcmp.eq.s32.totalorder %v799, 11
      %vm6551 = vcmp.eq.s32.totalorder %v800, 11
      %vm6552 = vcmp.eq.s32.totalorder %v801, 11
      %vm6553 = vcmp.eq.s32.totalorder %v802, 11
      %vm6554 = vcmp.eq.s32.totalorder %v803, 11
      %vm6555 = vcmp.eq.s32.totalorder %v804, 11
      %vm6556 = vcmp.eq.s32.totalorder %v805, 11
      %vm6557 = vcmp.eq.s32.totalorder %v806, 11
      %vm6558 = vcmp.eq.s32.totalorder %v807, 11
      %vm6559 = vcmp.eq.s32.totalorder %v808, 11
      %vm6560 = vcmp.eq.s32.totalorder %v809, 11
      %vm6561 = vcmp.eq.s32.totalorder %v810, 11
      %vm6562 = vcmp.eq.s32.totalorder %v811, 11
      %vm6563 = vcmp.eq.s32.totalorder %v812, 11
      %vm6564 = vcmp.eq.s32.totalorder %v813, 11
      %vm6565 = vcmp.eq.s32.totalorder %v814, 11
      %vm6566 = vcmp.eq.s32.totalorder %v815, 11
      %vm6567 = vcmp.eq.s32.totalorder %v816, 11
      %vm6568 = vcmp.eq.s32.totalorder %v817, 11
      %vm6569 = vcmp.eq.s32.totalorder %v818, 11
      %vm6570 = vcmp.eq.s32.totalorder %v819, 11
      %vm6571 = vcmp.eq.s32.totalorder %v820, 11
      %vm6572 = vcmp.eq.s32.totalorder %v821, 11
      %vm6573 = vcmp.eq.s32.totalorder %v822, 11
      %vm6574 = vcmp.eq.s32.totalorder %v823, 11
      %vm6575 = vcmp.eq.s32.totalorder %v824, 11
      %vm6576 = vcmp.eq.s32.totalorder %v825, 11
      %vm6577 = vcmp.eq.s32.totalorder %v826, 11
      %vm6578 = vcmp.eq.s32.totalorder %v827, 11
      %vm6579 = vcmp.eq.s32.totalorder %v828, 11
      %vm6580 = vcmp.eq.s32.totalorder %v829, 11
      %vm6581 = vcmp.eq.s32.totalorder %v830, 11
      %vm6582 = vcmp.eq.s32.totalorder %v831, 11
      %vm6583 = vcmp.eq.s32.totalorder %v832, 11
      %vm6584 = vcmp.eq.s32.totalorder %v833, 11
      %vm6585 = vcmp.eq.s32.totalorder %v834, 11
      %vm6586 = vcmp.eq.s32.totalorder %v835, 11
      %vm6587 = vcmp.eq.s32.totalorder %v836, 11
      %vm6588 = vcmp.eq.s32.totalorder %v837, 11
      %vm6589 = vcmp.eq.s32.totalorder %v838, 11
      %vm6590 = vcmp.eq.s32.totalorder %v839, 11
      %vm6591 = vcmp.eq.s32.totalorder %v840, 11
      %vm6592 = vcmp.eq.s32.totalorder %v841, 11
      %vm6593 = vcmp.eq.s32.totalorder %v842, 11
      %vm6594 = vcmp.eq.s32.totalorder %v843, 11
      %v6595 = vsel %vm6531, 1, 0
      %v6596 = vsel %vm6532, 1, 0
      %v6597 = vsel %vm6533, 1, 0
      %v6598 = vsel %vm6534, 1, 0
      %v6599 = vsel %vm6535, 1, 0
      %v6600 = vsel %vm6536, 1, 0
      %v6601 = vsel %vm6537, 1, 0
      %v6602 = vsel %vm6538, 1, 0
      %v6603 = vsel %vm6539, 1, 0
      %v6604 = vsel %vm6540, 1, 0
      %v6605 = vsel %vm6541, 1, 0
      %v6606 = vsel %vm6542, 1, 0
      %v6607 = vsel %vm6543, 1, 0
      %v6608 = vsel %vm6544, 1, 0
      %v6609 = vsel %vm6545, 1, 0
      %v6610 = vsel %vm6546, 1, 0
      %v6611 = vsel %vm6547, 1, 0
      %v6612 = vsel %vm6548, 1, 0
      %v6613 = vsel %vm6549, 1, 0
      %v6614 = vsel %vm6550, 1, 0
      %v6615 = vsel %vm6551, 1, 0
      %v6616 = vsel %vm6552, 1, 0
      %v6617 = vsel %vm6553, 1, 0
      %v6618 = vsel %vm6554, 1, 0
      %v6619 = vsel %vm6555, 1, 0
      %v6620 = vsel %vm6556, 1, 0
      %v6621 = vsel %vm6557, 1, 0
      %v6622 = vsel %vm6558, 1, 0
      %v6623 = vsel %vm6559, 1, 0
      %v6624 = vsel %vm6560, 1, 0
      %v6625 = vsel %vm6561, 1, 0
      %v6626 = vsel %vm6562, 1, 0
      %v6627 = vsel %vm6563, 1, 0
      %v6628 = vsel %vm6564, 1, 0
      %v6629 = vsel %vm6565, 1, 0
      %v6630 = vsel %vm6566, 1, 0
      %v6631 = vsel %vm6567, 1, 0
      %v6632 = vsel %vm6568, 1, 0
      %v6633 = vsel %vm6569, 1, 0
      %v6634 = vsel %vm6570, 1, 0
      %v6635 = vsel %vm6571, 1, 0
      %v6636 = vsel %vm6572, 1, 0
      %v6637 = vsel %vm6573, 1, 0
      %v6638 = vsel %vm6574, 1, 0
      %v6639 = vsel %vm6575, 1, 0
      %v6640 = vsel %vm6576, 1, 0
      %v6641 = vsel %vm6577, 1, 0
      %v6642 = vsel %vm6578, 1, 0
      %v6643 = vsel %vm6579, 1, 0
      %v6644 = vsel %vm6580, 1, 0
      %v6645 = vsel %vm6581, 1, 0
      %v6646 = vsel %vm6582, 1, 0
      %v6647 = vsel %vm6583, 1, 0
      %v6648 = vsel %vm6584, 1, 0
      %v6649 = vsel %vm6585, 1, 0
      %v6650 = vsel %vm6586, 1, 0
      %v6651 = vsel %vm6587, 1, 0
      %v6652 = vsel %vm6588, 1, 0
      %v6653 = vsel %vm6589, 1, 0
      %v6654 = vsel %vm6590, 1, 0
      %v6655 = vsel %vm6591, 1, 0
      %v6656 = vsel %vm6592, 1, 0
      %v6657 = vsel %vm6593, 1, 0
      %v6658 = vsel %vm6594, 1, 0
      %6659 = vset.pattern.permute.xlu0 0
      %6660 = vperm.xlu0 %6659, %v6595
      %v6661 = vpop.permute.xlu0 %6660
      %6662 = vset.pattern.permute.xlu0 0
      %6663 = vperm.xlu0 %6662, %v6596
      %v6664 = vpop.permute.xlu0 %6663
      %6665 = vset.pattern.permute.xlu0 0
      %6666 = vperm.xlu0 %6665, %v6597
      %v6667 = vpop.permute.xlu0 %6666
      %6668 = vset.pattern.permute.xlu0 0
      %6669 = vperm.xlu0 %6668, %v6598
      %v6670 = vpop.permute.xlu0 %6669
      %6671 = vset.pattern.permute.xlu0 0
      %6672 = vperm.xlu0 %6671, %v6599
      %v6673 = vpop.permute.xlu0 %6672
      %6674 = vset.pattern.permute.xlu0 0
      %6675 = vperm.xlu0 %6674, %v6600
      %v6676 = vpop.permute.xlu0 %6675
      %6677 = vset.pattern.permute.xlu0 0
      %6678 = vperm.xlu0 %6677, %v6601
      %v6679 = vpop.permute.xlu0 %6678
      %6680 = vset.pattern.permute.xlu0 0
      %6681 = vperm.xlu0 %6680, %v6602
      %v6682 = vpop.permute.xlu0 %6681
      %6683 = vset.pattern.permute.xlu0 0
      %6684 = vperm.xlu0 %6683, %v6603
      %v6685 = vpop.permute.xlu0 %6684
      %6686 = vset.pattern.permute.xlu0 0
      %6687 = vperm.xlu0 %6686, %v6604
      %v6688 = vpop.permute.xlu0 %6687
      %6689 = vset.pattern.permute.xlu0 0
      %6690 = vperm.xlu0 %6689, %v6605
      %v6691 = vpop.permute.xlu0 %6690
      %6692 = vset.pattern.permute.xlu0 0
      %6693 = vperm.xlu0 %6692, %v6606
      %v6694 = vpop.permute.xlu0 %6693
      %6695 = vset.pattern.permute.xlu0 0
      %6696 = vperm.xlu0 %6695, %v6607
      %v6697 = vpop.permute.xlu0 %6696
      %6698 = vset.pattern.permute.xlu0 0
      %6699 = vperm.xlu0 %6698, %v6608
      %v6700 = vpop.permute.xlu0 %6699
      %6701 = vset.pattern.permute.xlu0 0
      %6702 = vperm.xlu0 %6701, %v6609
      %v6703 = vpop.permute.xlu0 %6702
      %6704 = vset.pattern.permute.xlu0 0
      %6705 = vperm.xlu0 %6704, %v6610
      %v6706 = vpop.permute.xlu0 %6705
      %6707 = vset.pattern.permute.xlu0 0
      %6708 = vperm.xlu0 %6707, %v6611
      %v6709 = vpop.permute.xlu0 %6708
      %6710 = vset.pattern.permute.xlu0 0
      %6711 = vperm.xlu0 %6710, %v6612
      %v6712 = vpop.permute.xlu0 %6711
      %6713 = vset.pattern.permute.xlu0 0
      %6714 = vperm.xlu0 %6713, %v6613
      %v6715 = vpop.permute.xlu0 %6714
      %6716 = vset.pattern.permute.xlu0 0
      %6717 = vperm.xlu0 %6716, %v6614
      %v6718 = vpop.permute.xlu0 %6717
      %6719 = vset.pattern.permute.xlu0 0
      %6720 = vperm.xlu0 %6719, %v6615
      %v6721 = vpop.permute.xlu0 %6720
      %6722 = vset.pattern.permute.xlu0 0
      %6723 = vperm.xlu0 %6722, %v6616
      %v6724 = vpop.permute.xlu0 %6723
      %6725 = vset.pattern.permute.xlu0 0
      %6726 = vperm.xlu0 %6725, %v6617
      %v6727 = vpop.permute.xlu0 %6726
      %6728 = vset.pattern.permute.xlu0 0
      %6729 = vperm.xlu0 %6728, %v6618
      %v6730 = vpop.permute.xlu0 %6729
      %6731 = vset.pattern.permute.xlu0 0
      %6732 = vperm.xlu0 %6731, %v6619
      %v6733 = vpop.permute.xlu0 %6732
      %6734 = vset.pattern.permute.xlu0 0
      %6735 = vperm.xlu0 %6734, %v6620
      %v6736 = vpop.permute.xlu0 %6735
      %6737 = vset.pattern.permute.xlu0 0
      %6738 = vperm.xlu0 %6737, %v6621
      %v6739 = vpop.permute.xlu0 %6738
      %6740 = vset.pattern.permute.xlu0 0
      %6741 = vperm.xlu0 %6740, %v6622
      %v6742 = vpop.permute.xlu0 %6741
      %6743 = vset.pattern.permute.xlu0 0
      %6744 = vperm.xlu0 %6743, %v6623
      %v6745 = vpop.permute.xlu0 %6744
      %6746 = vset.pattern.permute.xlu0 0
      %6747 = vperm.xlu0 %6746, %v6624
      %v6748 = vpop.permute.xlu0 %6747
      %6749 = vset.pattern.permute.xlu0 0
      %6750 = vperm.xlu0 %6749, %v6625
      %v6751 = vpop.permute.xlu0 %6750
      %6752 = vset.pattern.permute.xlu0 0
      %6753 = vperm.xlu0 %6752, %v6626
      %v6754 = vpop.permute.xlu0 %6753
      %6755 = vset.pattern.permute.xlu0 0
      %6756 = vperm.xlu0 %6755, %v6627
      %v6757 = vpop.permute.xlu0 %6756
      %6758 = vset.pattern.permute.xlu0 0
      %6759 = vperm.xlu0 %6758, %v6628
      %v6760 = vpop.permute.xlu0 %6759
      %6761 = vset.pattern.permute.xlu0 0
      %6762 = vperm.xlu0 %6761, %v6629
      %v6763 = vpop.permute.xlu0 %6762
      %6764 = vset.pattern.permute.xlu0 0
      %6765 = vperm.xlu0 %6764, %v6630
      %v6766 = vpop.permute.xlu0 %6765
      %6767 = vset.pattern.permute.xlu0 0
      %6768 = vperm.xlu0 %6767, %v6631
      %v6769 = vpop.permute.xlu0 %6768
      %6770 = vset.pattern.permute.xlu0 0
      %6771 = vperm.xlu0 %6770, %v6632
      %v6772 = vpop.permute.xlu0 %6771
      %6773 = vset.pattern.permute.xlu0 0
      %6774 = vperm.xlu0 %6773, %v6633
      %v6775 = vpop.permute.xlu0 %6774
      %6776 = vset.pattern.permute.xlu0 0
      %6777 = vperm.xlu0 %6776, %v6634
      %v6778 = vpop.permute.xlu0 %6777
      %6779 = vset.pattern.permute.xlu0 0
      %6780 = vperm.xlu0 %6779, %v6635
      %v6781 = vpop.permute.xlu0 %6780
      %6782 = vset.pattern.permute.xlu0 0
      %6783 = vperm.xlu0 %6782, %v6636
      %v6784 = vpop.permute.xlu0 %6783
      %6785 = vset.pattern.permute.xlu0 0
      %6786 = vperm.xlu0 %6785, %v6637
      %v6787 = vpop.permute.xlu0 %6786
      %6788 = vset.pattern.permute.xlu0 0
      %6789 = vperm.xlu0 %6788, %v6638
      %v6790 = vpop.permute.xlu0 %6789
      %6791 = vset.pattern.permute.xlu0 0
      %6792 = vperm.xlu0 %6791, %v6639
      %v6793 = vpop.permute.xlu0 %6792
      %6794 = vset.pattern.permute.xlu0 0
      %6795 = vperm.xlu0 %6794, %v6640
      %v6796 = vpop.permute.xlu0 %6795
      %6797 = vset.pattern.permute.xlu0 0
      %6798 = vperm.xlu0 %6797, %v6641
      %v6799 = vpop.permute.xlu0 %6798
      %6800 = vset.pattern.permute.xlu0 0
      %6801 = vperm.xlu0 %6800, %v6642
      %v6802 = vpop.permute.xlu0 %6801
      %6803 = vset.pattern.permute.xlu0 0
      %6804 = vperm.xlu0 %6803, %v6643
      %v6805 = vpop.permute.xlu0 %6804
      %6806 = vset.pattern.permute.xlu0 0
      %6807 = vperm.xlu0 %6806, %v6644
      %v6808 = vpop.permute.xlu0 %6807
      %6809 = vset.pattern.permute.xlu0 0
      %6810 = vperm.xlu0 %6809, %v6645
      %v6811 = vpop.permute.xlu0 %6810
      %6812 = vset.pattern.permute.xlu0 0
      %6813 = vperm.xlu0 %6812, %v6646
      %v6814 = vpop.permute.xlu0 %6813
      %6815 = vset.pattern.permute.xlu0 0
      %6816 = vperm.xlu0 %6815, %v6647
      %v6817 = vpop.permute.xlu0 %6816
      %6818 = vset.pattern.permute.xlu0 0
      %6819 = vperm.xlu0 %6818, %v6648
      %v6820 = vpop.permute.xlu0 %6819
      %6821 = vset.pattern.permute.xlu0 0
      %6822 = vperm.xlu0 %6821, %v6649
      %v6823 = vpop.permute.xlu0 %6822
      %6824 = vset.pattern.permute.xlu0 0
      %6825 = vperm.xlu0 %6824, %v6650
      %v6826 = vpop.permute.xlu0 %6825
      %6827 = vset.pattern.permute.xlu0 0
      %6828 = vperm.xlu0 %6827, %v6651
      %v6829 = vpop.permute.xlu0 %6828
      %6830 = vset.pattern.permute.xlu0 0
      %6831 = vperm.xlu0 %6830, %v6652
      %v6832 = vpop.permute.xlu0 %6831
      %6833 = vset.pattern.permute.xlu0 0
      %6834 = vperm.xlu0 %6833, %v6653
      %v6835 = vpop.permute.xlu0 %6834
      %6836 = vset.pattern.permute.xlu0 0
      %6837 = vperm.xlu0 %6836, %v6654
      %v6838 = vpop.permute.xlu0 %6837
      %6839 = vset.pattern.permute.xlu0 0
      %6840 = vperm.xlu0 %6839, %v6655
      %v6841 = vpop.permute.xlu0 %6840
      %6842 = vset.pattern.permute.xlu0 0
      %6843 = vperm.xlu0 %6842, %v6656
      %v6844 = vpop.permute.xlu0 %6843
      %6845 = vset.pattern.permute.xlu0 0
      %6846 = vperm.xlu0 %6845, %v6657
      %v6847 = vpop.permute.xlu0 %6846
      %6848 = vset.pattern.permute.xlu0 0
      %6849 = vperm.xlu0 %6848, %v6658
      %v6850 = vpop.permute.xlu0 %6849
      %vm6851 = vcmp.eq.s32.totalorder %v6661, 1
      %vm6852 = vcmp.eq.s32.totalorder %v6664, 1
      %vm6853 = vcmp.eq.s32.totalorder %v6667, 1
      %vm6854 = vcmp.eq.s32.totalorder %v6670, 1
      %vm6855 = vcmp.eq.s32.totalorder %v6673, 1
      %vm6856 = vcmp.eq.s32.totalorder %v6676, 1
      %vm6857 = vcmp.eq.s32.totalorder %v6679, 1
      %vm6858 = vcmp.eq.s32.totalorder %v6682, 1
      %vm6859 = vcmp.eq.s32.totalorder %v6685, 1
      %vm6860 = vcmp.eq.s32.totalorder %v6688, 1
      %vm6861 = vcmp.eq.s32.totalorder %v6691, 1
      %vm6862 = vcmp.eq.s32.totalorder %v6694, 1
      %vm6863 = vcmp.eq.s32.totalorder %v6697, 1
      %vm6864 = vcmp.eq.s32.totalorder %v6700, 1
      %vm6865 = vcmp.eq.s32.totalorder %v6703, 1
      %vm6866 = vcmp.eq.s32.totalorder %v6706, 1
      %vm6867 = vcmp.eq.s32.totalorder %v6709, 1
      %vm6868 = vcmp.eq.s32.totalorder %v6712, 1
      %vm6869 = vcmp.eq.s32.totalorder %v6715, 1
      %vm6870 = vcmp.eq.s32.totalorder %v6718, 1
      %vm6871 = vcmp.eq.s32.totalorder %v6721, 1
      %vm6872 = vcmp.eq.s32.totalorder %v6724, 1
      %vm6873 = vcmp.eq.s32.totalorder %v6727, 1
      %vm6874 = vcmp.eq.s32.totalorder %v6730, 1
      %vm6875 = vcmp.eq.s32.totalorder %v6733, 1
      %vm6876 = vcmp.eq.s32.totalorder %v6736, 1
      %vm6877 = vcmp.eq.s32.totalorder %v6739, 1
      %vm6878 = vcmp.eq.s32.totalorder %v6742, 1
      %vm6879 = vcmp.eq.s32.totalorder %v6745, 1
      %vm6880 = vcmp.eq.s32.totalorder %v6748, 1
      %vm6881 = vcmp.eq.s32.totalorder %v6751, 1
      %vm6882 = vcmp.eq.s32.totalorder %v6754, 1
      %vm6883 = vcmp.eq.s32.totalorder %v6757, 1
      %vm6884 = vcmp.eq.s32.totalorder %v6760, 1
      %vm6885 = vcmp.eq.s32.totalorder %v6763, 1
      %vm6886 = vcmp.eq.s32.totalorder %v6766, 1
      %vm6887 = vcmp.eq.s32.totalorder %v6769, 1
      %vm6888 = vcmp.eq.s32.totalorder %v6772, 1
      %vm6889 = vcmp.eq.s32.totalorder %v6775, 1
      %vm6890 = vcmp.eq.s32.totalorder %v6778, 1
      %vm6891 = vcmp.eq.s32.totalorder %v6781, 1
      %vm6892 = vcmp.eq.s32.totalorder %v6784, 1
      %vm6893 = vcmp.eq.s32.totalorder %v6787, 1
      %vm6894 = vcmp.eq.s32.totalorder %v6790, 1
      %vm6895 = vcmp.eq.s32.totalorder %v6793, 1
      %vm6896 = vcmp.eq.s32.totalorder %v6796, 1
      %vm6897 = vcmp.eq.s32.totalorder %v6799, 1
      %vm6898 = vcmp.eq.s32.totalorder %v6802, 1
      %vm6899 = vcmp.eq.s32.totalorder %v6805, 1
      %vm6900 = vcmp.eq.s32.totalorder %v6808, 1
      %vm6901 = vcmp.eq.s32.totalorder %v6811, 1
      %vm6902 = vcmp.eq.s32.totalorder %v6814, 1
      %vm6903 = vcmp.eq.s32.totalorder %v6817, 1
      %vm6904 = vcmp.eq.s32.totalorder %v6820, 1
      %vm6905 = vcmp.eq.s32.totalorder %v6823, 1
      %vm6906 = vcmp.eq.s32.totalorder %v6826, 1
      %vm6907 = vcmp.eq.s32.totalorder %v6829, 1
      %vm6908 = vcmp.eq.s32.totalorder %v6832, 1
      %vm6909 = vcmp.eq.s32.totalorder %v6835, 1
      %vm6910 = vcmp.eq.s32.totalorder %v6838, 1
      %vm6911 = vcmp.eq.s32.totalorder %v6841, 1
      %vm6912 = vcmp.eq.s32.totalorder %v6844, 1
      %vm6913 = vcmp.eq.s32.totalorder %v6847, 1
      %vm6914 = vcmp.eq.s32.totalorder %v6850, 1
      %v6915 = vsel %vm6851, %v460, -inf
      %v6916 = vsel %vm6852, %v463, -inf
      %v6917 = vsel %vm6853, %v468, -inf
      %v6918 = vsel %vm6854, %v471, -inf
      %v6919 = vsel %vm6855, %v476, -inf
      %v6920 = vsel %vm6856, %v479, -inf
      %v6921 = vsel %vm6857, %v484, -inf
      %v6922 = vsel %vm6858, %v487, -inf
      %v6923 = vsel %vm6859, %v492, -inf
      %v6924 = vsel %vm6860, %v495, -inf
      %v6925 = vsel %vm6861, %v500, -inf
      %v6926 = vsel %vm6862, %v503, -inf
      %v6927 = vsel %vm6863, %v508, -inf
      %v6928 = vsel %vm6864, %v511, -inf
      %v6929 = vsel %vm6865, %v516, -inf
      %v6930 = vsel %vm6866, %v519, -inf
      %v6931 = vsel %vm6867, %v524, -inf
      %v6932 = vsel %vm6868, %v527, -inf
      %v6933 = vsel %vm6869, %v532, -inf
      %v6934 = vsel %vm6870, %v535, -inf
      %v6935 = vsel %vm6871, %v540, -inf
      %v6936 = vsel %vm6872, %v543, -inf
      %v6937 = vsel %vm6873, %v548, -inf
      %v6938 = vsel %vm6874, %v551, -inf
      %v6939 = vsel %vm6875, %v556, -inf
      %v6940 = vsel %vm6876, %v559, -inf
      %v6941 = vsel %vm6877, %v564, -inf
      %v6942 = vsel %vm6878, %v567, -inf
      %v6943 = vsel %vm6879, %v572, -inf
      %v6944 = vsel %vm6880, %v575, -inf
      %v6945 = vsel %vm6881, %v580, -inf
      %v6946 = vsel %vm6882, %v583, -inf
      %v6947 = vsel %vm6883, %v588, -inf
      %v6948 = vsel %vm6884, %v591, -inf
      %v6949 = vsel %vm6885, %v596, -inf
      %v6950 = vsel %vm6886, %v599, -inf
      %v6951 = vsel %vm6887, %v604, -inf
      %v6952 = vsel %vm6888, %v607, -inf
      %v6953 = vsel %vm6889, %v612, -inf
      %v6954 = vsel %vm6890, %v615, -inf
      %v6955 = vsel %vm6891, %v620, -inf
      %v6956 = vsel %vm6892, %v623, -inf
      %v6957 = vsel %vm6893, %v628, -inf
      %v6958 = vsel %vm6894, %v631, -inf
      %v6959 = vsel %vm6895, %v636, -inf
      %v6960 = vsel %vm6896, %v639, -inf
      %v6961 = vsel %vm6897, %v644, -inf
      %v6962 = vsel %vm6898, %v647, -inf
      %v6963 = vsel %vm6899, %v652, -inf
      %v6964 = vsel %vm6900, %v655, -inf
      %v6965 = vsel %vm6901, %v660, -inf
      %v6966 = vsel %vm6902, %v663, -inf
      %v6967 = vsel %vm6903, %v668, -inf
      %v6968 = vsel %vm6904, %v671, -inf
      %v6969 = vsel %vm6905, %v676, -inf
      %v6970 = vsel %vm6906, %v679, -inf
      %v6971 = vsel %vm6907, %v684, -inf
      %v6972 = vsel %vm6908, %v687, -inf
      %v6973 = vsel %vm6909, %v692, -inf
      %v6974 = vsel %vm6910, %v695, -inf
      %v6975 = vsel %vm6911, %v700, -inf
      %v6976 = vsel %vm6912, %v703, -inf
      %v6977 = vsel %vm6913, %v708, -inf
      %v6978 = vsel %vm6914, %v711, -inf
      %v6979 = vmax.f32 %v6915, %v6919
      %v6980 = vmax.f32 %v6916, %v6920
      %v6981 = vmax.f32 %v6917, %v6921
      %v6982 = vmax.f32 %v6918, %v6922
      %v6983 = vmax.f32 %v6979, %v6923
      %v6984 = vmax.f32 %v6980, %v6924
      %v6985 = vmax.f32 %v6981, %v6925
      %v6986 = vmax.f32 %v6982, %v6926
      %v6987 = vmax.f32 %v6983, %v6927
      %v6988 = vmax.f32 %v6984, %v6928
      %v6989 = vmax.f32 %v6985, %v6929
      %v6990 = vmax.f32 %v6986, %v6930
      %v6991 = vmax.f32 %v6987, %v6931
      %v6992 = vmax.f32 %v6988, %v6932
      %v6993 = vmax.f32 %v6989, %v6933
      %v6994 = vmax.f32 %v6990, %v6934
      %v6995 = vmax.f32 %v6991, %v6935
      %v6996 = vmax.f32 %v6992, %v6936
      %v6997 = vmax.f32 %v6993, %v6937
      %v6998 = vmax.f32 %v6994, %v6938
      %v6999 = vmax.f32 %v6995, %v6939
      %v7000 = vmax.f32 %v6996, %v6940
      %v7001 = vmax.f32 %v6997, %v6941
      %v7002 = vmax.f32 %v6998, %v6942
      %v7003 = vmax.f32 %v6999, %v6943
      %v7004 = vmax.f32 %v7000, %v6944
      %v7005 = vmax.f32 %v7001, %v6945
      %v7006 = vmax.f32 %v7002, %v6946
      %v7007 = vmax.f32 %v7003, %v6947
      %v7008 = vmax.f32 %v7004, %v6948
      %v7009 = vmax.f32 %v7005, %v6949
      %v7010 = vmax.f32 %v7006, %v6950
      %v7011 = vmax.f32 %v7007, %v6951
      %v7012 = vmax.f32 %v7008, %v6952
      %v7013 = vmax.f32 %v7009, %v6953
      %v7014 = vmax.f32 %v7010, %v6954
      %v7015 = vmax.f32 %v7011, %v6955
      %v7016 = vmax.f32 %v7012, %v6956
      %v7017 = vmax.f32 %v7013, %v6957
      %v7018 = vmax.f32 %v7014, %v6958
      %v7019 = vmax.f32 %v7015, %v6959
      %v7020 = vmax.f32 %v7016, %v6960
      %v7021 = vmax.f32 %v7017, %v6961
      %v7022 = vmax.f32 %v7018, %v6962
      %v7023 = vmax.f32 %v7019, %v6963
      %v7024 = vmax.f32 %v7020, %v6964
      %v7025 = vmax.f32 %v7021, %v6965
      %v7026 = vmax.f32 %v7022, %v6966
      %v7027 = vmax.f32 %v7023, %v6967
      %v7028 = vmax.f32 %v7024, %v6968
      %v7029 = vmax.f32 %v7025, %v6969
      %v7030 = vmax.f32 %v7026, %v6970
      %v7031 = vmax.f32 %v7027, %v6971
      %v7032 = vmax.f32 %v7028, %v6972
      %v7033 = vmax.f32 %v7029, %v6973
      %v7034 = vmax.f32 %v7030, %v6974
      %v7035 = vmax.f32 %v7031, %v6975
      %v7036 = vmax.f32 %v7032, %v6976
      %v7037 = vmax.f32 %v7033, %v6977
      %v7038 = vmax.f32 %v7034, %v6978
      %v7039 = vmax.f32 %v7035, %v7036
      %v7040 = vmax.f32 %v7037, %v7038
      %v7041 = vmax.f32 %v7039, %v7040
      %v7042 = vrot.slane %v7041, 4
      %v7043 = vmax.f32 %v7041, %v7042
      %v7044 = vrot.slane %v7043, 2
      %v7045 = vmax.f32 %v7043, %v7044
      %v7046 = vrot.slane %v7045, 1
      %v7047 = vmax.f32 %v7045, %v7046
      %vm7048 = vcmp.eq.s32.totalorder %v780, 12
      %vm7049 = vcmp.eq.s32.totalorder %v781, 12
      %vm7050 = vcmp.eq.s32.totalorder %v782, 12
      %vm7051 = vcmp.eq.s32.totalorder %v783, 12
      %vm7052 = vcmp.eq.s32.totalorder %v784, 12
      %vm7053 = vcmp.eq.s32.totalorder %v785, 12
      %vm7054 = vcmp.eq.s32.totalorder %v786, 12
      %vm7055 = vcmp.eq.s32.totalorder %v787, 12
      %vm7056 = vcmp.eq.s32.totalorder %v788, 12
      %vm7057 = vcmp.eq.s32.totalorder %v789, 12
      %vm7058 = vcmp.eq.s32.totalorder %v790, 12
      %vm7059 = vcmp.eq.s32.totalorder %v791, 12
      %vm7060 = vcmp.eq.s32.totalorder %v792, 12
      %vm7061 = vcmp.eq.s32.totalorder %v793, 12
      %vm7062 = vcmp.eq.s32.totalorder %v794, 12
      %vm7063 = vcmp.eq.s32.totalorder %v795, 12
      %vm7064 = vcmp.eq.s32.totalorder %v796, 12
      %vm7065 = vcmp.eq.s32.totalorder %v797, 12
      %vm7066 = vcmp.eq.s32.totalorder %v798, 12
      %vm7067 = vcmp.eq.s32.totalorder %v799, 12
      %vm7068 = vcmp.eq.s32.totalorder %v800, 12
      %vm7069 = vcmp.eq.s32.totalorder %v801, 12
      %vm7070 = vcmp.eq.s32.totalorder %v802, 12
      %vm7071 = vcmp.eq.s32.totalorder %v803, 12
      %vm7072 = vcmp.eq.s32.totalorder %v804, 12
      %vm7073 = vcmp.eq.s32.totalorder %v805, 12
      %vm7074 = vcmp.eq.s32.totalorder %v806, 12
      %vm7075 = vcmp.eq.s32.totalorder %v807, 12
      %vm7076 = vcmp.eq.s32.totalorder %v808, 12
      %vm7077 = vcmp.eq.s32.totalorder %v809, 12
      %vm7078 = vcmp.eq.s32.totalorder %v810, 12
      %vm7079 = vcmp.eq.s32.totalorder %v811, 12
      %vm7080 = vcmp.eq.s32.totalorder %v812, 12
      %vm7081 = vcmp.eq.s32.totalorder %v813, 12
      %vm7082 = vcmp.eq.s32.totalorder %v814, 12
      %vm7083 = vcmp.eq.s32.totalorder %v815, 12
      %vm7084 = vcmp.eq.s32.totalorder %v816, 12
      %vm7085 = vcmp.eq.s32.totalorder %v817, 12
      %vm7086 = vcmp.eq.s32.totalorder %v818, 12
      %vm7087 = vcmp.eq.s32.totalorder %v819, 12
      %vm7088 = vcmp.eq.s32.totalorder %v820, 12
      %vm7089 = vcmp.eq.s32.totalorder %v821, 12
      %vm7090 = vcmp.eq.s32.totalorder %v822, 12
      %vm7091 = vcmp.eq.s32.totalorder %v823, 12
      %vm7092 = vcmp.eq.s32.totalorder %v824, 12
      %vm7093 = vcmp.eq.s32.totalorder %v825, 12
      %vm7094 = vcmp.eq.s32.totalorder %v826, 12
      %vm7095 = vcmp.eq.s32.totalorder %v827, 12
      %vm7096 = vcmp.eq.s32.totalorder %v828, 12
      %vm7097 = vcmp.eq.s32.totalorder %v829, 12
      %vm7098 = vcmp.eq.s32.totalorder %v830, 12
      %vm7099 = vcmp.eq.s32.totalorder %v831, 12
      %vm7100 = vcmp.eq.s32.totalorder %v832, 12
      %vm7101 = vcmp.eq.s32.totalorder %v833, 12
      %vm7102 = vcmp.eq.s32.totalorder %v834, 12
      %vm7103 = vcmp.eq.s32.totalorder %v835, 12
      %vm7104 = vcmp.eq.s32.totalorder %v836, 12
      %vm7105 = vcmp.eq.s32.totalorder %v837, 12
      %vm7106 = vcmp.eq.s32.totalorder %v838, 12
      %vm7107 = vcmp.eq.s32.totalorder %v839, 12
      %vm7108 = vcmp.eq.s32.totalorder %v840, 12
      %vm7109 = vcmp.eq.s32.totalorder %v841, 12
      %vm7110 = vcmp.eq.s32.totalorder %v842, 12
      %vm7111 = vcmp.eq.s32.totalorder %v843, 12
      %v7112 = vsel %vm7048, 1, 0
      %v7113 = vsel %vm7049, 1, 0
      %v7114 = vsel %vm7050, 1, 0
      %v7115 = vsel %vm7051, 1, 0
      %v7116 = vsel %vm7052, 1, 0
      %v7117 = vsel %vm7053, 1, 0
      %v7118 = vsel %vm7054, 1, 0
      %v7119 = vsel %vm7055, 1, 0
      %v7120 = vsel %vm7056, 1, 0
      %v7121 = vsel %vm7057, 1, 0
      %v7122 = vsel %vm7058, 1, 0
      %v7123 = vsel %vm7059, 1, 0
      %v7124 = vsel %vm7060, 1, 0
      %v7125 = vsel %vm7061, 1, 0
      %v7126 = vsel %vm7062, 1, 0
      %v7127 = vsel %vm7063, 1, 0
      %v7128 = vsel %vm7064, 1, 0
      %v7129 = vsel %vm7065, 1, 0
      %v7130 = vsel %vm7066, 1, 0
      %v7131 = vsel %vm7067, 1, 0
      %v7132 = vsel %vm7068, 1, 0
      %v7133 = vsel %vm7069, 1, 0
      %v7134 = vsel %vm7070, 1, 0
      %v7135 = vsel %vm7071, 1, 0
      %v7136 = vsel %vm7072, 1, 0
      %v7137 = vsel %vm7073, 1, 0
      %v7138 = vsel %vm7074, 1, 0
      %v7139 = vsel %vm7075, 1, 0
      %v7140 = vsel %vm7076, 1, 0
      %v7141 = vsel %vm7077, 1, 0
      %v7142 = vsel %vm7078, 1, 0
      %v7143 = vsel %vm7079, 1, 0
      %v7144 = vsel %vm7080, 1, 0
      %v7145 = vsel %vm7081, 1, 0
      %v7146 = vsel %vm7082, 1, 0
      %v7147 = vsel %vm7083, 1, 0
      %v7148 = vsel %vm7084, 1, 0
      %v7149 = vsel %vm7085, 1, 0
      %v7150 = vsel %vm7086, 1, 0
      %v7151 = vsel %vm7087, 1, 0
      %v7152 = vsel %vm7088, 1, 0
      %v7153 = vsel %vm7089, 1, 0
      %v7154 = vsel %vm7090, 1, 0
      %v7155 = vsel %vm7091, 1, 0
      %v7156 = vsel %vm7092, 1, 0
      %v7157 = vsel %vm7093, 1, 0
      %v7158 = vsel %vm7094, 1, 0
      %v7159 = vsel %vm7095, 1, 0
      %v7160 = vsel %vm7096, 1, 0
      %v7161 = vsel %vm7097, 1, 0
      %v7162 = vsel %vm7098, 1, 0
      %v7163 = vsel %vm7099, 1, 0
      %v7164 = vsel %vm7100, 1, 0
      %v7165 = vsel %vm7101, 1, 0
      %v7166 = vsel %vm7102, 1, 0
      %v7167 = vsel %vm7103, 1, 0
      %v7168 = vsel %vm7104, 1, 0
      %v7169 = vsel %vm7105, 1, 0
      %v7170 = vsel %vm7106, 1, 0
      %v7171 = vsel %vm7107, 1, 0
      %v7172 = vsel %vm7108, 1, 0
      %v7173 = vsel %vm7109, 1, 0
      %v7174 = vsel %vm7110, 1, 0
      %v7175 = vsel %vm7111, 1, 0
      %7176 = vset.pattern.permute.xlu0 0
      %7177 = vperm.xlu0 %7176, %v7112
      %v7178 = vpop.permute.xlu0 %7177
      %7179 = vset.pattern.permute.xlu0 0
      %7180 = vperm.xlu0 %7179, %v7113
      %v7181 = vpop.permute.xlu0 %7180
      %7182 = vset.pattern.permute.xlu0 0
      %7183 = vperm.xlu0 %7182, %v7114
      %v7184 = vpop.permute.xlu0 %7183
      %7185 = vset.pattern.permute.xlu0 0
      %7186 = vperm.xlu0 %7185, %v7115
      %v7187 = vpop.permute.xlu0 %7186
      %7188 = vset.pattern.permute.xlu0 0
      %7189 = vperm.xlu0 %7188, %v7116
      %v7190 = vpop.permute.xlu0 %7189
      %7191 = vset.pattern.permute.xlu0 0
      %7192 = vperm.xlu0 %7191, %v7117
      %v7193 = vpop.permute.xlu0 %7192
      %7194 = vset.pattern.permute.xlu0 0
      %7195 = vperm.xlu0 %7194, %v7118
      %v7196 = vpop.permute.xlu0 %7195
      %7197 = vset.pattern.permute.xlu0 0
      %7198 = vperm.xlu0 %7197, %v7119
      %v7199 = vpop.permute.xlu0 %7198
      %7200 = vset.pattern.permute.xlu0 0
      %7201 = vperm.xlu0 %7200, %v7120
      %v7202 = vpop.permute.xlu0 %7201
      %7203 = vset.pattern.permute.xlu0 0
      %7204 = vperm.xlu0 %7203, %v7121
      %v7205 = vpop.permute.xlu0 %7204
      %7206 = vset.pattern.permute.xlu0 0
      %7207 = vperm.xlu0 %7206, %v7122
      %v7208 = vpop.permute.xlu0 %7207
      %7209 = vset.pattern.permute.xlu0 0
      %7210 = vperm.xlu0 %7209, %v7123
      %v7211 = vpop.permute.xlu0 %7210
      %7212 = vset.pattern.permute.xlu0 0
      %7213 = vperm.xlu0 %7212, %v7124
      %v7214 = vpop.permute.xlu0 %7213
      %7215 = vset.pattern.permute.xlu0 0
      %7216 = vperm.xlu0 %7215, %v7125
      %v7217 = vpop.permute.xlu0 %7216
      %7218 = vset.pattern.permute.xlu0 0
      %7219 = vperm.xlu0 %7218, %v7126
      %v7220 = vpop.permute.xlu0 %7219
      %7221 = vset.pattern.permute.xlu0 0
      %7222 = vperm.xlu0 %7221, %v7127
      %v7223 = vpop.permute.xlu0 %7222
      %7224 = vset.pattern.permute.xlu0 0
      %7225 = vperm.xlu0 %7224, %v7128
      %v7226 = vpop.permute.xlu0 %7225
      %7227 = vset.pattern.permute.xlu0 0
      %7228 = vperm.xlu0 %7227, %v7129
      %v7229 = vpop.permute.xlu0 %7228
      %7230 = vset.pattern.permute.xlu0 0
      %7231 = vperm.xlu0 %7230, %v7130
      %v7232 = vpop.permute.xlu0 %7231
      %7233 = vset.pattern.permute.xlu0 0
      %7234 = vperm.xlu0 %7233, %v7131
      %v7235 = vpop.permute.xlu0 %7234
      %7236 = vset.pattern.permute.xlu0 0
      %7237 = vperm.xlu0 %7236, %v7132
      %v7238 = vpop.permute.xlu0 %7237
      %7239 = vset.pattern.permute.xlu0 0
      %7240 = vperm.xlu0 %7239, %v7133
      %v7241 = vpop.permute.xlu0 %7240
      %7242 = vset.pattern.permute.xlu0 0
      %7243 = vperm.xlu0 %7242, %v7134
      %v7244 = vpop.permute.xlu0 %7243
      %7245 = vset.pattern.permute.xlu0 0
      %7246 = vperm.xlu0 %7245, %v7135
      %v7247 = vpop.permute.xlu0 %7246
      %7248 = vset.pattern.permute.xlu0 0
      %7249 = vperm.xlu0 %7248, %v7136
      %v7250 = vpop.permute.xlu0 %7249
      %7251 = vset.pattern.permute.xlu0 0
      %7252 = vperm.xlu0 %7251, %v7137
      %v7253 = vpop.permute.xlu0 %7252
      %7254 = vset.pattern.permute.xlu0 0
      %7255 = vperm.xlu0 %7254, %v7138
      %v7256 = vpop.permute.xlu0 %7255
      %7257 = vset.pattern.permute.xlu0 0
      %7258 = vperm.xlu0 %7257, %v7139
      %v7259 = vpop.permute.xlu0 %7258
      %7260 = vset.pattern.permute.xlu0 0
      %7261 = vperm.xlu0 %7260, %v7140
      %v7262 = vpop.permute.xlu0 %7261
      %7263 = vset.pattern.permute.xlu0 0
      %7264 = vperm.xlu0 %7263, %v7141
      %v7265 = vpop.permute.xlu0 %7264
      %7266 = vset.pattern.permute.xlu0 0
      %7267 = vperm.xlu0 %7266, %v7142
      %v7268 = vpop.permute.xlu0 %7267
      %7269 = vset.pattern.permute.xlu0 0
      %7270 = vperm.xlu0 %7269, %v7143
      %v7271 = vpop.permute.xlu0 %7270
      %7272 = vset.pattern.permute.xlu0 0
      %7273 = vperm.xlu0 %7272, %v7144
      %v7274 = vpop.permute.xlu0 %7273
      %7275 = vset.pattern.permute.xlu0 0
      %7276 = vperm.xlu0 %7275, %v7145
      %v7277 = vpop.permute.xlu0 %7276
      %7278 = vset.pattern.permute.xlu0 0
      %7279 = vperm.xlu0 %7278, %v7146
      %v7280 = vpop.permute.xlu0 %7279
      %7281 = vset.pattern.permute.xlu0 0
      %7282 = vperm.xlu0 %7281, %v7147
      %v7283 = vpop.permute.xlu0 %7282
      %7284 = vset.pattern.permute.xlu0 0
      %7285 = vperm.xlu0 %7284, %v7148
      %v7286 = vpop.permute.xlu0 %7285
      %7287 = vset.pattern.permute.xlu0 0
      %7288 = vperm.xlu0 %7287, %v7149
      %v7289 = vpop.permute.xlu0 %7288
      %7290 = vset.pattern.permute.xlu0 0
      %7291 = vperm.xlu0 %7290, %v7150
      %v7292 = vpop.permute.xlu0 %7291
      %7293 = vset.pattern.permute.xlu0 0
      %7294 = vperm.xlu0 %7293, %v7151
      %v7295 = vpop.permute.xlu0 %7294
      %7296 = vset.pattern.permute.xlu0 0
      %7297 = vperm.xlu0 %7296, %v7152
      %v7298 = vpop.permute.xlu0 %7297
      %7299 = vset.pattern.permute.xlu0 0
      %7300 = vperm.xlu0 %7299, %v7153
      %v7301 = vpop.permute.xlu0 %7300
      %7302 = vset.pattern.permute.xlu0 0
      %7303 = vperm.xlu0 %7302, %v7154
      %v7304 = vpop.permute.xlu0 %7303
      %7305 = vset.pattern.permute.xlu0 0
      %7306 = vperm.xlu0 %7305, %v7155
      %v7307 = vpop.permute.xlu0 %7306
      %7308 = vset.pattern.permute.xlu0 0
      %7309 = vperm.xlu0 %7308, %v7156
      %v7310 = vpop.permute.xlu0 %7309
      %7311 = vset.pattern.permute.xlu0 0
      %7312 = vperm.xlu0 %7311, %v7157
      %v7313 = vpop.permute.xlu0 %7312
      %7314 = vset.pattern.permute.xlu0 0
      %7315 = vperm.xlu0 %7314, %v7158
      %v7316 = vpop.permute.xlu0 %7315
      %7317 = vset.pattern.permute.xlu0 0
      %7318 = vperm.xlu0 %7317, %v7159
      %v7319 = vpop.permute.xlu0 %7318
      %7320 = vset.pattern.permute.xlu0 0
      %7321 = vperm.xlu0 %7320, %v7160
      %v7322 = vpop.permute.xlu0 %7321
      %7323 = vset.pattern.permute.xlu0 0
      %7324 = vperm.xlu0 %7323, %v7161
      %v7325 = vpop.permute.xlu0 %7324
      %7326 = vset.pattern.permute.xlu0 0
      %7327 = vperm.xlu0 %7326, %v7162
      %v7328 = vpop.permute.xlu0 %7327
      %7329 = vset.pattern.permute.xlu0 0
      %7330 = vperm.xlu0 %7329, %v7163
      %v7331 = vpop.permute.xlu0 %7330
      %7332 = vset.pattern.permute.xlu0 0
      %7333 = vperm.xlu0 %7332, %v7164
      %v7334 = vpop.permute.xlu0 %7333
      %7335 = vset.pattern.permute.xlu0 0
      %7336 = vperm.xlu0 %7335, %v7165
      %v7337 = vpop.permute.xlu0 %7336
      %7338 = vset.pattern.permute.xlu0 0
      %7339 = vperm.xlu0 %7338, %v7166
      %v7340 = vpop.permute.xlu0 %7339
      %7341 = vset.pattern.permute.xlu0 0
      %7342 = vperm.xlu0 %7341, %v7167
      %v7343 = vpop.permute.xlu0 %7342
      %7344 = vset.pattern.permute.xlu0 0
      %7345 = vperm.xlu0 %7344, %v7168
      %v7346 = vpop.permute.xlu0 %7345
      %7347 = vset.pattern.permute.xlu0 0
      %7348 = vperm.xlu0 %7347, %v7169
      %v7349 = vpop.permute.xlu0 %7348
      %7350 = vset.pattern.permute.xlu0 0
      %7351 = vperm.xlu0 %7350, %v7170
      %v7352 = vpop.permute.xlu0 %7351
      %7353 = vset.pattern.permute.xlu0 0
      %7354 = vperm.xlu0 %7353, %v7171
      %v7355 = vpop.permute.xlu0 %7354
      %7356 = vset.pattern.permute.xlu0 0
      %7357 = vperm.xlu0 %7356, %v7172
      %v7358 = vpop.permute.xlu0 %7357
      %7359 = vset.pattern.permute.xlu0 0
      %7360 = vperm.xlu0 %7359, %v7173
      %v7361 = vpop.permute.xlu0 %7360
      %7362 = vset.pattern.permute.xlu0 0
      %7363 = vperm.xlu0 %7362, %v7174
      %v7364 = vpop.permute.xlu0 %7363
      %7365 = vset.pattern.permute.xlu0 0
      %7366 = vperm.xlu0 %7365, %v7175
      %v7367 = vpop.permute.xlu0 %7366
      %vm7368 = vcmp.eq.s32.totalorder %v7178, 1
      %vm7369 = vcmp.eq.s32.totalorder %v7181, 1
      %vm7370 = vcmp.eq.s32.totalorder %v7184, 1
      %vm7371 = vcmp.eq.s32.totalorder %v7187, 1
      %vm7372 = vcmp.eq.s32.totalorder %v7190, 1
      %vm7373 = vcmp.eq.s32.totalorder %v7193, 1
      %vm7374 = vcmp.eq.s32.totalorder %v7196, 1
      %vm7375 = vcmp.eq.s32.totalorder %v7199, 1
      %vm7376 = vcmp.eq.s32.totalorder %v7202, 1
      %vm7377 = vcmp.eq.s32.totalorder %v7205, 1
      %vm7378 = vcmp.eq.s32.totalorder %v7208, 1
      %vm7379 = vcmp.eq.s32.totalorder %v7211, 1
      %vm7380 = vcmp.eq.s32.totalorder %v7214, 1
      %vm7381 = vcmp.eq.s32.totalorder %v7217, 1
      %vm7382 = vcmp.eq.s32.totalorder %v7220, 1
      %vm7383 = vcmp.eq.s32.totalorder %v7223, 1
      %vm7384 = vcmp.eq.s32.totalorder %v7226, 1
      %vm7385 = vcmp.eq.s32.totalorder %v7229, 1
      %vm7386 = vcmp.eq.s32.totalorder %v7232, 1
      %vm7387 = vcmp.eq.s32.totalorder %v7235, 1
      %vm7388 = vcmp.eq.s32.totalorder %v7238, 1
      %vm7389 = vcmp.eq.s32.totalorder %v7241, 1
      %vm7390 = vcmp.eq.s32.totalorder %v7244, 1
      %vm7391 = vcmp.eq.s32.totalorder %v7247, 1
      %vm7392 = vcmp.eq.s32.totalorder %v7250, 1
      %vm7393 = vcmp.eq.s32.totalorder %v7253, 1
      %vm7394 = vcmp.eq.s32.totalorder %v7256, 1
      %vm7395 = vcmp.eq.s32.totalorder %v7259, 1
      %vm7396 = vcmp.eq.s32.totalorder %v7262, 1
      %vm7397 = vcmp.eq.s32.totalorder %v7265, 1
      %vm7398 = vcmp.eq.s32.totalorder %v7268, 1
      %vm7399 = vcmp.eq.s32.totalorder %v7271, 1
      %vm7400 = vcmp.eq.s32.totalorder %v7274, 1
      %vm7401 = vcmp.eq.s32.totalorder %v7277, 1
      %vm7402 = vcmp.eq.s32.totalorder %v7280, 1
      %vm7403 = vcmp.eq.s32.totalorder %v7283, 1
      %vm7404 = vcmp.eq.s32.totalorder %v7286, 1
      %vm7405 = vcmp.eq.s32.totalorder %v7289, 1
      %vm7406 = vcmp.eq.s32.totalorder %v7292, 1
      %vm7407 = vcmp.eq.s32.totalorder %v7295, 1
      %vm7408 = vcmp.eq.s32.totalorder %v7298, 1
      %vm7409 = vcmp.eq.s32.totalorder %v7301, 1
      %vm7410 = vcmp.eq.s32.totalorder %v7304, 1
      %vm7411 = vcmp.eq.s32.totalorder %v7307, 1
      %vm7412 = vcmp.eq.s32.totalorder %v7310, 1
      %vm7413 = vcmp.eq.s32.totalorder %v7313, 1
      %vm7414 = vcmp.eq.s32.totalorder %v7316, 1
      %vm7415 = vcmp.eq.s32.totalorder %v7319, 1
      %vm7416 = vcmp.eq.s32.totalorder %v7322, 1
      %vm7417 = vcmp.eq.s32.totalorder %v7325, 1
      %vm7418 = vcmp.eq.s32.totalorder %v7328, 1
      %vm7419 = vcmp.eq.s32.totalorder %v7331, 1
      %vm7420 = vcmp.eq.s32.totalorder %v7334, 1
      %vm7421 = vcmp.eq.s32.totalorder %v7337, 1
      %vm7422 = vcmp.eq.s32.totalorder %v7340, 1
      %vm7423 = vcmp.eq.s32.totalorder %v7343, 1
      %vm7424 = vcmp.eq.s32.totalorder %v7346, 1
      %vm7425 = vcmp.eq.s32.totalorder %v7349, 1
      %vm7426 = vcmp.eq.s32.totalorder %v7352, 1
      %vm7427 = vcmp.eq.s32.totalorder %v7355, 1
      %vm7428 = vcmp.eq.s32.totalorder %v7358, 1
      %vm7429 = vcmp.eq.s32.totalorder %v7361, 1
      %vm7430 = vcmp.eq.s32.totalorder %v7364, 1
      %vm7431 = vcmp.eq.s32.totalorder %v7367, 1
      %v7432 = vsel %vm7368, %v460, -inf
      %v7433 = vsel %vm7369, %v463, -inf
      %v7434 = vsel %vm7370, %v468, -inf
      %v7435 = vsel %vm7371, %v471, -inf
      %v7436 = vsel %vm7372, %v476, -inf
      %v7437 = vsel %vm7373, %v479, -inf
      %v7438 = vsel %vm7374, %v484, -inf
      %v7439 = vsel %vm7375, %v487, -inf
      %v7440 = vsel %vm7376, %v492, -inf
      %v7441 = vsel %vm7377, %v495, -inf
      %v7442 = vsel %vm7378, %v500, -inf
      %v7443 = vsel %vm7379, %v503, -inf
      %v7444 = vsel %vm7380, %v508, -inf
      %v7445 = vsel %vm7381, %v511, -inf
      %v7446 = vsel %vm7382, %v516, -inf
      %v7447 = vsel %vm7383, %v519, -inf
      %v7448 = vsel %vm7384, %v524, -inf
      %v7449 = vsel %vm7385, %v527, -inf
      %v7450 = vsel %vm7386, %v532, -inf
      %v7451 = vsel %vm7387, %v535, -inf
      %v7452 = vsel %vm7388, %v540, -inf
      %v7453 = vsel %vm7389, %v543, -inf
      %v7454 = vsel %vm7390, %v548, -inf
      %v7455 = vsel %vm7391, %v551, -inf
      %v7456 = vsel %vm7392, %v556, -inf
      %v7457 = vsel %vm7393, %v559, -inf
      %v7458 = vsel %vm7394, %v564, -inf
      %v7459 = vsel %vm7395, %v567, -inf
      %v7460 = vsel %vm7396, %v572, -inf
      %v7461 = vsel %vm7397, %v575, -inf
      %v7462 = vsel %vm7398, %v580, -inf
      %v7463 = vsel %vm7399, %v583, -inf
      %v7464 = vsel %vm7400, %v588, -inf
      %v7465 = vsel %vm7401, %v591, -inf
      %v7466 = vsel %vm7402, %v596, -inf
      %v7467 = vsel %vm7403, %v599, -inf
      %v7468 = vsel %vm7404, %v604, -inf
      %v7469 = vsel %vm7405, %v607, -inf
      %v7470 = vsel %vm7406, %v612, -inf
      %v7471 = vsel %vm7407, %v615, -inf
      %v7472 = vsel %vm7408, %v620, -inf
      %v7473 = vsel %vm7409, %v623, -inf
      %v7474 = vsel %vm7410, %v628, -inf
      %v7475 = vsel %vm7411, %v631, -inf
      %v7476 = vsel %vm7412, %v636, -inf
      %v7477 = vsel %vm7413, %v639, -inf
      %v7478 = vsel %vm7414, %v644, -inf
      %v7479 = vsel %vm7415, %v647, -inf
      %v7480 = vsel %vm7416, %v652, -inf
      %v7481 = vsel %vm7417, %v655, -inf
      %v7482 = vsel %vm7418, %v660, -inf
      %v7483 = vsel %vm7419, %v663, -inf
      %v7484 = vsel %vm7420, %v668, -inf
      %v7485 = vsel %vm7421, %v671, -inf
      %v7486 = vsel %vm7422, %v676, -inf
      %v7487 = vsel %vm7423, %v679, -inf
      %v7488 = vsel %vm7424, %v684, -inf
      %v7489 = vsel %vm7425, %v687, -inf
      %v7490 = vsel %vm7426, %v692, -inf
      %v7491 = vsel %vm7427, %v695, -inf
      %v7492 = vsel %vm7428, %v700, -inf
      %v7493 = vsel %vm7429, %v703, -inf
      %v7494 = vsel %vm7430, %v708, -inf
      %v7495 = vsel %vm7431, %v711, -inf
      %v7496 = vmax.f32 %v7432, %v7436
      %v7497 = vmax.f32 %v7433, %v7437
      %v7498 = vmax.f32 %v7434, %v7438
      %v7499 = vmax.f32 %v7435, %v7439
      %v7500 = vmax.f32 %v7496, %v7440
      %v7501 = vmax.f32 %v7497, %v7441
      %v7502 = vmax.f32 %v7498, %v7442
      %v7503 = vmax.f32 %v7499, %v7443
      %v7504 = vmax.f32 %v7500, %v7444
      %v7505 = vmax.f32 %v7501, %v7445
      %v7506 = vmax.f32 %v7502, %v7446
      %v7507 = vmax.f32 %v7503, %v7447
      %v7508 = vmax.f32 %v7504, %v7448
      %v7509 = vmax.f32 %v7505, %v7449
      %v7510 = vmax.f32 %v7506, %v7450
      %v7511 = vmax.f32 %v7507, %v7451
      %v7512 = vmax.f32 %v7508, %v7452
      %v7513 = vmax.f32 %v7509, %v7453
      %v7514 = vmax.f32 %v7510, %v7454
      %v7515 = vmax.f32 %v7511, %v7455
      %v7516 = vmax.f32 %v7512, %v7456
      %v7517 = vmax.f32 %v7513, %v7457
      %v7518 = vmax.f32 %v7514, %v7458
      %v7519 = vmax.f32 %v7515, %v7459
      %v7520 = vmax.f32 %v7516, %v7460
      %v7521 = vmax.f32 %v7517, %v7461
      %v7522 = vmax.f32 %v7518, %v7462
      %v7523 = vmax.f32 %v7519, %v7463
      %v7524 = vmax.f32 %v7520, %v7464
      %v7525 = vmax.f32 %v7521, %v7465
      %v7526 = vmax.f32 %v7522, %v7466
      %v7527 = vmax.f32 %v7523, %v7467
      %v7528 = vmax.f32 %v7524, %v7468
      %v7529 = vmax.f32 %v7525, %v7469
      %v7530 = vmax.f32 %v7526, %v7470
      %v7531 = vmax.f32 %v7527, %v7471
      %v7532 = vmax.f32 %v7528, %v7472
      %v7533 = vmax.f32 %v7529, %v7473
      %v7534 = vmax.f32 %v7530, %v7474
      %v7535 = vmax.f32 %v7531, %v7475
      %v7536 = vmax.f32 %v7532, %v7476
      %v7537 = vmax.f32 %v7533, %v7477
      %v7538 = vmax.f32 %v7534, %v7478
      %v7539 = vmax.f32 %v7535, %v7479
      %v7540 = vmax.f32 %v7536, %v7480
      %v7541 = vmax.f32 %v7537, %v7481
      %v7542 = vmax.f32 %v7538, %v7482
      %v7543 = vmax.f32 %v7539, %v7483
      %v7544 = vmax.f32 %v7540, %v7484
      %v7545 = vmax.f32 %v7541, %v7485
      %v7546 = vmax.f32 %v7542, %v7486
      %v7547 = vmax.f32 %v7543, %v7487
      %v7548 = vmax.f32 %v7544, %v7488
      %v7549 = vmax.f32 %v7545, %v7489
      %v7550 = vmax.f32 %v7546, %v7490
      %v7551 = vmax.f32 %v7547, %v7491
      %v7552 = vmax.f32 %v7548, %v7492
      %v7553 = vmax.f32 %v7549, %v7493
      %v7554 = vmax.f32 %v7550, %v7494
      %v7555 = vmax.f32 %v7551, %v7495
      %v7556 = vmax.f32 %v7552, %v7553
      %v7557 = vmax.f32 %v7554, %v7555
      %v7558 = vmax.f32 %v7556, %v7557
      %v7559 = vrot.slane %v7558, 4
      %v7560 = vmax.f32 %v7558, %v7559
      %v7561 = vrot.slane %v7560, 2
      %v7562 = vmax.f32 %v7560, %v7561
      %v7563 = vrot.slane %v7562, 1
      %v7564 = vmax.f32 %v7562, %v7563
      %vm7565 = vcmp.eq.s32.totalorder %v780, 13
      %vm7566 = vcmp.eq.s32.totalorder %v781, 13
      %vm7567 = vcmp.eq.s32.totalorder %v782, 13
      %vm7568 = vcmp.eq.s32.totalorder %v783, 13
      %vm7569 = vcmp.eq.s32.totalorder %v784, 13
      %vm7570 = vcmp.eq.s32.totalorder %v785, 13
      %vm7571 = vcmp.eq.s32.totalorder %v786, 13
      %vm7572 = vcmp.eq.s32.totalorder %v787, 13
      %vm7573 = vcmp.eq.s32.totalorder %v788, 13
      %vm7574 = vcmp.eq.s32.totalorder %v789, 13
      %vm7575 = vcmp.eq.s32.totalorder %v790, 13
      %vm7576 = vcmp.eq.s32.totalorder %v791, 13
      %vm7577 = vcmp.eq.s32.totalorder %v792, 13
      %vm7578 = vcmp.eq.s32.totalorder %v793, 13
      %vm7579 = vcmp.eq.s32.totalorder %v794, 13
      %vm7580 = vcmp.eq.s32.totalorder %v795, 13
      %vm7581 = vcmp.eq.s32.totalorder %v796, 13
      %vm7582 = vcmp.eq.s32.totalorder %v797, 13
      %vm7583 = vcmp.eq.s32.totalorder %v798, 13
      %vm7584 = vcmp.eq.s32.totalorder %v799, 13
      %vm7585 = vcmp.eq.s32.totalorder %v800, 13
      %vm7586 = vcmp.eq.s32.totalorder %v801, 13
      %vm7587 = vcmp.eq.s32.totalorder %v802, 13
      %vm7588 = vcmp.eq.s32.totalorder %v803, 13
      %vm7589 = vcmp.eq.s32.totalorder %v804, 13
      %vm7590 = vcmp.eq.s32.totalorder %v805, 13
      %vm7591 = vcmp.eq.s32.totalorder %v806, 13
      %vm7592 = vcmp.eq.s32.totalorder %v807, 13
      %vm7593 = vcmp.eq.s32.totalorder %v808, 13
      %vm7594 = vcmp.eq.s32.totalorder %v809, 13
      %vm7595 = vcmp.eq.s32.totalorder %v810, 13
      %vm7596 = vcmp.eq.s32.totalorder %v811, 13
      %vm7597 = vcmp.eq.s32.totalorder %v812, 13
      %vm7598 = vcmp.eq.s32.totalorder %v813, 13
      %vm7599 = vcmp.eq.s32.totalorder %v814, 13
      %vm7600 = vcmp.eq.s32.totalorder %v815, 13
      %vm7601 = vcmp.eq.s32.totalorder %v816, 13
      %vm7602 = vcmp.eq.s32.totalorder %v817, 13
      %vm7603 = vcmp.eq.s32.totalorder %v818, 13
      %vm7604 = vcmp.eq.s32.totalorder %v819, 13
      %vm7605 = vcmp.eq.s32.totalorder %v820, 13
      %vm7606 = vcmp.eq.s32.totalorder %v821, 13
      %vm7607 = vcmp.eq.s32.totalorder %v822, 13
      %vm7608 = vcmp.eq.s32.totalorder %v823, 13
      %vm7609 = vcmp.eq.s32.totalorder %v824, 13
      %vm7610 = vcmp.eq.s32.totalorder %v825, 13
      %vm7611 = vcmp.eq.s32.totalorder %v826, 13
      %vm7612 = vcmp.eq.s32.totalorder %v827, 13
      %vm7613 = vcmp.eq.s32.totalorder %v828, 13
      %vm7614 = vcmp.eq.s32.totalorder %v829, 13
      %vm7615 = vcmp.eq.s32.totalorder %v830, 13
      %vm7616 = vcmp.eq.s32.totalorder %v831, 13
      %vm7617 = vcmp.eq.s32.totalorder %v832, 13
      %vm7618 = vcmp.eq.s32.totalorder %v833, 13
      %vm7619 = vcmp.eq.s32.totalorder %v834, 13
      %vm7620 = vcmp.eq.s32.totalorder %v835, 13
      %vm7621 = vcmp.eq.s32.totalorder %v836, 13
      %vm7622 = vcmp.eq.s32.totalorder %v837, 13
      %vm7623 = vcmp.eq.s32.totalorder %v838, 13
      %vm7624 = vcmp.eq.s32.totalorder %v839, 13
      %vm7625 = vcmp.eq.s32.totalorder %v840, 13
      %vm7626 = vcmp.eq.s32.totalorder %v841, 13
      %vm7627 = vcmp.eq.s32.totalorder %v842, 13
      %vm7628 = vcmp.eq.s32.totalorder %v843, 13
      %v7629 = vsel %vm7565, 1, 0
      %v7630 = vsel %vm7566, 1, 0
      %v7631 = vsel %vm7567, 1, 0
      %v7632 = vsel %vm7568, 1, 0
      %v7633 = vsel %vm7569, 1, 0
      %v7634 = vsel %vm7570, 1, 0
      %v7635 = vsel %vm7571, 1, 0
      %v7636 = vsel %vm7572, 1, 0
      %v7637 = vsel %vm7573, 1, 0
      %v7638 = vsel %vm7574, 1, 0
      %v7639 = vsel %vm7575, 1, 0
      %v7640 = vsel %vm7576, 1, 0
      %v7641 = vsel %vm7577, 1, 0
      %v7642 = vsel %vm7578, 1, 0
      %v7643 = vsel %vm7579, 1, 0
      %v7644 = vsel %vm7580, 1, 0
      %v7645 = vsel %vm7581, 1, 0
      %v7646 = vsel %vm7582, 1, 0
      %v7647 = vsel %vm7583, 1, 0
      %v7648 = vsel %vm7584, 1, 0
      %v7649 = vsel %vm7585, 1, 0
      %v7650 = vsel %vm7586, 1, 0
      %v7651 = vsel %vm7587, 1, 0
      %v7652 = vsel %vm7588, 1, 0
      %v7653 = vsel %vm7589, 1, 0
      %v7654 = vsel %vm7590, 1, 0
      %v7655 = vsel %vm7591, 1, 0
      %v7656 = vsel %vm7592, 1, 0
      %v7657 = vsel %vm7593, 1, 0
      %v7658 = vsel %vm7594, 1, 0
      %v7659 = vsel %vm7595, 1, 0
      %v7660 = vsel %vm7596, 1, 0
      %v7661 = vsel %vm7597, 1, 0
      %v7662 = vsel %vm7598, 1, 0
      %v7663 = vsel %vm7599, 1, 0
      %v7664 = vsel %vm7600, 1, 0
      %v7665 = vsel %vm7601, 1, 0
      %v7666 = vsel %vm7602, 1, 0
      %v7667 = vsel %vm7603, 1, 0
      %v7668 = vsel %vm7604, 1, 0
      %v7669 = vsel %vm7605, 1, 0
      %v7670 = vsel %vm7606, 1, 0
      %v7671 = vsel %vm7607, 1, 0
      %v7672 = vsel %vm7608, 1, 0
      %v7673 = vsel %vm7609, 1, 0
      %v7674 = vsel %vm7610, 1, 0
      %v7675 = vsel %vm7611, 1, 0
      %v7676 = vsel %vm7612, 1, 0
      %v7677 = vsel %vm7613, 1, 0
      %v7678 = vsel %vm7614, 1, 0
      %v7679 = vsel %vm7615, 1, 0
      %v7680 = vsel %vm7616, 1, 0
      %v7681 = vsel %vm7617, 1, 0
      %v7682 = vsel %vm7618, 1, 0
      %v7683 = vsel %vm7619, 1, 0
      %v7684 = vsel %vm7620, 1, 0
      %v7685 = vsel %vm7621, 1, 0
      %v7686 = vsel %vm7622, 1, 0
      %v7687 = vsel %vm7623, 1, 0
      %v7688 = vsel %vm7624, 1, 0
      %v7689 = vsel %vm7625, 1, 0
      %v7690 = vsel %vm7626, 1, 0
      %v7691 = vsel %vm7627, 1, 0
      %v7692 = vsel %vm7628, 1, 0
      %7693 = vset.pattern.permute.xlu0 0
      %7694 = vperm.xlu0 %7693, %v7629
      %v7695 = vpop.permute.xlu0 %7694
      %7696 = vset.pattern.permute.xlu0 0
      %7697 = vperm.xlu0 %7696, %v7630
      %v7698 = vpop.permute.xlu0 %7697
      %7699 = vset.pattern.permute.xlu0 0
      %7700 = vperm.xlu0 %7699, %v7631
      %v7701 = vpop.permute.xlu0 %7700
      %7702 = vset.pattern.permute.xlu0 0
      %7703 = vperm.xlu0 %7702, %v7632
      %v7704 = vpop.permute.xlu0 %7703
      %7705 = vset.pattern.permute.xlu0 0
      %7706 = vperm.xlu0 %7705, %v7633
      %v7707 = vpop.permute.xlu0 %7706
      %7708 = vset.pattern.permute.xlu0 0
      %7709 = vperm.xlu0 %7708, %v7634
      %v7710 = vpop.permute.xlu0 %7709
      %7711 = vset.pattern.permute.xlu0 0
      %7712 = vperm.xlu0 %7711, %v7635
      %v7713 = vpop.permute.xlu0 %7712
      %7714 = vset.pattern.permute.xlu0 0
      %7715 = vperm.xlu0 %7714, %v7636
      %v7716 = vpop.permute.xlu0 %7715
      %7717 = vset.pattern.permute.xlu0 0
      %7718 = vperm.xlu0 %7717, %v7637
      %v7719 = vpop.permute.xlu0 %7718
      %7720 = vset.pattern.permute.xlu0 0
      %7721 = vperm.xlu0 %7720, %v7638
      %v7722 = vpop.permute.xlu0 %7721
      %7723 = vset.pattern.permute.xlu0 0
      %7724 = vperm.xlu0 %7723, %v7639
      %v7725 = vpop.permute.xlu0 %7724
      %7726 = vset.pattern.permute.xlu0 0
      %7727 = vperm.xlu0 %7726, %v7640
      %v7728 = vpop.permute.xlu0 %7727
      %7729 = vset.pattern.permute.xlu0 0
      %7730 = vperm.xlu0 %7729, %v7641
      %v7731 = vpop.permute.xlu0 %7730
      %7732 = vset.pattern.permute.xlu0 0
      %7733 = vperm.xlu0 %7732, %v7642
      %v7734 = vpop.permute.xlu0 %7733
      %7735 = vset.pattern.permute.xlu0 0
      %7736 = vperm.xlu0 %7735, %v7643
      %v7737 = vpop.permute.xlu0 %7736
      %7738 = vset.pattern.permute.xlu0 0
      %7739 = vperm.xlu0 %7738, %v7644
      %v7740 = vpop.permute.xlu0 %7739
      %7741 = vset.pattern.permute.xlu0 0
      %7742 = vperm.xlu0 %7741, %v7645
      %v7743 = vpop.permute.xlu0 %7742
      %7744 = vset.pattern.permute.xlu0 0
      %7745 = vperm.xlu0 %7744, %v7646
      %v7746 = vpop.permute.xlu0 %7745
      %7747 = vset.pattern.permute.xlu0 0
      %7748 = vperm.xlu0 %7747, %v7647
      %v7749 = vpop.permute.xlu0 %7748
      %7750 = vset.pattern.permute.xlu0 0
      %7751 = vperm.xlu0 %7750, %v7648
      %v7752 = vpop.permute.xlu0 %7751
      %7753 = vset.pattern.permute.xlu0 0
      %7754 = vperm.xlu0 %7753, %v7649
      %v7755 = vpop.permute.xlu0 %7754
      %7756 = vset.pattern.permute.xlu0 0
      %7757 = vperm.xlu0 %7756, %v7650
      %v7758 = vpop.permute.xlu0 %7757
      %7759 = vset.pattern.permute.xlu0 0
      %7760 = vperm.xlu0 %7759, %v7651
      %v7761 = vpop.permute.xlu0 %7760
      %7762 = vset.pattern.permute.xlu0 0
      %7763 = vperm.xlu0 %7762, %v7652
      %v7764 = vpop.permute.xlu0 %7763
      %7765 = vset.pattern.permute.xlu0 0
      %7766 = vperm.xlu0 %7765, %v7653
      %v7767 = vpop.permute.xlu0 %7766
      %7768 = vset.pattern.permute.xlu0 0
      %7769 = vperm.xlu0 %7768, %v7654
      %v7770 = vpop.permute.xlu0 %7769
      %7771 = vset.pattern.permute.xlu0 0
      %7772 = vperm.xlu0 %7771, %v7655
      %v7773 = vpop.permute.xlu0 %7772
      %7774 = vset.pattern.permute.xlu0 0
      %7775 = vperm.xlu0 %7774, %v7656
      %v7776 = vpop.permute.xlu0 %7775
      %7777 = vset.pattern.permute.xlu0 0
      %7778 = vperm.xlu0 %7777, %v7657
      %v7779 = vpop.permute.xlu0 %7778
      %7780 = vset.pattern.permute.xlu0 0
      %7781 = vperm.xlu0 %7780, %v7658
      %v7782 = vpop.permute.xlu0 %7781
      %7783 = vset.pattern.permute.xlu0 0
      %7784 = vperm.xlu0 %7783, %v7659
      %v7785 = vpop.permute.xlu0 %7784
      %7786 = vset.pattern.permute.xlu0 0
      %7787 = vperm.xlu0 %7786, %v7660
      %v7788 = vpop.permute.xlu0 %7787
      %7789 = vset.pattern.permute.xlu0 0
      %7790 = vperm.xlu0 %7789, %v7661
      %v7791 = vpop.permute.xlu0 %7790
      %7792 = vset.pattern.permute.xlu0 0
      %7793 = vperm.xlu0 %7792, %v7662
      %v7794 = vpop.permute.xlu0 %7793
      %7795 = vset.pattern.permute.xlu0 0
      %7796 = vperm.xlu0 %7795, %v7663
      %v7797 = vpop.permute.xlu0 %7796
      %7798 = vset.pattern.permute.xlu0 0
      %7799 = vperm.xlu0 %7798, %v7664
      %v7800 = vpop.permute.xlu0 %7799
      %7801 = vset.pattern.permute.xlu0 0
      %7802 = vperm.xlu0 %7801, %v7665
      %v7803 = vpop.permute.xlu0 %7802
      %7804 = vset.pattern.permute.xlu0 0
      %7805 = vperm.xlu0 %7804, %v7666
      %v7806 = vpop.permute.xlu0 %7805
      %7807 = vset.pattern.permute.xlu0 0
      %7808 = vperm.xlu0 %7807, %v7667
      %v7809 = vpop.permute.xlu0 %7808
      %7810 = vset.pattern.permute.xlu0 0
      %7811 = vperm.xlu0 %7810, %v7668
      %v7812 = vpop.permute.xlu0 %7811
      %7813 = vset.pattern.permute.xlu0 0
      %7814 = vperm.xlu0 %7813, %v7669
      %v7815 = vpop.permute.xlu0 %7814
      %7816 = vset.pattern.permute.xlu0 0
      %7817 = vperm.xlu0 %7816, %v7670
      %v7818 = vpop.permute.xlu0 %7817
      %7819 = vset.pattern.permute.xlu0 0
      %7820 = vperm.xlu0 %7819, %v7671
      %v7821 = vpop.permute.xlu0 %7820
      %7822 = vset.pattern.permute.xlu0 0
      %7823 = vperm.xlu0 %7822, %v7672
      %v7824 = vpop.permute.xlu0 %7823
      %7825 = vset.pattern.permute.xlu0 0
      %7826 = vperm.xlu0 %7825, %v7673
      %v7827 = vpop.permute.xlu0 %7826
      %7828 = vset.pattern.permute.xlu0 0
      %7829 = vperm.xlu0 %7828, %v7674
      %v7830 = vpop.permute.xlu0 %7829
      %7831 = vset.pattern.permute.xlu0 0
      %7832 = vperm.xlu0 %7831, %v7675
      %v7833 = vpop.permute.xlu0 %7832
      %7834 = vset.pattern.permute.xlu0 0
      %7835 = vperm.xlu0 %7834, %v7676
      %v7836 = vpop.permute.xlu0 %7835
      %7837 = vset.pattern.permute.xlu0 0
      %7838 = vperm.xlu0 %7837, %v7677
      %v7839 = vpop.permute.xlu0 %7838
      %7840 = vset.pattern.permute.xlu0 0
      %7841 = vperm.xlu0 %7840, %v7678
      %v7842 = vpop.permute.xlu0 %7841
      %7843 = vset.pattern.permute.xlu0 0
      %7844 = vperm.xlu0 %7843, %v7679
      %v7845 = vpop.permute.xlu0 %7844
      %7846 = vset.pattern.permute.xlu0 0
      %7847 = vperm.xlu0 %7846, %v7680
      %v7848 = vpop.permute.xlu0 %7847
      %7849 = vset.pattern.permute.xlu0 0
      %7850 = vperm.xlu0 %7849, %v7681
      %v7851 = vpop.permute.xlu0 %7850
      %7852 = vset.pattern.permute.xlu0 0
      %7853 = vperm.xlu0 %7852, %v7682
      %v7854 = vpop.permute.xlu0 %7853
      %7855 = vset.pattern.permute.xlu0 0
      %7856 = vperm.xlu0 %7855, %v7683
      %v7857 = vpop.permute.xlu0 %7856
      %7858 = vset.pattern.permute.xlu0 0
      %7859 = vperm.xlu0 %7858, %v7684
      %v7860 = vpop.permute.xlu0 %7859
      %7861 = vset.pattern.permute.xlu0 0
      %7862 = vperm.xlu0 %7861, %v7685
      %v7863 = vpop.permute.xlu0 %7862
      %7864 = vset.pattern.permute.xlu0 0
      %7865 = vperm.xlu0 %7864, %v7686
      %v7866 = vpop.permute.xlu0 %7865
      %7867 = vset.pattern.permute.xlu0 0
      %7868 = vperm.xlu0 %7867, %v7687
      %v7869 = vpop.permute.xlu0 %7868
      %7870 = vset.pattern.permute.xlu0 0
      %7871 = vperm.xlu0 %7870, %v7688
      %v7872 = vpop.permute.xlu0 %7871
      %7873 = vset.pattern.permute.xlu0 0
      %7874 = vperm.xlu0 %7873, %v7689
      %v7875 = vpop.permute.xlu0 %7874
      %7876 = vset.pattern.permute.xlu0 0
      %7877 = vperm.xlu0 %7876, %v7690
      %v7878 = vpop.permute.xlu0 %7877
      %7879 = vset.pattern.permute.xlu0 0
      %7880 = vperm.xlu0 %7879, %v7691
      %v7881 = vpop.permute.xlu0 %7880
      %7882 = vset.pattern.permute.xlu0 0
      %7883 = vperm.xlu0 %7882, %v7692
      %v7884 = vpop.permute.xlu0 %7883
      %vm7885 = vcmp.eq.s32.totalorder %v7695, 1
      %vm7886 = vcmp.eq.s32.totalorder %v7698, 1
      %vm7887 = vcmp.eq.s32.totalorder %v7701, 1
      %vm7888 = vcmp.eq.s32.totalorder %v7704, 1
      %vm7889 = vcmp.eq.s32.totalorder %v7707, 1
      %vm7890 = vcmp.eq.s32.totalorder %v7710, 1
      %vm7891 = vcmp.eq.s32.totalorder %v7713, 1
      %vm7892 = vcmp.eq.s32.totalorder %v7716, 1
      %vm7893 = vcmp.eq.s32.totalorder %v7719, 1
      %vm7894 = vcmp.eq.s32.totalorder %v7722, 1
      %vm7895 = vcmp.eq.s32.totalorder %v7725, 1
      %vm7896 = vcmp.eq.s32.totalorder %v7728, 1
      %vm7897 = vcmp.eq.s32.totalorder %v7731, 1
      %vm7898 = vcmp.eq.s32.totalorder %v7734, 1
      %vm7899 = vcmp.eq.s32.totalorder %v7737, 1
      %vm7900 = vcmp.eq.s32.totalorder %v7740, 1
      %vm7901 = vcmp.eq.s32.totalorder %v7743, 1
      %vm7902 = vcmp.eq.s32.totalorder %v7746, 1
      %vm7903 = vcmp.eq.s32.totalorder %v7749, 1
      %vm7904 = vcmp.eq.s32.totalorder %v7752, 1
      %vm7905 = vcmp.eq.s32.totalorder %v7755, 1
      %vm7906 = vcmp.eq.s32.totalorder %v7758, 1
      %vm7907 = vcmp.eq.s32.totalorder %v7761, 1
      %vm7908 = vcmp.eq.s32.totalorder %v7764, 1
      %vm7909 = vcmp.eq.s32.totalorder %v7767, 1
      %vm7910 = vcmp.eq.s32.totalorder %v7770, 1
      %vm7911 = vcmp.eq.s32.totalorder %v7773, 1
      %vm7912 = vcmp.eq.s32.totalorder %v7776, 1
      %vm7913 = vcmp.eq.s32.totalorder %v7779, 1
      %vm7914 = vcmp.eq.s32.totalorder %v7782, 1
      %vm7915 = vcmp.eq.s32.totalorder %v7785, 1
      %vm7916 = vcmp.eq.s32.totalorder %v7788, 1
      %vm7917 = vcmp.eq.s32.totalorder %v7791, 1
      %vm7918 = vcmp.eq.s32.totalorder %v7794, 1
      %vm7919 = vcmp.eq.s32.totalorder %v7797, 1
      %vm7920 = vcmp.eq.s32.totalorder %v7800, 1
      %vm7921 = vcmp.eq.s32.totalorder %v7803, 1
      %vm7922 = vcmp.eq.s32.totalorder %v7806, 1
      %vm7923 = vcmp.eq.s32.totalorder %v7809, 1
      %vm7924 = vcmp.eq.s32.totalorder %v7812, 1
      %vm7925 = vcmp.eq.s32.totalorder %v7815, 1
      %vm7926 = vcmp.eq.s32.totalorder %v7818, 1
      %vm7927 = vcmp.eq.s32.totalorder %v7821, 1
      %vm7928 = vcmp.eq.s32.totalorder %v7824, 1
      %vm7929 = vcmp.eq.s32.totalorder %v7827, 1
      %vm7930 = vcmp.eq.s32.totalorder %v7830, 1
      %vm7931 = vcmp.eq.s32.totalorder %v7833, 1
      %vm7932 = vcmp.eq.s32.totalorder %v7836, 1
      %vm7933 = vcmp.eq.s32.totalorder %v7839, 1
      %vm7934 = vcmp.eq.s32.totalorder %v7842, 1
      %vm7935 = vcmp.eq.s32.totalorder %v7845, 1
      %vm7936 = vcmp.eq.s32.totalorder %v7848, 1
      %vm7937 = vcmp.eq.s32.totalorder %v7851, 1
      %vm7938 = vcmp.eq.s32.totalorder %v7854, 1
      %vm7939 = vcmp.eq.s32.totalorder %v7857, 1
      %vm7940 = vcmp.eq.s32.totalorder %v7860, 1
      %vm7941 = vcmp.eq.s32.totalorder %v7863, 1
      %vm7942 = vcmp.eq.s32.totalorder %v7866, 1
      %vm7943 = vcmp.eq.s32.totalorder %v7869, 1
      %vm7944 = vcmp.eq.s32.totalorder %v7872, 1
      %vm7945 = vcmp.eq.s32.totalorder %v7875, 1
      %vm7946 = vcmp.eq.s32.totalorder %v7878, 1
      %vm7947 = vcmp.eq.s32.totalorder %v7881, 1
      %vm7948 = vcmp.eq.s32.totalorder %v7884, 1
      %v7949 = vsel %vm7885, %v460, -inf
      %v7950 = vsel %vm7886, %v463, -inf
      %v7951 = vsel %vm7887, %v468, -inf
      %v7952 = vsel %vm7888, %v471, -inf
      %v7953 = vsel %vm7889, %v476, -inf
      %v7954 = vsel %vm7890, %v479, -inf
      %v7955 = vsel %vm7891, %v484, -inf
      %v7956 = vsel %vm7892, %v487, -inf
      %v7957 = vsel %vm7893, %v492, -inf
      %v7958 = vsel %vm7894, %v495, -inf
      %v7959 = vsel %vm7895, %v500, -inf
      %v7960 = vsel %vm7896, %v503, -inf
      %v7961 = vsel %vm7897, %v508, -inf
      %v7962 = vsel %vm7898, %v511, -inf
      %v7963 = vsel %vm7899, %v516, -inf
      %v7964 = vsel %vm7900, %v519, -inf
      %v7965 = vsel %vm7901, %v524, -inf
      %v7966 = vsel %vm7902, %v527, -inf
      %v7967 = vsel %vm7903, %v532, -inf
      %v7968 = vsel %vm7904, %v535, -inf
      %v7969 = vsel %vm7905, %v540, -inf
      %v7970 = vsel %vm7906, %v543, -inf
      %v7971 = vsel %vm7907, %v548, -inf
      %v7972 = vsel %vm7908, %v551, -inf
      %v7973 = vsel %vm7909, %v556, -inf
      %v7974 = vsel %vm7910, %v559, -inf
      %v7975 = vsel %vm7911, %v564, -inf
      %v7976 = vsel %vm7912, %v567, -inf
      %v7977 = vsel %vm7913, %v572, -inf
      %v7978 = vsel %vm7914, %v575, -inf
      %v7979 = vsel %vm7915, %v580, -inf
      %v7980 = vsel %vm7916, %v583, -inf
      %v7981 = vsel %vm7917, %v588, -inf
      %v7982 = vsel %vm7918, %v591, -inf
      %v7983 = vsel %vm7919, %v596, -inf
      %v7984 = vsel %vm7920, %v599, -inf
      %v7985 = vsel %vm7921, %v604, -inf
      %v7986 = vsel %vm7922, %v607, -inf
      %v7987 = vsel %vm7923, %v612, -inf
      %v7988 = vsel %vm7924, %v615, -inf
      %v7989 = vsel %vm7925, %v620, -inf
      %v7990 = vsel %vm7926, %v623, -inf
      %v7991 = vsel %vm7927, %v628, -inf
      %v7992 = vsel %vm7928, %v631, -inf
      %v7993 = vsel %vm7929, %v636, -inf
      %v7994 = vsel %vm7930, %v639, -inf
      %v7995 = vsel %vm7931, %v644, -inf
      %v7996 = vsel %vm7932, %v647, -inf
      %v7997 = vsel %vm7933, %v652, -inf
      %v7998 = vsel %vm7934, %v655, -inf
      %v7999 = vsel %vm7935, %v660, -inf
      %v8000 = vsel %vm7936, %v663, -inf
      %v8001 = vsel %vm7937, %v668, -inf
      %v8002 = vsel %vm7938, %v671, -inf
      %v8003 = vsel %vm7939, %v676, -inf
      %v8004 = vsel %vm7940, %v679, -inf
      %v8005 = vsel %vm7941, %v684, -inf
      %v8006 = vsel %vm7942, %v687, -inf
      %v8007 = vsel %vm7943, %v692, -inf
      %v8008 = vsel %vm7944, %v695, -inf
      %v8009 = vsel %vm7945, %v700, -inf
      %v8010 = vsel %vm7946, %v703, -inf
      %v8011 = vsel %vm7947, %v708, -inf
      %v8012 = vsel %vm7948, %v711, -inf
      %v8013 = vmax.f32 %v7949, %v7953
      %v8014 = vmax.f32 %v7950, %v7954
      %v8015 = vmax.f32 %v7951, %v7955
      %v8016 = vmax.f32 %v7952, %v7956
      %v8017 = vmax.f32 %v8013, %v7957
      %v8018 = vmax.f32 %v8014, %v7958
      %v8019 = vmax.f32 %v8015, %v7959
      %v8020 = vmax.f32 %v8016, %v7960
      %v8021 = vmax.f32 %v8017, %v7961
      %v8022 = vmax.f32 %v8018, %v7962
      %v8023 = vmax.f32 %v8019, %v7963
      %v8024 = vmax.f32 %v8020, %v7964
      %v8025 = vmax.f32 %v8021, %v7965
      %v8026 = vmax.f32 %v8022, %v7966
      %v8027 = vmax.f32 %v8023, %v7967
      %v8028 = vmax.f32 %v8024, %v7968
      %v8029 = vmax.f32 %v8025, %v7969
      %v8030 = vmax.f32 %v8026, %v7970
      %v8031 = vmax.f32 %v8027, %v7971
      %v8032 = vmax.f32 %v8028, %v7972
      %v8033 = vmax.f32 %v8029, %v7973
      %v8034 = vmax.f32 %v8030, %v7974
      %v8035 = vmax.f32 %v8031, %v7975
      %v8036 = vmax.f32 %v8032, %v7976
      %v8037 = vmax.f32 %v8033, %v7977
      %v8038 = vmax.f32 %v8034, %v7978
      %v8039 = vmax.f32 %v8035, %v7979
      %v8040 = vmax.f32 %v8036, %v7980
      %v8041 = vmax.f32 %v8037, %v7981
      %v8042 = vmax.f32 %v8038, %v7982
      %v8043 = vmax.f32 %v8039, %v7983
      %v8044 = vmax.f32 %v8040, %v7984
      %v8045 = vmax.f32 %v8041, %v7985
      %v8046 = vmax.f32 %v8042, %v7986
      %v8047 = vmax.f32 %v8043, %v7987
      %v8048 = vmax.f32 %v8044, %v7988
      %v8049 = vmax.f32 %v8045, %v7989
      %v8050 = vmax.f32 %v8046, %v7990
      %v8051 = vmax.f32 %v8047, %v7991
      %v8052 = vmax.f32 %v8048, %v7992
      %v8053 = vmax.f32 %v8049, %v7993
      %v8054 = vmax.f32 %v8050, %v7994
      %v8055 = vmax.f32 %v8051, %v7995
      %v8056 = vmax.f32 %v8052, %v7996
      %v8057 = vmax.f32 %v8053, %v7997
      %v8058 = vmax.f32 %v8054, %v7998
      %v8059 = vmax.f32 %v8055, %v7999
      %v8060 = vmax.f32 %v8056, %v8000
      %v8061 = vmax.f32 %v8057, %v8001
      %v8062 = vmax.f32 %v8058, %v8002
      %v8063 = vmax.f32 %v8059, %v8003
      %v8064 = vmax.f32 %v8060, %v8004
      %v8065 = vmax.f32 %v8061, %v8005
      %v8066 = vmax.f32 %v8062, %v8006
      %v8067 = vmax.f32 %v8063, %v8007
      %v8068 = vmax.f32 %v8064, %v8008
      %v8069 = vmax.f32 %v8065, %v8009
      %v8070 = vmax.f32 %v8066, %v8010
      %v8071 = vmax.f32 %v8067, %v8011
      %v8072 = vmax.f32 %v8068, %v8012
      %v8073 = vmax.f32 %v8069, %v8070
      %v8074 = vmax.f32 %v8071, %v8072
      %v8075 = vmax.f32 %v8073, %v8074
      %v8076 = vrot.slane %v8075, 4
      %v8077 = vmax.f32 %v8075, %v8076
      %v8078 = vrot.slane %v8077, 2
      %v8079 = vmax.f32 %v8077, %v8078
      %v8080 = vrot.slane %v8079, 1
      %v8081 = vmax.f32 %v8079, %v8080
      %vm8082 = vcmp.eq.s32.totalorder %v780, 14
      %vm8083 = vcmp.eq.s32.totalorder %v781, 14
      %vm8084 = vcmp.eq.s32.totalorder %v782, 14
      %vm8085 = vcmp.eq.s32.totalorder %v783, 14
      %vm8086 = vcmp.eq.s32.totalorder %v784, 14
      %vm8087 = vcmp.eq.s32.totalorder %v785, 14
      %vm8088 = vcmp.eq.s32.totalorder %v786, 14
      %vm8089 = vcmp.eq.s32.totalorder %v787, 14
      %vm8090 = vcmp.eq.s32.totalorder %v788, 14
      %vm8091 = vcmp.eq.s32.totalorder %v789, 14
      %vm8092 = vcmp.eq.s32.totalorder %v790, 14
      %vm8093 = vcmp.eq.s32.totalorder %v791, 14
      %vm8094 = vcmp.eq.s32.totalorder %v792, 14
      %vm8095 = vcmp.eq.s32.totalorder %v793, 14
      %vm8096 = vcmp.eq.s32.totalorder %v794, 14
      %vm8097 = vcmp.eq.s32.totalorder %v795, 14
      %vm8098 = vcmp.eq.s32.totalorder %v796, 14
      %vm8099 = vcmp.eq.s32.totalorder %v797, 14
      %vm8100 = vcmp.eq.s32.totalorder %v798, 14
      %vm8101 = vcmp.eq.s32.totalorder %v799, 14
      %vm8102 = vcmp.eq.s32.totalorder %v800, 14
      %vm8103 = vcmp.eq.s32.totalorder %v801, 14
      %vm8104 = vcmp.eq.s32.totalorder %v802, 14
      %vm8105 = vcmp.eq.s32.totalorder %v803, 14
      %vm8106 = vcmp.eq.s32.totalorder %v804, 14
      %vm8107 = vcmp.eq.s32.totalorder %v805, 14
      %vm8108 = vcmp.eq.s32.totalorder %v806, 14
      %vm8109 = vcmp.eq.s32.totalorder %v807, 14
      %vm8110 = vcmp.eq.s32.totalorder %v808, 14
      %vm8111 = vcmp.eq.s32.totalorder %v809, 14
      %vm8112 = vcmp.eq.s32.totalorder %v810, 14
      %vm8113 = vcmp.eq.s32.totalorder %v811, 14
      %vm8114 = vcmp.eq.s32.totalorder %v812, 14
      %vm8115 = vcmp.eq.s32.totalorder %v813, 14
      %vm8116 = vcmp.eq.s32.totalorder %v814, 14
      %vm8117 = vcmp.eq.s32.totalorder %v815, 14
      %vm8118 = vcmp.eq.s32.totalorder %v816, 14
      %vm8119 = vcmp.eq.s32.totalorder %v817, 14
      %vm8120 = vcmp.eq.s32.totalorder %v818, 14
      %vm8121 = vcmp.eq.s32.totalorder %v819, 14
      %vm8122 = vcmp.eq.s32.totalorder %v820, 14
      %vm8123 = vcmp.eq.s32.totalorder %v821, 14
      %vm8124 = vcmp.eq.s32.totalorder %v822, 14
      %vm8125 = vcmp.eq.s32.totalorder %v823, 14
      %vm8126 = vcmp.eq.s32.totalorder %v824, 14
      %vm8127 = vcmp.eq.s32.totalorder %v825, 14
      %vm8128 = vcmp.eq.s32.totalorder %v826, 14
      %vm8129 = vcmp.eq.s32.totalorder %v827, 14
      %vm8130 = vcmp.eq.s32.totalorder %v828, 14
      %vm8131 = vcmp.eq.s32.totalorder %v829, 14
      %vm8132 = vcmp.eq.s32.totalorder %v830, 14
      %vm8133 = vcmp.eq.s32.totalorder %v831, 14
      %vm8134 = vcmp.eq.s32.totalorder %v832, 14
      %vm8135 = vcmp.eq.s32.totalorder %v833, 14
      %vm8136 = vcmp.eq.s32.totalorder %v834, 14
      %vm8137 = vcmp.eq.s32.totalorder %v835, 14
      %vm8138 = vcmp.eq.s32.totalorder %v836, 14
      %vm8139 = vcmp.eq.s32.totalorder %v837, 14
      %vm8140 = vcmp.eq.s32.totalorder %v838, 14
      %vm8141 = vcmp.eq.s32.totalorder %v839, 14
      %vm8142 = vcmp.eq.s32.totalorder %v840, 14
      %vm8143 = vcmp.eq.s32.totalorder %v841, 14
      %vm8144 = vcmp.eq.s32.totalorder %v842, 14
      %vm8145 = vcmp.eq.s32.totalorder %v843, 14
      %v8146 = vsel %vm8082, 1, 0
      %v8147 = vsel %vm8083, 1, 0
      %v8148 = vsel %vm8084, 1, 0
      %v8149 = vsel %vm8085, 1, 0
      %v8150 = vsel %vm8086, 1, 0
      %v8151 = vsel %vm8087, 1, 0
      %v8152 = vsel %vm8088, 1, 0
      %v8153 = vsel %vm8089, 1, 0
      %v8154 = vsel %vm8090, 1, 0
      %v8155 = vsel %vm8091, 1, 0
      %v8156 = vsel %vm8092, 1, 0
      %v8157 = vsel %vm8093, 1, 0
      %v8158 = vsel %vm8094, 1, 0
      %v8159 = vsel %vm8095, 1, 0
      %v8160 = vsel %vm8096, 1, 0
      %v8161 = vsel %vm8097, 1, 0
      %v8162 = vsel %vm8098, 1, 0
      %v8163 = vsel %vm8099, 1, 0
      %v8164 = vsel %vm8100, 1, 0
      %v8165 = vsel %vm8101, 1, 0
      %v8166 = vsel %vm8102, 1, 0
      %v8167 = vsel %vm8103, 1, 0
      %v8168 = vsel %vm8104, 1, 0
      %v8169 = vsel %vm8105, 1, 0
      %v8170 = vsel %vm8106, 1, 0
      %v8171 = vsel %vm8107, 1, 0
      %v8172 = vsel %vm8108, 1, 0
      %v8173 = vsel %vm8109, 1, 0
      %v8174 = vsel %vm8110, 1, 0
      %v8175 = vsel %vm8111, 1, 0
      %v8176 = vsel %vm8112, 1, 0
      %v8177 = vsel %vm8113, 1, 0
      %v8178 = vsel %vm8114, 1, 0
      %v8179 = vsel %vm8115, 1, 0
      %v8180 = vsel %vm8116, 1, 0
      %v8181 = vsel %vm8117, 1, 0
      %v8182 = vsel %vm8118, 1, 0
      %v8183 = vsel %vm8119, 1, 0
      %v8184 = vsel %vm8120, 1, 0
      %v8185 = vsel %vm8121, 1, 0
      %v8186 = vsel %vm8122, 1, 0
      %v8187 = vsel %vm8123, 1, 0
      %v8188 = vsel %vm8124, 1, 0
      %v8189 = vsel %vm8125, 1, 0
      %v8190 = vsel %vm8126, 1, 0
      %v8191 = vsel %vm8127, 1, 0
      %v8192 = vsel %vm8128, 1, 0
      %v8193 = vsel %vm8129, 1, 0
      %v8194 = vsel %vm8130, 1, 0
      %v8195 = vsel %vm8131, 1, 0
      %v8196 = vsel %vm8132, 1, 0
      %v8197 = vsel %vm8133, 1, 0
      %v8198 = vsel %vm8134, 1, 0
      %v8199 = vsel %vm8135, 1, 0
      %v8200 = vsel %vm8136, 1, 0
      %v8201 = vsel %vm8137, 1, 0
      %v8202 = vsel %vm8138, 1, 0
      %v8203 = vsel %vm8139, 1, 0
      %v8204 = vsel %vm8140, 1, 0
      %v8205 = vsel %vm8141, 1, 0
      %v8206 = vsel %vm8142, 1, 0
      %v8207 = vsel %vm8143, 1, 0
      %v8208 = vsel %vm8144, 1, 0
      %v8209 = vsel %vm8145, 1, 0
      %8210 = vset.pattern.permute.xlu0 0
      %8211 = vperm.xlu0 %8210, %v8146
      %v8212 = vpop.permute.xlu0 %8211
      %8213 = vset.pattern.permute.xlu0 0
      %8214 = vperm.xlu0 %8213, %v8147
      %v8215 = vpop.permute.xlu0 %8214
      %8216 = vset.pattern.permute.xlu0 0
      %8217 = vperm.xlu0 %8216, %v8148
      %v8218 = vpop.permute.xlu0 %8217
      %8219 = vset.pattern.permute.xlu0 0
      %8220 = vperm.xlu0 %8219, %v8149
      %v8221 = vpop.permute.xlu0 %8220
      %8222 = vset.pattern.permute.xlu0 0
      %8223 = vperm.xlu0 %8222, %v8150
      %v8224 = vpop.permute.xlu0 %8223
      %8225 = vset.pattern.permute.xlu0 0
      %8226 = vperm.xlu0 %8225, %v8151
      %v8227 = vpop.permute.xlu0 %8226
      %8228 = vset.pattern.permute.xlu0 0
      %8229 = vperm.xlu0 %8228, %v8152
      %v8230 = vpop.permute.xlu0 %8229
      %8231 = vset.pattern.permute.xlu0 0
      %8232 = vperm.xlu0 %8231, %v8153
      %v8233 = vpop.permute.xlu0 %8232
      %8234 = vset.pattern.permute.xlu0 0
      %8235 = vperm.xlu0 %8234, %v8154
      %v8236 = vpop.permute.xlu0 %8235
      %8237 = vset.pattern.permute.xlu0 0
      %8238 = vperm.xlu0 %8237, %v8155
      %v8239 = vpop.permute.xlu0 %8238
      %8240 = vset.pattern.permute.xlu0 0
      %8241 = vperm.xlu0 %8240, %v8156
      %v8242 = vpop.permute.xlu0 %8241
      %8243 = vset.pattern.permute.xlu0 0
      %8244 = vperm.xlu0 %8243, %v8157
      %v8245 = vpop.permute.xlu0 %8244
      %8246 = vset.pattern.permute.xlu0 0
      %8247 = vperm.xlu0 %8246, %v8158
      %v8248 = vpop.permute.xlu0 %8247
      %8249 = vset.pattern.permute.xlu0 0
      %8250 = vperm.xlu0 %8249, %v8159
      %v8251 = vpop.permute.xlu0 %8250
      %8252 = vset.pattern.permute.xlu0 0
      %8253 = vperm.xlu0 %8252, %v8160
      %v8254 = vpop.permute.xlu0 %8253
      %8255 = vset.pattern.permute.xlu0 0
      %8256 = vperm.xlu0 %8255, %v8161
      %v8257 = vpop.permute.xlu0 %8256
      %8258 = vset.pattern.permute.xlu0 0
      %8259 = vperm.xlu0 %8258, %v8162
      %v8260 = vpop.permute.xlu0 %8259
      %8261 = vset.pattern.permute.xlu0 0
      %8262 = vperm.xlu0 %8261, %v8163
      %v8263 = vpop.permute.xlu0 %8262
      %8264 = vset.pattern.permute.xlu0 0
      %8265 = vperm.xlu0 %8264, %v8164
      %v8266 = vpop.permute.xlu0 %8265
      %8267 = vset.pattern.permute.xlu0 0
      %8268 = vperm.xlu0 %8267, %v8165
      %v8269 = vpop.permute.xlu0 %8268
      %8270 = vset.pattern.permute.xlu0 0
      %8271 = vperm.xlu0 %8270, %v8166
      %v8272 = vpop.permute.xlu0 %8271
      %8273 = vset.pattern.permute.xlu0 0
      %8274 = vperm.xlu0 %8273, %v8167
      %v8275 = vpop.permute.xlu0 %8274
      %8276 = vset.pattern.permute.xlu0 0
      %8277 = vperm.xlu0 %8276, %v8168
      %v8278 = vpop.permute.xlu0 %8277
      %8279 = vset.pattern.permute.xlu0 0
      %8280 = vperm.xlu0 %8279, %v8169
      %v8281 = vpop.permute.xlu0 %8280
      %8282 = vset.pattern.permute.xlu0 0
      %8283 = vperm.xlu0 %8282, %v8170
      %v8284 = vpop.permute.xlu0 %8283
      %8285 = vset.pattern.permute.xlu0 0
      %8286 = vperm.xlu0 %8285, %v8171
      %v8287 = vpop.permute.xlu0 %8286
      %8288 = vset.pattern.permute.xlu0 0
      %8289 = vperm.xlu0 %8288, %v8172
      %v8290 = vpop.permute.xlu0 %8289
      %8291 = vset.pattern.permute.xlu0 0
      %8292 = vperm.xlu0 %8291, %v8173
      %v8293 = vpop.permute.xlu0 %8292
      %8294 = vset.pattern.permute.xlu0 0
      %8295 = vperm.xlu0 %8294, %v8174
      %v8296 = vpop.permute.xlu0 %8295
      %8297 = vset.pattern.permute.xlu0 0
      %8298 = vperm.xlu0 %8297, %v8175
      %v8299 = vpop.permute.xlu0 %8298
      %8300 = vset.pattern.permute.xlu0 0
      %8301 = vperm.xlu0 %8300, %v8176
      %v8302 = vpop.permute.xlu0 %8301
      %8303 = vset.pattern.permute.xlu0 0
      %8304 = vperm.xlu0 %8303, %v8177
      %v8305 = vpop.permute.xlu0 %8304
      %8306 = vset.pattern.permute.xlu0 0
      %8307 = vperm.xlu0 %8306, %v8178
      %v8308 = vpop.permute.xlu0 %8307
      %8309 = vset.pattern.permute.xlu0 0
      %8310 = vperm.xlu0 %8309, %v8179
      %v8311 = vpop.permute.xlu0 %8310
      %8312 = vset.pattern.permute.xlu0 0
      %8313 = vperm.xlu0 %8312, %v8180
      %v8314 = vpop.permute.xlu0 %8313
      %8315 = vset.pattern.permute.xlu0 0
      %8316 = vperm.xlu0 %8315, %v8181
      %v8317 = vpop.permute.xlu0 %8316
      %8318 = vset.pattern.permute.xlu0 0
      %8319 = vperm.xlu0 %8318, %v8182
      %v8320 = vpop.permute.xlu0 %8319
      %8321 = vset.pattern.permute.xlu0 0
      %8322 = vperm.xlu0 %8321, %v8183
      %v8323 = vpop.permute.xlu0 %8322
      %8324 = vset.pattern.permute.xlu0 0
      %8325 = vperm.xlu0 %8324, %v8184
      %v8326 = vpop.permute.xlu0 %8325
      %8327 = vset.pattern.permute.xlu0 0
      %8328 = vperm.xlu0 %8327, %v8185
      %v8329 = vpop.permute.xlu0 %8328
      %8330 = vset.pattern.permute.xlu0 0
      %8331 = vperm.xlu0 %8330, %v8186
      %v8332 = vpop.permute.xlu0 %8331
      %8333 = vset.pattern.permute.xlu0 0
      %8334 = vperm.xlu0 %8333, %v8187
      %v8335 = vpop.permute.xlu0 %8334
      %8336 = vset.pattern.permute.xlu0 0
      %8337 = vperm.xlu0 %8336, %v8188
      %v8338 = vpop.permute.xlu0 %8337
      %8339 = vset.pattern.permute.xlu0 0
      %8340 = vperm.xlu0 %8339, %v8189
      %v8341 = vpop.permute.xlu0 %8340
      %8342 = vset.pattern.permute.xlu0 0
      %8343 = vperm.xlu0 %8342, %v8190
      %v8344 = vpop.permute.xlu0 %8343
      %8345 = vset.pattern.permute.xlu0 0
      %8346 = vperm.xlu0 %8345, %v8191
      %v8347 = vpop.permute.xlu0 %8346
      %8348 = vset.pattern.permute.xlu0 0
      %8349 = vperm.xlu0 %8348, %v8192
      %v8350 = vpop.permute.xlu0 %8349
      %8351 = vset.pattern.permute.xlu0 0
      %8352 = vperm.xlu0 %8351, %v8193
      %v8353 = vpop.permute.xlu0 %8352
      %8354 = vset.pattern.permute.xlu0 0
      %8355 = vperm.xlu0 %8354, %v8194
      %v8356 = vpop.permute.xlu0 %8355
      %8357 = vset.pattern.permute.xlu0 0
      %8358 = vperm.xlu0 %8357, %v8195
      %v8359 = vpop.permute.xlu0 %8358
      %8360 = vset.pattern.permute.xlu0 0
      %8361 = vperm.xlu0 %8360, %v8196
      %v8362 = vpop.permute.xlu0 %8361
      %8363 = vset.pattern.permute.xlu0 0
      %8364 = vperm.xlu0 %8363, %v8197
      %v8365 = vpop.permute.xlu0 %8364
      %8366 = vset.pattern.permute.xlu0 0
      %8367 = vperm.xlu0 %8366, %v8198
      %v8368 = vpop.permute.xlu0 %8367
      %8369 = vset.pattern.permute.xlu0 0
      %8370 = vperm.xlu0 %8369, %v8199
      %v8371 = vpop.permute.xlu0 %8370
      %8372 = vset.pattern.permute.xlu0 0
      %8373 = vperm.xlu0 %8372, %v8200
      %v8374 = vpop.permute.xlu0 %8373
      %8375 = vset.pattern.permute.xlu0 0
      %8376 = vperm.xlu0 %8375, %v8201
      %v8377 = vpop.permute.xlu0 %8376
      %8378 = vset.pattern.permute.xlu0 0
      %8379 = vperm.xlu0 %8378, %v8202
      %v8380 = vpop.permute.xlu0 %8379
      %8381 = vset.pattern.permute.xlu0 0
      %8382 = vperm.xlu0 %8381, %v8203
      %v8383 = vpop.permute.xlu0 %8382
      %8384 = vset.pattern.permute.xlu0 0
      %8385 = vperm.xlu0 %8384, %v8204
      %v8386 = vpop.permute.xlu0 %8385
      %8387 = vset.pattern.permute.xlu0 0
      %8388 = vperm.xlu0 %8387, %v8205
      %v8389 = vpop.permute.xlu0 %8388
      %8390 = vset.pattern.permute.xlu0 0
      %8391 = vperm.xlu0 %8390, %v8206
      %v8392 = vpop.permute.xlu0 %8391
      %8393 = vset.pattern.permute.xlu0 0
      %8394 = vperm.xlu0 %8393, %v8207
      %v8395 = vpop.permute.xlu0 %8394
      %8396 = vset.pattern.permute.xlu0 0
      %8397 = vperm.xlu0 %8396, %v8208
      %v8398 = vpop.permute.xlu0 %8397
      %8399 = vset.pattern.permute.xlu0 0
      %8400 = vperm.xlu0 %8399, %v8209
      %v8401 = vpop.permute.xlu0 %8400
      %vm8402 = vcmp.eq.s32.totalorder %v8212, 1
      %vm8403 = vcmp.eq.s32.totalorder %v8215, 1
      %vm8404 = vcmp.eq.s32.totalorder %v8218, 1
      %vm8405 = vcmp.eq.s32.totalorder %v8221, 1
      %vm8406 = vcmp.eq.s32.totalorder %v8224, 1
      %vm8407 = vcmp.eq.s32.totalorder %v8227, 1
      %vm8408 = vcmp.eq.s32.totalorder %v8230, 1
      %vm8409 = vcmp.eq.s32.totalorder %v8233, 1
      %vm8410 = vcmp.eq.s32.totalorder %v8236, 1
      %vm8411 = vcmp.eq.s32.totalorder %v8239, 1
      %vm8412 = vcmp.eq.s32.totalorder %v8242, 1
      %vm8413 = vcmp.eq.s32.totalorder %v8245, 1
      %vm8414 = vcmp.eq.s32.totalorder %v8248, 1
      %vm8415 = vcmp.eq.s32.totalorder %v8251, 1
      %vm8416 = vcmp.eq.s32.totalorder %v8254, 1
      %vm8417 = vcmp.eq.s32.totalorder %v8257, 1
      %vm8418 = vcmp.eq.s32.totalorder %v8260, 1
      %vm8419 = vcmp.eq.s32.totalorder %v8263, 1
      %vm8420 = vcmp.eq.s32.totalorder %v8266, 1
      %vm8421 = vcmp.eq.s32.totalorder %v8269, 1
      %vm8422 = vcmp.eq.s32.totalorder %v8272, 1
      %vm8423 = vcmp.eq.s32.totalorder %v8275, 1
      %vm8424 = vcmp.eq.s32.totalorder %v8278, 1
      %vm8425 = vcmp.eq.s32.totalorder %v8281, 1
      %vm8426 = vcmp.eq.s32.totalorder %v8284, 1
      %vm8427 = vcmp.eq.s32.totalorder %v8287, 1
      %vm8428 = vcmp.eq.s32.totalorder %v8290, 1
      %vm8429 = vcmp.eq.s32.totalorder %v8293, 1
      %vm8430 = vcmp.eq.s32.totalorder %v8296, 1
      %vm8431 = vcmp.eq.s32.totalorder %v8299, 1
      %vm8432 = vcmp.eq.s32.totalorder %v8302, 1
      %vm8433 = vcmp.eq.s32.totalorder %v8305, 1
      %vm8434 = vcmp.eq.s32.totalorder %v8308, 1
      %vm8435 = vcmp.eq.s32.totalorder %v8311, 1
      %vm8436 = vcmp.eq.s32.totalorder %v8314, 1
      %vm8437 = vcmp.eq.s32.totalorder %v8317, 1
      %vm8438 = vcmp.eq.s32.totalorder %v8320, 1
      %vm8439 = vcmp.eq.s32.totalorder %v8323, 1
      %vm8440 = vcmp.eq.s32.totalorder %v8326, 1
      %vm8441 = vcmp.eq.s32.totalorder %v8329, 1
      %vm8442 = vcmp.eq.s32.totalorder %v8332, 1
      %vm8443 = vcmp.eq.s32.totalorder %v8335, 1
      %vm8444 = vcmp.eq.s32.totalorder %v8338, 1
      %vm8445 = vcmp.eq.s32.totalorder %v8341, 1
      %vm8446 = vcmp.eq.s32.totalorder %v8344, 1
      %vm8447 = vcmp.eq.s32.totalorder %v8347, 1
      %vm8448 = vcmp.eq.s32.totalorder %v8350, 1
      %vm8449 = vcmp.eq.s32.totalorder %v8353, 1
      %vm8450 = vcmp.eq.s32.totalorder %v8356, 1
      %vm8451 = vcmp.eq.s32.totalorder %v8359, 1
      %vm8452 = vcmp.eq.s32.totalorder %v8362, 1
      %vm8453 = vcmp.eq.s32.totalorder %v8365, 1
      %vm8454 = vcmp.eq.s32.totalorder %v8368, 1
      %vm8455 = vcmp.eq.s32.totalorder %v8371, 1
      %vm8456 = vcmp.eq.s32.totalorder %v8374, 1
      %vm8457 = vcmp.eq.s32.totalorder %v8377, 1
      %vm8458 = vcmp.eq.s32.totalorder %v8380, 1
      %vm8459 = vcmp.eq.s32.totalorder %v8383, 1
      %vm8460 = vcmp.eq.s32.totalorder %v8386, 1
      %vm8461 = vcmp.eq.s32.totalorder %v8389, 1
      %vm8462 = vcmp.eq.s32.totalorder %v8392, 1
      %vm8463 = vcmp.eq.s32.totalorder %v8395, 1
      %vm8464 = vcmp.eq.s32.totalorder %v8398, 1
      %vm8465 = vcmp.eq.s32.totalorder %v8401, 1
      %v8466 = vsel %vm8402, %v460, -inf
      %v8467 = vsel %vm8403, %v463, -inf
      %v8468 = vsel %vm8404, %v468, -inf
      %v8469 = vsel %vm8405, %v471, -inf
      %v8470 = vsel %vm8406, %v476, -inf
      %v8471 = vsel %vm8407, %v479, -inf
      %v8472 = vsel %vm8408, %v484, -inf
      %v8473 = vsel %vm8409, %v487, -inf
      %v8474 = vsel %vm8410, %v492, -inf
      %v8475 = vsel %vm8411, %v495, -inf
      %v8476 = vsel %vm8412, %v500, -inf
      %v8477 = vsel %vm8413, %v503, -inf
      %v8478 = vsel %vm8414, %v508, -inf
      %v8479 = vsel %vm8415, %v511, -inf
      %v8480 = vsel %vm8416, %v516, -inf
      %v8481 = vsel %vm8417, %v519, -inf
      %v8482 = vsel %vm8418, %v524, -inf
      %v8483 = vsel %vm8419, %v527, -inf
      %v8484 = vsel %vm8420, %v532, -inf
      %v8485 = vsel %vm8421, %v535, -inf
      %v8486 = vsel %vm8422, %v540, -inf
      %v8487 = vsel %vm8423, %v543, -inf
      %v8488 = vsel %vm8424, %v548, -inf
      %v8489 = vsel %vm8425, %v551, -inf
      %v8490 = vsel %vm8426, %v556, -inf
      %v8491 = vsel %vm8427, %v559, -inf
      %v8492 = vsel %vm8428, %v564, -inf
      %v8493 = vsel %vm8429, %v567, -inf
      %v8494 = vsel %vm8430, %v572, -inf
      %v8495 = vsel %vm8431, %v575, -inf
      %v8496 = vsel %vm8432, %v580, -inf
      %v8497 = vsel %vm8433, %v583, -inf
      %v8498 = vsel %vm8434, %v588, -inf
      %v8499 = vsel %vm8435, %v591, -inf
      %v8500 = vsel %vm8436, %v596, -inf
      %v8501 = vsel %vm8437, %v599, -inf
      %v8502 = vsel %vm8438, %v604, -inf
      %v8503 = vsel %vm8439, %v607, -inf
      %v8504 = vsel %vm8440, %v612, -inf
      %v8505 = vsel %vm8441, %v615, -inf
      %v8506 = vsel %vm8442, %v620, -inf
      %v8507 = vsel %vm8443, %v623, -inf
      %v8508 = vsel %vm8444, %v628, -inf
      %v8509 = vsel %vm8445, %v631, -inf
      %v8510 = vsel %vm8446, %v636, -inf
      %v8511 = vsel %vm8447, %v639, -inf
      %v8512 = vsel %vm8448, %v644, -inf
      %v8513 = vsel %vm8449, %v647, -inf
      %v8514 = vsel %vm8450, %v652, -inf
      %v8515 = vsel %vm8451, %v655, -inf
      %v8516 = vsel %vm8452, %v660, -inf
      %v8517 = vsel %vm8453, %v663, -inf
      %v8518 = vsel %vm8454, %v668, -inf
      %v8519 = vsel %vm8455, %v671, -inf
      %v8520 = vsel %vm8456, %v676, -inf
      %v8521 = vsel %vm8457, %v679, -inf
      %v8522 = vsel %vm8458, %v684, -inf
      %v8523 = vsel %vm8459, %v687, -inf
      %v8524 = vsel %vm8460, %v692, -inf
      %v8525 = vsel %vm8461, %v695, -inf
      %v8526 = vsel %vm8462, %v700, -inf
      %v8527 = vsel %vm8463, %v703, -inf
      %v8528 = vsel %vm8464, %v708, -inf
      %v8529 = vsel %vm8465, %v711, -inf
      %v8530 = vmax.f32 %v8466, %v8470
      %v8531 = vmax.f32 %v8467, %v8471
      %v8532 = vmax.f32 %v8468, %v8472
      %v8533 = vmax.f32 %v8469, %v8473
      %v8534 = vmax.f32 %v8530, %v8474
      %v8535 = vmax.f32 %v8531, %v8475
      %v8536 = vmax.f32 %v8532, %v8476
      %v8537 = vmax.f32 %v8533, %v8477
      %v8538 = vmax.f32 %v8534, %v8478
      %v8539 = vmax.f32 %v8535, %v8479
      %v8540 = vmax.f32 %v8536, %v8480
      %v8541 = vmax.f32 %v8537, %v8481
      %v8542 = vmax.f32 %v8538, %v8482
      %v8543 = vmax.f32 %v8539, %v8483
      %v8544 = vmax.f32 %v8540, %v8484
      %v8545 = vmax.f32 %v8541, %v8485
      %v8546 = vmax.f32 %v8542, %v8486
      %v8547 = vmax.f32 %v8543, %v8487
      %v8548 = vmax.f32 %v8544, %v8488
      %v8549 = vmax.f32 %v8545, %v8489
      %v8550 = vmax.f32 %v8546, %v8490
      %v8551 = vmax.f32 %v8547, %v8491
      %v8552 = vmax.f32 %v8548, %v8492
      %v8553 = vmax.f32 %v8549, %v8493
      %v8554 = vmax.f32 %v8550, %v8494
      %v8555 = vmax.f32 %v8551, %v8495
      %v8556 = vmax.f32 %v8552, %v8496
      %v8557 = vmax.f32 %v8553, %v8497
      %v8558 = vmax.f32 %v8554, %v8498
      %v8559 = vmax.f32 %v8555, %v8499
      %v8560 = vmax.f32 %v8556, %v8500
      %v8561 = vmax.f32 %v8557, %v8501
      %v8562 = vmax.f32 %v8558, %v8502
      %v8563 = vmax.f32 %v8559, %v8503
      %v8564 = vmax.f32 %v8560, %v8504
      %v8565 = vmax.f32 %v8561, %v8505
      %v8566 = vmax.f32 %v8562, %v8506
      %v8567 = vmax.f32 %v8563, %v8507
      %v8568 = vmax.f32 %v8564, %v8508
      %v8569 = vmax.f32 %v8565, %v8509
      %v8570 = vmax.f32 %v8566, %v8510
      %v8571 = vmax.f32 %v8567, %v8511
      %v8572 = vmax.f32 %v8568, %v8512
      %v8573 = vmax.f32 %v8569, %v8513
      %v8574 = vmax.f32 %v8570, %v8514
      %v8575 = vmax.f32 %v8571, %v8515
      %v8576 = vmax.f32 %v8572, %v8516
      %v8577 = vmax.f32 %v8573, %v8517
      %v8578 = vmax.f32 %v8574, %v8518
      %v8579 = vmax.f32 %v8575, %v8519
      %v8580 = vmax.f32 %v8576, %v8520
      %v8581 = vmax.f32 %v8577, %v8521
      %v8582 = vmax.f32 %v8578, %v8522
      %v8583 = vmax.f32 %v8579, %v8523
      %v8584 = vmax.f32 %v8580, %v8524
      %v8585 = vmax.f32 %v8581, %v8525
      %v8586 = vmax.f32 %v8582, %v8526
      %v8587 = vmax.f32 %v8583, %v8527
      %v8588 = vmax.f32 %v8584, %v8528
      %v8589 = vmax.f32 %v8585, %v8529
      %v8590 = vmax.f32 %v8586, %v8587
      %v8591 = vmax.f32 %v8588, %v8589
      %v8592 = vmax.f32 %v8590, %v8591
      %v8593 = vrot.slane %v8592, 4
      %v8594 = vmax.f32 %v8592, %v8593
      %v8595 = vrot.slane %v8594, 2
      %v8596 = vmax.f32 %v8594, %v8595
      %v8597 = vrot.slane %v8596, 1
      %v8598 = vmax.f32 %v8596, %v8597
      %vm8599 = vcmp.eq.s32.totalorder %v780, 15
      %vm8600 = vcmp.eq.s32.totalorder %v781, 15
      %vm8601 = vcmp.eq.s32.totalorder %v782, 15
      %vm8602 = vcmp.eq.s32.totalorder %v783, 15
      %vm8603 = vcmp.eq.s32.totalorder %v784, 15
      %vm8604 = vcmp.eq.s32.totalorder %v785, 15
      %vm8605 = vcmp.eq.s32.totalorder %v786, 15
      %vm8606 = vcmp.eq.s32.totalorder %v787, 15
      %vm8607 = vcmp.eq.s32.totalorder %v788, 15
      %vm8608 = vcmp.eq.s32.totalorder %v789, 15
      %vm8609 = vcmp.eq.s32.totalorder %v790, 15
      %vm8610 = vcmp.eq.s32.totalorder %v791, 15
      %vm8611 = vcmp.eq.s32.totalorder %v792, 15
      %vm8612 = vcmp.eq.s32.totalorder %v793, 15
      %vm8613 = vcmp.eq.s32.totalorder %v794, 15
      %vm8614 = vcmp.eq.s32.totalorder %v795, 15
      %vm8615 = vcmp.eq.s32.totalorder %v796, 15
      %vm8616 = vcmp.eq.s32.totalorder %v797, 15
      %vm8617 = vcmp.eq.s32.totalorder %v798, 15
      %vm8618 = vcmp.eq.s32.totalorder %v799, 15
      %vm8619 = vcmp.eq.s32.totalorder %v800, 15
      %vm8620 = vcmp.eq.s32.totalorder %v801, 15
      %vm8621 = vcmp.eq.s32.totalorder %v802, 15
      %vm8622 = vcmp.eq.s32.totalorder %v803, 15
      %vm8623 = vcmp.eq.s32.totalorder %v804, 15
      %vm8624 = vcmp.eq.s32.totalorder %v805, 15
      %vm8625 = vcmp.eq.s32.totalorder %v806, 15
      %vm8626 = vcmp.eq.s32.totalorder %v807, 15
      %vm8627 = vcmp.eq.s32.totalorder %v808, 15
      %vm8628 = vcmp.eq.s32.totalorder %v809, 15
      %vm8629 = vcmp.eq.s32.totalorder %v810, 15
      %vm8630 = vcmp.eq.s32.totalorder %v811, 15
      %vm8631 = vcmp.eq.s32.totalorder %v812, 15
      %vm8632 = vcmp.eq.s32.totalorder %v813, 15
      %vm8633 = vcmp.eq.s32.totalorder %v814, 15
      %vm8634 = vcmp.eq.s32.totalorder %v815, 15
      %vm8635 = vcmp.eq.s32.totalorder %v816, 15
      %vm8636 = vcmp.eq.s32.totalorder %v817, 15
      %vm8637 = vcmp.eq.s32.totalorder %v818, 15
      %vm8638 = vcmp.eq.s32.totalorder %v819, 15
      %vm8639 = vcmp.eq.s32.totalorder %v820, 15
      %vm8640 = vcmp.eq.s32.totalorder %v821, 15
      %vm8641 = vcmp.eq.s32.totalorder %v822, 15
      %vm8642 = vcmp.eq.s32.totalorder %v823, 15
      %vm8643 = vcmp.eq.s32.totalorder %v824, 15
      %vm8644 = vcmp.eq.s32.totalorder %v825, 15
      %vm8645 = vcmp.eq.s32.totalorder %v826, 15
      %vm8646 = vcmp.eq.s32.totalorder %v827, 15
      %vm8647 = vcmp.eq.s32.totalorder %v828, 15
      %vm8648 = vcmp.eq.s32.totalorder %v829, 15
      %vm8649 = vcmp.eq.s32.totalorder %v830, 15
      %vm8650 = vcmp.eq.s32.totalorder %v831, 15
      %vm8651 = vcmp.eq.s32.totalorder %v832, 15
      %vm8652 = vcmp.eq.s32.totalorder %v833, 15
      %vm8653 = vcmp.eq.s32.totalorder %v834, 15
      %vm8654 = vcmp.eq.s32.totalorder %v835, 15
      %vm8655 = vcmp.eq.s32.totalorder %v836, 15
      %vm8656 = vcmp.eq.s32.totalorder %v837, 15
      %vm8657 = vcmp.eq.s32.totalorder %v838, 15
      %vm8658 = vcmp.eq.s32.totalorder %v839, 15
      %vm8659 = vcmp.eq.s32.totalorder %v840, 15
      %vm8660 = vcmp.eq.s32.totalorder %v841, 15
      %vm8661 = vcmp.eq.s32.totalorder %v842, 15
      %vm8662 = vcmp.eq.s32.totalorder %v843, 15
      %v8663 = vsel %vm8599, 1, 0
      %v8664 = vsel %vm8600, 1, 0
      %v8665 = vsel %vm8601, 1, 0
      %v8666 = vsel %vm8602, 1, 0
      %v8667 = vsel %vm8603, 1, 0
      %v8668 = vsel %vm8604, 1, 0
      %v8669 = vsel %vm8605, 1, 0
      %v8670 = vsel %vm8606, 1, 0
      %v8671 = vsel %vm8607, 1, 0
      %v8672 = vsel %vm8608, 1, 0
      %v8673 = vsel %vm8609, 1, 0
      %v8674 = vsel %vm8610, 1, 0
      %v8675 = vsel %vm8611, 1, 0
      %v8676 = vsel %vm8612, 1, 0
      %v8677 = vsel %vm8613, 1, 0
      %v8678 = vsel %vm8614, 1, 0
      %v8679 = vsel %vm8615, 1, 0
      %v8680 = vsel %vm8616, 1, 0
      %v8681 = vsel %vm8617, 1, 0
      %v8682 = vsel %vm8618, 1, 0
      %v8683 = vsel %vm8619, 1, 0
      %v8684 = vsel %vm8620, 1, 0
      %v8685 = vsel %vm8621, 1, 0
      %v8686 = vsel %vm8622, 1, 0
      %v8687 = vsel %vm8623, 1, 0
      %v8688 = vsel %vm8624, 1, 0
      %v8689 = vsel %vm8625, 1, 0
      %v8690 = vsel %vm8626, 1, 0
      %v8691 = vsel %vm8627, 1, 0
      %v8692 = vsel %vm8628, 1, 0
      %v8693 = vsel %vm8629, 1, 0
      %v8694 = vsel %vm8630, 1, 0
      %v8695 = vsel %vm8631, 1, 0
      %v8696 = vsel %vm8632, 1, 0
      %v8697 = vsel %vm8633, 1, 0
      %v8698 = vsel %vm8634, 1, 0
      %v8699 = vsel %vm8635, 1, 0
      %v8700 = vsel %vm8636, 1, 0
      %v8701 = vsel %vm8637, 1, 0
      %v8702 = vsel %vm8638, 1, 0
      %v8703 = vsel %vm8639, 1, 0
      %v8704 = vsel %vm8640, 1, 0
      %v8705 = vsel %vm8641, 1, 0
      %v8706 = vsel %vm8642, 1, 0
      %v8707 = vsel %vm8643, 1, 0
      %v8708 = vsel %vm8644, 1, 0
      %v8709 = vsel %vm8645, 1, 0
      %v8710 = vsel %vm8646, 1, 0
      %v8711 = vsel %vm8647, 1, 0
      %v8712 = vsel %vm8648, 1, 0
      %v8713 = vsel %vm8649, 1, 0
      %v8714 = vsel %vm8650, 1, 0
      %v8715 = vsel %vm8651, 1, 0
      %v8716 = vsel %vm8652, 1, 0
      %v8717 = vsel %vm8653, 1, 0
      %v8718 = vsel %vm8654, 1, 0
      %v8719 = vsel %vm8655, 1, 0
      %v8720 = vsel %vm8656, 1, 0
      %v8721 = vsel %vm8657, 1, 0
      %v8722 = vsel %vm8658, 1, 0
      %v8723 = vsel %vm8659, 1, 0
      %v8724 = vsel %vm8660, 1, 0
      %v8725 = vsel %vm8661, 1, 0
      %v8726 = vsel %vm8662, 1, 0
      %8727 = vset.pattern.permute.xlu0 0
      %8728 = vperm.xlu0 %8727, %v8663
      %v8729 = vpop.permute.xlu0 %8728
      %8730 = vset.pattern.permute.xlu0 0
      %8731 = vperm.xlu0 %8730, %v8664
      %v8732 = vpop.permute.xlu0 %8731
      %8733 = vset.pattern.permute.xlu0 0
      %8734 = vperm.xlu0 %8733, %v8665
      %v8735 = vpop.permute.xlu0 %8734
      %8736 = vset.pattern.permute.xlu0 0
      %8737 = vperm.xlu0 %8736, %v8666
      %v8738 = vpop.permute.xlu0 %8737
      %8739 = vset.pattern.permute.xlu0 0
      %8740 = vperm.xlu0 %8739, %v8667
      %v8741 = vpop.permute.xlu0 %8740
      %8742 = vset.pattern.permute.xlu0 0
      %8743 = vperm.xlu0 %8742, %v8668
      %v8744 = vpop.permute.xlu0 %8743
      %8745 = vset.pattern.permute.xlu0 0
      %8746 = vperm.xlu0 %8745, %v8669
      %v8747 = vpop.permute.xlu0 %8746
      %8748 = vset.pattern.permute.xlu0 0
      %8749 = vperm.xlu0 %8748, %v8670
      %v8750 = vpop.permute.xlu0 %8749
      %8751 = vset.pattern.permute.xlu0 0
      %8752 = vperm.xlu0 %8751, %v8671
      %v8753 = vpop.permute.xlu0 %8752
      %8754 = vset.pattern.permute.xlu0 0
      %8755 = vperm.xlu0 %8754, %v8672
      %v8756 = vpop.permute.xlu0 %8755
      %8757 = vset.pattern.permute.xlu0 0
      %8758 = vperm.xlu0 %8757, %v8673
      %v8759 = vpop.permute.xlu0 %8758
      %8760 = vset.pattern.permute.xlu0 0
      %8761 = vperm.xlu0 %8760, %v8674
      %v8762 = vpop.permute.xlu0 %8761
      %8763 = vset.pattern.permute.xlu0 0
      %8764 = vperm.xlu0 %8763, %v8675
      %v8765 = vpop.permute.xlu0 %8764
      %8766 = vset.pattern.permute.xlu0 0
      %8767 = vperm.xlu0 %8766, %v8676
      %v8768 = vpop.permute.xlu0 %8767
      %8769 = vset.pattern.permute.xlu0 0
      %8770 = vperm.xlu0 %8769, %v8677
      %v8771 = vpop.permute.xlu0 %8770
      %8772 = vset.pattern.permute.xlu0 0
      %8773 = vperm.xlu0 %8772, %v8678
      %v8774 = vpop.permute.xlu0 %8773
      %8775 = vset.pattern.permute.xlu0 0
      %8776 = vperm.xlu0 %8775, %v8679
      %v8777 = vpop.permute.xlu0 %8776
      %8778 = vset.pattern.permute.xlu0 0
      %8779 = vperm.xlu0 %8778, %v8680
      %v8780 = vpop.permute.xlu0 %8779
      %8781 = vset.pattern.permute.xlu0 0
      %8782 = vperm.xlu0 %8781, %v8681
      %v8783 = vpop.permute.xlu0 %8782
      %8784 = vset.pattern.permute.xlu0 0
      %8785 = vperm.xlu0 %8784, %v8682
      %v8786 = vpop.permute.xlu0 %8785
      %8787 = vset.pattern.permute.xlu0 0
      %8788 = vperm.xlu0 %8787, %v8683
      %v8789 = vpop.permute.xlu0 %8788
      %8790 = vset.pattern.permute.xlu0 0
      %8791 = vperm.xlu0 %8790, %v8684
      %v8792 = vpop.permute.xlu0 %8791
      %8793 = vset.pattern.permute.xlu0 0
      %8794 = vperm.xlu0 %8793, %v8685
      %v8795 = vpop.permute.xlu0 %8794
      %8796 = vset.pattern.permute.xlu0 0
      %8797 = vperm.xlu0 %8796, %v8686
      %v8798 = vpop.permute.xlu0 %8797
      %8799 = vset.pattern.permute.xlu0 0
      %8800 = vperm.xlu0 %8799, %v8687
      %v8801 = vpop.permute.xlu0 %8800
      %8802 = vset.pattern.permute.xlu0 0
      %8803 = vperm.xlu0 %8802, %v8688
      %v8804 = vpop.permute.xlu0 %8803
      %8805 = vset.pattern.permute.xlu0 0
      %8806 = vperm.xlu0 %8805, %v8689
      %v8807 = vpop.permute.xlu0 %8806
      %8808 = vset.pattern.permute.xlu0 0
      %8809 = vperm.xlu0 %8808, %v8690
      %v8810 = vpop.permute.xlu0 %8809
      %8811 = vset.pattern.permute.xlu0 0
      %8812 = vperm.xlu0 %8811, %v8691
      %v8813 = vpop.permute.xlu0 %8812
      %8814 = vset.pattern.permute.xlu0 0
      %8815 = vperm.xlu0 %8814, %v8692
      %v8816 = vpop.permute.xlu0 %8815
      %8817 = vset.pattern.permute.xlu0 0
      %8818 = vperm.xlu0 %8817, %v8693
      %v8819 = vpop.permute.xlu0 %8818
      %8820 = vset.pattern.permute.xlu0 0
      %8821 = vperm.xlu0 %8820, %v8694
      %v8822 = vpop.permute.xlu0 %8821
      %8823 = vset.pattern.permute.xlu0 0
      %8824 = vperm.xlu0 %8823, %v8695
      %v8825 = vpop.permute.xlu0 %8824
      %8826 = vset.pattern.permute.xlu0 0
      %8827 = vperm.xlu0 %8826, %v8696
      %v8828 = vpop.permute.xlu0 %8827
      %8829 = vset.pattern.permute.xlu0 0
      %8830 = vperm.xlu0 %8829, %v8697
      %v8831 = vpop.permute.xlu0 %8830
      %8832 = vset.pattern.permute.xlu0 0
      %8833 = vperm.xlu0 %8832, %v8698
      %v8834 = vpop.permute.xlu0 %8833
      %8835 = vset.pattern.permute.xlu0 0
      %8836 = vperm.xlu0 %8835, %v8699
      %v8837 = vpop.permute.xlu0 %8836
      %8838 = vset.pattern.permute.xlu0 0
      %8839 = vperm.xlu0 %8838, %v8700
      %v8840 = vpop.permute.xlu0 %8839
      %8841 = vset.pattern.permute.xlu0 0
      %8842 = vperm.xlu0 %8841, %v8701
      %v8843 = vpop.permute.xlu0 %8842
      %8844 = vset.pattern.permute.xlu0 0
      %8845 = vperm.xlu0 %8844, %v8702
      %v8846 = vpop.permute.xlu0 %8845
      %8847 = vset.pattern.permute.xlu0 0
      %8848 = vperm.xlu0 %8847, %v8703
      %v8849 = vpop.permute.xlu0 %8848
      %8850 = vset.pattern.permute.xlu0 0
      %8851 = vperm.xlu0 %8850, %v8704
      %v8852 = vpop.permute.xlu0 %8851
      %8853 = vset.pattern.permute.xlu0 0
      %8854 = vperm.xlu0 %8853, %v8705
      %v8855 = vpop.permute.xlu0 %8854
      %8856 = vset.pattern.permute.xlu0 0
      %8857 = vperm.xlu0 %8856, %v8706
      %v8858 = vpop.permute.xlu0 %8857
      %8859 = vset.pattern.permute.xlu0 0
      %8860 = vperm.xlu0 %8859, %v8707
      %v8861 = vpop.permute.xlu0 %8860
      %8862 = vset.pattern.permute.xlu0 0
      %8863 = vperm.xlu0 %8862, %v8708
      %v8864 = vpop.permute.xlu0 %8863
      %8865 = vset.pattern.permute.xlu0 0
      %8866 = vperm.xlu0 %8865, %v8709
      %v8867 = vpop.permute.xlu0 %8866
      %8868 = vset.pattern.permute.xlu0 0
      %8869 = vperm.xlu0 %8868, %v8710
      %v8870 = vpop.permute.xlu0 %8869
      %8871 = vset.pattern.permute.xlu0 0
      %8872 = vperm.xlu0 %8871, %v8711
      %v8873 = vpop.permute.xlu0 %8872
      %8874 = vset.pattern.permute.xlu0 0
      %8875 = vperm.xlu0 %8874, %v8712
      %v8876 = vpop.permute.xlu0 %8875
      %8877 = vset.pattern.permute.xlu0 0
      %8878 = vperm.xlu0 %8877, %v8713
      %v8879 = vpop.permute.xlu0 %8878
      %8880 = vset.pattern.permute.xlu0 0
      %8881 = vperm.xlu0 %8880, %v8714
      %v8882 = vpop.permute.xlu0 %8881
      %8883 = vset.pattern.permute.xlu0 0
      %8884 = vperm.xlu0 %8883, %v8715
      %v8885 = vpop.permute.xlu0 %8884
      %8886 = vset.pattern.permute.xlu0 0
      %8887 = vperm.xlu0 %8886, %v8716
      %v8888 = vpop.permute.xlu0 %8887
      %8889 = vset.pattern.permute.xlu0 0
      %8890 = vperm.xlu0 %8889, %v8717
      %v8891 = vpop.permute.xlu0 %8890
      %8892 = vset.pattern.permute.xlu0 0
      %8893 = vperm.xlu0 %8892, %v8718
      %v8894 = vpop.permute.xlu0 %8893
      %8895 = vset.pattern.permute.xlu0 0
      %8896 = vperm.xlu0 %8895, %v8719
      %v8897 = vpop.permute.xlu0 %8896
      %8898 = vset.pattern.permute.xlu0 0
      %8899 = vperm.xlu0 %8898, %v8720
      %v8900 = vpop.permute.xlu0 %8899
      %8901 = vset.pattern.permute.xlu0 0
      %8902 = vperm.xlu0 %8901, %v8721
      %v8903 = vpop.permute.xlu0 %8902
      %8904 = vset.pattern.permute.xlu0 0
      %8905 = vperm.xlu0 %8904, %v8722
      %v8906 = vpop.permute.xlu0 %8905
      %8907 = vset.pattern.permute.xlu0 0
      %8908 = vperm.xlu0 %8907, %v8723
      %v8909 = vpop.permute.xlu0 %8908
      %8910 = vset.pattern.permute.xlu0 0
      %8911 = vperm.xlu0 %8910, %v8724
      %v8912 = vpop.permute.xlu0 %8911
      %8913 = vset.pattern.permute.xlu0 0
      %8914 = vperm.xlu0 %8913, %v8725
      %v8915 = vpop.permute.xlu0 %8914
      %8916 = vset.pattern.permute.xlu0 0
      %8917 = vperm.xlu0 %8916, %v8726
      %v8918 = vpop.permute.xlu0 %8917
      %vm8919 = vcmp.eq.s32.totalorder %v8729, 1
      %vm8920 = vcmp.eq.s32.totalorder %v8732, 1
      %vm8921 = vcmp.eq.s32.totalorder %v8735, 1
      %vm8922 = vcmp.eq.s32.totalorder %v8738, 1
      %vm8923 = vcmp.eq.s32.totalorder %v8741, 1
      %vm8924 = vcmp.eq.s32.totalorder %v8744, 1
      %vm8925 = vcmp.eq.s32.totalorder %v8747, 1
      %vm8926 = vcmp.eq.s32.totalorder %v8750, 1
      %vm8927 = vcmp.eq.s32.totalorder %v8753, 1
      %vm8928 = vcmp.eq.s32.totalorder %v8756, 1
      %vm8929 = vcmp.eq.s32.totalorder %v8759, 1
      %vm8930 = vcmp.eq.s32.totalorder %v8762, 1
      %vm8931 = vcmp.eq.s32.totalorder %v8765, 1
      %vm8932 = vcmp.eq.s32.totalorder %v8768, 1
      %vm8933 = vcmp.eq.s32.totalorder %v8771, 1
      %vm8934 = vcmp.eq.s32.totalorder %v8774, 1
      %vm8935 = vcmp.eq.s32.totalorder %v8777, 1
      %vm8936 = vcmp.eq.s32.totalorder %v8780, 1
      %vm8937 = vcmp.eq.s32.totalorder %v8783, 1
      %vm8938 = vcmp.eq.s32.totalorder %v8786, 1
      %vm8939 = vcmp.eq.s32.totalorder %v8789, 1
      %vm8940 = vcmp.eq.s32.totalorder %v8792, 1
      %vm8941 = vcmp.eq.s32.totalorder %v8795, 1
      %vm8942 = vcmp.eq.s32.totalorder %v8798, 1
      %vm8943 = vcmp.eq.s32.totalorder %v8801, 1
      %vm8944 = vcmp.eq.s32.totalorder %v8804, 1
      %vm8945 = vcmp.eq.s32.totalorder %v8807, 1
      %vm8946 = vcmp.eq.s32.totalorder %v8810, 1
      %vm8947 = vcmp.eq.s32.totalorder %v8813, 1
      %vm8948 = vcmp.eq.s32.totalorder %v8816, 1
      %vm8949 = vcmp.eq.s32.totalorder %v8819, 1
      %vm8950 = vcmp.eq.s32.totalorder %v8822, 1
      %vm8951 = vcmp.eq.s32.totalorder %v8825, 1
      %vm8952 = vcmp.eq.s32.totalorder %v8828, 1
      %vm8953 = vcmp.eq.s32.totalorder %v8831, 1
      %vm8954 = vcmp.eq.s32.totalorder %v8834, 1
      %vm8955 = vcmp.eq.s32.totalorder %v8837, 1
      %vm8956 = vcmp.eq.s32.totalorder %v8840, 1
      %vm8957 = vcmp.eq.s32.totalorder %v8843, 1
      %vm8958 = vcmp.eq.s32.totalorder %v8846, 1
      %vm8959 = vcmp.eq.s32.totalorder %v8849, 1
      %vm8960 = vcmp.eq.s32.totalorder %v8852, 1
      %vm8961 = vcmp.eq.s32.totalorder %v8855, 1
      %vm8962 = vcmp.eq.s32.totalorder %v8858, 1
      %vm8963 = vcmp.eq.s32.totalorder %v8861, 1
      %vm8964 = vcmp.eq.s32.totalorder %v8864, 1
      %vm8965 = vcmp.eq.s32.totalorder %v8867, 1
      %vm8966 = vcmp.eq.s32.totalorder %v8870, 1
      %vm8967 = vcmp.eq.s32.totalorder %v8873, 1
      %vm8968 = vcmp.eq.s32.totalorder %v8876, 1
      %vm8969 = vcmp.eq.s32.totalorder %v8879, 1
      %vm8970 = vcmp.eq.s32.totalorder %v8882, 1
      %vm8971 = vcmp.eq.s32.totalorder %v8885, 1
      %vm8972 = vcmp.eq.s32.totalorder %v8888, 1
      %vm8973 = vcmp.eq.s32.totalorder %v8891, 1
      %vm8974 = vcmp.eq.s32.totalorder %v8894, 1
      %vm8975 = vcmp.eq.s32.totalorder %v8897, 1
      %vm8976 = vcmp.eq.s32.totalorder %v8900, 1
      %vm8977 = vcmp.eq.s32.totalorder %v8903, 1
      %vm8978 = vcmp.eq.s32.totalorder %v8906, 1
      %vm8979 = vcmp.eq.s32.totalorder %v8909, 1
      %vm8980 = vcmp.eq.s32.totalorder %v8912, 1
      %vm8981 = vcmp.eq.s32.totalorder %v8915, 1
      %vm8982 = vcmp.eq.s32.totalorder %v8918, 1
      %v8983 = vsel %vm8919, %v460, -inf
      %v8984 = vsel %vm8920, %v463, -inf
      %v8985 = vsel %vm8921, %v468, -inf
      %v8986 = vsel %vm8922, %v471, -inf
      %v8987 = vsel %vm8923, %v476, -inf
      %v8988 = vsel %vm8924, %v479, -inf
      %v8989 = vsel %vm8925, %v484, -inf
      %v8990 = vsel %vm8926, %v487, -inf
      %v8991 = vsel %vm8927, %v492, -inf
      %v8992 = vsel %vm8928, %v495, -inf
      %v8993 = vsel %vm8929, %v500, -inf
      %v8994 = vsel %vm8930, %v503, -inf
      %v8995 = vsel %vm8931, %v508, -inf
      %v8996 = vsel %vm8932, %v511, -inf
      %v8997 = vsel %vm8933, %v516, -inf
      %v8998 = vsel %vm8934, %v519, -inf
      %v8999 = vsel %vm8935, %v524, -inf
      %v9000 = vsel %vm8936, %v527, -inf
      %v9001 = vsel %vm8937, %v532, -inf
      %v9002 = vsel %vm8938, %v535, -inf
      %v9003 = vsel %vm8939, %v540, -inf
      %v9004 = vsel %vm8940, %v543, -inf
      %v9005 = vsel %vm8941, %v548, -inf
      %v9006 = vsel %vm8942, %v551, -inf
      %v9007 = vsel %vm8943, %v556, -inf
      %v9008 = vsel %vm8944, %v559, -inf
      %v9009 = vsel %vm8945, %v564, -inf
      %v9010 = vsel %vm8946, %v567, -inf
      %v9011 = vsel %vm8947, %v572, -inf
      %v9012 = vsel %vm8948, %v575, -inf
      %v9013 = vsel %vm8949, %v580, -inf
      %v9014 = vsel %vm8950, %v583, -inf
      %v9015 = vsel %vm8951, %v588, -inf
      %v9016 = vsel %vm8952, %v591, -inf
      %v9017 = vsel %vm8953, %v596, -inf
      %v9018 = vsel %vm8954, %v599, -inf
      %v9019 = vsel %vm8955, %v604, -inf
      %v9020 = vsel %vm8956, %v607, -inf
      %v9021 = vsel %vm8957, %v612, -inf
      %v9022 = vsel %vm8958, %v615, -inf
      %v9023 = vsel %vm8959, %v620, -inf
      %v9024 = vsel %vm8960, %v623, -inf
      %v9025 = vsel %vm8961, %v628, -inf
      %v9026 = vsel %vm8962, %v631, -inf
      %v9027 = vsel %vm8963, %v636, -inf
      %v9028 = vsel %vm8964, %v639, -inf
      %v9029 = vsel %vm8965, %v644, -inf
      %v9030 = vsel %vm8966, %v647, -inf
      %v9031 = vsel %vm8967, %v652, -inf
      %v9032 = vsel %vm8968, %v655, -inf
      %v9033 = vsel %vm8969, %v660, -inf
      %v9034 = vsel %vm8970, %v663, -inf
      %v9035 = vsel %vm8971, %v668, -inf
      %v9036 = vsel %vm8972, %v671, -inf
      %v9037 = vsel %vm8973, %v676, -inf
      %v9038 = vsel %vm8974, %v679, -inf
      %v9039 = vsel %vm8975, %v684, -inf
      %v9040 = vsel %vm8976, %v687, -inf
      %v9041 = vsel %vm8977, %v692, -inf
      %v9042 = vsel %vm8978, %v695, -inf
      %v9043 = vsel %vm8979, %v700, -inf
      %v9044 = vsel %vm8980, %v703, -inf
      %v9045 = vsel %vm8981, %v708, -inf
      %v9046 = vsel %vm8982, %v711, -inf
      %v9047 = vmax.f32 %v8983, %v8987
      %v9048 = vmax.f32 %v8984, %v8988
      %v9049 = vmax.f32 %v8985, %v8989
      %v9050 = vmax.f32 %v8986, %v8990
      %v9051 = vmax.f32 %v9047, %v8991
      %v9052 = vmax.f32 %v9048, %v8992
      %v9053 = vmax.f32 %v9049, %v8993
      %v9054 = vmax.f32 %v9050, %v8994
      %v9055 = vmax.f32 %v9051, %v8995
      %v9056 = vmax.f32 %v9052, %v8996
      %v9057 = vmax.f32 %v9053, %v8997
      %v9058 = vmax.f32 %v9054, %v8998
      %v9059 = vmax.f32 %v9055, %v8999
      %v9060 = vmax.f32 %v9056, %v9000
      %v9061 = vmax.f32 %v9057, %v9001
      %v9062 = vmax.f32 %v9058, %v9002
      %v9063 = vmax.f32 %v9059, %v9003
      %v9064 = vmax.f32 %v9060, %v9004
      %v9065 = vmax.f32 %v9061, %v9005
      %v9066 = vmax.f32 %v9062, %v9006
      %v9067 = vmax.f32 %v9063, %v9007
      %v9068 = vmax.f32 %v9064, %v9008
      %v9069 = vmax.f32 %v9065, %v9009
      %v9070 = vmax.f32 %v9066, %v9010
      %v9071 = vmax.f32 %v9067, %v9011
      %v9072 = vmax.f32 %v9068, %v9012
      %v9073 = vmax.f32 %v9069, %v9013
      %v9074 = vmax.f32 %v9070, %v9014
      %v9075 = vmax.f32 %v9071, %v9015
      %v9076 = vmax.f32 %v9072, %v9016
      %v9077 = vmax.f32 %v9073, %v9017
      %v9078 = vmax.f32 %v9074, %v9018
      %v9079 = vmax.f32 %v9075, %v9019
      %v9080 = vmax.f32 %v9076, %v9020
      %v9081 = vmax.f32 %v9077, %v9021
      %v9082 = vmax.f32 %v9078, %v9022
      %v9083 = vmax.f32 %v9079, %v9023
      %v9084 = vmax.f32 %v9080, %v9024
      %v9085 = vmax.f32 %v9081, %v9025
      %v9086 = vmax.f32 %v9082, %v9026
      %v9087 = vmax.f32 %v9083, %v9027
      %v9088 = vmax.f32 %v9084, %v9028
      %v9089 = vmax.f32 %v9085, %v9029
      %v9090 = vmax.f32 %v9086, %v9030
      %v9091 = vmax.f32 %v9087, %v9031
      %v9092 = vmax.f32 %v9088, %v9032
      %v9093 = vmax.f32 %v9089, %v9033
      %v9094 = vmax.f32 %v9090, %v9034
      %v9095 = vmax.f32 %v9091, %v9035
      %v9096 = vmax.f32 %v9092, %v9036
      %v9097 = vmax.f32 %v9093, %v9037
      %v9098 = vmax.f32 %v9094, %v9038
      %v9099 = vmax.f32 %v9095, %v9039
      %v9100 = vmax.f32 %v9096, %v9040
      %v9101 = vmax.f32 %v9097, %v9041
      %v9102 = vmax.f32 %v9098, %v9042
      %v9103 = vmax.f32 %v9099, %v9043
      %v9104 = vmax.f32 %v9100, %v9044
      %v9105 = vmax.f32 %v9101, %v9045
      %v9106 = vmax.f32 %v9102, %v9046
      %v9107 = vmax.f32 %v9103, %v9104
      %v9108 = vmax.f32 %v9105, %v9106
      %v9109 = vmax.f32 %v9107, %v9108
      %v9110 = vrot.slane %v9109, 4
      %v9111 = vmax.f32 %v9109, %v9110
      %v9112 = vrot.slane %v9111, 2
      %v9113 = vmax.f32 %v9111, %v9112
      %v9114 = vrot.slane %v9113, 1
      %v9115 = vmax.f32 %v9113, %v9114
      %vm9116 = vcmask 1040384
      %v9117 = vsel %vm9116, %v1360, %v1877
      %vm9118 = vcmask 1041408
      %v9119 = vsel %vm9118, %v9117, %v2394
      %vm9120 = vcmask 1042432
      %v9121 = vsel %vm9120, %v9119, %v2911
      %vm9122 = vcmask 1043456
      %v9123 = vsel %vm9122, %v9121, %v3428
      %vm9124 = vcmask 1044480
      %v9125 = vsel %vm9124, %v9123, %v3945
      %vm9126 = vcmask 1045504
      %v9127 = vsel %vm9126, %v9125, %v4462
      %vm9128 = vcmask 1046528
      %v9129 = vsel %vm9128, %v9127, %v4979
      %v9130 = vsel %vm9116, %v5496, %v6013
      %v9131 = vsel %vm9118, %v9130, %v6530
      %v9132 = vsel %vm9120, %v9131, %v7047
      %v9133 = vsel %vm9122, %v9132, %v7564
      %v9134 = vsel %vm9124, %v9133, %v8081
      %v9135 = vsel %vm9126, %v9134, %v8598
      %v9136 = vsel %vm9128, %v9135, %v9115
      %v9137 = vld [vmem:[#allocation5] sm:$0xff]
      %v9138 = vld [vmem:[#allocation5 + $0x8] sm:$0xff]
      %v9139 = vmax.f32 %v9137, %v9129
      %v9140 = vmax.f32 %v9138, %v9136
      %9141 = vst [vmem:[#allocation5] sm:$0xff] %v9139
      %9142 = vst [vmem:[#allocation5 + $0x8] sm:$0xff] %v9140
    $region21: #{tpu_custom_call.1} parent=1 // pred_fallthru
      _
    // Predicated region
    $region22: #{tpu_custom_call.1} parent=1 // pred_check
      _
    $region23: #{tpu_custom_call.1} parent=1 // pred_check_branch
      %9144 = sbr.rel (0) target = $region25
    $region24: #{tpu_custom_call.1} parent=1 // pred_region
      %s9146 = ssub.s32 256, 256
      %9147 = vsyncadd [#allocation6], %s9146
      %s9148 = sshll.u32 [#allocation5], 4
      %s9149 = int_to_ptr.vmem [resolvable:$true] %s9148
      %9154 = dma.vmem_to_hbm [thread:$0]  %s9149, 256, %s5, [#allocation6], 128, 128, 8
    $region25: #{tpu_custom_call.1} parent=1 // pred_fallthru
      _
    // Predicated region
    $region26: #{tpu_custom_call.1} parent=1 // pred_check
      _
    $region27: #{tpu_custom_call.1} parent=1 // pred_check_branch
      %9156 = sbr.rel (0) target = $region29
    $region28: #{tpu_custom_call.1} parent=1 // pred_region
      %9157 = dma.done [#allocation6], 256
    $region29: #{tpu_custom_call.1} parent=1 // pred_fallthru
      _
    %9158 = vsyncpa [#allocation6], 1

</llo_original>
